<compile_context>
chip_gen: v7x
topology: tpu7x:2x2x1
jax: 0.10.0
libtpu: 0.0.40
codegen_flags: <defaults>
</compile_context>

<pallas_src>
import jax
import jax.numpy as jnp
from jax.experimental import pallas as pl
from jax.experimental.pallas import tpu as pltpu

NUM_TOKENS = 10
DIM = 128                     # hidden dim
DEPTH = 3                     # number of EGNN layers
M_DIM = 16                    # EGNN default m_dim
EDGE_IN = 2 * DIM + 1         # 257
EDGE_HID = 2 * EDGE_IN        # 514
EDGE_HID_P = 640              # 514 zero-padded to a multiple of 128 lanes
COORS_HID = 4 * M_DIM         # 64
NODE_HID = 2 * DIM            # 256
LN_EPS = 1e-5
OUT_DIM = 9
OUT_DIM_P = 128               # lane-dense output slab; sliced to 9 in wrapper


def _silu(x):
    return x * jax.nn.sigmoid(x)


def _silu_fast(x):
    # For the big (pair_rows, 640) tensor: exp (EUP) + approx vrcp (EUP),
    # avoiding a full-precision divide on the dominant elementwise path.
    return x * pl.reciprocal(1.0 + jnp.exp(-x), approx=True)


def quadrupole_egnn_kernel(
    feats_ref, coors_ref,
    w1ab_ref, w1c_ref, b1_ref, w2_ref, b2_ref,      # edge MLP (padded to 640, bf16 mats)
    g_ref, bt_ref,                                  # LayerNorm gamma / beta
    w3_ref, b3_ref, w4t_ref, b4_ref,                # coors MLP
    w5a_ref, w5b_ref, b5_ref, w6_ref, b6_ref,       # node MLP
    fc1w_ref, fc1b_ref, fc2w_ref, fc2b_ref,         # readout head (fc2 padded to 128)
    out_ref,
):
    BB, N, D = feats_ref.shape
    feats = feats_ref[...].reshape(BB * N, D)       # (BB*N, 128) f32
    coors = coors_ref[...]                          # (BB, N, 3)  f32

    for l in range(DEPTH):
        # ---- relative coords & squared distances (pure VPU broadcasts) ----
        rel = coors[:, :, None, :] - coors[:, None, :, :]        # (BB, N, N, 3)
        rel_dist = jnp.sum(rel * rel, axis=-1, keepdims=True)    # (BB, N, N, 1)

        # ---- edge MLP: fused bf16 (128 -> 2*640) input projection, broadcast-
        #      add feats_i + feats_j on the pair axis, SiLU, bf16 (640 -> 16) ----
        AB = jnp.dot(feats.astype(jnp.bfloat16), w1ab_ref[l],
                     preferred_element_type=jnp.float32)          # (BB*N, 1280) f32
        A = AB[:, :EDGE_HID_P].reshape(BB, N, 1, EDGE_HID_P)      # feats_i rows
        Bj = AB[:, EDGE_HID_P:].reshape(BB, 1, N, EDGE_HID_P)     # feats_j rows
        h1 = A + Bj + rel_dist * w1c_ref[l] + b1_ref[l:l + 1, :]  # (BB, N, N, 640)
        h1 = _silu_fast(h1).reshape(BB * N * N, EDGE_HID_P)
        m_ij = _silu(jnp.dot(h1.astype(jnp.bfloat16), w2_ref[l],
                             preferred_element_type=jnp.float32)
                     + b2_ref[l:l + 1, :])                        # (BB*N*N, 16)

        # ---- coors MLP: Linear(16->64) -> SiLU -> Linear(64->1) as a lane
        #      reduction (kept off the MXU), then sum over j ----
        c1 = _silu(jnp.dot(m_ij, w3_ref[l],
                           preferred_element_type=jnp.float32)
                   + b3_ref[l:l + 1, :])                          # (BB*N*N, 64)
        cw = (jnp.sum(c1 * w4t_ref[l], axis=-1, keepdims=True)
              + b4_ref[l:l + 1, :])                               # (BB*N*N, 1)
        delta = cw.reshape(BB, N, N, 1) * rel                     # (BB, N, N, 3)
        coors = coors + jnp.sum(delta, axis=2)                    # (BB, N, 3)

        # ---- node update: pool messages over j, LayerNorm, node MLP + residual ----
        m_i = jnp.sum(m_ij.reshape(BB, N, N, M_DIM), axis=2)
        m_i = m_i.reshape(BB * N, M_DIM)                          # (BB*N, 16)
        mu = jnp.mean(feats, axis=-1, keepdims=True)
        var = jnp.mean((feats - mu) ** 2, axis=-1, keepdims=True)
        normed = ((feats - mu) * jax.lax.rsqrt(var + LN_EPS)
                  * g_ref[l:l + 1, :] + bt_ref[l:l + 1, :])       # (BB*N, 128)
        h = _silu(jnp.dot(normed, w5a_ref[l],
                          preferred_element_type=jnp.float32)
                  + jnp.dot(m_i, w5b_ref[l],
                            preferred_element_type=jnp.float32)
                  + b5_ref[l:l + 1, :])                           # (BB*N, 256)
        feats = (jnp.dot(h, w6_ref[l], preferred_element_type=jnp.float32)
                 + b6_ref[l:l + 1, :] + feats)                    # (BB*N, 128)

    # ---- readout head, batched over the BB graphs in this block ----
    graph = jnp.mean(feats.reshape(BB, N, D), axis=1)             # (BB, 128)
    hid = _silu(jnp.dot(graph, fc1w_ref[...],
                        preferred_element_type=jnp.float32) + fc1b_ref[...])
    out = (jnp.dot(hid, fc2w_ref[...],
                   preferred_element_type=jnp.float32) + fc2b_ref[...])  # (BB, 128)
    out_ref[...] = out.reshape(BB, 1, OUT_DIM_P)                  # lane-dense store


def make_params(key):
    def normal(k, shape, std):
        return jax.random.normal(k, shape, dtype=jnp.float32) * std

    ks = iter(jax.random.split(key, 32))
    p = {}
    p["token_emb"] = normal(next(ks), (NUM_TOKENS, DIM), 1.0)            # nn.Embedding
    # EGNN layer weights, stored as (in_features, out_features); synthetic init.
    p["w1"] = normal(next(ks), (DEPTH, EDGE_IN, EDGE_HID), 0.02)
    p["b1"] = normal(next(ks), (DEPTH, EDGE_HID), 0.02)
    p["w2"] = normal(next(ks), (DEPTH, EDGE_HID, M_DIM), 0.02)
    p["b2"] = normal(next(ks), (DEPTH, M_DIM), 0.02)
    p["ln_g"] = jnp.ones((DEPTH, DIM), jnp.float32)
    p["ln_b"] = jnp.zeros((DEPTH, DIM), jnp.float32)
    p["w3"] = normal(next(ks), (DEPTH, M_DIM, COORS_HID), 0.02)
    p["b3"] = normal(next(ks), (DEPTH, COORS_HID), 0.02)
    p["w4"] = normal(next(ks), (DEPTH, COORS_HID, 1), 0.02)
    p["b4"] = normal(next(ks), (DEPTH, 1), 0.02)
    p["w5"] = normal(next(ks), (DEPTH, DIM + M_DIM, NODE_HID), 0.02)
    p["b5"] = normal(next(ks), (DEPTH, NODE_HID), 0.02)
    p["w6"] = normal(next(ks), (DEPTH, NODE_HID, DIM), 0.02)
    p["b6"] = normal(next(ks), (DEPTH, DIM), 0.02)
    p["fc1_w"] = normal(next(ks), (DIM, DIM), 1.0 / (DIM ** 0.5))
    p["fc1_b"] = normal(next(ks), (1, DIM), 0.02)
    p["fc2_w"] = normal(next(ks), (DIM, OUT_DIM), 1.0 / (DIM ** 0.5))
    p["fc2_b"] = normal(next(ks), (1, OUT_DIM), 0.02)
    return p


def _choose_bb(B, N, max_pair_rows=4096):
    """Graph-tile size + padded batch.

    BB graphs per grid step, capped so the (BB*N*N, 640) edge intermediate stays
    VMEM-friendly (4096 pair rows ~= 10.5 MB f32). B is padded up to a multiple
    of BB so awkward batch sizes keep a full MXU row dimension. When the batch
    is big enough but would give a single grid step, BB is halved so both v7x
    TensorCores get work under dimension_semantics=("parallel",).
    """
    cap = max(1, max_pair_rows // (N * N))
    bb = min(B, cap)
    if -(-B // bb) == 1 and bb >= 16 and bb % 2 == 0:
        bb //= 2
    b_pad = -(-B // bb) * bb
    return bb, b_pad


@jax.jit
def quadrupole_predictor_egnn(feats_tokens, coors, adj_mat, params):
    # adj_mat is accepted for API parity with the PyTorch module; with the
    # default EGNN_Network config it does not influence the forward pass.
    del adj_mat
    B, N = feats_tokens.shape
    BB, Bp = _choose_bb(B, N)

    # Pad the batch with dummy graphs (token 0, zero coords); sliced off below.
    feats_tokens = jnp.pad(feats_tokens, ((0, Bp - B), (0, 0)))
    coors = jnp.pad(coors.astype(jnp.float32), ((0, Bp - B), (0, 0), (0, 0)))

    # Token embedding lookup (gather) is glue -> plain JAX.
    feats = jnp.take(params["token_emb"], feats_tokens, axis=0).astype(jnp.float32)

    # ---- repack weights for the kernel (once per call, outside the kernel) ----
    pad = EDGE_HID_P - EDGE_HID
    w1 = params["w1"]                                             # (D, 257, 514)
    w1a = jnp.pad(w1[:, :DIM, :], ((0, 0), (0, 0), (0, pad)))     # feats_i rows
    w1b = jnp.pad(w1[:, DIM:2 * DIM, :], ((0, 0), (0, 0), (0, pad)))  # feats_j rows
    w1ab = jnp.concatenate([w1a, w1b], axis=-1).astype(jnp.bfloat16)  # (D, 128, 1280)
    w1c = jnp.pad(w1[:, 2 * DIM:, :], ((0, 0), (0, 0), (0, pad)))  # (D, 1, 640)
    b1 = jnp.pad(params["b1"], ((0, 0), (0, pad)))                 # (D, 640)
    w2 = jnp.pad(params["w2"],
                 ((0, 0), (0, pad), (0, 0))).astype(jnp.bfloat16)  # (D, 640, 16), pad rows 0
    w4t = jnp.transpose(params["w4"], (0, 2, 1))                   # (D, 1, 64)
    w5a = params["w5"][:, :DIM, :]                                 # (D, 128, 256)
    w5b = params["w5"][:, DIM:, :]                                 # (D, 16, 256)
    out_pad = OUT_DIM_P - OUT_DIM
    fc2w = jnp.pad(params["fc2_w"], ((0, 0), (0, out_pad)))        # (128, 128), pad cols 0
    fc2b = jnp.pad(params["fc2_b"], ((0, 0), (0, out_pad)))        # (1, 128)

    param_arrays = [
        w1ab, w1c, b1, w2, params["b2"],
        params["ln_g"], params["ln_b"],
        params["w3"], params["b3"], w4t, params["b4"],
        w5a, w5b, params["b5"], params["w6"], params["b6"],
        params["fc1_w"], params["fc1_b"], fc2w, fc2b,
    ]

    grid = (Bp // BB,)

    in_specs = [
        pl.BlockSpec((BB, N, DIM), lambda b: (b, 0, 0)),
        pl.BlockSpec((BB, N, 3), lambda b: (b, 0, 0)),
    ] + [
        # Grid-invariant weights: resident once in VMEM, no blocking/double-buffering.
        pl.BlockSpec(memory_space=pltpu.MemorySpace.VMEM)
        for _ in param_arrays
    ]

    out = pl.pallas_call(
        quadrupole_egnn_kernel,
        out_shape=jax.ShapeDtypeStruct((Bp, 1, OUT_DIM_P), jnp.float32),
        grid_spec=pltpu.PrefetchScalarGridSpec(
            num_scalar_prefetch=0,
            grid=grid,
            in_specs=in_specs,
            out_specs=pl.BlockSpec((BB, 1, OUT_DIM_P), lambda b: (b, 0, 0)),
        ),
        compiler_params=pltpu.CompilerParams(
            dimension_semantics=("parallel",),
            # 48 MiB: fits v7x's 64 MiB/TC with headroom, lets v5e/v6e take the
            # larger 4096-pair-row tile.
            vmem_limit_bytes=48 * 1024 * 1024,
        ),
    )(feats, coors, *param_arrays)

    return out[:B, 0, :OUT_DIM].reshape(B, 3, 3)


if __name__ == "__main__":
    key = jax.random.PRNGKey(0)
    k_par, k_tok, k_coor, k_adj = jax.random.split(key, 4)
    params = make_params(k_par)

    B, N = 2, 8
    feats_tokens = jax.random.randint(k_tok, (B, N), 0, NUM_TOKENS, dtype=jnp.int32)
    coors = jax.random.normal(k_coor, (B, N, 3), dtype=jnp.float32)
    adj_mat = jax.random.bernoulli(k_adj, 0.5, (B, N, N))   # unused by this config

    out = quadrupole_predictor_egnn(feats_tokens, coors, adj_mat, params)
    out = jax.block_until_ready(out)
    assert out.shape == (B, 3, 3)
    assert bool(jnp.all(jnp.isfinite(out)))
    print("KERNEL_OK")
</pallas_src>

<mosaic_0001>
module attributes {stable_mosaic.version = 11 : i64} {
  func.func @quadrupole_egnn_kernel(%arg0: i32, %arg1: memref<2x8x128xf32, #tpu.memory_space<vmem>>, %arg2: memref<2x8x3xf32, #tpu.memory_space<vmem>>, %arg3: memref<3x128x1280xbf16, #tpu.memory_space<vmem>>, %arg4: memref<3x1x640xf32, #tpu.memory_space<vmem>>, %arg5: memref<3x640xf32, #tpu.memory_space<vmem>>, %arg6: memref<3x640x16xbf16, #tpu.memory_space<vmem>>, %arg7: memref<3x16xf32, #tpu.memory_space<vmem>>, %arg8: memref<3x128xf32, #tpu.memory_space<vmem>>, %arg9: memref<3x128xf32, #tpu.memory_space<vmem>>, %arg10: memref<3x16x64xf32, #tpu.memory_space<vmem>>, %arg11: memref<3x64xf32, #tpu.memory_space<vmem>>, %arg12: memref<3x1x64xf32, #tpu.memory_space<vmem>>, %arg13: memref<3x1xf32, #tpu.memory_space<vmem>>, %arg14: memref<3x128x256xf32, #tpu.memory_space<vmem>>, %arg15: memref<3x16x256xf32, #tpu.memory_space<vmem>>, %arg16: memref<3x256xf32, #tpu.memory_space<vmem>>, %arg17: memref<3x256x128xf32, #tpu.memory_space<vmem>>, %arg18: memref<3x128xf32, #tpu.memory_space<vmem>>, %arg19: memref<128x128xf32, #tpu.memory_space<vmem>>, %arg20: memref<1x128xf32, #tpu.memory_space<vmem>>, %arg21: memref<128x128xf32, #tpu.memory_space<vmem>>, %arg22: memref<1x128xf32, #tpu.memory_space<vmem>>, %arg23: memref<2x1x128xf32, #tpu.memory_space<vmem>>) attributes {dimension_semantics = [#tpu.dimension_semantics<parallel>], iteration_bounds = array<i64: 1>, scalar_prefetch = 0 : i64, scratch_operands = 0 : i64, tpu.core_type = #tpu.core_type<tc>, window_params = [{transform_indices = @transform_0, window_bounds = array<i64: 2, 8, 128>}, {transform_indices = @transform_1, window_bounds = array<i64: 2, 8, 3>}, {pipeline_mode = #tpu.pipeline_mode<synchronous>, transform_indices = @transform_2, window_bounds = array<i64: 3, 128, 1280>}, {pipeline_mode = #tpu.pipeline_mode<synchronous>, transform_indices = @transform_3, window_bounds = array<i64: 3, 1, 640>}, {pipeline_mode = #tpu.pipeline_mode<synchronous>, transform_indices = @transform_4, window_bounds = array<i64: 3, 640>}, {pipeline_mode = #tpu.pipeline_mode<synchronous>, transform_indices = @transform_5, window_bounds = array<i64: 3, 640, 16>}, {pipeline_mode = #tpu.pipeline_mode<synchronous>, transform_indices = @transform_6, window_bounds = array<i64: 3, 16>}, {pipeline_mode = #tpu.pipeline_mode<synchronous>, transform_indices = @transform_7, window_bounds = array<i64: 3, 128>}, {pipeline_mode = #tpu.pipeline_mode<synchronous>, transform_indices = @transform_8, window_bounds = array<i64: 3, 128>}, {pipeline_mode = #tpu.pipeline_mode<synchronous>, transform_indices = @transform_9, window_bounds = array<i64: 3, 16, 64>}, {pipeline_mode = #tpu.pipeline_mode<synchronous>, transform_indices = @transform_10, window_bounds = array<i64: 3, 64>}, {pipeline_mode = #tpu.pipeline_mode<synchronous>, transform_indices = @transform_11, window_bounds = array<i64: 3, 1, 64>}, {pipeline_mode = #tpu.pipeline_mode<synchronous>, transform_indices = @transform_12, window_bounds = array<i64: 3, 1>}, {pipeline_mode = #tpu.pipeline_mode<synchronous>, transform_indices = @transform_13, window_bounds = array<i64: 3, 128, 256>}, {pipeline_mode = #tpu.pipeline_mode<synchronous>, transform_indices = @transform_14, window_bounds = array<i64: 3, 16, 256>}, {pipeline_mode = #tpu.pipeline_mode<synchronous>, transform_indices = @transform_15, window_bounds = array<i64: 3, 256>}, {pipeline_mode = #tpu.pipeline_mode<synchronous>, transform_indices = @transform_16, window_bounds = array<i64: 3, 256, 128>}, {pipeline_mode = #tpu.pipeline_mode<synchronous>, transform_indices = @transform_17, window_bounds = array<i64: 3, 128>}, {pipeline_mode = #tpu.pipeline_mode<synchronous>, transform_indices = @transform_18, window_bounds = array<i64: 128, 128>}, {pipeline_mode = #tpu.pipeline_mode<synchronous>, transform_indices = @transform_19, window_bounds = array<i64: 1, 128>}, {pipeline_mode = #tpu.pipeline_mode<synchronous>, transform_indices = @transform_20, window_bounds = array<i64: 128, 128>}, {pipeline_mode = #tpu.pipeline_mode<synchronous>, transform_indices = @transform_21, window_bounds = array<i64: 1, 128>}, {transform_indices = @transform_22, window_bounds = array<i64: 2, 1, 128>}]} {
    %c0 = arith.constant 0 : index
    %c0_0 = arith.constant 0 : index
    %c0_1 = arith.constant 0 : index
    %0 = vector.load %arg1[%c0, %c0_0, %c0_1] : memref<2x8x128xf32, #tpu.memory_space<vmem>>, vector<2x8x128xf32>
    %1 = vector.shape_cast %0 : vector<2x8x128xf32> to vector<16x128xf32>
    %c0_2 = arith.constant 0 : index
    %c0_3 = arith.constant 0 : index
    %c0_4 = arith.constant 0 : index
    %2 = vector.load %arg2[%c0_2, %c0_3, %c0_4] : memref<2x8x3xf32, #tpu.memory_space<vmem>>, vector<2x8x3xf32>
    %3 = vector.shape_cast %2 : vector<2x8x3xf32> to vector<2x8x1x3xf32>
    %4 = vector.shape_cast %2 : vector<2x8x3xf32> to vector<2x1x8x3xf32>
    %5 = vector.broadcast %3 : vector<2x8x1x3xf32> to vector<2x8x8x3xf32>
    %6 = vector.broadcast %4 : vector<2x1x8x3xf32> to vector<2x8x8x3xf32>
    %7 = arith.subf %5, %6 : vector<2x8x8x3xf32>
    %8 = arith.mulf %7, %7 : vector<2x8x8x3xf32>
    %cst = arith.constant dense<0.000000e+00> : vector<2x8x8xf32>
    %9 = vector.multi_reduction <add>, %8, %cst [3] : vector<2x8x8x3xf32> to vector<2x8x8xf32>
    %10 = vector.shape_cast %9 : vector<2x8x8xf32> to vector<2x8x8x1xf32>
    %11 = arith.truncf %1 : vector<16x128xf32> to vector<16x128xbf16>
    %c0_5 = arith.constant 0 : index
    %c0_6 = arith.constant 0 : index
    %c0_7 = arith.constant 0 : index
    %12 = vector.load %arg3[%c0_5, %c0_6, %c0_7] : memref<3x128x1280xbf16, #tpu.memory_space<vmem>>, vector<1x128x1280xbf16>
    %13 = vector.shape_cast %12 : vector<1x128x1280xbf16> to vector<128x1280xbf16>
    %cst_8 = arith.constant dense<0.000000e+00> : vector<16x1280xf32>
    %14 = tpu.matmul %11, %13, %cst_8 {dimension_numbers = #tpu.dot_dimension_numbers<[1], [0], [0], [1], [0, 0, 1, 1], [], []>} : vector<16x128xbf16>, vector<128x1280xbf16>, vector<16x1280xf32> -> vector<16x1280xf32>
    %15 = vector.extract_strided_slice %14 {offsets = [0, 0], sizes = [16, 640], strides = [1, 1]} : vector<16x1280xf32> to vector<16x640xf32>
    %16 = vector.shape_cast %15 : vector<16x640xf32> to vector<2x8x1x640xf32>
    %17 = vector.extract_strided_slice %14 {offsets = [0, 640], sizes = [16, 640], strides = [1, 1]} : vector<16x1280xf32> to vector<16x640xf32>
    %18 = vector.shape_cast %17 : vector<16x640xf32> to vector<2x1x8x640xf32>
    %19 = vector.broadcast %16 : vector<2x8x1x640xf32> to vector<2x8x8x640xf32>
    %20 = vector.broadcast %18 : vector<2x1x8x640xf32> to vector<2x8x8x640xf32>
    %21 = arith.addf %19, %20 : vector<2x8x8x640xf32>
    %c0_9 = arith.constant 0 : index
    %c0_10 = arith.constant 0 : index
    %c0_11 = arith.constant 0 : index
    %22 = vector.load %arg4[%c0_9, %c0_10, %c0_11] : memref<3x1x640xf32, #tpu.memory_space<vmem>>, vector<1x1x640xf32>
    %23 = vector.shape_cast %22 : vector<1x1x640xf32> to vector<1x640xf32>
    %24 = vector.shape_cast %23 : vector<1x640xf32> to vector<1x1x1x640xf32>
    %25 = vector.broadcast %10 : vector<2x8x8x1xf32> to vector<2x8x8x640xf32>
    %26 = vector.broadcast %24 : vector<1x1x1x640xf32> to vector<2x8x8x640xf32>
    %27 = arith.mulf %25, %26 : vector<2x8x8x640xf32>
    %28 = arith.addf %21, %27 : vector<2x8x8x640xf32>
    %c0_12 = arith.constant 0 : index
    %c0_13 = arith.constant 0 : index
    %29 = vector.load %arg5[%c0_12, %c0_13] : memref<3x640xf32, #tpu.memory_space<vmem>>, vector<1x640xf32>
    %30 = vector.shape_cast %29 : vector<1x640xf32> to vector<1x1x1x640xf32>
    %31 = vector.broadcast %30 : vector<1x1x1x640xf32> to vector<2x8x8x640xf32>
    %32 = arith.addf %28, %31 : vector<2x8x8x640xf32>
    %cst_14 = arith.constant 0.000000e+00 : f32
    %33 = vector.broadcast %cst_14 : f32 to vector<2x8x8x640xf32>
    %34 = arith.subf %33, %32 : vector<2x8x8x640xf32>
    %35 = math.exp %34 : vector<2x8x8x640xf32>
    %cst_15 = arith.constant 1.000000e+00 : f32
    %36 = vector.broadcast %cst_15 : f32 to vector<2x8x8x640xf32>
    %37 = arith.addf %36, %35 : vector<2x8x8x640xf32>
    %38 = tpu.reciprocal %37 {approx = true} : vector<2x8x8x640xf32> -> vector<2x8x8x640xf32>
    %39 = arith.mulf %32, %38 : vector<2x8x8x640xf32>
    %40 = vector.shape_cast %39 : vector<2x8x8x640xf32> to vector<128x640xf32>
    %41 = arith.truncf %40 : vector<128x640xf32> to vector<128x640xbf16>
    %c0_16 = arith.constant 0 : index
    %c0_17 = arith.constant 0 : index
    %c0_18 = arith.constant 0 : index
    %42 = vector.load %arg6[%c0_16, %c0_17, %c0_18] : memref<3x640x16xbf16, #tpu.memory_space<vmem>>, vector<1x640x16xbf16>
    %43 = vector.shape_cast %42 : vector<1x640x16xbf16> to vector<640x16xbf16>
    %cst_19 = arith.constant dense<0.000000e+00> : vector<128x16xf32>
    %44 = tpu.matmul %41, %43, %cst_19 {dimension_numbers = #tpu.dot_dimension_numbers<[1], [0], [0], [1], [0, 0, 1, 1], [], []>} : vector<128x640xbf16>, vector<640x16xbf16>, vector<128x16xf32> -> vector<128x16xf32>
    %c0_20 = arith.constant 0 : index
    %c0_21 = arith.constant 0 : index
    %45 = vector.load %arg7[%c0_20, %c0_21] : memref<3x16xf32, #tpu.memory_space<vmem>>, vector<1x16xf32>
    %46 = vector.broadcast %45 : vector<1x16xf32> to vector<128x16xf32>
    %47 = arith.addf %44, %46 : vector<128x16xf32>
    %48 = arith.negf %47 : vector<128x16xf32>
    %49 = math.exp %48 : vector<128x16xf32>
    %cst_22 = arith.constant 1.000000e+00 : f32
    %50 = vector.broadcast %cst_22 : f32 to vector<128x16xf32>
    %51 = arith.addf %50, %49 : vector<128x16xf32>
    %52 = arith.divf %50, %51 : vector<128x16xf32>
    %53 = arith.mulf %47, %52 : vector<128x16xf32>
    %c0_23 = arith.constant 0 : index
    %c0_24 = arith.constant 0 : index
    %c0_25 = arith.constant 0 : index
    %54 = vector.load %arg10[%c0_23, %c0_24, %c0_25] : memref<3x16x64xf32, #tpu.memory_space<vmem>>, vector<1x16x64xf32>
    %55 = vector.shape_cast %54 : vector<1x16x64xf32> to vector<16x64xf32>
    %cst_26 = arith.constant dense<0.000000e+00> : vector<128x64xf32>
    %56 = tpu.matmul %53, %55, %cst_26 {dimension_numbers = #tpu.dot_dimension_numbers<[1], [0], [0], [1], [0, 0, 1, 1], [], []>} : vector<128x16xf32>, vector<16x64xf32>, vector<128x64xf32> -> vector<128x64xf32>
    %c0_27 = arith.constant 0 : index
    %c0_28 = arith.constant 0 : index
    %57 = vector.load %arg11[%c0_27, %c0_28] : memref<3x64xf32, #tpu.memory_space<vmem>>, vector<1x64xf32>
    %58 = vector.broadcast %57 : vector<1x64xf32> to vector<128x64xf32>
    %59 = arith.addf %56, %58 : vector<128x64xf32>
    %60 = arith.negf %59 : vector<128x64xf32>
    %61 = math.exp %60 : vector<128x64xf32>
    %cst_29 = arith.constant 1.000000e+00 : f32
    %62 = vector.broadcast %cst_29 : f32 to vector<128x64xf32>
    %63 = arith.addf %62, %61 : vector<128x64xf32>
    %64 = arith.divf %62, %63 : vector<128x64xf32>
    %65 = arith.mulf %59, %64 : vector<128x64xf32>
    %c0_30 = arith.constant 0 : index
    %c0_31 = arith.constant 0 : index
    %c0_32 = arith.constant 0 : index
    %66 = vector.load %arg12[%c0_30, %c0_31, %c0_32] : memref<3x1x64xf32, #tpu.memory_space<vmem>>, vector<1x1x64xf32>
    %67 = vector.shape_cast %66 : vector<1x1x64xf32> to vector<1x64xf32>
    %68 = vector.broadcast %67 : vector<1x64xf32> to vector<128x64xf32>
    %69 = arith.mulf %65, %68 : vector<128x64xf32>
    %cst_33 = arith.constant dense<0.000000e+00> : vector<128xf32>
    %70 = vector.multi_reduction <add>, %69, %cst_33 [1] : vector<128x64xf32> to vector<128xf32>
    %71 = vector.shape_cast %70 : vector<128xf32> to vector<128x1xf32>
    %c0_34 = arith.constant 0 : index
    %c0_35 = arith.constant 0 : index
    %72 = vector.load %arg13[%c0_34, %c0_35] : memref<3x1xf32, #tpu.memory_space<vmem>>, vector<1x1xf32>
    %73 = vector.broadcast %72 : vector<1x1xf32> to vector<128x1xf32>
    %74 = arith.addf %71, %73 : vector<128x1xf32>
    %75 = vector.shape_cast %74 : vector<128x1xf32> to vector<2x8x8x1xf32>
    %76 = vector.broadcast %75 : vector<2x8x8x1xf32> to vector<2x8x8x3xf32>
    %77 = arith.mulf %76, %7 : vector<2x8x8x3xf32>
    %cst_36 = arith.constant dense<0.000000e+00> : vector<2x8x3xf32>
    %78 = vector.multi_reduction <add>, %77, %cst_36 [2] : vector<2x8x8x3xf32> to vector<2x8x3xf32>
    %79 = arith.addf %2, %78 : vector<2x8x3xf32>
    %80 = vector.shape_cast %53 : vector<128x16xf32> to vector<2x8x8x16xf32>
    %cst_37 = arith.constant dense<0.000000e+00> : vector<2x8x16xf32>
    %81 = vector.multi_reduction <add>, %80, %cst_37 [2] : vector<2x8x8x16xf32> to vector<2x8x16xf32>
    %82 = vector.shape_cast %81 : vector<2x8x16xf32> to vector<16x16xf32>
    %cst_38 = arith.constant dense<0.000000e+00> : vector<16xf32>
    %83 = vector.multi_reduction <add>, %1, %cst_38 [1] : vector<16x128xf32> to vector<16xf32>
    %84 = vector.shape_cast %83 : vector<16xf32> to vector<16x1xf32>
    %cst_39 = arith.constant 1.280000e+02 : f32
    %85 = vector.broadcast %cst_39 : f32 to vector<16x1xf32>
    %86 = arith.divf %84, %85 : vector<16x1xf32>
    %87 = vector.broadcast %86 : vector<16x1xf32> to vector<16x128xf32>
    %88 = arith.subf %1, %87 : vector<16x128xf32>
    %89 = arith.mulf %88, %88 : vector<16x128xf32>
    %cst_40 = arith.constant dense<0.000000e+00> : vector<16xf32>
    %90 = vector.multi_reduction <add>, %89, %cst_40 [1] : vector<16x128xf32> to vector<16xf32>
    %91 = vector.shape_cast %90 : vector<16xf32> to vector<16x1xf32>
    %cst_41 = arith.constant 1.280000e+02 : f32
    %92 = vector.broadcast %cst_41 : f32 to vector<16x1xf32>
    %93 = arith.divf %91, %92 : vector<16x1xf32>
    %94 = vector.broadcast %86 : vector<16x1xf32> to vector<16x128xf32>
    %95 = arith.subf %1, %94 : vector<16x128xf32>
    %cst_42 = arith.constant 9.99999974E-6 : f32
    %96 = vector.broadcast %cst_42 : f32 to vector<16x1xf32>
    %97 = arith.addf %93, %96 : vector<16x1xf32>
    %98 = math.rsqrt %97 : vector<16x1xf32>
    %99 = vector.broadcast %98 : vector<16x1xf32> to vector<16x128xf32>
    %100 = arith.mulf %95, %99 : vector<16x128xf32>
    %c0_43 = arith.constant 0 : index
    %c0_44 = arith.constant 0 : index
    %101 = vector.load %arg8[%c0_43, %c0_44] : memref<3x128xf32, #tpu.memory_space<vmem>>, vector<1x128xf32>
    %102 = vector.broadcast %101 : vector<1x128xf32> to vector<16x128xf32>
    %103 = arith.mulf %100, %102 : vector<16x128xf32>
    %c0_45 = arith.constant 0 : index
    %c0_46 = arith.constant 0 : index
    %104 = vector.load %arg9[%c0_45, %c0_46] : memref<3x128xf32, #tpu.memory_space<vmem>>, vector<1x128xf32>
    %105 = vector.broadcast %104 : vector<1x128xf32> to vector<16x128xf32>
    %106 = arith.addf %103, %105 : vector<16x128xf32>
    %c0_47 = arith.constant 0 : index
    %c0_48 = arith.constant 0 : index
    %c0_49 = arith.constant 0 : index
    %107 = vector.load %arg14[%c0_47, %c0_48, %c0_49] : memref<3x128x256xf32, #tpu.memory_space<vmem>>, vector<1x128x256xf32>
    %108 = vector.shape_cast %107 : vector<1x128x256xf32> to vector<128x256xf32>
    %cst_50 = arith.constant dense<0.000000e+00> : vector<16x256xf32>
    %109 = tpu.matmul %106, %108, %cst_50 {dimension_numbers = #tpu.dot_dimension_numbers<[1], [0], [0], [1], [0, 0, 1, 1], [], []>} : vector<16x128xf32>, vector<128x256xf32>, vector<16x256xf32> -> vector<16x256xf32>
    %c0_51 = arith.constant 0 : index
    %c0_52 = arith.constant 0 : index
    %c0_53 = arith.constant 0 : index
    %110 = vector.load %arg15[%c0_51, %c0_52, %c0_53] : memref<3x16x256xf32, #tpu.memory_space<vmem>>, vector<1x16x256xf32>
    %111 = vector.shape_cast %110 : vector<1x16x256xf32> to vector<16x256xf32>
    %cst_54 = arith.constant dense<0.000000e+00> : vector<16x256xf32>
    %112 = tpu.matmul %82, %111, %cst_54 {dimension_numbers = #tpu.dot_dimension_numbers<[1], [0], [0], [1], [0, 0, 1, 1], [], []>} : vector<16x16xf32>, vector<16x256xf32>, vector<16x256xf32> -> vector<16x256xf32>
    %113 = arith.addf %109, %112 : vector<16x256xf32>
    %c0_55 = arith.constant 0 : index
    %c0_56 = arith.constant 0 : index
    %114 = vector.load %arg16[%c0_55, %c0_56] : memref<3x256xf32, #tpu.memory_space<vmem>>, vector<1x256xf32>
    %115 = vector.broadcast %114 : vector<1x256xf32> to vector<16x256xf32>
    %116 = arith.addf %113, %115 : vector<16x256xf32>
    %117 = arith.negf %116 : vector<16x256xf32>
    %118 = math.exp %117 : vector<16x256xf32>
    %cst_57 = arith.constant 1.000000e+00 : f32
    %119 = vector.broadcast %cst_57 : f32 to vector<16x256xf32>
    %120 = arith.addf %119, %118 : vector<16x256xf32>
    %121 = arith.divf %119, %120 : vector<16x256xf32>
    %122 = arith.mulf %116, %121 : vector<16x256xf32>
    %c0_58 = arith.constant 0 : index
    %c0_59 = arith.constant 0 : index
    %c0_60 = arith.constant 0 : index
    %123 = vector.load %arg17[%c0_58, %c0_59, %c0_60] : memref<3x256x128xf32, #tpu.memory_space<vmem>>, vector<1x256x128xf32>
    %124 = vector.shape_cast %123 : vector<1x256x128xf32> to vector<256x128xf32>
    %cst_61 = arith.constant dense<0.000000e+00> : vector<16x128xf32>
    %125 = tpu.matmul %122, %124, %cst_61 {dimension_numbers = #tpu.dot_dimension_numbers<[1], [0], [0], [1], [0, 0, 1, 1], [], []>} : vector<16x256xf32>, vector<256x128xf32>, vector<16x128xf32> -> vector<16x128xf32>
    %c0_62 = arith.constant 0 : index
    %c0_63 = arith.constant 0 : index
    %126 = vector.load %arg18[%c0_62, %c0_63] : memref<3x128xf32, #tpu.memory_space<vmem>>, vector<1x128xf32>
    %127 = vector.broadcast %126 : vector<1x128xf32> to vector<16x128xf32>
    %128 = arith.addf %125, %127 : vector<16x128xf32>
    %129 = arith.addf %128, %1 : vector<16x128xf32>
    %130 = vector.shape_cast %79 : vector<2x8x3xf32> to vector<2x8x1x3xf32>
    %131 = vector.shape_cast %79 : vector<2x8x3xf32> to vector<2x1x8x3xf32>
    %132 = vector.broadcast %130 : vector<2x8x1x3xf32> to vector<2x8x8x3xf32>
    %133 = vector.broadcast %131 : vector<2x1x8x3xf32> to vector<2x8x8x3xf32>
    %134 = arith.subf %132, %133 : vector<2x8x8x3xf32>
    %135 = arith.mulf %134, %134 : vector<2x8x8x3xf32>
    %cst_64 = arith.constant dense<0.000000e+00> : vector<2x8x8xf32>
    %136 = vector.multi_reduction <add>, %135, %cst_64 [3] : vector<2x8x8x3xf32> to vector<2x8x8xf32>
    %137 = vector.shape_cast %136 : vector<2x8x8xf32> to vector<2x8x8x1xf32>
    %138 = arith.truncf %129 : vector<16x128xf32> to vector<16x128xbf16>
    %c1 = arith.constant 1 : index
    %c0_65 = arith.constant 0 : index
    %c0_66 = arith.constant 0 : index
    %139 = vector.load %arg3[%c1, %c0_65, %c0_66] : memref<3x128x1280xbf16, #tpu.memory_space<vmem>>, vector<1x128x1280xbf16>
    %140 = vector.shape_cast %139 : vector<1x128x1280xbf16> to vector<128x1280xbf16>
    %cst_67 = arith.constant dense<0.000000e+00> : vector<16x1280xf32>
    %141 = tpu.matmul %138, %140, %cst_67 {dimension_numbers = #tpu.dot_dimension_numbers<[1], [0], [0], [1], [0, 0, 1, 1], [], []>} : vector<16x128xbf16>, vector<128x1280xbf16>, vector<16x1280xf32> -> vector<16x1280xf32>
    %142 = vector.extract_strided_slice %141 {offsets = [0, 0], sizes = [16, 640], strides = [1, 1]} : vector<16x1280xf32> to vector<16x640xf32>
    %143 = vector.shape_cast %142 : vector<16x640xf32> to vector<2x8x1x640xf32>
    %144 = vector.extract_strided_slice %141 {offsets = [0, 640], sizes = [16, 640], strides = [1, 1]} : vector<16x1280xf32> to vector<16x640xf32>
    %145 = vector.shape_cast %144 : vector<16x640xf32> to vector<2x1x8x640xf32>
    %146 = vector.broadcast %143 : vector<2x8x1x640xf32> to vector<2x8x8x640xf32>
    %147 = vector.broadcast %145 : vector<2x1x8x640xf32> to vector<2x8x8x640xf32>
    %148 = arith.addf %146, %147 : vector<2x8x8x640xf32>
    %c1_68 = arith.constant 1 : index
    %c0_69 = arith.constant 0 : index
    %c0_70 = arith.constant 0 : index
    %149 = vector.load %arg4[%c1_68, %c0_69, %c0_70] : memref<3x1x640xf32, #tpu.memory_space<vmem>>, vector<1x1x640xf32>
    %150 = vector.shape_cast %149 : vector<1x1x640xf32> to vector<1x640xf32>
    %151 = vector.shape_cast %150 : vector<1x640xf32> to vector<1x1x1x640xf32>
    %152 = vector.broadcast %137 : vector<2x8x8x1xf32> to vector<2x8x8x640xf32>
    %153 = vector.broadcast %151 : vector<1x1x1x640xf32> to vector<2x8x8x640xf32>
    %154 = arith.mulf %152, %153 : vector<2x8x8x640xf32>
    %155 = arith.addf %148, %154 : vector<2x8x8x640xf32>
    %c1_71 = arith.constant 1 : index
    %c0_72 = arith.constant 0 : index
    %156 = vector.load %arg5[%c1_71, %c0_72] : memref<3x640xf32, #tpu.memory_space<vmem>>, vector<1x640xf32>
    %157 = vector.shape_cast %156 : vector<1x640xf32> to vector<1x1x1x640xf32>
    %158 = vector.broadcast %157 : vector<1x1x1x640xf32> to vector<2x8x8x640xf32>
    %159 = arith.addf %155, %158 : vector<2x8x8x640xf32>
    %cst_73 = arith.constant 0.000000e+00 : f32
    %160 = vector.broadcast %cst_73 : f32 to vector<2x8x8x640xf32>
    %161 = arith.subf %160, %159 : vector<2x8x8x640xf32>
    %162 = math.exp %161 : vector<2x8x8x640xf32>
    %cst_74 = arith.constant 1.000000e+00 : f32
    %163 = vector.broadcast %cst_74 : f32 to vector<2x8x8x640xf32>
    %164 = arith.addf %163, %162 : vector<2x8x8x640xf32>
    %165 = tpu.reciprocal %164 {approx = true} : vector<2x8x8x640xf32> -> vector<2x8x8x640xf32>
    %166 = arith.mulf %159, %165 : vector<2x8x8x640xf32>
    %167 = vector.shape_cast %166 : vector<2x8x8x640xf32> to vector<128x640xf32>
    %168 = arith.truncf %167 : vector<128x640xf32> to vector<128x640xbf16>
    %c1_75 = arith.constant 1 : index
    %c0_76 = arith.constant 0 : index
    %c0_77 = arith.constant 0 : index
    %169 = vector.load %arg6[%c1_75, %c0_76, %c0_77] : memref<3x640x16xbf16, #tpu.memory_space<vmem>>, vector<1x640x16xbf16>
    %170 = vector.shape_cast %169 : vector<1x640x16xbf16> to vector<640x16xbf16>
    %cst_78 = arith.constant dense<0.000000e+00> : vector<128x16xf32>
    %171 = tpu.matmul %168, %170, %cst_78 {dimension_numbers = #tpu.dot_dimension_numbers<[1], [0], [0], [1], [0, 0, 1, 1], [], []>} : vector<128x640xbf16>, vector<640x16xbf16>, vector<128x16xf32> -> vector<128x16xf32>
    %c1_79 = arith.constant 1 : index
    %c0_80 = arith.constant 0 : index
    %172 = vector.load %arg7[%c1_79, %c0_80] : memref<3x16xf32, #tpu.memory_space<vmem>>, vector<1x16xf32>
    %173 = vector.broadcast %172 : vector<1x16xf32> to vector<128x16xf32>
    %174 = arith.addf %171, %173 : vector<128x16xf32>
    %175 = arith.negf %174 : vector<128x16xf32>
    %176 = math.exp %175 : vector<128x16xf32>
    %cst_81 = arith.constant 1.000000e+00 : f32
    %177 = vector.broadcast %cst_81 : f32 to vector<128x16xf32>
    %178 = arith.addf %177, %176 : vector<128x16xf32>
    %179 = arith.divf %177, %178 : vector<128x16xf32>
    %180 = arith.mulf %174, %179 : vector<128x16xf32>
    %c1_82 = arith.constant 1 : index
    %c0_83 = arith.constant 0 : index
    %c0_84 = arith.constant 0 : index
    %181 = vector.load %arg10[%c1_82, %c0_83, %c0_84] : memref<3x16x64xf32, #tpu.memory_space<vmem>>, vector<1x16x64xf32>
    %182 = vector.shape_cast %181 : vector<1x16x64xf32> to vector<16x64xf32>
    %cst_85 = arith.constant dense<0.000000e+00> : vector<128x64xf32>
    %183 = tpu.matmul %180, %182, %cst_85 {dimension_numbers = #tpu.dot_dimension_numbers<[1], [0], [0], [1], [0, 0, 1, 1], [], []>} : vector<128x16xf32>, vector<16x64xf32>, vector<128x64xf32> -> vector<128x64xf32>
    %c1_86 = arith.constant 1 : index
    %c0_87 = arith.constant 0 : index
    %184 = vector.load %arg11[%c1_86, %c0_87] : memref<3x64xf32, #tpu.memory_space<vmem>>, vector<1x64xf32>
    %185 = vector.broadcast %184 : vector<1x64xf32> to vector<128x64xf32>
    %186 = arith.addf %183, %185 : vector<128x64xf32>
    %187 = arith.negf %186 : vector<128x64xf32>
    %188 = math.exp %187 : vector<128x64xf32>
    %cst_88 = arith.constant 1.000000e+00 : f32
    %189 = vector.broadcast %cst_88 : f32 to vector<128x64xf32>
    %190 = arith.addf %189, %188 : vector<128x64xf32>
    %191 = arith.divf %189, %190 : vector<128x64xf32>
    %192 = arith.mulf %186, %191 : vector<128x64xf32>
    %c1_89 = arith.constant 1 : index
    %c0_90 = arith.constant 0 : index
    %c0_91 = arith.constant 0 : index
    %193 = vector.load %arg12[%c1_89, %c0_90, %c0_91] : memref<3x1x64xf32, #tpu.memory_space<vmem>>, vector<1x1x64xf32>
    %194 = vector.shape_cast %193 : vector<1x1x64xf32> to vector<1x64xf32>
    %195 = vector.broadcast %194 : vector<1x64xf32> to vector<128x64xf32>
    %196 = arith.mulf %192, %195 : vector<128x64xf32>
    %cst_92 = arith.constant dense<0.000000e+00> : vector<128xf32>
    %197 = vector.multi_reduction <add>, %196, %cst_92 [1] : vector<128x64xf32> to vector<128xf32>
    %198 = vector.shape_cast %197 : vector<128xf32> to vector<128x1xf32>
    %c1_93 = arith.constant 1 : index
    %c0_94 = arith.constant 0 : index
    %199 = vector.load %arg13[%c1_93, %c0_94] : memref<3x1xf32, #tpu.memory_space<vmem>>, vector<1x1xf32>
    %200 = vector.broadcast %199 : vector<1x1xf32> to vector<128x1xf32>
    %201 = arith.addf %198, %200 : vector<128x1xf32>
    %202 = vector.shape_cast %201 : vector<128x1xf32> to vector<2x8x8x1xf32>
    %203 = vector.broadcast %202 : vector<2x8x8x1xf32> to vector<2x8x8x3xf32>
    %204 = arith.mulf %203, %134 : vector<2x8x8x3xf32>
    %cst_95 = arith.constant dense<0.000000e+00> : vector<2x8x3xf32>
    %205 = vector.multi_reduction <add>, %204, %cst_95 [2] : vector<2x8x8x3xf32> to vector<2x8x3xf32>
    %206 = arith.addf %79, %205 : vector<2x8x3xf32>
    %207 = vector.shape_cast %180 : vector<128x16xf32> to vector<2x8x8x16xf32>
    %cst_96 = arith.constant dense<0.000000e+00> : vector<2x8x16xf32>
    %208 = vector.multi_reduction <add>, %207, %cst_96 [2] : vector<2x8x8x16xf32> to vector<2x8x16xf32>
    %209 = vector.shape_cast %208 : vector<2x8x16xf32> to vector<16x16xf32>
    %cst_97 = arith.constant dense<0.000000e+00> : vector<16xf32>
    %210 = vector.multi_reduction <add>, %129, %cst_97 [1] : vector<16x128xf32> to vector<16xf32>
    %211 = vector.shape_cast %210 : vector<16xf32> to vector<16x1xf32>
    %cst_98 = arith.constant 1.280000e+02 : f32
    %212 = vector.broadcast %cst_98 : f32 to vector<16x1xf32>
    %213 = arith.divf %211, %212 : vector<16x1xf32>
    %214 = vector.broadcast %213 : vector<16x1xf32> to vector<16x128xf32>
    %215 = arith.subf %129, %214 : vector<16x128xf32>
    %216 = arith.mulf %215, %215 : vector<16x128xf32>
    %cst_99 = arith.constant dense<0.000000e+00> : vector<16xf32>
    %217 = vector.multi_reduction <add>, %216, %cst_99 [1] : vector<16x128xf32> to vector<16xf32>
    %218 = vector.shape_cast %217 : vector<16xf32> to vector<16x1xf32>
    %cst_100 = arith.constant 1.280000e+02 : f32
    %219 = vector.broadcast %cst_100 : f32 to vector<16x1xf32>
    %220 = arith.divf %218, %219 : vector<16x1xf32>
    %221 = vector.broadcast %213 : vector<16x1xf32> to vector<16x128xf32>
    %222 = arith.subf %129, %221 : vector<16x128xf32>
    %cst_101 = arith.constant 9.99999974E-6 : f32
    %223 = vector.broadcast %cst_101 : f32 to vector<16x1xf32>
    %224 = arith.addf %220, %223 : vector<16x1xf32>
    %225 = math.rsqrt %224 : vector<16x1xf32>
    %226 = vector.broadcast %225 : vector<16x1xf32> to vector<16x128xf32>
    %227 = arith.mulf %222, %226 : vector<16x128xf32>
    %c1_102 = arith.constant 1 : index
    %c0_103 = arith.constant 0 : index
    %228 = vector.load %arg8[%c1_102, %c0_103] : memref<3x128xf32, #tpu.memory_space<vmem>>, vector<1x128xf32>
    %229 = vector.broadcast %228 : vector<1x128xf32> to vector<16x128xf32>
    %230 = arith.mulf %227, %229 : vector<16x128xf32>
    %c1_104 = arith.constant 1 : index
    %c0_105 = arith.constant 0 : index
    %231 = vector.load %arg9[%c1_104, %c0_105] : memref<3x128xf32, #tpu.memory_space<vmem>>, vector<1x128xf32>
    %232 = vector.broadcast %231 : vector<1x128xf32> to vector<16x128xf32>
    %233 = arith.addf %230, %232 : vector<16x128xf32>
    %c1_106 = arith.constant 1 : index
    %c0_107 = arith.constant 0 : index
    %c0_108 = arith.constant 0 : index
    %234 = vector.load %arg14[%c1_106, %c0_107, %c0_108] : memref<3x128x256xf32, #tpu.memory_space<vmem>>, vector<1x128x256xf32>
    %235 = vector.shape_cast %234 : vector<1x128x256xf32> to vector<128x256xf32>
    %cst_109 = arith.constant dense<0.000000e+00> : vector<16x256xf32>
    %236 = tpu.matmul %233, %235, %cst_109 {dimension_numbers = #tpu.dot_dimension_numbers<[1], [0], [0], [1], [0, 0, 1, 1], [], []>} : vector<16x128xf32>, vector<128x256xf32>, vector<16x256xf32> -> vector<16x256xf32>
    %c1_110 = arith.constant 1 : index
    %c0_111 = arith.constant 0 : index
    %c0_112 = arith.constant 0 : index
    %237 = vector.load %arg15[%c1_110, %c0_111, %c0_112] : memref<3x16x256xf32, #tpu.memory_space<vmem>>, vector<1x16x256xf32>
    %238 = vector.shape_cast %237 : vector<1x16x256xf32> to vector<16x256xf32>
    %cst_113 = arith.constant dense<0.000000e+00> : vector<16x256xf32>
    %239 = tpu.matmul %209, %238, %cst_113 {dimension_numbers = #tpu.dot_dimension_numbers<[1], [0], [0], [1], [0, 0, 1, 1], [], []>} : vector<16x16xf32>, vector<16x256xf32>, vector<16x256xf32> -> vector<16x256xf32>
    %240 = arith.addf %236, %239 : vector<16x256xf32>
    %c1_114 = arith.constant 1 : index
    %c0_115 = arith.constant 0 : index
    %241 = vector.load %arg16[%c1_114, %c0_115] : memref<3x256xf32, #tpu.memory_space<vmem>>, vector<1x256xf32>
    %242 = vector.broadcast %241 : vector<1x256xf32> to vector<16x256xf32>
    %243 = arith.addf %240, %242 : vector<16x256xf32>
    %244 = arith.negf %243 : vector<16x256xf32>
    %245 = math.exp %244 : vector<16x256xf32>
    %cst_116 = arith.constant 1.000000e+00 : f32
    %246 = vector.broadcast %cst_116 : f32 to vector<16x256xf32>
    %247 = arith.addf %246, %245 : vector<16x256xf32>
    %248 = arith.divf %246, %247 : vector<16x256xf32>
    %249 = arith.mulf %243, %248 : vector<16x256xf32>
    %c1_117 = arith.constant 1 : index
    %c0_118 = arith.constant 0 : index
    %c0_119 = arith.constant 0 : index
    %250 = vector.load %arg17[%c1_117, %c0_118, %c0_119] : memref<3x256x128xf32, #tpu.memory_space<vmem>>, vector<1x256x128xf32>
    %251 = vector.shape_cast %250 : vector<1x256x128xf32> to vector<256x128xf32>
    %cst_120 = arith.constant dense<0.000000e+00> : vector<16x128xf32>
    %252 = tpu.matmul %249, %251, %cst_120 {dimension_numbers = #tpu.dot_dimension_numbers<[1], [0], [0], [1], [0, 0, 1, 1], [], []>} : vector<16x256xf32>, vector<256x128xf32>, vector<16x128xf32> -> vector<16x128xf32>
    %c1_121 = arith.constant 1 : index
    %c0_122 = arith.constant 0 : index
    %253 = vector.load %arg18[%c1_121, %c0_122] : memref<3x128xf32, #tpu.memory_space<vmem>>, vector<1x128xf32>
    %254 = vector.broadcast %253 : vector<1x128xf32> to vector<16x128xf32>
    %255 = arith.addf %252, %254 : vector<16x128xf32>
    %256 = arith.addf %255, %129 : vector<16x128xf32>
    %257 = vector.shape_cast %206 : vector<2x8x3xf32> to vector<2x8x1x3xf32>
    %258 = vector.shape_cast %206 : vector<2x8x3xf32> to vector<2x1x8x3xf32>
    %259 = vector.broadcast %257 : vector<2x8x1x3xf32> to vector<2x8x8x3xf32>
    %260 = vector.broadcast %258 : vector<2x1x8x3xf32> to vector<2x8x8x3xf32>
    %261 = arith.subf %259, %260 : vector<2x8x8x3xf32>
    %262 = arith.mulf %261, %261 : vector<2x8x8x3xf32>
    %cst_123 = arith.constant dense<0.000000e+00> : vector<2x8x8xf32>
    %263 = vector.multi_reduction <add>, %262, %cst_123 [3] : vector<2x8x8x3xf32> to vector<2x8x8xf32>
    %264 = vector.shape_cast %263 : vector<2x8x8xf32> to vector<2x8x8x1xf32>
    %265 = arith.truncf %256 : vector<16x128xf32> to vector<16x128xbf16>
    %c2 = arith.constant 2 : index
    %c0_124 = arith.constant 0 : index
    %c0_125 = arith.constant 0 : index
    %266 = vector.load %arg3[%c2, %c0_124, %c0_125] : memref<3x128x1280xbf16, #tpu.memory_space<vmem>>, vector<1x128x1280xbf16>
    %267 = vector.shape_cast %266 : vector<1x128x1280xbf16> to vector<128x1280xbf16>
    %cst_126 = arith.constant dense<0.000000e+00> : vector<16x1280xf32>
    %268 = tpu.matmul %265, %267, %cst_126 {dimension_numbers = #tpu.dot_dimension_numbers<[1], [0], [0], [1], [0, 0, 1, 1], [], []>} : vector<16x128xbf16>, vector<128x1280xbf16>, vector<16x1280xf32> -> vector<16x1280xf32>
    %269 = vector.extract_strided_slice %268 {offsets = [0, 0], sizes = [16, 640], strides = [1, 1]} : vector<16x1280xf32> to vector<16x640xf32>
    %270 = vector.shape_cast %269 : vector<16x640xf32> to vector<2x8x1x640xf32>
    %271 = vector.extract_strided_slice %268 {offsets = [0, 640], sizes = [16, 640], strides = [1, 1]} : vector<16x1280xf32> to vector<16x640xf32>
    %272 = vector.shape_cast %271 : vector<16x640xf32> to vector<2x1x8x640xf32>
    %273 = vector.broadcast %270 : vector<2x8x1x640xf32> to vector<2x8x8x640xf32>
    %274 = vector.broadcast %272 : vector<2x1x8x640xf32> to vector<2x8x8x640xf32>
    %275 = arith.addf %273, %274 : vector<2x8x8x640xf32>
    %c2_127 = arith.constant 2 : index
    %c0_128 = arith.constant 0 : index
    %c0_129 = arith.constant 0 : index
    %276 = vector.load %arg4[%c2_127, %c0_128, %c0_129] : memref<3x1x640xf32, #tpu.memory_space<vmem>>, vector<1x1x640xf32>
    %277 = vector.shape_cast %276 : vector<1x1x640xf32> to vector<1x640xf32>
    %278 = vector.shape_cast %277 : vector<1x640xf32> to vector<1x1x1x640xf32>
    %279 = vector.broadcast %264 : vector<2x8x8x1xf32> to vector<2x8x8x640xf32>
    %280 = vector.broadcast %278 : vector<1x1x1x640xf32> to vector<2x8x8x640xf32>
    %281 = arith.mulf %279, %280 : vector<2x8x8x640xf32>
    %282 = arith.addf %275, %281 : vector<2x8x8x640xf32>
    %c2_130 = arith.constant 2 : index
    %c0_131 = arith.constant 0 : index
    %283 = vector.load %arg5[%c2_130, %c0_131] : memref<3x640xf32, #tpu.memory_space<vmem>>, vector<1x640xf32>
    %284 = vector.shape_cast %283 : vector<1x640xf32> to vector<1x1x1x640xf32>
    %285 = vector.broadcast %284 : vector<1x1x1x640xf32> to vector<2x8x8x640xf32>
    %286 = arith.addf %282, %285 : vector<2x8x8x640xf32>
    %cst_132 = arith.constant 0.000000e+00 : f32
    %287 = vector.broadcast %cst_132 : f32 to vector<2x8x8x640xf32>
    %288 = arith.subf %287, %286 : vector<2x8x8x640xf32>
    %289 = math.exp %288 : vector<2x8x8x640xf32>
    %cst_133 = arith.constant 1.000000e+00 : f32
    %290 = vector.broadcast %cst_133 : f32 to vector<2x8x8x640xf32>
    %291 = arith.addf %290, %289 : vector<2x8x8x640xf32>
    %292 = tpu.reciprocal %291 {approx = true} : vector<2x8x8x640xf32> -> vector<2x8x8x640xf32>
    %293 = arith.mulf %286, %292 : vector<2x8x8x640xf32>
    %294 = vector.shape_cast %293 : vector<2x8x8x640xf32> to vector<128x640xf32>
    %295 = arith.truncf %294 : vector<128x640xf32> to vector<128x640xbf16>
    %c2_134 = arith.constant 2 : index
    %c0_135 = arith.constant 0 : index
    %c0_136 = arith.constant 0 : index
    %296 = vector.load %arg6[%c2_134, %c0_135, %c0_136] : memref<3x640x16xbf16, #tpu.memory_space<vmem>>, vector<1x640x16xbf16>
    %297 = vector.shape_cast %296 : vector<1x640x16xbf16> to vector<640x16xbf16>
    %cst_137 = arith.constant dense<0.000000e+00> : vector<128x16xf32>
    %298 = tpu.matmul %295, %297, %cst_137 {dimension_numbers = #tpu.dot_dimension_numbers<[1], [0], [0], [1], [0, 0, 1, 1], [], []>} : vector<128x640xbf16>, vector<640x16xbf16>, vector<128x16xf32> -> vector<128x16xf32>
    %c2_138 = arith.constant 2 : index
    %c0_139 = arith.constant 0 : index
    %299 = vector.load %arg7[%c2_138, %c0_139] : memref<3x16xf32, #tpu.memory_space<vmem>>, vector<1x16xf32>
    %300 = vector.broadcast %299 : vector<1x16xf32> to vector<128x16xf32>
    %301 = arith.addf %298, %300 : vector<128x16xf32>
    %302 = arith.negf %301 : vector<128x16xf32>
    %303 = math.exp %302 : vector<128x16xf32>
    %cst_140 = arith.constant 1.000000e+00 : f32
    %304 = vector.broadcast %cst_140 : f32 to vector<128x16xf32>
    %305 = arith.addf %304, %303 : vector<128x16xf32>
    %306 = arith.divf %304, %305 : vector<128x16xf32>
    %307 = arith.mulf %301, %306 : vector<128x16xf32>
    %308 = vector.shape_cast %307 : vector<128x16xf32> to vector<2x8x8x16xf32>
    %cst_141 = arith.constant dense<0.000000e+00> : vector<2x8x16xf32>
    %309 = vector.multi_reduction <add>, %308, %cst_141 [2] : vector<2x8x8x16xf32> to vector<2x8x16xf32>
    %310 = vector.shape_cast %309 : vector<2x8x16xf32> to vector<16x16xf32>
    %cst_142 = arith.constant dense<0.000000e+00> : vector<16xf32>
    %311 = vector.multi_reduction <add>, %256, %cst_142 [1] : vector<16x128xf32> to vector<16xf32>
    %312 = vector.shape_cast %311 : vector<16xf32> to vector<16x1xf32>
    %cst_143 = arith.constant 1.280000e+02 : f32
    %313 = vector.broadcast %cst_143 : f32 to vector<16x1xf32>
    %314 = arith.divf %312, %313 : vector<16x1xf32>
    %315 = vector.broadcast %314 : vector<16x1xf32> to vector<16x128xf32>
    %316 = arith.subf %256, %315 : vector<16x128xf32>
    %317 = arith.mulf %316, %316 : vector<16x128xf32>
    %cst_144 = arith.constant dense<0.000000e+00> : vector<16xf32>
    %318 = vector.multi_reduction <add>, %317, %cst_144 [1] : vector<16x128xf32> to vector<16xf32>
    %319 = vector.shape_cast %318 : vector<16xf32> to vector<16x1xf32>
    %cst_145 = arith.constant 1.280000e+02 : f32
    %320 = vector.broadcast %cst_145 : f32 to vector<16x1xf32>
    %321 = arith.divf %319, %320 : vector<16x1xf32>
    %322 = vector.broadcast %314 : vector<16x1xf32> to vector<16x128xf32>
    %323 = arith.subf %256, %322 : vector<16x128xf32>
    %cst_146 = arith.constant 9.99999974E-6 : f32
    %324 = vector.broadcast %cst_146 : f32 to vector<16x1xf32>
    %325 = arith.addf %321, %324 : vector<16x1xf32>
    %326 = math.rsqrt %325 : vector<16x1xf32>
    %327 = vector.broadcast %326 : vector<16x1xf32> to vector<16x128xf32>
    %328 = arith.mulf %323, %327 : vector<16x128xf32>
    %c2_147 = arith.constant 2 : index
    %c0_148 = arith.constant 0 : index
    %329 = vector.load %arg8[%c2_147, %c0_148] : memref<3x128xf32, #tpu.memory_space<vmem>>, vector<1x128xf32>
    %330 = vector.broadcast %329 : vector<1x128xf32> to vector<16x128xf32>
    %331 = arith.mulf %328, %330 : vector<16x128xf32>
    %c2_149 = arith.constant 2 : index
    %c0_150 = arith.constant 0 : index
    %332 = vector.load %arg9[%c2_149, %c0_150] : memref<3x128xf32, #tpu.memory_space<vmem>>, vector<1x128xf32>
    %333 = vector.broadcast %332 : vector<1x128xf32> to vector<16x128xf32>
    %334 = arith.addf %331, %333 : vector<16x128xf32>
    %c2_151 = arith.constant 2 : index
    %c0_152 = arith.constant 0 : index
    %c0_153 = arith.constant 0 : index
    %335 = vector.load %arg14[%c2_151, %c0_152, %c0_153] : memref<3x128x256xf32, #tpu.memory_space<vmem>>, vector<1x128x256xf32>
    %336 = vector.shape_cast %335 : vector<1x128x256xf32> to vector<128x256xf32>
    %cst_154 = arith.constant dense<0.000000e+00> : vector<16x256xf32>
    %337 = tpu.matmul %334, %336, %cst_154 {dimension_numbers = #tpu.dot_dimension_numbers<[1], [0], [0], [1], [0, 0, 1, 1], [], []>} : vector<16x128xf32>, vector<128x256xf32>, vector<16x256xf32> -> vector<16x256xf32>
    %c2_155 = arith.constant 2 : index
    %c0_156 = arith.constant 0 : index
    %c0_157 = arith.constant 0 : index
    %338 = vector.load %arg15[%c2_155, %c0_156, %c0_157] : memref<3x16x256xf32, #tpu.memory_space<vmem>>, vector<1x16x256xf32>
    %339 = vector.shape_cast %338 : vector<1x16x256xf32> to vector<16x256xf32>
    %cst_158 = arith.constant dense<0.000000e+00> : vector<16x256xf32>
    %340 = tpu.matmul %310, %339, %cst_158 {dimension_numbers = #tpu.dot_dimension_numbers<[1], [0], [0], [1], [0, 0, 1, 1], [], []>} : vector<16x16xf32>, vector<16x256xf32>, vector<16x256xf32> -> vector<16x256xf32>
    %341 = arith.addf %337, %340 : vector<16x256xf32>
    %c2_159 = arith.constant 2 : index
    %c0_160 = arith.constant 0 : index
    %342 = vector.load %arg16[%c2_159, %c0_160] : memref<3x256xf32, #tpu.memory_space<vmem>>, vector<1x256xf32>
    %343 = vector.broadcast %342 : vector<1x256xf32> to vector<16x256xf32>
    %344 = arith.addf %341, %343 : vector<16x256xf32>
    %345 = arith.negf %344 : vector<16x256xf32>
    %346 = math.exp %345 : vector<16x256xf32>
    %cst_161 = arith.constant 1.000000e+00 : f32
    %347 = vector.broadcast %cst_161 : f32 to vector<16x256xf32>
    %348 = arith.addf %347, %346 : vector<16x256xf32>
    %349 = arith.divf %347, %348 : vector<16x256xf32>
    %350 = arith.mulf %344, %349 : vector<16x256xf32>
    %c2_162 = arith.constant 2 : index
    %c0_163 = arith.constant 0 : index
    %c0_164 = arith.constant 0 : index
    %351 = vector.load %arg17[%c2_162, %c0_163, %c0_164] : memref<3x256x128xf32, #tpu.memory_space<vmem>>, vector<1x256x128xf32>
    %352 = vector.shape_cast %351 : vector<1x256x128xf32> to vector<256x128xf32>
    %cst_165 = arith.constant dense<0.000000e+00> : vector<16x128xf32>
    %353 = tpu.matmul %350, %352, %cst_165 {dimension_numbers = #tpu.dot_dimension_numbers<[1], [0], [0], [1], [0, 0, 1, 1], [], []>} : vector<16x256xf32>, vector<256x128xf32>, vector<16x128xf32> -> vector<16x128xf32>
    %c2_166 = arith.constant 2 : index
    %c0_167 = arith.constant 0 : index
    %354 = vector.load %arg18[%c2_166, %c0_167] : memref<3x128xf32, #tpu.memory_space<vmem>>, vector<1x128xf32>
    %355 = vector.broadcast %354 : vector<1x128xf32> to vector<16x128xf32>
    %356 = arith.addf %353, %355 : vector<16x128xf32>
    %357 = arith.addf %356, %256 : vector<16x128xf32>
    %358 = vector.shape_cast %357 : vector<16x128xf32> to vector<2x8x128xf32>
    %cst_168 = arith.constant dense<0.000000e+00> : vector<2x128xf32>
    %359 = vector.multi_reduction <add>, %358, %cst_168 [1] : vector<2x8x128xf32> to vector<2x128xf32>
    %cst_169 = arith.constant 8.000000e+00 : f32
    %360 = vector.broadcast %cst_169 : f32 to vector<2x128xf32>
    %361 = arith.divf %359, %360 : vector<2x128xf32>
    %c0_170 = arith.constant 0 : index
    %c0_171 = arith.constant 0 : index
    %362 = vector.load %arg19[%c0_170, %c0_171] : memref<128x128xf32, #tpu.memory_space<vmem>>, vector<128x128xf32>
    %cst_172 = arith.constant dense<0.000000e+00> : vector<2x128xf32>
    %363 = tpu.matmul %361, %362, %cst_172 {dimension_numbers = #tpu.dot_dimension_numbers<[1], [0], [0], [1], [0, 0, 1, 1], [], []>} : vector<2x128xf32>, vector<128x128xf32>, vector<2x128xf32> -> vector<2x128xf32>
    %c0_173 = arith.constant 0 : index
    %c0_174 = arith.constant 0 : index
    %364 = vector.load %arg20[%c0_173, %c0_174] : memref<1x128xf32, #tpu.memory_space<vmem>>, vector<1x128xf32>
    %365 = vector.broadcast %364 : vector<1x128xf32> to vector<2x128xf32>
    %366 = arith.addf %363, %365 : vector<2x128xf32>
    %367 = arith.negf %366 : vector<2x128xf32>
    %368 = math.exp %367 : vector<2x128xf32>
    %cst_175 = arith.constant 1.000000e+00 : f32
    %369 = vector.broadcast %cst_175 : f32 to vector<2x128xf32>
    %370 = arith.addf %369, %368 : vector<2x128xf32>
    %371 = arith.divf %369, %370 : vector<2x128xf32>
    %372 = arith.mulf %366, %371 : vector<2x128xf32>
    %c0_176 = arith.constant 0 : index
    %c0_177 = arith.constant 0 : index
    %373 = vector.load %arg21[%c0_176, %c0_177] : memref<128x128xf32, #tpu.memory_space<vmem>>, vector<128x128xf32>
    %cst_178 = arith.constant dense<0.000000e+00> : vector<2x128xf32>
    %374 = tpu.matmul %372, %373, %cst_178 {dimension_numbers = #tpu.dot_dimension_numbers<[1], [0], [0], [1], [0, 0, 1, 1], [], []>} : vector<2x128xf32>, vector<128x128xf32>, vector<2x128xf32> -> vector<2x128xf32>
    %c0_179 = arith.constant 0 : index
    %c0_180 = arith.constant 0 : index
    %375 = vector.load %arg22[%c0_179, %c0_180] : memref<1x128xf32, #tpu.memory_space<vmem>>, vector<1x128xf32>
    %376 = vector.broadcast %375 : vector<1x128xf32> to vector<2x128xf32>
    %377 = arith.addf %374, %376 : vector<2x128xf32>
    %378 = vector.shape_cast %377 : vector<2x128xf32> to vector<2x1x128xf32>
    %c0_181 = arith.constant 0 : index
    %c0_182 = arith.constant 0 : index
    %c0_183 = arith.constant 0 : index
    %379 = vector.load %arg23[%c0_181, %c0_182, %c0_183] : memref<2x1x128xf32, #tpu.memory_space<vmem>>, vector<2x1x128xf32>
    tpu.vector_store %arg23[%c0_181, %c0_182, %c0_183], %378 {strides = array<i32>} : memref<2x1x128xf32, #tpu.memory_space<vmem>>, vector<2x1x128xf32>,
    return
  }
  func.func @transform_0(%arg0: i32) -> (i32, i32, i32) {
    %c0_i32 = arith.constant 0 : i32
    %c0_i32_0 = arith.constant 0 : i32
    %c0_i32_1 = arith.constant 0 : i32
    return %arg0, %c0_i32, %c0_i32_0 : i32, i32, i32
  }
  func.func @transform_1(%arg0: i32) -> (i32, i32, i32) {
    %c0_i32 = arith.constant 0 : i32
    %c0_i32_0 = arith.constant 0 : i32
    %c0_i32_1 = arith.constant 0 : i32
    return %arg0, %c0_i32, %c0_i32_0 : i32, i32, i32
  }
  func.func @transform_2(%arg0: i32) -> (i32, i32, i32) {
    %c0_i32 = arith.constant 0 : i32
    %c0_i32_0 = arith.constant 0 : i32
    %c0_i32_1 = arith.constant 0 : i32
    %c0_i32_2 = arith.constant 0 : i32
    return %c0_i32, %c0_i32_0, %c0_i32_1 : i32, i32, i32
  }
  func.func @transform_3(%arg0: i32) -> (i32, i32, i32) {
    %c0_i32 = arith.constant 0 : i32
    %c0_i32_0 = arith.constant 0 : i32
    %c0_i32_1 = arith.constant 0 : i32
    %c0_i32_2 = arith.constant 0 : i32
    return %c0_i32, %c0_i32_0, %c0_i32_1 : i32, i32, i32
  }
  func.func @transform_4(%arg0: i32) -> (i32, i32) {
    %c0_i32 = arith.constant 0 : i32
    %c0_i32_0 = arith.constant 0 : i32
    %c0_i32_1 = arith.constant 0 : i32
    return %c0_i32, %c0_i32_0 : i32, i32
  }
  func.func @transform_5(%arg0: i32) -> (i32, i32, i32) {
    %c0_i32 = arith.constant 0 : i32
    %c0_i32_0 = arith.constant 0 : i32
    %c0_i32_1 = arith.constant 0 : i32
    %c0_i32_2 = arith.constant 0 : i32
    return %c0_i32, %c0_i32_0, %c0_i32_1 : i32, i32, i32
  }
  func.func @transform_6(%arg0: i32) -> (i32, i32) {
    %c0_i32 = arith.constant 0 : i32
    %c0_i32_0 = arith.constant 0 : i32
    %c0_i32_1 = arith.constant 0 : i32
    return %c0_i32, %c0_i32_0 : i32, i32
  }
  func.func @transform_7(%arg0: i32) -> (i32, i32) {
    %c0_i32 = arith.constant 0 : i32
    %c0_i32_0 = arith.constant 0 : i32
    %c0_i32_1 = arith.constant 0 : i32
    return %c0_i32, %c0_i32_0 : i32, i32
  }
  func.func @transform_8(%arg0: i32) -> (i32, i32) {
    %c0_i32 = arith.constant 0 : i32
    %c0_i32_0 = arith.constant 0 : i32
    %c0_i32_1 = arith.constant 0 : i32
    return %c0_i32, %c0_i32_0 : i32, i32
  }
  func.func @transform_9(%arg0: i32) -> (i32, i32, i32) {
    %c0_i32 = arith.constant 0 : i32
    %c0_i32_0 = arith.constant 0 : i32
    %c0_i32_1 = arith.constant 0 : i32
    %c0_i32_2 = arith.constant 0 : i32
    return %c0_i32, %c0_i32_0, %c0_i32_1 : i32, i32, i32
  }
  func.func @transform_10(%arg0: i32) -> (i32, i32) {
    %c0_i32 = arith.constant 0 : i32
    %c0_i32_0 = arith.constant 0 : i32
    %c0_i32_1 = arith.constant 0 : i32
    return %c0_i32, %c0_i32_0 : i32, i32
  }
  func.func @transform_11(%arg0: i32) -> (i32, i32, i32) {
    %c0_i32 = arith.constant 0 : i32
    %c0_i32_0 = arith.constant 0 : i32
    %c0_i32_1 = arith.constant 0 : i32
    %c0_i32_2 = arith.constant 0 : i32
    return %c0_i32, %c0_i32_0, %c0_i32_1 : i32, i32, i32
  }
  func.func @transform_12(%arg0: i32) -> (i32, i32) {
    %c0_i32 = arith.constant 0 : i32
    %c0_i32_0 = arith.constant 0 : i32
    %c0_i32_1 = arith.constant 0 : i32
    return %c0_i32, %c0_i32_0 : i32, i32
  }
  func.func @transform_13(%arg0: i32) -> (i32, i32, i32) {
    %c0_i32 = arith.constant 0 : i32
    %c0_i32_0 = arith.constant 0 : i32
    %c0_i32_1 = arith.constant 0 : i32
    %c0_i32_2 = arith.constant 0 : i32
    return %c0_i32, %c0_i32_0, %c0_i32_1 : i32, i32, i32
  }
  func.func @transform_14(%arg0: i32) -> (i32, i32, i32) {
    %c0_i32 = arith.constant 0 : i32
    %c0_i32_0 = arith.constant 0 : i32
    %c0_i32_1 = arith.constant 0 : i32
    %c0_i32_2 = arith.constant 0 : i32
    return %c0_i32, %c0_i32_0, %c0_i32_1 : i32, i32, i32
  }
  func.func @transform_15(%arg0: i32) -> (i32, i32) {
    %c0_i32 = arith.constant 0 : i32
    %c0_i32_0 = arith.constant 0 : i32
    %c0_i32_1 = arith.constant 0 : i32
    return %c0_i32, %c0_i32_0 : i32, i32
  }
  func.func @transform_16(%arg0: i32) -> (i32, i32, i32) {
    %c0_i32 = arith.constant 0 : i32
    %c0_i32_0 = arith.constant 0 : i32
    %c0_i32_1 = arith.constant 0 : i32
    %c0_i32_2 = arith.constant 0 : i32
    return %c0_i32, %c0_i32_0, %c0_i32_1 : i32, i32, i32
  }
  func.func @transform_17(%arg0: i32) -> (i32, i32) {
    %c0_i32 = arith.constant 0 : i32
    %c0_i32_0 = arith.constant 0 : i32
    %c0_i32_1 = arith.constant 0 : i32
    return %c0_i32, %c0_i32_0 : i32, i32
  }
  func.func @transform_18(%arg0: i32) -> (i32, i32) {
    %c0_i32 = arith.constant 0 : i32
    %c0_i32_0 = arith.constant 0 : i32
    %c0_i32_1 = arith.constant 0 : i32
    return %c0_i32, %c0_i32_0 : i32, i32
  }
  func.func @transform_19(%arg0: i32) -> (i32, i32) {
    %c0_i32 = arith.constant 0 : i32
    %c0_i32_0 = arith.constant 0 : i32
    %c0_i32_1 = arith.constant 0 : i32
    return %c0_i32, %c0_i32_0 : i32, i32
  }
  func.func @transform_20(%arg0: i32) -> (i32, i32) {
    %c0_i32 = arith.constant 0 : i32
    %c0_i32_0 = arith.constant 0 : i32
    %c0_i32_1 = arith.constant 0 : i32
    return %c0_i32, %c0_i32_0 : i32, i32
  }
  func.func @transform_21(%arg0: i32) -> (i32, i32) {
    %c0_i32 = arith.constant 0 : i32
    %c0_i32_0 = arith.constant 0 : i32
    %c0_i32_1 = arith.constant 0 : i32
    return %c0_i32, %c0_i32_0 : i32, i32
  }
  func.func @transform_22(%arg0: i32) -> (i32, i32, i32) {
    %c0_i32 = arith.constant 0 : i32
    %c0_i32_0 = arith.constant 0 : i32
    %c0_i32_1 = arith.constant 0 : i32
    return %arg0, %c0_i32, %c0_i32_0 : i32, i32, i32
  }
}

</mosaic_0001>

<llo_original>
// kernel: squeeze.1
$region0: #{squeeze.1}
  %s0 = inlined_call_operand.vmem [shape: f32[2,9], index: 0, kind: input, shape index: {}]
  %s1 = inlined_call_operand.vmem [shape: f32[2,3,3], index: 1, kind: output, shape index: {}]
  $region1: #{squeeze.1} parent=0
    #allocation0 [shape = 'u8[8192]{0}', space=vmem, size = 0x2000, scoped, tag = 'scoped mem for output reshape']
    #allocation1 [shape = 'u8[4096]{0}', space=vmem, size = 0x1000, scoped, tag = 'scoped mem for input reshape']
    %s3 = sshllo.u32 0, 2
    %v4 = vld [vmem:[%s0] sm:%s3]
    %5 = vst [vmem:[#allocation1] sm:%s3] %v4
    %v6 = vld [vmem:[#allocation1] sm:$0x3]
    %vm7 = vcmask 23552
    %8 = vst.msk [vmem:[#allocation0] ss:$8 sm:$0x3] %vm7, %v6
    %v9 = vld [vmem:[#allocation1] sm:$0x3]
    %10 = vrot.lane.b32.xlu0 %v9, 125
    %v11 = vpop.permute.xlu0 %10
    %vm12 = vcmask 23552
    %s13 = scalar_lea.vmem [#allocation0], 1
    %14 = vst.msk [vmem:[%s13] ss:$8 sm:$0x3] %vm12, %v11
    %v15 = vld [vmem:[#allocation1] sm:$0x3]
    %16 = vrot.lane.b32.xlu0 %v15, 122
    %v17 = vpop.permute.xlu0 %16
    %vm18 = vcmask 23552
    %s19 = scalar_lea.vmem [#allocation0], 2
    %20 = vst.msk [vmem:[%s19] ss:$8 sm:$0x3] %vm18, %v17
    %s22 = sshllo.u32 0, 4
    %v24 = vld [vmem:[#allocation0] sm:%s22]
    %s25 = sshllo.u32 0, 4
    %26 = vst [vmem:[%s1] sm:%s25] %v24
    %s27 = scalar_lea.vmem [#allocation0], 8
    %v28 = vld [vmem:[%s27] sm:%s22]
    %s29 = sshllo.u32 0, 4
    %s30 = scalar_lea.vmem %s1, 4
    %31 = vst [vmem:[%s30] sm:%s29] %v28

// kernel: quadrupole_predictor_egnn.1
$region0: #{quadrupole_predictor_egnn.1}
  #allocation0 [shape = 'u32[]', space=smem, size = 0x4, offset = 0x4, fixed_abs, tag = 'smem constant byte address 0x4 - core index']
  #allocation1 [shape = 'u32[144,128]{1,0:T(1,128)}', space=vmem, size = 0x12000, scoped, tag = 'internal scratch']
  %s0 = inlined_call_operand.vmem [shape: f32[2,8,128], index: 0, kind: input, shape index: {}]
  %s1 = inlined_call_operand.vmem [shape: f32[2,8,3], index: 1, kind: input, shape index: {}]
  %s2 = inlined_call_operand.vmem [shape: bf16[3,128,1280], index: 2, kind: input, shape index: {}]
  %s3 = inlined_call_operand.vmem [shape: f32[3,1,640], index: 3, kind: input, shape index: {}]
  %s4 = inlined_call_operand.vmem [shape: f32[3,640], index: 4, kind: input, shape index: {}]
  %s5 = inlined_call_operand.vmem [shape: bf16[3,640,16], index: 5, kind: input, shape index: {}]
  %s6 = inlined_call_operand.vmem [shape: f32[3,16], index: 6, kind: input, shape index: {}]
  %s7 = inlined_call_operand.vmem [shape: f32[3,128], index: 7, kind: input, shape index: {}]
  %s8 = inlined_call_operand.vmem [shape: f32[3,128], index: 8, kind: input, shape index: {}]
  %s9 = inlined_call_operand.vmem [shape: f32[3,16,64], index: 9, kind: input, shape index: {}]
  %s10 = inlined_call_operand.vmem [shape: f32[3,64], index: 10, kind: input, shape index: {}]
  %s11 = inlined_call_operand.vmem [shape: f32[3,1,64], index: 11, kind: input, shape index: {}]
  %s12 = inlined_call_operand.vmem [shape: f32[3,1], index: 12, kind: input, shape index: {}]
  %s13 = inlined_call_operand.vmem [shape: f32[3,128,256], index: 13, kind: input, shape index: {}]
  %s14 = inlined_call_operand.vmem [shape: f32[3,16,256], index: 14, kind: input, shape index: {}]
  %s15 = inlined_call_operand.vmem [shape: f32[3,256], index: 15, kind: input, shape index: {}]
  %s16 = inlined_call_operand.vmem [shape: f32[3,256,128], index: 16, kind: input, shape index: {}]
  %s17 = inlined_call_operand.vmem [shape: f32[3,128], index: 17, kind: input, shape index: {}]
  %s18 = inlined_call_operand.vmem [shape: f32[128,128], index: 18, kind: input, shape index: {}]
  %s19 = inlined_call_operand.vmem [shape: f32[1,128], index: 19, kind: input, shape index: {}]
  %s20 = inlined_call_operand.vmem [shape: f32[128,128], index: 20, kind: input, shape index: {}]
  %s21 = inlined_call_operand.vmem [shape: f32[1,128], index: 21, kind: input, shape index: {}]
  %s22 = inlined_call_operand.vmem [shape: f32[2,1,128], index: 22, kind: output, shape index: {}]
  %s23 = sld [smem:[#allocation0]]
  $region98: #{quadrupole_predictor_egnn.1} parent=0
    _
  %s25 = ssub.s32 1, %s23
  %s26 = scalar_select 0, %s25, %s23
  // Predicated region
  $region2: #{quadrupole_predictor_egnn.1} parent=0 // pred_check
    _
  $region3: #{quadrupole_predictor_egnn.1} parent=0 // pred_check_branch
    %28 = sbr.rel (0) target = $region5
  $region4: #{quadrupole_predictor_egnn.1} parent=0 // pred_region
    _
  $region5: #{quadrupole_predictor_egnn.1} parent=0 // pred_fallthru
    _
  // Predicated region
  $region6: #{quadrupole_predictor_egnn.1} parent=0 // pred_check
    _
  $region7: #{quadrupole_predictor_egnn.1} parent=0 // pred_check_branch
    %30 = sbr.rel (0) target = $region9
  $region8: #{quadrupole_predictor_egnn.1} parent=0 // pred_region
    _
  $region9: #{quadrupole_predictor_egnn.1} parent=0 // pred_fallthru
    _
  // Predicated region
  $region10: #{quadrupole_predictor_egnn.1} parent=0 // pred_check
    _
  $region11: #{quadrupole_predictor_egnn.1} parent=0 // pred_check_branch
    %32 = sbr.rel (0) target = $region13
  $region12: #{quadrupole_predictor_egnn.1} parent=0 // pred_region
    _
  $region13: #{quadrupole_predictor_egnn.1} parent=0 // pred_fallthru
    _
  // Predicated region
  $region14: #{quadrupole_predictor_egnn.1} parent=0 // pred_check
    _
  $region15: #{quadrupole_predictor_egnn.1} parent=0 // pred_check_branch
    %34 = sbr.rel (0) target = $region17
  $region16: #{quadrupole_predictor_egnn.1} parent=0 // pred_region
    _
  $region17: #{quadrupole_predictor_egnn.1} parent=0 // pred_fallthru
    _
  // Predicated region
  $region18: #{quadrupole_predictor_egnn.1} parent=0 // pred_check
    _
  $region19: #{quadrupole_predictor_egnn.1} parent=0 // pred_check_branch
    %36 = sbr.rel (0) target = $region21
  $region20: #{quadrupole_predictor_egnn.1} parent=0 // pred_region
    _
  $region21: #{quadrupole_predictor_egnn.1} parent=0 // pred_fallthru
    _
  // Predicated region
  $region22: #{quadrupole_predictor_egnn.1} parent=0 // pred_check
    _
  $region23: #{quadrupole_predictor_egnn.1} parent=0 // pred_check_branch
    %38 = sbr.rel (0) target = $region25
  $region24: #{quadrupole_predictor_egnn.1} parent=0 // pred_region
    _
  $region25: #{quadrupole_predictor_egnn.1} parent=0 // pred_fallthru
    _
  // Predicated region
  $region26: #{quadrupole_predictor_egnn.1} parent=0 // pred_check
    _
  $region27: #{quadrupole_predictor_egnn.1} parent=0 // pred_check_branch
    %40 = sbr.rel (0) target = $region29
  $region28: #{quadrupole_predictor_egnn.1} parent=0 // pred_region
    _
  $region29: #{quadrupole_predictor_egnn.1} parent=0 // pred_fallthru
    _
  // Predicated region
  $region30: #{quadrupole_predictor_egnn.1} parent=0 // pred_check
    _
  $region31: #{quadrupole_predictor_egnn.1} parent=0 // pred_check_branch
    %42 = sbr.rel (0) target = $region33
  $region32: #{quadrupole_predictor_egnn.1} parent=0 // pred_region
    _
  $region33: #{quadrupole_predictor_egnn.1} parent=0 // pred_fallthru
    _
  // Predicated region
  $region34: #{quadrupole_predictor_egnn.1} parent=0 // pred_check
    _
  $region35: #{quadrupole_predictor_egnn.1} parent=0 // pred_check_branch
    %44 = sbr.rel (0) target = $region37
  $region36: #{quadrupole_predictor_egnn.1} parent=0 // pred_region
    _
  $region37: #{quadrupole_predictor_egnn.1} parent=0 // pred_fallthru
    _
  // Predicated region
  $region38: #{quadrupole_predictor_egnn.1} parent=0 // pred_check
    _
  $region39: #{quadrupole_predictor_egnn.1} parent=0 // pred_check_branch
    %46 = sbr.rel (0) target = $region41
  $region40: #{quadrupole_predictor_egnn.1} parent=0 // pred_region
    _
  $region41: #{quadrupole_predictor_egnn.1} parent=0 // pred_fallthru
    _
  // Predicated region
  $region42: #{quadrupole_predictor_egnn.1} parent=0 // pred_check
    _
  $region43: #{quadrupole_predictor_egnn.1} parent=0 // pred_check_branch
    %48 = sbr.rel (0) target = $region45
  $region44: #{quadrupole_predictor_egnn.1} parent=0 // pred_region
    _
  $region45: #{quadrupole_predictor_egnn.1} parent=0 // pred_fallthru
    _
  // Predicated region
  $region46: #{quadrupole_predictor_egnn.1} parent=0 // pred_check
    _
  $region47: #{quadrupole_predictor_egnn.1} parent=0 // pred_check_branch
    %50 = sbr.rel (0) target = $region49
  $region48: #{quadrupole_predictor_egnn.1} parent=0 // pred_region
    _
  $region49: #{quadrupole_predictor_egnn.1} parent=0 // pred_fallthru
    _
  // Predicated region
  $region50: #{quadrupole_predictor_egnn.1} parent=0 // pred_check
    _
  $region51: #{quadrupole_predictor_egnn.1} parent=0 // pred_check_branch
    %52 = sbr.rel (0) target = $region53
  $region52: #{quadrupole_predictor_egnn.1} parent=0 // pred_region
    _
  $region53: #{quadrupole_predictor_egnn.1} parent=0 // pred_fallthru
    _
  // Predicated region
  $region54: #{quadrupole_predictor_egnn.1} parent=0 // pred_check
    _
  $region55: #{quadrupole_predictor_egnn.1} parent=0 // pred_check_branch
    %54 = sbr.rel (0) target = $region57
  $region56: #{quadrupole_predictor_egnn.1} parent=0 // pred_region
    _
  $region57: #{quadrupole_predictor_egnn.1} parent=0 // pred_fallthru
    _
  // Predicated region
  $region58: #{quadrupole_predictor_egnn.1} parent=0 // pred_check
    _
  $region59: #{quadrupole_predictor_egnn.1} parent=0 // pred_check_branch
    %56 = sbr.rel (0) target = $region61
  $region60: #{quadrupole_predictor_egnn.1} parent=0 // pred_region
    _
  $region61: #{quadrupole_predictor_egnn.1} parent=0 // pred_fallthru
    _
  // Predicated region
  $region62: #{quadrupole_predictor_egnn.1} parent=0 // pred_check
    _
  $region63: #{quadrupole_predictor_egnn.1} parent=0 // pred_check_branch
    %58 = sbr.rel (0) target = $region65
  $region64: #{quadrupole_predictor_egnn.1} parent=0 // pred_region
    _
  $region65: #{quadrupole_predictor_egnn.1} parent=0 // pred_fallthru
    _
  // Predicated region
  $region66: #{quadrupole_predictor_egnn.1} parent=0 // pred_check
    _
  $region67: #{quadrupole_predictor_egnn.1} parent=0 // pred_check_branch
    %60 = sbr.rel (0) target = $region69
  $region68: #{quadrupole_predictor_egnn.1} parent=0 // pred_region
    _
  $region69: #{quadrupole_predictor_egnn.1} parent=0 // pred_fallthru
    _
  // Predicated region
  $region70: #{quadrupole_predictor_egnn.1} parent=0 // pred_check
    _
  $region71: #{quadrupole_predictor_egnn.1} parent=0 // pred_check_branch
    %62 = sbr.rel (0) target = $region73
  $region72: #{quadrupole_predictor_egnn.1} parent=0 // pred_region
    _
  $region73: #{quadrupole_predictor_egnn.1} parent=0 // pred_fallthru
    _
  // Predicated region
  $region74: #{quadrupole_predictor_egnn.1} parent=0 // pred_check
    _
  $region75: #{quadrupole_predictor_egnn.1} parent=0 // pred_check_branch
    %64 = sbr.rel (0) target = $region77
  $region76: #{quadrupole_predictor_egnn.1} parent=0 // pred_region
    _
  $region77: #{quadrupole_predictor_egnn.1} parent=0 // pred_fallthru
    _
  // Predicated region
  $region78: #{quadrupole_predictor_egnn.1} parent=0 // pred_check
    _
  $region79: #{quadrupole_predictor_egnn.1} parent=0 // pred_check_branch
    %66 = sbr.rel (0) target = $region81
  $region80: #{quadrupole_predictor_egnn.1} parent=0 // pred_region
    _
  $region81: #{quadrupole_predictor_egnn.1} parent=0 // pred_fallthru
    _
  // Predicated region
  $region82: #{quadrupole_predictor_egnn.1} parent=0 // pred_check
    _
  $region83: #{quadrupole_predictor_egnn.1} parent=0 // pred_check_branch
    %68 = sbr.rel (0) target = $region85
  $region84: #{quadrupole_predictor_egnn.1} parent=0 // pred_region
    _
  $region85: #{quadrupole_predictor_egnn.1} parent=0 // pred_fallthru
    _
  // Predicated region
  $region86: #{quadrupole_predictor_egnn.1} parent=0 // pred_check
    _
  $region87: #{quadrupole_predictor_egnn.1} parent=0 // pred_check_branch
    %70 = sbr.rel (0) target = $region89
  $region88: #{quadrupole_predictor_egnn.1} parent=0 // pred_region
    _
  $region89: #{quadrupole_predictor_egnn.1} parent=0 // pred_fallthru
    _
  %v72 = vld [vmem:[%s0] sm:$0xff]
  %v73 = vld [vmem:[%s0 + $0x8] sm:$0xff]
  %v74 = vld [vmem:[%s1] sm:$0xff]
  %v75 = vld [vmem:[%s1 + $0x8] sm:$0xff]
  %v78 = vcombine.high %v74, %v74
  %v80 = vunpack.c.l.s4 1966171168
  %v81 = vunpack.c.0.s8 %v80
  %v82 = vlaneseq
  %v83 = vshrl.u32 %v82, 7
  %v84 = vsub.s32 %v81, %v83
  %v85 = vrot.slane %v74, %v84
  %v87 = vunpack.c.l.s4 1966171168
  %v88 = vunpack.c.0.s8 %v87
  %v89 = vlaneseq
  %v90 = vshrl.u32 %v89, 7
  %v91 = vsub.s32 %v88, %v90
  %v92 = vrot.slane %v78, %v91
  %v93 = vcombine.high %v85, %v85
  %v94 = vcombine.high %v92, %v92
  %v96 = vunpack.c.l.s4 1966171168
  %v97 = vunpack.c.0.s8 %v96
  %v98 = vlaneseq
  %v99 = vshrl.u32 %v98, 7
  %v100 = vsub.s32 %v97, %v99
  %v101 = vrot.slane %v85, %v100
  %v103 = vunpack.c.l.s4 1966171168
  %v104 = vunpack.c.0.s8 %v103
  %v105 = vlaneseq
  %v106 = vshrl.u32 %v105, 7
  %v107 = vsub.s32 %v104, %v106
  %v108 = vrot.slane %v92, %v107
  %v110 = vunpack.c.l.s4 1966171168
  %v111 = vunpack.c.0.s8 %v110
  %v112 = vlaneseq
  %v113 = vshrl.u32 %v112, 7
  %v114 = vsub.s32 %v111, %v113
  %v115 = vrot.slane %v93, %v114
  %v117 = vunpack.c.l.s4 1966171168
  %v118 = vunpack.c.0.s8 %v117
  %v119 = vlaneseq
  %v120 = vshrl.u32 %v119, 7
  %v121 = vsub.s32 %v118, %v120
  %v122 = vrot.slane %v94, %v121
  %v123 = vcombine.high %v101, %v101
  %v124 = vcombine.high %v108, %v108
  %v125 = vcombine.high %v115, %v115
  %v126 = vcombine.high %v122, %v122
  %v127 = vcombine.high %v75, %v75
  %v129 = vunpack.c.l.s4 1966171168
  %v130 = vunpack.c.0.s8 %v129
  %v131 = vlaneseq
  %v132 = vshrl.u32 %v131, 7
  %v133 = vsub.s32 %v130, %v132
  %v134 = vrot.slane %v75, %v133
  %v136 = vunpack.c.l.s4 1966171168
  %v137 = vunpack.c.0.s8 %v136
  %v138 = vlaneseq
  %v139 = vshrl.u32 %v138, 7
  %v140 = vsub.s32 %v137, %v139
  %v141 = vrot.slane %v127, %v140
  %v142 = vcombine.high %v134, %v134
  %v143 = vcombine.high %v141, %v141
  %v145 = vunpack.c.l.s4 1966171168
  %v146 = vunpack.c.0.s8 %v145
  %v147 = vlaneseq
  %v148 = vshrl.u32 %v147, 7
  %v149 = vsub.s32 %v146, %v148
  %v150 = vrot.slane %v134, %v149
  %v152 = vunpack.c.l.s4 1966171168
  %v153 = vunpack.c.0.s8 %v152
  %v154 = vlaneseq
  %v155 = vshrl.u32 %v154, 7
  %v156 = vsub.s32 %v153, %v155
  %v157 = vrot.slane %v141, %v156
  %v159 = vunpack.c.l.s4 1966171168
  %v160 = vunpack.c.0.s8 %v159
  %v161 = vlaneseq
  %v162 = vshrl.u32 %v161, 7
  %v163 = vsub.s32 %v160, %v162
  %v164 = vrot.slane %v142, %v163
  %v166 = vunpack.c.l.s4 1966171168
  %v167 = vunpack.c.0.s8 %v166
  %v168 = vlaneseq
  %v169 = vshrl.u32 %v168, 7
  %v170 = vsub.s32 %v167, %v169
  %v171 = vrot.slane %v143, %v170
  %v172 = vcombine.high %v150, %v150
  %v173 = vcombine.high %v157, %v157
  %v174 = vcombine.high %v164, %v164
  %v175 = vcombine.high %v171, %v171
  %v176 = vlaneseq
  %v177 = vshrl.u32 %v176, 7
  %v178 = vsub.s32 0, %v177
  %v179 = vrot.slane %v101, %v178
  %v180 = vlaneseq
  %v181 = vshrl.u32 %v180, 7
  %v182 = vsub.s32 0, %v181
  %v183 = vrot.slane %v115, %v182
  %v184 = vlaneseq
  %v185 = vshrl.u32 %v184, 7
  %v186 = vsub.s32 0, %v185
  %v187 = vrot.slane %v123, %v186
  %v188 = vlaneseq
  %v189 = vshrl.u32 %v188, 7
  %v190 = vsub.s32 0, %v189
  %v191 = vrot.slane %v125, %v190
  %v192 = vlaneseq
  %v193 = vshrl.u32 %v192, 7
  %v194 = vsub.s32 0, %v193
  %v195 = vrot.slane %v108, %v194
  %v196 = vlaneseq
  %v197 = vshrl.u32 %v196, 7
  %v198 = vsub.s32 0, %v197
  %v199 = vrot.slane %v122, %v198
  %v200 = vlaneseq
  %v201 = vshrl.u32 %v200, 7
  %v202 = vsub.s32 0, %v201
  %v203 = vrot.slane %v124, %v202
  %v204 = vlaneseq
  %v205 = vshrl.u32 %v204, 7
  %v206 = vsub.s32 0, %v205
  %v207 = vrot.slane %v126, %v206
  %v208 = vlaneseq
  %v209 = vshrl.u32 %v208, 7
  %v210 = vsub.s32 0, %v209
  %v211 = vrot.slane %v150, %v210
  %v212 = vlaneseq
  %v213 = vshrl.u32 %v212, 7
  %v214 = vsub.s32 0, %v213
  %v215 = vrot.slane %v164, %v214
  %v216 = vlaneseq
  %v217 = vshrl.u32 %v216, 7
  %v218 = vsub.s32 0, %v217
  %v219 = vrot.slane %v172, %v218
  %v220 = vlaneseq
  %v221 = vshrl.u32 %v220, 7
  %v222 = vsub.s32 0, %v221
  %v223 = vrot.slane %v174, %v222
  %v224 = vlaneseq
  %v225 = vshrl.u32 %v224, 7
  %v226 = vsub.s32 0, %v225
  %v227 = vrot.slane %v157, %v226
  %v228 = vlaneseq
  %v229 = vshrl.u32 %v228, 7
  %v230 = vsub.s32 0, %v229
  %v231 = vrot.slane %v171, %v230
  %v232 = vlaneseq
  %v233 = vshrl.u32 %v232, 7
  %v234 = vsub.s32 0, %v233
  %v235 = vrot.slane %v173, %v234
  %v236 = vlaneseq
  %v237 = vshrl.u32 %v236, 7
  %v238 = vsub.s32 0, %v237
  %v239 = vrot.slane %v175, %v238
  %v256 = vsub.f32 %v179, %v74
  %v257 = vsub.f32 %v183, %v74
  %v258 = vsub.f32 %v187, %v74
  %v259 = vsub.f32 %v191, %v74
  %v260 = vsub.f32 %v195, %v74
  %v261 = vsub.f32 %v199, %v74
  %v262 = vsub.f32 %v203, %v74
  %v263 = vsub.f32 %v207, %v74
  %v264 = vsub.f32 %v211, %v75
  %v265 = vsub.f32 %v215, %v75
  %v266 = vsub.f32 %v219, %v75
  %v267 = vsub.f32 %v223, %v75
  %v268 = vsub.f32 %v227, %v75
  %v269 = vsub.f32 %v231, %v75
  %v270 = vsub.f32 %v235, %v75
  %v271 = vsub.f32 %v239, %v75
  %v272 = vmul.f32 %v256, %v256
  %v273 = vmul.f32 %v257, %v257
  %v274 = vmul.f32 %v258, %v258
  %v275 = vmul.f32 %v259, %v259
  %v276 = vmul.f32 %v260, %v260
  %v277 = vmul.f32 %v261, %v261
  %v278 = vmul.f32 %v262, %v262
  %v279 = vmul.f32 %v263, %v263
  %v280 = vmul.f32 %v264, %v264
  %v281 = vmul.f32 %v265, %v265
  %v282 = vmul.f32 %v266, %v266
  %v283 = vmul.f32 %v267, %v267
  %v284 = vmul.f32 %v268, %v268
  %v285 = vmul.f32 %v269, %v269
  %v286 = vmul.f32 %v270, %v270
  %v287 = vmul.f32 %v271, %v271
  %vm288 = vcmask 23552
  %v289 = vsel %vm288, %v272, 0.0
  %290 = vadd.xlane.f32.xlu0 %v289
  %v291 = vpop.xlane.xlu0 %290
  %v292 = vsel %vm288, %v273, 0.0
  %293 = vadd.xlane.f32.xlu0 %v292
  %v294 = vpop.xlane.xlu0 %293
  %v295 = vsel %vm288, %v274, 0.0
  %296 = vadd.xlane.f32.xlu0 %v295
  %v297 = vpop.xlane.xlu0 %296
  %v298 = vsel %vm288, %v275, 0.0
  %299 = vadd.xlane.f32.xlu0 %v298
  %v300 = vpop.xlane.xlu0 %299
  %v301 = vsel %vm288, %v276, 0.0
  %302 = vadd.xlane.f32.xlu0 %v301
  %v303 = vpop.xlane.xlu0 %302
  %v304 = vsel %vm288, %v277, 0.0
  %305 = vadd.xlane.f32.xlu0 %v304
  %v306 = vpop.xlane.xlu0 %305
  %v307 = vsel %vm288, %v278, 0.0
  %308 = vadd.xlane.f32.xlu0 %v307
  %v309 = vpop.xlane.xlu0 %308
  %v310 = vsel %vm288, %v279, 0.0
  %311 = vadd.xlane.f32.xlu0 %v310
  %v312 = vpop.xlane.xlu0 %311
  %v313 = vsel %vm288, %v280, 0.0
  %314 = vadd.xlane.f32.xlu0 %v313
  %v315 = vpop.xlane.xlu0 %314
  %v316 = vsel %vm288, %v281, 0.0
  %317 = vadd.xlane.f32.xlu0 %v316
  %v318 = vpop.xlane.xlu0 %317
  %v319 = vsel %vm288, %v282, 0.0
  %320 = vadd.xlane.f32.xlu0 %v319
  %v321 = vpop.xlane.xlu0 %320
  %v322 = vsel %vm288, %v283, 0.0
  %323 = vadd.xlane.f32.xlu0 %v322
  %v324 = vpop.xlane.xlu0 %323
  %v325 = vsel %vm288, %v284, 0.0
  %326 = vadd.xlane.f32.xlu0 %v325
  %v327 = vpop.xlane.xlu0 %326
  %v328 = vsel %vm288, %v285, 0.0
  %329 = vadd.xlane.f32.xlu0 %v328
  %v330 = vpop.xlane.xlu0 %329
  %v331 = vsel %vm288, %v286, 0.0
  %332 = vadd.xlane.f32.xlu0 %v331
  %v333 = vpop.xlane.xlu0 %332
  %v334 = vsel %vm288, %v287, 0.0
  %335 = vadd.xlane.f32.xlu0 %v334
  %v336 = vpop.xlane.xlu0 %335
  %v337 = vpack.c.bf16 %v73, %v72
  %v338 = vld [vmem:[%s2] sm:$0xff]
  %v339 = vld [vmem:[%s2 + $0x8] sm:$0xff]
  %v340 = vld [vmem:[%s2 + $0x10] sm:$0xff]
  %v341 = vld [vmem:[%s2 + $0x18] sm:$0xff]
  %v342 = vld [vmem:[%s2 + $0x20] sm:$0xff]
  %v343 = vld [vmem:[%s2 + $0x28] sm:$0xff]
  %v344 = vld [vmem:[%s2 + $0x30] sm:$0xff]
  %v345 = vld [vmem:[%s2 + $0x38] sm:$0xff]
  %v346 = vld [vmem:[%s2 + $0x40] sm:$0xff]
  %v347 = vld [vmem:[%s2 + $0x48] sm:$0xff]
  %v348 = vld [vmem:[%s2 + $0x50] sm:$0xff]
  %v349 = vld [vmem:[%s2 + $0x58] sm:$0xff]
  %v350 = vld [vmem:[%s2 + $0x60] sm:$0xff]
  %v351 = vld [vmem:[%s2 + $0x68] sm:$0xff]
  %v352 = vld [vmem:[%s2 + $0x70] sm:$0xff]
  %v353 = vld [vmem:[%s2 + $0x78] sm:$0xff]
  %v354 = vld [vmem:[%s2 + $0x80] sm:$0xff]
  %v355 = vld [vmem:[%s2 + $0x88] sm:$0xff]
  %v356 = vld [vmem:[%s2 + $0x90] sm:$0xff]
  %v357 = vld [vmem:[%s2 + $0x98] sm:$0xff]
  %v358 = vld [vmem:[%s2 + $0xa0] sm:$0xff]
  %v359 = vld [vmem:[%s2 + $0xa8] sm:$0xff]
  %v360 = vld [vmem:[%s2 + $0xb0] sm:$0xff]
  %v361 = vld [vmem:[%s2 + $0xb8] sm:$0xff]
  %v362 = vld [vmem:[%s2 + $0xc0] sm:$0xff]
  %v363 = vld [vmem:[%s2 + $0xc8] sm:$0xff]
  %v364 = vld [vmem:[%s2 + $0xd0] sm:$0xff]
  %v365 = vld [vmem:[%s2 + $0xd8] sm:$0xff]
  %v366 = vld [vmem:[%s2 + $0xe0] sm:$0xff]
  %v367 = vld [vmem:[%s2 + $0xe8] sm:$0xff]
  %v368 = vld [vmem:[%s2 + $0xf0] sm:$0xff]
  %v369 = vld [vmem:[%s2 + $0xf8] sm:$0xff]
  %v370 = vld [vmem:[%s2 + $0x100] sm:$0xff]
  %v371 = vld [vmem:[%s2 + $0x108] sm:$0xff]
  %v372 = vld [vmem:[%s2 + $0x110] sm:$0xff]
  %v373 = vld [vmem:[%s2 + $0x118] sm:$0xff]
  %v374 = vld [vmem:[%s2 + $0x120] sm:$0xff]
  %v375 = vld [vmem:[%s2 + $0x128] sm:$0xff]
  %v376 = vld [vmem:[%s2 + $0x130] sm:$0xff]
  %v377 = vld [vmem:[%s2 + $0x138] sm:$0xff]
  %v378 = vld [vmem:[%s2 + $0x140] sm:$0xff]
  %v379 = vld [vmem:[%s2 + $0x148] sm:$0xff]
  %v380 = vld [vmem:[%s2 + $0x150] sm:$0xff]
  %v381 = vld [vmem:[%s2 + $0x158] sm:$0xff]
  %v382 = vld [vmem:[%s2 + $0x160] sm:$0xff]
  %v383 = vld [vmem:[%s2 + $0x168] sm:$0xff]
  %v384 = vld [vmem:[%s2 + $0x170] sm:$0xff]
  %v385 = vld [vmem:[%s2 + $0x178] sm:$0xff]
  %v386 = vld [vmem:[%s2 + $0x180] sm:$0xff]
  %v387 = vld [vmem:[%s2 + $0x188] sm:$0xff]
  %v388 = vld [vmem:[%s2 + $0x190] sm:$0xff]
  %v389 = vld [vmem:[%s2 + $0x198] sm:$0xff]
  %v390 = vld [vmem:[%s2 + $0x1a0] sm:$0xff]
  %v391 = vld [vmem:[%s2 + $0x1a8] sm:$0xff]
  %v392 = vld [vmem:[%s2 + $0x1b0] sm:$0xff]
  %v393 = vld [vmem:[%s2 + $0x1b8] sm:$0xff]
  %v394 = vld [vmem:[%s2 + $0x1c0] sm:$0xff]
  %v395 = vld [vmem:[%s2 + $0x1c8] sm:$0xff]
  %v396 = vld [vmem:[%s2 + $0x1d0] sm:$0xff]
  %v397 = vld [vmem:[%s2 + $0x1d8] sm:$0xff]
  %v398 = vld [vmem:[%s2 + $0x1e0] sm:$0xff]
  %v399 = vld [vmem:[%s2 + $0x1e8] sm:$0xff]
  %v400 = vld [vmem:[%s2 + $0x1f0] sm:$0xff]
  %v401 = vld [vmem:[%s2 + $0x1f8] sm:$0xff]
  %v402 = vld [vmem:[%s2 + $0x200] sm:$0xff]
  %v403 = vld [vmem:[%s2 + $0x208] sm:$0xff]
  %v404 = vld [vmem:[%s2 + $0x210] sm:$0xff]
  %v405 = vld [vmem:[%s2 + $0x218] sm:$0xff]
  %v406 = vld [vmem:[%s2 + $0x220] sm:$0xff]
  %v407 = vld [vmem:[%s2 + $0x228] sm:$0xff]
  %v408 = vld [vmem:[%s2 + $0x230] sm:$0xff]
  %v409 = vld [vmem:[%s2 + $0x238] sm:$0xff]
  %v410 = vld [vmem:[%s2 + $0x240] sm:$0xff]
  %v411 = vld [vmem:[%s2 + $0x248] sm:$0xff]
  %v412 = vld [vmem:[%s2 + $0x250] sm:$0xff]
  %v413 = vld [vmem:[%s2 + $0x258] sm:$0xff]
  %v414 = vld [vmem:[%s2 + $0x260] sm:$0xff]
  %v415 = vld [vmem:[%s2 + $0x268] sm:$0xff]
  %v416 = vld [vmem:[%s2 + $0x270] sm:$0xff]
  %v417 = vld [vmem:[%s2 + $0x278] sm:$0xff]
  %v498 = vunpack.c.l.b16 %v338
  %v499 = vunpack.c.h.b16 %v338
  %v500 = vunpack.c.l.b16 %v339
  %v501 = vunpack.c.h.b16 %v339
  %v502 = vunpack.c.l.b16 %v340
  %v503 = vunpack.c.h.b16 %v340
  %v504 = vunpack.c.l.b16 %v341
  %v505 = vunpack.c.h.b16 %v341
  %v506 = vunpack.c.l.b16 %v342
  %v507 = vunpack.c.h.b16 %v342
  %v508 = vunpack.c.l.b16 %v343
  %v509 = vunpack.c.h.b16 %v343
  %v510 = vunpack.c.l.b16 %v344
  %v511 = vunpack.c.h.b16 %v344
  %v512 = vunpack.c.l.b16 %v345
  %v513 = vunpack.c.h.b16 %v345
  %v514 = vunpack.c.l.b16 %v346
  %v515 = vunpack.c.h.b16 %v346
  %v516 = vunpack.c.l.b16 %v347
  %v517 = vunpack.c.h.b16 %v347
  %v518 = vunpack.c.l.b16 %v348
  %v519 = vunpack.c.h.b16 %v348
  %v520 = vunpack.c.l.b16 %v349
  %v521 = vunpack.c.h.b16 %v349
  %v522 = vunpack.c.l.b16 %v350
  %v523 = vunpack.c.h.b16 %v350
  %v524 = vunpack.c.l.b16 %v351
  %v525 = vunpack.c.h.b16 %v351
  %v526 = vunpack.c.l.b16 %v352
  %v527 = vunpack.c.h.b16 %v352
  %v528 = vunpack.c.l.b16 %v353
  %v529 = vunpack.c.h.b16 %v353
  %v530 = vunpack.c.l.b16 %v354
  %v531 = vunpack.c.h.b16 %v354
  %v532 = vunpack.c.l.b16 %v355
  %v533 = vunpack.c.h.b16 %v355
  %v534 = vunpack.c.l.b16 %v356
  %v535 = vunpack.c.h.b16 %v356
  %v536 = vunpack.c.l.b16 %v357
  %v537 = vunpack.c.h.b16 %v357
  %v538 = vunpack.c.l.b16 %v358
  %v539 = vunpack.c.h.b16 %v358
  %v540 = vunpack.c.l.b16 %v359
  %v541 = vunpack.c.h.b16 %v359
  %v542 = vunpack.c.l.b16 %v360
  %v543 = vunpack.c.h.b16 %v360
  %v544 = vunpack.c.l.b16 %v361
  %v545 = vunpack.c.h.b16 %v361
  %v546 = vunpack.c.l.b16 %v362
  %v547 = vunpack.c.h.b16 %v362
  %v548 = vunpack.c.l.b16 %v363
  %v549 = vunpack.c.h.b16 %v363
  %v550 = vunpack.c.l.b16 %v364
  %v551 = vunpack.c.h.b16 %v364
  %v552 = vunpack.c.l.b16 %v365
  %v553 = vunpack.c.h.b16 %v365
  %v554 = vunpack.c.l.b16 %v366
  %v555 = vunpack.c.h.b16 %v366
  %v556 = vunpack.c.l.b16 %v367
  %v557 = vunpack.c.h.b16 %v367
  %v558 = vunpack.c.l.b16 %v368
  %v559 = vunpack.c.h.b16 %v368
  %v560 = vunpack.c.l.b16 %v369
  %v561 = vunpack.c.h.b16 %v369
  %v562 = vunpack.c.l.b16 %v370
  %v563 = vunpack.c.h.b16 %v370
  %v564 = vunpack.c.l.b16 %v371
  %v565 = vunpack.c.h.b16 %v371
  %v566 = vunpack.c.l.b16 %v372
  %v567 = vunpack.c.h.b16 %v372
  %v568 = vunpack.c.l.b16 %v373
  %v569 = vunpack.c.h.b16 %v373
  %v570 = vunpack.c.l.b16 %v374
  %v571 = vunpack.c.h.b16 %v374
  %v572 = vunpack.c.l.b16 %v375
  %v573 = vunpack.c.h.b16 %v375
  %v574 = vunpack.c.l.b16 %v376
  %v575 = vunpack.c.h.b16 %v376
  %v576 = vunpack.c.l.b16 %v377
  %v577 = vunpack.c.h.b16 %v377
  %v578 = vunpack.c.l.b16 %v378
  %v579 = vunpack.c.h.b16 %v378
  %v580 = vunpack.c.l.b16 %v379
  %v581 = vunpack.c.h.b16 %v379
  %v582 = vunpack.c.l.b16 %v380
  %v583 = vunpack.c.h.b16 %v380
  %v584 = vunpack.c.l.b16 %v381
  %v585 = vunpack.c.h.b16 %v381
  %v586 = vunpack.c.l.b16 %v382
  %v587 = vunpack.c.h.b16 %v382
  %v588 = vunpack.c.l.b16 %v383
  %v589 = vunpack.c.h.b16 %v383
  %v590 = vunpack.c.l.b16 %v384
  %v591 = vunpack.c.h.b16 %v384
  %v592 = vunpack.c.l.b16 %v385
  %v593 = vunpack.c.h.b16 %v385
  %v594 = vunpack.c.l.b16 %v386
  %v595 = vunpack.c.h.b16 %v386
  %v596 = vunpack.c.l.b16 %v387
  %v597 = vunpack.c.h.b16 %v387
  %v598 = vunpack.c.l.b16 %v388
  %v599 = vunpack.c.h.b16 %v388
  %v600 = vunpack.c.l.b16 %v389
  %v601 = vunpack.c.h.b16 %v389
  %v602 = vunpack.c.l.b16 %v390
  %v603 = vunpack.c.h.b16 %v390
  %v604 = vunpack.c.l.b16 %v391
  %v605 = vunpack.c.h.b16 %v391
  %v606 = vunpack.c.l.b16 %v392
  %v607 = vunpack.c.h.b16 %v392
  %v608 = vunpack.c.l.b16 %v393
  %v609 = vunpack.c.h.b16 %v393
  %v610 = vunpack.c.l.b16 %v394
  %v611 = vunpack.c.h.b16 %v394
  %v612 = vunpack.c.l.b16 %v395
  %v613 = vunpack.c.h.b16 %v395
  %v614 = vunpack.c.l.b16 %v396
  %v615 = vunpack.c.h.b16 %v396
  %v616 = vunpack.c.l.b16 %v397
  %v617 = vunpack.c.h.b16 %v397
  %v618 = vunpack.c.l.b16 %v398
  %v619 = vunpack.c.h.b16 %v398
  %v620 = vunpack.c.l.b16 %v399
  %v621 = vunpack.c.h.b16 %v399
  %v622 = vunpack.c.l.b16 %v400
  %v623 = vunpack.c.h.b16 %v400
  %v624 = vunpack.c.l.b16 %v401
  %v625 = vunpack.c.h.b16 %v401
  %v626 = vunpack.c.l.b16 %v402
  %v627 = vunpack.c.h.b16 %v402
  %v628 = vunpack.c.l.b16 %v403
  %v629 = vunpack.c.h.b16 %v403
  %v630 = vunpack.c.l.b16 %v404
  %v631 = vunpack.c.h.b16 %v404
  %v632 = vunpack.c.l.b16 %v405
  %v633 = vunpack.c.h.b16 %v405
  %v634 = vunpack.c.l.b16 %v406
  %v635 = vunpack.c.h.b16 %v406
  %v636 = vunpack.c.l.b16 %v407
  %v637 = vunpack.c.h.b16 %v407
  %v638 = vunpack.c.l.b16 %v408
  %v639 = vunpack.c.h.b16 %v408
  %v640 = vunpack.c.l.b16 %v409
  %v641 = vunpack.c.h.b16 %v409
  %v642 = vunpack.c.l.b16 %v410
  %v643 = vunpack.c.h.b16 %v410
  %v644 = vunpack.c.l.b16 %v411
  %v645 = vunpack.c.h.b16 %v411
  %v646 = vunpack.c.l.b16 %v412
  %v647 = vunpack.c.h.b16 %v412
  %v648 = vunpack.c.l.b16 %v413
  %v649 = vunpack.c.h.b16 %v413
  %v650 = vunpack.c.l.b16 %v414
  %v651 = vunpack.c.h.b16 %v414
  %v652 = vunpack.c.l.b16 %v415
  %v653 = vunpack.c.h.b16 %v415
  %v654 = vunpack.c.l.b16 %v416
  %v655 = vunpack.c.h.b16 %v416
  %v656 = vunpack.c.l.b16 %v417
  %v657 = vunpack.c.h.b16 %v417
  %v658 = vpack.c.b16 %v508, %v498
  %v659 = vpack.c.b16 %v509, %v499
  %v660 = vpack.c.b16 %v510, %v500
  %v661 = vpack.c.b16 %v511, %v501
  %v662 = vpack.c.b16 %v512, %v502
  %v663 = vpack.c.b16 %v513, %v503
  %v664 = vpack.c.b16 %v514, %v504
  %v665 = vpack.c.b16 %v515, %v505
  %v666 = vpack.c.b16 %v516, %v506
  %v667 = vpack.c.b16 %v517, %v507
  %v668 = vpack.c.b16 %v528, %v518
  %v669 = vpack.c.b16 %v529, %v519
  %v670 = vpack.c.b16 %v530, %v520
  %v671 = vpack.c.b16 %v531, %v521
  %v672 = vpack.c.b16 %v532, %v522
  %v673 = vpack.c.b16 %v533, %v523
  %v674 = vpack.c.b16 %v534, %v524
  %v675 = vpack.c.b16 %v535, %v525
  %v676 = vpack.c.b16 %v536, %v526
  %v677 = vpack.c.b16 %v537, %v527
  %v678 = vpack.c.b16 %v548, %v538
  %v679 = vpack.c.b16 %v549, %v539
  %v680 = vpack.c.b16 %v550, %v540
  %v681 = vpack.c.b16 %v551, %v541
  %v682 = vpack.c.b16 %v552, %v542
  %v683 = vpack.c.b16 %v553, %v543
  %v684 = vpack.c.b16 %v554, %v544
  %v685 = vpack.c.b16 %v555, %v545
  %v686 = vpack.c.b16 %v556, %v546
  %v687 = vpack.c.b16 %v557, %v547
  %v688 = vpack.c.b16 %v568, %v558
  %v689 = vpack.c.b16 %v569, %v559
  %v690 = vpack.c.b16 %v570, %v560
  %v691 = vpack.c.b16 %v571, %v561
  %v692 = vpack.c.b16 %v572, %v562
  %v693 = vpack.c.b16 %v573, %v563
  %v694 = vpack.c.b16 %v574, %v564
  %v695 = vpack.c.b16 %v575, %v565
  %v696 = vpack.c.b16 %v576, %v566
  %v697 = vpack.c.b16 %v577, %v567
  %v698 = vpack.c.b16 %v588, %v578
  %v699 = vpack.c.b16 %v589, %v579
  %v700 = vpack.c.b16 %v590, %v580
  %v701 = vpack.c.b16 %v591, %v581
  %v702 = vpack.c.b16 %v592, %v582
  %v703 = vpack.c.b16 %v593, %v583
  %v704 = vpack.c.b16 %v594, %v584
  %v705 = vpack.c.b16 %v595, %v585
  %v706 = vpack.c.b16 %v596, %v586
  %v707 = vpack.c.b16 %v597, %v587
  %v708 = vpack.c.b16 %v608, %v598
  %v709 = vpack.c.b16 %v609, %v599
  %v710 = vpack.c.b16 %v610, %v600
  %v711 = vpack.c.b16 %v611, %v601
  %v712 = vpack.c.b16 %v612, %v602
  %v713 = vpack.c.b16 %v613, %v603
  %v714 = vpack.c.b16 %v614, %v604
  %v715 = vpack.c.b16 %v615, %v605
  %v716 = vpack.c.b16 %v616, %v606
  %v717 = vpack.c.b16 %v617, %v607
  %v718 = vpack.c.b16 %v628, %v618
  %v719 = vpack.c.b16 %v629, %v619
  %v720 = vpack.c.b16 %v630, %v620
  %v721 = vpack.c.b16 %v631, %v621
  %v722 = vpack.c.b16 %v632, %v622
  %v723 = vpack.c.b16 %v633, %v623
  %v724 = vpack.c.b16 %v634, %v624
  %v725 = vpack.c.b16 %v635, %v625
  %v726 = vpack.c.b16 %v636, %v626
  %v727 = vpack.c.b16 %v637, %v627
  %v728 = vpack.c.b16 %v648, %v638
  %v729 = vpack.c.b16 %v649, %v639
  %v730 = vpack.c.b16 %v650, %v640
  %v731 = vpack.c.b16 %v651, %v641
  %v732 = vpack.c.b16 %v652, %v642
  %v733 = vpack.c.b16 %v653, %v643
  %v734 = vpack.c.b16 %v654, %v644
  %v735 = vpack.c.b16 %v655, %v645
  %v736 = vpack.c.b16 %v656, %v646
  %v737 = vpack.c.b16 %v657, %v647
  %818 = vmatprep.subr.bf16.mxu0 %v659
  %819 = vmatpush1.bf16.msra.mxu0 %v658
  %820 = vmatprep.subr.bf16.mxu0 %v669
  %821 = vmatpush1.bf16.msra.mxu0 %v668
  %822 = vmatprep.subr.bf16.mxu0 %v679
  %823 = vmatpush1.bf16.msra.mxu0 %v678
  %824 = vmatprep.subr.bf16.mxu0 %v689
  %825 = vmatpush1.bf16.msra.mxu0 %v688
  %826 = vmatprep.subr.bf16.mxu0 %v699
  %827 = vmatpush1.bf16.msra.mxu0 %v698
  %828 = vmatprep.subr.bf16.mxu0 %v709
  %829 = vmatpush1.bf16.msra.mxu0 %v708
  %830 = vmatprep.subr.bf16.mxu0 %v719
  %831 = vmatpush1.bf16.msra.mxu0 %v718
  %832 = vmatprep.subr.bf16.mxu0 %v729
  %833 = vmatpush1.bf16.msra.mxu0 %v728
  %834 = vmatprep.subr.bf16.mxu0 0
  %835 = vmatpush1.bf16.msra.mxu0 0
  %836 = vmatprep.subr.bf16.mxu0 0
  %837 = vmatpush1.bf16.msra.mxu0 0
  %838 = vmatprep.subr.bf16.mxu0 0
  %839 = vmatpush1.bf16.msra.mxu0 0
  %840 = vmatprep.subr.bf16.mxu0 0
  %841 = vmatpush1.bf16.msra.mxu0 0
  %842 = vmatprep.subr.bf16.mxu0 0
  %843 = vmatpush1.bf16.msra.mxu0 0
  %844 = vmatprep.subr.bf16.mxu0 0
  %845 = vmatpush1.bf16.msra.mxu0 0
  %846 = vmatprep.subr.bf16.mxu0 0
  %847 = vmatpush1.bf16.msra.mxu0 0
  %848 = vmatprep.subr.bf16.mxu0 0
  %849 = vmatpush1.bf16.msra.mxu0 0
  %850 = vmatprep.mubr.bf16.mxu0 0
  %851 = vmatmul.mubr.bf16.gmra.mrb[0].mxu0 %v337
  %v852 = vpop.f32.mrb[0].mxu0
  %v853 = vadd.f32 0.0, %v852
  %v854 = vpop.f32.mrb[0].mxu0
  %v855 = vadd.f32 0.0, %v854
  %v856 = vpop.f32.mrb[0].mxu0
  %v857 = vadd.f32 0.0, %v856
  %v858 = vpop.f32.mrb[0].mxu0
  %v859 = vadd.f32 0.0, %v858
  %860 = vdwg.mxu0
  %861 = vmatprep.subr.bf16.mxu0 %v661
  %862 = vmatpush1.bf16.msra.mxu0 %v660
  %863 = vmatprep.subr.bf16.mxu0 %v671
  %864 = vmatpush1.bf16.msra.mxu0 %v670
  %865 = vmatprep.subr.bf16.mxu0 %v681
  %866 = vmatpush1.bf16.msra.mxu0 %v680
  %867 = vmatprep.subr.bf16.mxu0 %v691
  %868 = vmatpush1.bf16.msra.mxu0 %v690
  %869 = vmatprep.subr.bf16.mxu0 %v701
  %870 = vmatpush1.bf16.msra.mxu0 %v700
  %871 = vmatprep.subr.bf16.mxu0 %v711
  %872 = vmatpush1.bf16.msra.mxu0 %v710
  %873 = vmatprep.subr.bf16.mxu0 %v721
  %874 = vmatpush1.bf16.msra.mxu0 %v720
  %875 = vmatprep.subr.bf16.mxu0 %v731
  %876 = vmatpush1.bf16.msra.mxu0 %v730
  %877 = vmatprep.subr.bf16.mxu0 0
  %878 = vmatpush1.bf16.msra.mxu0 0
  %879 = vmatprep.subr.bf16.mxu0 0
  %880 = vmatpush1.bf16.msra.mxu0 0
  %881 = vmatprep.subr.bf16.mxu0 0
  %882 = vmatpush1.bf16.msra.mxu0 0
  %883 = vmatprep.subr.bf16.mxu0 0
  %884 = vmatpush1.bf16.msra.mxu0 0
  %885 = vmatprep.subr.bf16.mxu0 0
  %886 = vmatpush1.bf16.msra.mxu0 0
  %887 = vmatprep.subr.bf16.mxu0 0
  %888 = vmatpush1.bf16.msra.mxu0 0
  %889 = vmatprep.subr.bf16.mxu0 0
  %890 = vmatpush1.bf16.msra.mxu0 0
  %891 = vmatprep.subr.bf16.mxu0 0
  %892 = vmatpush1.bf16.msra.mxu0 0
  %893 = vmatprep.mubr.bf16.mxu0 0
  %894 = vmatmul.mubr.bf16.gmra.mrb[0].mxu0 %v337
  %v895 = vpop.f32.mrb[0].mxu0
  %v896 = vadd.f32 0.0, %v895
  %v897 = vpop.f32.mrb[0].mxu0
  %v898 = vadd.f32 0.0, %v897
  %v899 = vpop.f32.mrb[0].mxu0
  %v900 = vadd.f32 0.0, %v899
  %v901 = vpop.f32.mrb[0].mxu0
  %v902 = vadd.f32 0.0, %v901
  %903 = vdwg.mxu0
  %904 = vmatprep.subr.bf16.mxu0 %v663
  %905 = vmatpush1.bf16.msra.mxu0 %v662
  %906 = vmatprep.subr.bf16.mxu0 %v673
  %907 = vmatpush1.bf16.msra.mxu0 %v672
  %908 = vmatprep.subr.bf16.mxu0 %v683
  %909 = vmatpush1.bf16.msra.mxu0 %v682
  %910 = vmatprep.subr.bf16.mxu0 %v693
  %911 = vmatpush1.bf16.msra.mxu0 %v692
  %912 = vmatprep.subr.bf16.mxu0 %v703
  %913 = vmatpush1.bf16.msra.mxu0 %v702
  %914 = vmatprep.subr.bf16.mxu0 %v713
  %915 = vmatpush1.bf16.msra.mxu0 %v712
  %916 = vmatprep.subr.bf16.mxu0 %v723
  %917 = vmatpush1.bf16.msra.mxu0 %v722
  %918 = vmatprep.subr.bf16.mxu0 %v733
  %919 = vmatpush1.bf16.msra.mxu0 %v732
  %920 = vmatprep.subr.bf16.mxu0 0
  %921 = vmatpush1.bf16.msra.mxu0 0
  %922 = vmatprep.subr.bf16.mxu0 0
  %923 = vmatpush1.bf16.msra.mxu0 0
  %924 = vmatprep.subr.bf16.mxu0 0
  %925 = vmatpush1.bf16.msra.mxu0 0
  %926 = vmatprep.subr.bf16.mxu0 0
  %927 = vmatpush1.bf16.msra.mxu0 0
  %928 = vmatprep.subr.bf16.mxu0 0
  %929 = vmatpush1.bf16.msra.mxu0 0
  %930 = vmatprep.subr.bf16.mxu0 0
  %931 = vmatpush1.bf16.msra.mxu0 0
  %932 = vmatprep.subr.bf16.mxu0 0
  %933 = vmatpush1.bf16.msra.mxu0 0
  %934 = vmatprep.subr.bf16.mxu0 0
  %935 = vmatpush1.bf16.msra.mxu0 0
  %936 = vmatprep.mubr.bf16.mxu0 0
  %937 = vmatmul.mubr.bf16.gmra.mrb[0].mxu0 %v337
  %v938 = vpop.f32.mrb[0].mxu0
  %v939 = vadd.f32 0.0, %v938
  %v940 = vpop.f32.mrb[0].mxu0
  %v941 = vadd.f32 0.0, %v940
  %v942 = vpop.f32.mrb[0].mxu0
  %v943 = vadd.f32 0.0, %v942
  %v944 = vpop.f32.mrb[0].mxu0
  %v945 = vadd.f32 0.0, %v944
  %946 = vdwg.mxu0
  %947 = vmatprep.subr.bf16.mxu0 %v665
  %948 = vmatpush1.bf16.msra.mxu0 %v664
  %949 = vmatprep.subr.bf16.mxu0 %v675
  %950 = vmatpush1.bf16.msra.mxu0 %v674
  %951 = vmatprep.subr.bf16.mxu0 %v685
  %952 = vmatpush1.bf16.msra.mxu0 %v684
  %953 = vmatprep.subr.bf16.mxu0 %v695
  %954 = vmatpush1.bf16.msra.mxu0 %v694
  %955 = vmatprep.subr.bf16.mxu0 %v705
  %956 = vmatpush1.bf16.msra.mxu0 %v704
  %957 = vmatprep.subr.bf16.mxu0 %v715
  %958 = vmatpush1.bf16.msra.mxu0 %v714
  %959 = vmatprep.subr.bf16.mxu0 %v725
  %960 = vmatpush1.bf16.msra.mxu0 %v724
  %961 = vmatprep.subr.bf16.mxu0 %v735
  %962 = vmatpush1.bf16.msra.mxu0 %v734
  %963 = vmatprep.subr.bf16.mxu0 0
  %964 = vmatpush1.bf16.msra.mxu0 0
  %965 = vmatprep.subr.bf16.mxu0 0
  %966 = vmatpush1.bf16.msra.mxu0 0
  %967 = vmatprep.subr.bf16.mxu0 0
  %968 = vmatpush1.bf16.msra.mxu0 0
  %969 = vmatprep.subr.bf16.mxu0 0
  %970 = vmatpush1.bf16.msra.mxu0 0
  %971 = vmatprep.subr.bf16.mxu0 0
  %972 = vmatpush1.bf16.msra.mxu0 0
  %973 = vmatprep.subr.bf16.mxu0 0
  %974 = vmatpush1.bf16.msra.mxu0 0
  %975 = vmatprep.subr.bf16.mxu0 0
  %976 = vmatpush1.bf16.msra.mxu0 0
  %977 = vmatprep.subr.bf16.mxu0 0
  %978 = vmatpush1.bf16.msra.mxu0 0
  %979 = vmatprep.mubr.bf16.mxu0 0
  %980 = vmatmul.mubr.bf16.gmra.mrb[0].mxu0 %v337
  %v981 = vpop.f32.mrb[0].mxu0
  %v982 = vadd.f32 0.0, %v981
  %v983 = vpop.f32.mrb[0].mxu0
  %v984 = vadd.f32 0.0, %v983
  %v985 = vpop.f32.mrb[0].mxu0
  %v986 = vadd.f32 0.0, %v985
  %v987 = vpop.f32.mrb[0].mxu0
  %v988 = vadd.f32 0.0, %v987
  %989 = vdwg.mxu0
  %990 = vmatprep.subr.bf16.mxu0 %v667
  %991 = vmatpush1.bf16.msra.mxu0 %v666
  %992 = vmatprep.subr.bf16.mxu0 %v677
  %993 = vmatpush1.bf16.msra.mxu0 %v676
  %994 = vmatprep.subr.bf16.mxu0 %v687
  %995 = vmatpush1.bf16.msra.mxu0 %v686
  %996 = vmatprep.subr.bf16.mxu0 %v697
  %997 = vmatpush1.bf16.msra.mxu0 %v696
  %998 = vmatprep.subr.bf16.mxu0 %v707
  %999 = vmatpush1.bf16.msra.mxu0 %v706
  %1000 = vmatprep.subr.bf16.mxu0 %v717
  %1001 = vmatpush1.bf16.msra.mxu0 %v716
  %1002 = vmatprep.subr.bf16.mxu0 %v727
  %1003 = vmatpush1.bf16.msra.mxu0 %v726
  %1004 = vmatprep.subr.bf16.mxu0 %v737
  %1005 = vmatpush1.bf16.msra.mxu0 %v736
  %1006 = vmatprep.subr.bf16.mxu0 0
  %1007 = vmatpush1.bf16.msra.mxu0 0
  %1008 = vmatprep.subr.bf16.mxu0 0
  %1009 = vmatpush1.bf16.msra.mxu0 0
  %1010 = vmatprep.subr.bf16.mxu0 0
  %1011 = vmatpush1.bf16.msra.mxu0 0
  %1012 = vmatprep.subr.bf16.mxu0 0
  %1013 = vmatpush1.bf16.msra.mxu0 0
  %1014 = vmatprep.subr.bf16.mxu0 0
  %1015 = vmatpush1.bf16.msra.mxu0 0
  %1016 = vmatprep.subr.bf16.mxu0 0
  %1017 = vmatpush1.bf16.msra.mxu0 0
  %1018 = vmatprep.subr.bf16.mxu0 0
  %1019 = vmatpush1.bf16.msra.mxu0 0
  %1020 = vmatprep.subr.bf16.mxu0 0
  %1021 = vmatpush1.bf16.msra.mxu0 0
  %1022 = vmatprep.mubr.bf16.mxu0 0
  %1023 = vmatmul.mubr.bf16.gmra.mrb[0].mxu0 %v337
  %v1024 = vpop.f32.mrb[0].mxu0
  %v1025 = vadd.f32 0.0, %v1024
  %v1026 = vpop.f32.mrb[0].mxu0
  %v1027 = vadd.f32 0.0, %v1026
  %v1028 = vpop.f32.mrb[0].mxu0
  %v1029 = vadd.f32 0.0, %v1028
  %v1030 = vpop.f32.mrb[0].mxu0
  %v1031 = vadd.f32 0.0, %v1030
  %1032 = vdwg.mxu0
  %v1043 = vcombine.low %v853, %v855
  %v1044 = vcombine.high %v853, %v855
  %v1045 = vcombine.low %v896, %v898
  %v1046 = vcombine.high %v896, %v898
  %v1047 = vcombine.high %v939, %v939
  %v1049 = vunpack.c.l.s4 1966171168
  %v1050 = vunpack.c.0.s8 %v1049
  %v1051 = vlaneseq
  %v1052 = vshrl.u32 %v1051, 7
  %v1053 = vsub.s32 %v1050, %v1052
  %v1054 = vrot.slane %v1043, %v1053
  %v1056 = vunpack.c.l.s4 1966171168
  %v1057 = vunpack.c.0.s8 %v1056
  %v1058 = vlaneseq
  %v1059 = vshrl.u32 %v1058, 7
  %v1060 = vsub.s32 %v1057, %v1059
  %v1061 = vrot.slane %v1044, %v1060
  %v1063 = vunpack.c.l.s4 1966171168
  %v1064 = vunpack.c.0.s8 %v1063
  %v1065 = vlaneseq
  %v1066 = vshrl.u32 %v1065, 7
  %v1067 = vsub.s32 %v1064, %v1066
  %v1068 = vrot.slane %v1045, %v1067
  %v1070 = vunpack.c.l.s4 1966171168
  %v1071 = vunpack.c.0.s8 %v1070
  %v1072 = vlaneseq
  %v1073 = vshrl.u32 %v1072, 7
  %v1074 = vsub.s32 %v1071, %v1073
  %v1075 = vrot.slane %v1046, %v1074
  %v1077 = vunpack.c.l.s4 1966171168
  %v1078 = vunpack.c.0.s8 %v1077
  %v1079 = vlaneseq
  %v1080 = vshrl.u32 %v1079, 7
  %v1081 = vsub.s32 %v1078, %v1080
  %v1082 = vrot.slane %v939, %v1081
  %v1084 = vunpack.c.l.s4 1966171168
  %v1085 = vunpack.c.0.s8 %v1084
  %v1086 = vlaneseq
  %v1087 = vshrl.u32 %v1086, 7
  %v1088 = vsub.s32 %v1085, %v1087
  %v1089 = vrot.slane %v1047, %v1088
  %v1090 = vcombine.low %v1054, %v1068
  %v1091 = vcombine.high %v1054, %v1068
  %v1092 = vcombine.low %v1061, %v1075
  %v1093 = vcombine.high %v1061, %v1075
  %v1094 = vcombine.high %v1082, %v1082
  %v1095 = vcombine.high %v1089, %v1089
  %v1097 = vunpack.c.l.s4 1966171168
  %v1098 = vunpack.c.0.s8 %v1097
  %v1099 = vlaneseq
  %v1100 = vshrl.u32 %v1099, 7
  %v1101 = vsub.s32 %v1098, %v1100
  %v1102 = vrot.slane %v1090, %v1101
  %v1104 = vunpack.c.l.s4 1966171168
  %v1105 = vunpack.c.0.s8 %v1104
  %v1106 = vlaneseq
  %v1107 = vshrl.u32 %v1106, 7
  %v1108 = vsub.s32 %v1105, %v1107
  %v1109 = vrot.slane %v1092, %v1108
  %v1111 = vunpack.c.l.s4 1966171168
  %v1112 = vunpack.c.0.s8 %v1111
  %v1113 = vlaneseq
  %v1114 = vshrl.u32 %v1113, 7
  %v1115 = vsub.s32 %v1112, %v1114
  %v1116 = vrot.slane %v1091, %v1115
  %v1118 = vunpack.c.l.s4 1966171168
  %v1119 = vunpack.c.0.s8 %v1118
  %v1120 = vlaneseq
  %v1121 = vshrl.u32 %v1120, 7
  %v1122 = vsub.s32 %v1119, %v1121
  %v1123 = vrot.slane %v1093, %v1122
  %v1125 = vunpack.c.l.s4 1966171168
  %v1126 = vunpack.c.0.s8 %v1125
  %v1127 = vlaneseq
  %v1128 = vshrl.u32 %v1127, 7
  %v1129 = vsub.s32 %v1126, %v1128
  %v1130 = vrot.slane %v1082, %v1129
  %v1132 = vunpack.c.l.s4 1966171168
  %v1133 = vunpack.c.0.s8 %v1132
  %v1134 = vlaneseq
  %v1135 = vshrl.u32 %v1134, 7
  %v1136 = vsub.s32 %v1133, %v1135
  %v1137 = vrot.slane %v1089, %v1136
  %v1139 = vunpack.c.l.s4 1966171168
  %v1140 = vunpack.c.0.s8 %v1139
  %v1141 = vlaneseq
  %v1142 = vshrl.u32 %v1141, 7
  %v1143 = vsub.s32 %v1140, %v1142
  %v1144 = vrot.slane %v1094, %v1143
  %v1146 = vunpack.c.l.s4 1966171168
  %v1147 = vunpack.c.0.s8 %v1146
  %v1148 = vlaneseq
  %v1149 = vshrl.u32 %v1148, 7
  %v1150 = vsub.s32 %v1147, %v1149
  %v1151 = vrot.slane %v1095, %v1150
  %v1152 = vcombine.low %v1102, %v1130
  %v1153 = vcombine.high %v1102, %v1130
  %v1154 = vcombine.low %v1109, %v1137
  %v1155 = vcombine.high %v1109, %v1137
  %v1156 = vcombine.low %v1116, %v1144
  %v1157 = vcombine.high %v1116, %v1144
  %v1158 = vcombine.low %v1123, %v1151
  %v1159 = vcombine.high %v1123, %v1151
  %v1160 = vcombine.low %v857, %v859
  %v1161 = vcombine.high %v857, %v859
  %v1162 = vcombine.low %v900, %v902
  %v1163 = vcombine.high %v900, %v902
  %v1164 = vcombine.high %v943, %v943
  %v1166 = vunpack.c.l.s4 1966171168
  %v1167 = vunpack.c.0.s8 %v1166
  %v1168 = vlaneseq
  %v1169 = vshrl.u32 %v1168, 7
  %v1170 = vsub.s32 %v1167, %v1169
  %v1171 = vrot.slane %v1160, %v1170
  %v1173 = vunpack.c.l.s4 1966171168
  %v1174 = vunpack.c.0.s8 %v1173
  %v1175 = vlaneseq
  %v1176 = vshrl.u32 %v1175, 7
  %v1177 = vsub.s32 %v1174, %v1176
  %v1178 = vrot.slane %v1161, %v1177
  %v1180 = vunpack.c.l.s4 1966171168
  %v1181 = vunpack.c.0.s8 %v1180
  %v1182 = vlaneseq
  %v1183 = vshrl.u32 %v1182, 7
  %v1184 = vsub.s32 %v1181, %v1183
  %v1185 = vrot.slane %v1162, %v1184
  %v1187 = vunpack.c.l.s4 1966171168
  %v1188 = vunpack.c.0.s8 %v1187
  %v1189 = vlaneseq
  %v1190 = vshrl.u32 %v1189, 7
  %v1191 = vsub.s32 %v1188, %v1190
  %v1192 = vrot.slane %v1163, %v1191
  %v1194 = vunpack.c.l.s4 1966171168
  %v1195 = vunpack.c.0.s8 %v1194
  %v1196 = vlaneseq
  %v1197 = vshrl.u32 %v1196, 7
  %v1198 = vsub.s32 %v1195, %v1197
  %v1199 = vrot.slane %v943, %v1198
  %v1201 = vunpack.c.l.s4 1966171168
  %v1202 = vunpack.c.0.s8 %v1201
  %v1203 = vlaneseq
  %v1204 = vshrl.u32 %v1203, 7
  %v1205 = vsub.s32 %v1202, %v1204
  %v1206 = vrot.slane %v1164, %v1205
  %v1207 = vcombine.low %v1171, %v1185
  %v1208 = vcombine.high %v1171, %v1185
  %v1209 = vcombine.low %v1178, %v1192
  %v1210 = vcombine.high %v1178, %v1192
  %v1211 = vcombine.high %v1199, %v1199
  %v1212 = vcombine.high %v1206, %v1206
  %v1214 = vunpack.c.l.s4 1966171168
  %v1215 = vunpack.c.0.s8 %v1214
  %v1216 = vlaneseq
  %v1217 = vshrl.u32 %v1216, 7
  %v1218 = vsub.s32 %v1215, %v1217
  %v1219 = vrot.slane %v1207, %v1218
  %v1221 = vunpack.c.l.s4 1966171168
  %v1222 = vunpack.c.0.s8 %v1221
  %v1223 = vlaneseq
  %v1224 = vshrl.u32 %v1223, 7
  %v1225 = vsub.s32 %v1222, %v1224
  %v1226 = vrot.slane %v1209, %v1225
  %v1228 = vunpack.c.l.s4 1966171168
  %v1229 = vunpack.c.0.s8 %v1228
  %v1230 = vlaneseq
  %v1231 = vshrl.u32 %v1230, 7
  %v1232 = vsub.s32 %v1229, %v1231
  %v1233 = vrot.slane %v1208, %v1232
  %v1235 = vunpack.c.l.s4 1966171168
  %v1236 = vunpack.c.0.s8 %v1235
  %v1237 = vlaneseq
  %v1238 = vshrl.u32 %v1237, 7
  %v1239 = vsub.s32 %v1236, %v1238
  %v1240 = vrot.slane %v1210, %v1239
  %v1242 = vunpack.c.l.s4 1966171168
  %v1243 = vunpack.c.0.s8 %v1242
  %v1244 = vlaneseq
  %v1245 = vshrl.u32 %v1244, 7
  %v1246 = vsub.s32 %v1243, %v1245
  %v1247 = vrot.slane %v1199, %v1246
  %v1249 = vunpack.c.l.s4 1966171168
  %v1250 = vunpack.c.0.s8 %v1249
  %v1251 = vlaneseq
  %v1252 = vshrl.u32 %v1251, 7
  %v1253 = vsub.s32 %v1250, %v1252
  %v1254 = vrot.slane %v1206, %v1253
  %v1256 = vunpack.c.l.s4 1966171168
  %v1257 = vunpack.c.0.s8 %v1256
  %v1258 = vlaneseq
  %v1259 = vshrl.u32 %v1258, 7
  %v1260 = vsub.s32 %v1257, %v1259
  %v1261 = vrot.slane %v1211, %v1260
  %v1263 = vunpack.c.l.s4 1966171168
  %v1264 = vunpack.c.0.s8 %v1263
  %v1265 = vlaneseq
  %v1266 = vshrl.u32 %v1265, 7
  %v1267 = vsub.s32 %v1264, %v1266
  %v1268 = vrot.slane %v1212, %v1267
  %v1269 = vcombine.low %v1219, %v1247
  %v1270 = vcombine.high %v1219, %v1247
  %v1271 = vcombine.low %v1226, %v1254
  %v1272 = vcombine.high %v1226, %v1254
  %v1273 = vcombine.low %v1233, %v1261
  %v1274 = vcombine.high %v1233, %v1261
  %v1275 = vcombine.low %v1240, %v1268
  %v1276 = vcombine.high %v1240, %v1268
  %v1277 = vlaneseq
  %v1278 = vshrl.u32 %v1277, 7
  %v1279 = vsub.s32 0, %v1278
  %v1280 = vrot.slane %v1152, %v1279
  %v1281 = vlaneseq
  %v1282 = vshrl.u32 %v1281, 7
  %v1283 = vsub.s32 1, %v1282
  %v1284 = vrot.slane %v1152, %v1283
  %v1285 = vlaneseq
  %v1286 = vshrl.u32 %v1285, 7
  %v1287 = vsub.s32 2, %v1286
  %v1288 = vrot.slane %v1152, %v1287
  %v1289 = vlaneseq
  %v1290 = vshrl.u32 %v1289, 7
  %v1291 = vsub.s32 3, %v1290
  %v1292 = vrot.slane %v1152, %v1291
  %v1293 = vlaneseq
  %v1294 = vshrl.u32 %v1293, 7
  %v1295 = vsub.s32 4, %v1294
  %v1296 = vrot.slane %v1152, %v1295
  %v1297 = vlaneseq
  %v1298 = vshrl.u32 %v1297, 7
  %v1299 = vsub.s32 0, %v1298
  %v1300 = vrot.slane %v1156, %v1299
  %v1301 = vlaneseq
  %v1302 = vshrl.u32 %v1301, 7
  %v1303 = vsub.s32 1, %v1302
  %v1304 = vrot.slane %v1156, %v1303
  %v1305 = vlaneseq
  %v1306 = vshrl.u32 %v1305, 7
  %v1307 = vsub.s32 2, %v1306
  %v1308 = vrot.slane %v1156, %v1307
  %v1309 = vlaneseq
  %v1310 = vshrl.u32 %v1309, 7
  %v1311 = vsub.s32 3, %v1310
  %v1312 = vrot.slane %v1156, %v1311
  %v1313 = vlaneseq
  %v1314 = vshrl.u32 %v1313, 7
  %v1315 = vsub.s32 4, %v1314
  %v1316 = vrot.slane %v1156, %v1315
  %v1317 = vlaneseq
  %v1318 = vshrl.u32 %v1317, 7
  %v1319 = vsub.s32 0, %v1318
  %v1320 = vrot.slane %v1153, %v1319
  %v1321 = vlaneseq
  %v1322 = vshrl.u32 %v1321, 7
  %v1323 = vsub.s32 1, %v1322
  %v1324 = vrot.slane %v1153, %v1323
  %v1325 = vlaneseq
  %v1326 = vshrl.u32 %v1325, 7
  %v1327 = vsub.s32 2, %v1326
  %v1328 = vrot.slane %v1153, %v1327
  %v1329 = vlaneseq
  %v1330 = vshrl.u32 %v1329, 7
  %v1331 = vsub.s32 3, %v1330
  %v1332 = vrot.slane %v1153, %v1331
  %v1333 = vlaneseq
  %v1334 = vshrl.u32 %v1333, 7
  %v1335 = vsub.s32 4, %v1334
  %v1336 = vrot.slane %v1153, %v1335
  %v1337 = vlaneseq
  %v1338 = vshrl.u32 %v1337, 7
  %v1339 = vsub.s32 0, %v1338
  %v1340 = vrot.slane %v1157, %v1339
  %v1341 = vlaneseq
  %v1342 = vshrl.u32 %v1341, 7
  %v1343 = vsub.s32 1, %v1342
  %v1344 = vrot.slane %v1157, %v1343
  %v1345 = vlaneseq
  %v1346 = vshrl.u32 %v1345, 7
  %v1347 = vsub.s32 2, %v1346
  %v1348 = vrot.slane %v1157, %v1347
  %v1349 = vlaneseq
  %v1350 = vshrl.u32 %v1349, 7
  %v1351 = vsub.s32 3, %v1350
  %v1352 = vrot.slane %v1157, %v1351
  %v1353 = vlaneseq
  %v1354 = vshrl.u32 %v1353, 7
  %v1355 = vsub.s32 4, %v1354
  %v1356 = vrot.slane %v1157, %v1355
  %v1357 = vlaneseq
  %v1358 = vshrl.u32 %v1357, 7
  %v1359 = vsub.s32 0, %v1358
  %v1360 = vrot.slane %v1154, %v1359
  %v1361 = vlaneseq
  %v1362 = vshrl.u32 %v1361, 7
  %v1363 = vsub.s32 1, %v1362
  %v1364 = vrot.slane %v1154, %v1363
  %v1365 = vlaneseq
  %v1366 = vshrl.u32 %v1365, 7
  %v1367 = vsub.s32 2, %v1366
  %v1368 = vrot.slane %v1154, %v1367
  %v1369 = vlaneseq
  %v1370 = vshrl.u32 %v1369, 7
  %v1371 = vsub.s32 3, %v1370
  %v1372 = vrot.slane %v1154, %v1371
  %v1373 = vlaneseq
  %v1374 = vshrl.u32 %v1373, 7
  %v1375 = vsub.s32 4, %v1374
  %v1376 = vrot.slane %v1154, %v1375
  %v1377 = vlaneseq
  %v1378 = vshrl.u32 %v1377, 7
  %v1379 = vsub.s32 0, %v1378
  %v1380 = vrot.slane %v1158, %v1379
  %v1381 = vlaneseq
  %v1382 = vshrl.u32 %v1381, 7
  %v1383 = vsub.s32 1, %v1382
  %v1384 = vrot.slane %v1158, %v1383
  %v1385 = vlaneseq
  %v1386 = vshrl.u32 %v1385, 7
  %v1387 = vsub.s32 2, %v1386
  %v1388 = vrot.slane %v1158, %v1387
  %v1389 = vlaneseq
  %v1390 = vshrl.u32 %v1389, 7
  %v1391 = vsub.s32 3, %v1390
  %v1392 = vrot.slane %v1158, %v1391
  %v1393 = vlaneseq
  %v1394 = vshrl.u32 %v1393, 7
  %v1395 = vsub.s32 4, %v1394
  %v1396 = vrot.slane %v1158, %v1395
  %v1397 = vlaneseq
  %v1398 = vshrl.u32 %v1397, 7
  %v1399 = vsub.s32 0, %v1398
  %v1400 = vrot.slane %v1155, %v1399
  %v1401 = vlaneseq
  %v1402 = vshrl.u32 %v1401, 7
  %v1403 = vsub.s32 1, %v1402
  %v1404 = vrot.slane %v1155, %v1403
  %v1405 = vlaneseq
  %v1406 = vshrl.u32 %v1405, 7
  %v1407 = vsub.s32 2, %v1406
  %v1408 = vrot.slane %v1155, %v1407
  %v1409 = vlaneseq
  %v1410 = vshrl.u32 %v1409, 7
  %v1411 = vsub.s32 3, %v1410
  %v1412 = vrot.slane %v1155, %v1411
  %v1413 = vlaneseq
  %v1414 = vshrl.u32 %v1413, 7
  %v1415 = vsub.s32 4, %v1414
  %v1416 = vrot.slane %v1155, %v1415
  %v1417 = vlaneseq
  %v1418 = vshrl.u32 %v1417, 7
  %v1419 = vsub.s32 0, %v1418
  %v1420 = vrot.slane %v1159, %v1419
  %v1421 = vlaneseq
  %v1422 = vshrl.u32 %v1421, 7
  %v1423 = vsub.s32 1, %v1422
  %v1424 = vrot.slane %v1159, %v1423
  %v1425 = vlaneseq
  %v1426 = vshrl.u32 %v1425, 7
  %v1427 = vsub.s32 2, %v1426
  %v1428 = vrot.slane %v1159, %v1427
  %v1429 = vlaneseq
  %v1430 = vshrl.u32 %v1429, 7
  %v1431 = vsub.s32 3, %v1430
  %v1432 = vrot.slane %v1159, %v1431
  %v1433 = vlaneseq
  %v1434 = vshrl.u32 %v1433, 7
  %v1435 = vsub.s32 4, %v1434
  %v1436 = vrot.slane %v1159, %v1435
  %v1437 = vlaneseq
  %v1438 = vshrl.u32 %v1437, 7
  %v1439 = vsub.s32 0, %v1438
  %v1440 = vrot.slane %v1269, %v1439
  %v1441 = vlaneseq
  %v1442 = vshrl.u32 %v1441, 7
  %v1443 = vsub.s32 1, %v1442
  %v1444 = vrot.slane %v1269, %v1443
  %v1445 = vlaneseq
  %v1446 = vshrl.u32 %v1445, 7
  %v1447 = vsub.s32 2, %v1446
  %v1448 = vrot.slane %v1269, %v1447
  %v1449 = vlaneseq
  %v1450 = vshrl.u32 %v1449, 7
  %v1451 = vsub.s32 3, %v1450
  %v1452 = vrot.slane %v1269, %v1451
  %v1453 = vlaneseq
  %v1454 = vshrl.u32 %v1453, 7
  %v1455 = vsub.s32 4, %v1454
  %v1456 = vrot.slane %v1269, %v1455
  %v1457 = vlaneseq
  %v1458 = vshrl.u32 %v1457, 7
  %v1459 = vsub.s32 0, %v1458
  %v1460 = vrot.slane %v1273, %v1459
  %v1461 = vlaneseq
  %v1462 = vshrl.u32 %v1461, 7
  %v1463 = vsub.s32 1, %v1462
  %v1464 = vrot.slane %v1273, %v1463
  %v1465 = vlaneseq
  %v1466 = vshrl.u32 %v1465, 7
  %v1467 = vsub.s32 2, %v1466
  %v1468 = vrot.slane %v1273, %v1467
  %v1469 = vlaneseq
  %v1470 = vshrl.u32 %v1469, 7
  %v1471 = vsub.s32 3, %v1470
  %v1472 = vrot.slane %v1273, %v1471
  %v1473 = vlaneseq
  %v1474 = vshrl.u32 %v1473, 7
  %v1475 = vsub.s32 4, %v1474
  %v1476 = vrot.slane %v1273, %v1475
  %v1477 = vlaneseq
  %v1478 = vshrl.u32 %v1477, 7
  %v1479 = vsub.s32 0, %v1478
  %v1480 = vrot.slane %v1270, %v1479
  %v1481 = vlaneseq
  %v1482 = vshrl.u32 %v1481, 7
  %v1483 = vsub.s32 1, %v1482
  %v1484 = vrot.slane %v1270, %v1483
  %v1485 = vlaneseq
  %v1486 = vshrl.u32 %v1485, 7
  %v1487 = vsub.s32 2, %v1486
  %v1488 = vrot.slane %v1270, %v1487
  %v1489 = vlaneseq
  %v1490 = vshrl.u32 %v1489, 7
  %v1491 = vsub.s32 3, %v1490
  %v1492 = vrot.slane %v1270, %v1491
  %v1493 = vlaneseq
  %v1494 = vshrl.u32 %v1493, 7
  %v1495 = vsub.s32 4, %v1494
  %v1496 = vrot.slane %v1270, %v1495
  %v1497 = vlaneseq
  %v1498 = vshrl.u32 %v1497, 7
  %v1499 = vsub.s32 0, %v1498
  %v1500 = vrot.slane %v1274, %v1499
  %v1501 = vlaneseq
  %v1502 = vshrl.u32 %v1501, 7
  %v1503 = vsub.s32 1, %v1502
  %v1504 = vrot.slane %v1274, %v1503
  %v1505 = vlaneseq
  %v1506 = vshrl.u32 %v1505, 7
  %v1507 = vsub.s32 2, %v1506
  %v1508 = vrot.slane %v1274, %v1507
  %v1509 = vlaneseq
  %v1510 = vshrl.u32 %v1509, 7
  %v1511 = vsub.s32 3, %v1510
  %v1512 = vrot.slane %v1274, %v1511
  %v1513 = vlaneseq
  %v1514 = vshrl.u32 %v1513, 7
  %v1515 = vsub.s32 4, %v1514
  %v1516 = vrot.slane %v1274, %v1515
  %v1517 = vlaneseq
  %v1518 = vshrl.u32 %v1517, 7
  %v1519 = vsub.s32 0, %v1518
  %v1520 = vrot.slane %v1271, %v1519
  %v1521 = vlaneseq
  %v1522 = vshrl.u32 %v1521, 7
  %v1523 = vsub.s32 1, %v1522
  %v1524 = vrot.slane %v1271, %v1523
  %v1525 = vlaneseq
  %v1526 = vshrl.u32 %v1525, 7
  %v1527 = vsub.s32 2, %v1526
  %v1528 = vrot.slane %v1271, %v1527
  %v1529 = vlaneseq
  %v1530 = vshrl.u32 %v1529, 7
  %v1531 = vsub.s32 3, %v1530
  %v1532 = vrot.slane %v1271, %v1531
  %v1533 = vlaneseq
  %v1534 = vshrl.u32 %v1533, 7
  %v1535 = vsub.s32 4, %v1534
  %v1536 = vrot.slane %v1271, %v1535
  %v1537 = vlaneseq
  %v1538 = vshrl.u32 %v1537, 7
  %v1539 = vsub.s32 0, %v1538
  %v1540 = vrot.slane %v1275, %v1539
  %v1541 = vlaneseq
  %v1542 = vshrl.u32 %v1541, 7
  %v1543 = vsub.s32 1, %v1542
  %v1544 = vrot.slane %v1275, %v1543
  %v1545 = vlaneseq
  %v1546 = vshrl.u32 %v1545, 7
  %v1547 = vsub.s32 2, %v1546
  %v1548 = vrot.slane %v1275, %v1547
  %v1549 = vlaneseq
  %v1550 = vshrl.u32 %v1549, 7
  %v1551 = vsub.s32 3, %v1550
  %v1552 = vrot.slane %v1275, %v1551
  %v1553 = vlaneseq
  %v1554 = vshrl.u32 %v1553, 7
  %v1555 = vsub.s32 4, %v1554
  %v1556 = vrot.slane %v1275, %v1555
  %v1557 = vlaneseq
  %v1558 = vshrl.u32 %v1557, 7
  %v1559 = vsub.s32 0, %v1558
  %v1560 = vrot.slane %v1272, %v1559
  %v1561 = vlaneseq
  %v1562 = vshrl.u32 %v1561, 7
  %v1563 = vsub.s32 1, %v1562
  %v1564 = vrot.slane %v1272, %v1563
  %v1565 = vlaneseq
  %v1566 = vshrl.u32 %v1565, 7
  %v1567 = vsub.s32 2, %v1566
  %v1568 = vrot.slane %v1272, %v1567
  %v1569 = vlaneseq
  %v1570 = vshrl.u32 %v1569, 7
  %v1571 = vsub.s32 3, %v1570
  %v1572 = vrot.slane %v1272, %v1571
  %v1573 = vlaneseq
  %v1574 = vshrl.u32 %v1573, 7
  %v1575 = vsub.s32 4, %v1574
  %v1576 = vrot.slane %v1272, %v1575
  %v1577 = vlaneseq
  %v1578 = vshrl.u32 %v1577, 7
  %v1579 = vsub.s32 0, %v1578
  %v1580 = vrot.slane %v1276, %v1579
  %v1581 = vlaneseq
  %v1582 = vshrl.u32 %v1581, 7
  %v1583 = vsub.s32 1, %v1582
  %v1584 = vrot.slane %v1276, %v1583
  %v1585 = vlaneseq
  %v1586 = vshrl.u32 %v1585, 7
  %v1587 = vsub.s32 2, %v1586
  %v1588 = vrot.slane %v1276, %v1587
  %v1589 = vlaneseq
  %v1590 = vshrl.u32 %v1589, 7
  %v1591 = vsub.s32 3, %v1590
  %v1592 = vrot.slane %v1276, %v1591
  %v1593 = vlaneseq
  %v1594 = vshrl.u32 %v1593, 7
  %v1595 = vsub.s32 4, %v1594
  %v1596 = vrot.slane %v1276, %v1595
  %v1677 = vadd.f32 %v1280, %v941
  %v1678 = vadd.f32 %v1284, %v982
  %v1679 = vadd.f32 %v1288, %v984
  %v1680 = vadd.f32 %v1292, %v1025
  %v1681 = vadd.f32 %v1296, %v1027
  %v1682 = vadd.f32 %v1300, %v941
  %v1683 = vadd.f32 %v1304, %v982
  %v1684 = vadd.f32 %v1308, %v984
  %v1685 = vadd.f32 %v1312, %v1025
  %v1686 = vadd.f32 %v1316, %v1027
  %v1687 = vadd.f32 %v1320, %v941
  %v1688 = vadd.f32 %v1324, %v982
  %v1689 = vadd.f32 %v1328, %v984
  %v1690 = vadd.f32 %v1332, %v1025
  %v1691 = vadd.f32 %v1336, %v1027
  %v1692 = vadd.f32 %v1340, %v941
  %v1693 = vadd.f32 %v1344, %v982
  %v1694 = vadd.f32 %v1348, %v984
  %v1695 = vadd.f32 %v1352, %v1025
  %v1696 = vadd.f32 %v1356, %v1027
  %v1697 = vadd.f32 %v1360, %v941
  %v1698 = vadd.f32 %v1364, %v982
  %v1699 = vadd.f32 %v1368, %v984
  %v1700 = vadd.f32 %v1372, %v1025
  %v1701 = vadd.f32 %v1376, %v1027
  %v1702 = vadd.f32 %v1380, %v941
  %v1703 = vadd.f32 %v1384, %v982
  %v1704 = vadd.f32 %v1388, %v984
  %v1705 = vadd.f32 %v1392, %v1025
  %v1706 = vadd.f32 %v1396, %v1027
  %v1707 = vadd.f32 %v1400, %v941
  %v1708 = vadd.f32 %v1404, %v982
  %v1709 = vadd.f32 %v1408, %v984
  %v1710 = vadd.f32 %v1412, %v1025
  %v1711 = vadd.f32 %v1416, %v1027
  %v1712 = vadd.f32 %v1420, %v941
  %v1713 = vadd.f32 %v1424, %v982
  %v1714 = vadd.f32 %v1428, %v984
  %v1715 = vadd.f32 %v1432, %v1025
  %v1716 = vadd.f32 %v1436, %v1027
  %v1717 = vadd.f32 %v1440, %v945
  %v1718 = vadd.f32 %v1444, %v986
  %v1719 = vadd.f32 %v1448, %v988
  %v1720 = vadd.f32 %v1452, %v1029
  %v1721 = vadd.f32 %v1456, %v1031
  %v1722 = vadd.f32 %v1460, %v945
  %v1723 = vadd.f32 %v1464, %v986
  %v1724 = vadd.f32 %v1468, %v988
  %v1725 = vadd.f32 %v1472, %v1029
  %v1726 = vadd.f32 %v1476, %v1031
  %v1727 = vadd.f32 %v1480, %v945
  %v1728 = vadd.f32 %v1484, %v986
  %v1729 = vadd.f32 %v1488, %v988
  %v1730 = vadd.f32 %v1492, %v1029
  %v1731 = vadd.f32 %v1496, %v1031
  %v1732 = vadd.f32 %v1500, %v945
  %v1733 = vadd.f32 %v1504, %v986
  %v1734 = vadd.f32 %v1508, %v988
  %v1735 = vadd.f32 %v1512, %v1029
  %v1736 = vadd.f32 %v1516, %v1031
  %v1737 = vadd.f32 %v1520, %v945
  %v1738 = vadd.f32 %v1524, %v986
  %v1739 = vadd.f32 %v1528, %v988
  %v1740 = vadd.f32 %v1532, %v1029
  %v1741 = vadd.f32 %v1536, %v1031
  %v1742 = vadd.f32 %v1540, %v945
  %v1743 = vadd.f32 %v1544, %v986
  %v1744 = vadd.f32 %v1548, %v988
  %v1745 = vadd.f32 %v1552, %v1029
  %v1746 = vadd.f32 %v1556, %v1031
  %v1747 = vadd.f32 %v1560, %v945
  %v1748 = vadd.f32 %v1564, %v986
  %v1749 = vadd.f32 %v1568, %v988
  %v1750 = vadd.f32 %v1572, %v1029
  %v1751 = vadd.f32 %v1576, %v1031
  %v1752 = vadd.f32 %v1580, %v945
  %v1753 = vadd.f32 %v1584, %v986
  %v1754 = vadd.f32 %v1588, %v988
  %v1755 = vadd.f32 %v1592, %v1029
  %v1756 = vadd.f32 %v1596, %v1031
  %v1757 = vld [vmem:[%s3] sm:$0x1f]
  %v1759 = vlaneseq
  %v1760 = vshrl.u32 %v1759, 7
  %v1761 = vsub.s32 0, %v1760
  %v1762 = vrot.slane %v1757, %v1761
  %v1763 = vlaneseq
  %v1764 = vshrl.u32 %v1763, 7
  %v1765 = vsub.s32 1, %v1764
  %v1766 = vrot.slane %v1757, %v1765
  %v1767 = vlaneseq
  %v1768 = vshrl.u32 %v1767, 7
  %v1769 = vsub.s32 2, %v1768
  %v1770 = vrot.slane %v1757, %v1769
  %v1771 = vlaneseq
  %v1772 = vshrl.u32 %v1771, 7
  %v1773 = vsub.s32 3, %v1772
  %v1774 = vrot.slane %v1757, %v1773
  %v1775 = vlaneseq
  %v1776 = vshrl.u32 %v1775, 7
  %v1777 = vsub.s32 4, %v1776
  %v1778 = vrot.slane %v1757, %v1777
  %v1784 = vmul.f32 %v291, %v1762
  %v1785 = vmul.f32 %v291, %v1766
  %v1786 = vmul.f32 %v291, %v1770
  %v1787 = vmul.f32 %v291, %v1774
  %v1788 = vmul.f32 %v291, %v1778
  %v1789 = vmul.f32 %v294, %v1762
  %v1790 = vmul.f32 %v294, %v1766
  %v1791 = vmul.f32 %v294, %v1770
  %v1792 = vmul.f32 %v294, %v1774
  %v1793 = vmul.f32 %v294, %v1778
  %v1794 = vmul.f32 %v297, %v1762
  %v1795 = vmul.f32 %v297, %v1766
  %v1796 = vmul.f32 %v297, %v1770
  %v1797 = vmul.f32 %v297, %v1774
  %v1798 = vmul.f32 %v297, %v1778
  %v1799 = vmul.f32 %v300, %v1762
  %v1800 = vmul.f32 %v300, %v1766
  %v1801 = vmul.f32 %v300, %v1770
  %v1802 = vmul.f32 %v300, %v1774
  %v1803 = vmul.f32 %v300, %v1778
  %v1804 = vmul.f32 %v303, %v1762
  %v1805 = vmul.f32 %v303, %v1766
  %v1806 = vmul.f32 %v303, %v1770
  %v1807 = vmul.f32 %v303, %v1774
  %v1808 = vmul.f32 %v303, %v1778
  %v1809 = vmul.f32 %v306, %v1762
  %v1810 = vmul.f32 %v306, %v1766
  %v1811 = vmul.f32 %v306, %v1770
  %v1812 = vmul.f32 %v306, %v1774
  %v1813 = vmul.f32 %v306, %v1778
  %v1814 = vmul.f32 %v309, %v1762
  %v1815 = vmul.f32 %v309, %v1766
  %v1816 = vmul.f32 %v309, %v1770
  %v1817 = vmul.f32 %v309, %v1774
  %v1818 = vmul.f32 %v309, %v1778
  %v1819 = vmul.f32 %v312, %v1762
  %v1820 = vmul.f32 %v312, %v1766
  %v1821 = vmul.f32 %v312, %v1770
  %v1822 = vmul.f32 %v312, %v1774
  %v1823 = vmul.f32 %v312, %v1778
  %v1824 = vmul.f32 %v315, %v1762
  %v1825 = vmul.f32 %v315, %v1766
  %v1826 = vmul.f32 %v315, %v1770
  %v1827 = vmul.f32 %v315, %v1774
  %v1828 = vmul.f32 %v315, %v1778
  %v1829 = vmul.f32 %v318, %v1762
  %v1830 = vmul.f32 %v318, %v1766
  %v1831 = vmul.f32 %v318, %v1770
  %v1832 = vmul.f32 %v318, %v1774
  %v1833 = vmul.f32 %v318, %v1778
  %v1834 = vmul.f32 %v321, %v1762
  %v1835 = vmul.f32 %v321, %v1766
  %v1836 = vmul.f32 %v321, %v1770
  %v1837 = vmul.f32 %v321, %v1774
  %v1838 = vmul.f32 %v321, %v1778
  %v1839 = vmul.f32 %v324, %v1762
  %v1840 = vmul.f32 %v324, %v1766
  %v1841 = vmul.f32 %v324, %v1770
  %v1842 = vmul.f32 %v324, %v1774
  %v1843 = vmul.f32 %v324, %v1778
  %v1844 = vmul.f32 %v327, %v1762
  %v1845 = vmul.f32 %v327, %v1766
  %v1846 = vmul.f32 %v327, %v1770
  %v1847 = vmul.f32 %v327, %v1774
  %v1848 = vmul.f32 %v327, %v1778
  %v1849 = vmul.f32 %v330, %v1762
  %v1850 = vmul.f32 %v330, %v1766
  %v1851 = vmul.f32 %v330, %v1770
  %v1852 = vmul.f32 %v330, %v1774
  %v1853 = vmul.f32 %v330, %v1778
  %v1854 = vmul.f32 %v333, %v1762
  %v1855 = vmul.f32 %v333, %v1766
  %v1856 = vmul.f32 %v333, %v1770
  %v1857 = vmul.f32 %v333, %v1774
  %v1858 = vmul.f32 %v333, %v1778
  %v1859 = vmul.f32 %v336, %v1762
  %v1860 = vmul.f32 %v336, %v1766
  %v1861 = vmul.f32 %v336, %v1770
  %v1862 = vmul.f32 %v336, %v1774
  %v1863 = vmul.f32 %v336, %v1778
  %v1864 = vadd.f32 %v1677, %v1784
  %v1865 = vadd.f32 %v1678, %v1785
  %v1866 = vadd.f32 %v1679, %v1786
  %v1867 = vadd.f32 %v1680, %v1787
  %v1868 = vadd.f32 %v1681, %v1788
  %v1869 = vadd.f32 %v1682, %v1789
  %v1870 = vadd.f32 %v1683, %v1790
  %v1871 = vadd.f32 %v1684, %v1791
  %v1872 = vadd.f32 %v1685, %v1792
  %v1873 = vadd.f32 %v1686, %v1793
  %v1874 = vadd.f32 %v1687, %v1794
  %v1875 = vadd.f32 %v1688, %v1795
  %v1876 = vadd.f32 %v1689, %v1796
  %v1877 = vadd.f32 %v1690, %v1797
  %v1878 = vadd.f32 %v1691, %v1798
  %v1879 = vadd.f32 %v1692, %v1799
  %v1880 = vadd.f32 %v1693, %v1800
  %v1881 = vadd.f32 %v1694, %v1801
  %v1882 = vadd.f32 %v1695, %v1802
  %v1883 = vadd.f32 %v1696, %v1803
  %v1884 = vadd.f32 %v1697, %v1804
  %v1885 = vadd.f32 %v1698, %v1805
  %v1886 = vadd.f32 %v1699, %v1806
  %v1887 = vadd.f32 %v1700, %v1807
  %v1888 = vadd.f32 %v1701, %v1808
  %v1889 = vadd.f32 %v1702, %v1809
  %v1890 = vadd.f32 %v1703, %v1810
  %v1891 = vadd.f32 %v1704, %v1811
  %v1892 = vadd.f32 %v1705, %v1812
  %v1893 = vadd.f32 %v1706, %v1813
  %v1894 = vadd.f32 %v1707, %v1814
  %v1895 = vadd.f32 %v1708, %v1815
  %v1896 = vadd.f32 %v1709, %v1816
  %v1897 = vadd.f32 %v1710, %v1817
  %v1898 = vadd.f32 %v1711, %v1818
  %v1899 = vadd.f32 %v1712, %v1819
  %v1900 = vadd.f32 %v1713, %v1820
  %v1901 = vadd.f32 %v1714, %v1821
  %v1902 = vadd.f32 %v1715, %v1822
  %v1903 = vadd.f32 %v1716, %v1823
  %v1904 = vadd.f32 %v1717, %v1824
  %v1905 = vadd.f32 %v1718, %v1825
  %v1906 = vadd.f32 %v1719, %v1826
  %v1907 = vadd.f32 %v1720, %v1827
  %v1908 = vadd.f32 %v1721, %v1828
  %v1909 = vadd.f32 %v1722, %v1829
  %v1910 = vadd.f32 %v1723, %v1830
  %v1911 = vadd.f32 %v1724, %v1831
  %v1912 = vadd.f32 %v1725, %v1832
  %v1913 = vadd.f32 %v1726, %v1833
  %v1914 = vadd.f32 %v1727, %v1834
  %v1915 = vadd.f32 %v1728, %v1835
  %v1916 = vadd.f32 %v1729, %v1836
  %v1917 = vadd.f32 %v1730, %v1837
  %v1918 = vadd.f32 %v1731, %v1838
  %v1919 = vadd.f32 %v1732, %v1839
  %v1920 = vadd.f32 %v1733, %v1840
  %v1921 = vadd.f32 %v1734, %v1841
  %v1922 = vadd.f32 %v1735, %v1842
  %v1923 = vadd.f32 %v1736, %v1843
  %v1924 = vadd.f32 %v1737, %v1844
  %v1925 = vadd.f32 %v1738, %v1845
  %v1926 = vadd.f32 %v1739, %v1846
  %v1927 = vadd.f32 %v1740, %v1847
  %v1928 = vadd.f32 %v1741, %v1848
  %v1929 = vadd.f32 %v1742, %v1849
  %v1930 = vadd.f32 %v1743, %v1850
  %v1931 = vadd.f32 %v1744, %v1851
  %v1932 = vadd.f32 %v1745, %v1852
  %v1933 = vadd.f32 %v1746, %v1853
  %v1934 = vadd.f32 %v1747, %v1854
  %v1935 = vadd.f32 %v1748, %v1855
  %v1936 = vadd.f32 %v1749, %v1856
  %v1937 = vadd.f32 %v1750, %v1857
  %v1938 = vadd.f32 %v1751, %v1858
  %v1939 = vadd.f32 %v1752, %v1859
  %v1940 = vadd.f32 %v1753, %v1860
  %v1941 = vadd.f32 %v1754, %v1861
  %v1942 = vadd.f32 %v1755, %v1862
  %v1943 = vadd.f32 %v1756, %v1863
  %v1944 = vld [vmem:[%s4] ss:$4 sm:$0x1f]
  %v1946 = vlaneseq
  %v1947 = vshrl.u32 %v1946, 7
  %v1948 = vsub.s32 0, %v1947
  %v1949 = vrot.slane %v1944, %v1948
  %v1950 = vlaneseq
  %v1951 = vshrl.u32 %v1950, 7
  %v1952 = vsub.s32 1, %v1951
  %v1953 = vrot.slane %v1944, %v1952
  %v1954 = vlaneseq
  %v1955 = vshrl.u32 %v1954, 7
  %v1956 = vsub.s32 2, %v1955
  %v1957 = vrot.slane %v1944, %v1956
  %v1958 = vlaneseq
  %v1959 = vshrl.u32 %v1958, 7
  %v1960 = vsub.s32 3, %v1959
  %v1961 = vrot.slane %v1944, %v1960
  %v1962 = vlaneseq
  %v1963 = vshrl.u32 %v1962, 7
  %v1964 = vsub.s32 4, %v1963
  %v1965 = vrot.slane %v1944, %v1964
  %v1971 = vadd.f32 %v1864, %v1949
  %v1972 = vadd.f32 %v1865, %v1953
  %v1973 = vadd.f32 %v1866, %v1957
  %v1974 = vadd.f32 %v1867, %v1961
  %v1975 = vadd.f32 %v1868, %v1965
  %v1976 = vadd.f32 %v1869, %v1949
  %v1977 = vadd.f32 %v1870, %v1953
  %v1978 = vadd.f32 %v1871, %v1957
  %v1979 = vadd.f32 %v1872, %v1961
  %v1980 = vadd.f32 %v1873, %v1965
  %v1981 = vadd.f32 %v1874, %v1949
  %v1982 = vadd.f32 %v1875, %v1953
  %v1983 = vadd.f32 %v1876, %v1957
  %v1984 = vadd.f32 %v1877, %v1961
  %v1985 = vadd.f32 %v1878, %v1965
  %v1986 = vadd.f32 %v1879, %v1949
  %v1987 = vadd.f32 %v1880, %v1953
  %v1988 = vadd.f32 %v1881, %v1957
  %v1989 = vadd.f32 %v1882, %v1961
  %v1990 = vadd.f32 %v1883, %v1965
  %v1991 = vadd.f32 %v1884, %v1949
  %v1992 = vadd.f32 %v1885, %v1953
  %v1993 = vadd.f32 %v1886, %v1957
  %v1994 = vadd.f32 %v1887, %v1961
  %v1995 = vadd.f32 %v1888, %v1965
  %v1996 = vadd.f32 %v1889, %v1949
  %v1997 = vadd.f32 %v1890, %v1953
  %v1998 = vadd.f32 %v1891, %v1957
  %v1999 = vadd.f32 %v1892, %v1961
  %v2000 = vadd.f32 %v1893, %v1965
  %v2001 = vadd.f32 %v1894, %v1949
  %v2002 = vadd.f32 %v1895, %v1953
  %v2003 = vadd.f32 %v1896, %v1957
  %v2004 = vadd.f32 %v1897, %v1961
  %v2005 = vadd.f32 %v1898, %v1965
  %v2006 = vadd.f32 %v1899, %v1949
  %v2007 = vadd.f32 %v1900, %v1953
  %v2008 = vadd.f32 %v1901, %v1957
  %v2009 = vadd.f32 %v1902, %v1961
  %v2010 = vadd.f32 %v1903, %v1965
  %v2011 = vadd.f32 %v1904, %v1949
  %v2012 = vadd.f32 %v1905, %v1953
  %v2013 = vadd.f32 %v1906, %v1957
  %v2014 = vadd.f32 %v1907, %v1961
  %v2015 = vadd.f32 %v1908, %v1965
  %v2016 = vadd.f32 %v1909, %v1949
  %v2017 = vadd.f32 %v1910, %v1953
  %v2018 = vadd.f32 %v1911, %v1957
  %v2019 = vadd.f32 %v1912, %v1961
  %v2020 = vadd.f32 %v1913, %v1965
  %v2021 = vadd.f32 %v1914, %v1949
  %v2022 = vadd.f32 %v1915, %v1953
  %v2023 = vadd.f32 %v1916, %v1957
  %v2024 = vadd.f32 %v1917, %v1961
  %v2025 = vadd.f32 %v1918, %v1965
  %v2026 = vadd.f32 %v1919, %v1949
  %v2027 = vadd.f32 %v1920, %v1953
  %v2028 = vadd.f32 %v1921, %v1957
  %v2029 = vadd.f32 %v1922, %v1961
  %v2030 = vadd.f32 %v1923, %v1965
  %v2031 = vadd.f32 %v1924, %v1949
  %v2032 = vadd.f32 %v1925, %v1953
  %v2033 = vadd.f32 %v1926, %v1957
  %v2034 = vadd.f32 %v1927, %v1961
  %v2035 = vadd.f32 %v1928, %v1965
  %v2036 = vadd.f32 %v1929, %v1949
  %v2037 = vadd.f32 %v1930, %v1953
  %v2038 = vadd.f32 %v1931, %v1957
  %v2039 = vadd.f32 %v1932, %v1961
  %v2040 = vadd.f32 %v1933, %v1965
  %v2041 = vadd.f32 %v1934, %v1949
  %v2042 = vadd.f32 %v1935, %v1953
  %v2043 = vadd.f32 %v1936, %v1957
  %v2044 = vadd.f32 %v1937, %v1961
  %v2045 = vadd.f32 %v1938, %v1965
  %v2046 = vadd.f32 %v1939, %v1949
  %v2047 = vadd.f32 %v1940, %v1953
  %v2048 = vadd.f32 %v1941, %v1957
  %v2049 = vadd.f32 %v1942, %v1961
  %v2050 = vadd.f32 %v1943, %v1965
  %v2051 = vsub.f32 0.0, %v1971
  %v2052 = vsub.f32 0.0, %v1972
  %v2053 = vsub.f32 0.0, %v1973
  %v2054 = vsub.f32 0.0, %v1974
  %v2055 = vsub.f32 0.0, %v1975
  %v2056 = vsub.f32 0.0, %v1976
  %v2057 = vsub.f32 0.0, %v1977
  %v2058 = vsub.f32 0.0, %v1978
  %v2059 = vsub.f32 0.0, %v1979
  %v2060 = vsub.f32 0.0, %v1980
  %v2061 = vsub.f32 0.0, %v1981
  %v2062 = vsub.f32 0.0, %v1982
  %v2063 = vsub.f32 0.0, %v1983
  %v2064 = vsub.f32 0.0, %v1984
  %v2065 = vsub.f32 0.0, %v1985
  %v2066 = vsub.f32 0.0, %v1986
  %v2067 = vsub.f32 0.0, %v1987
  %v2068 = vsub.f32 0.0, %v1988
  %v2069 = vsub.f32 0.0, %v1989
  %v2070 = vsub.f32 0.0, %v1990
  %v2071 = vsub.f32 0.0, %v1991
  %v2072 = vsub.f32 0.0, %v1992
  %v2073 = vsub.f32 0.0, %v1993
  %v2074 = vsub.f32 0.0, %v1994
  %v2075 = vsub.f32 0.0, %v1995
  %v2076 = vsub.f32 0.0, %v1996
  %v2077 = vsub.f32 0.0, %v1997
  %v2078 = vsub.f32 0.0, %v1998
  %v2079 = vsub.f32 0.0, %v1999
  %v2080 = vsub.f32 0.0, %v2000
  %v2081 = vsub.f32 0.0, %v2001
  %v2082 = vsub.f32 0.0, %v2002
  %v2083 = vsub.f32 0.0, %v2003
  %v2084 = vsub.f32 0.0, %v2004
  %v2085 = vsub.f32 0.0, %v2005
  %v2086 = vsub.f32 0.0, %v2006
  %v2087 = vsub.f32 0.0, %v2007
  %v2088 = vsub.f32 0.0, %v2008
  %v2089 = vsub.f32 0.0, %v2009
  %v2090 = vsub.f32 0.0, %v2010
  %v2091 = vsub.f32 0.0, %v2011
  %v2092 = vsub.f32 0.0, %v2012
  %v2093 = vsub.f32 0.0, %v2013
  %v2094 = vsub.f32 0.0, %v2014
  %v2095 = vsub.f32 0.0, %v2015
  %v2096 = vsub.f32 0.0, %v2016
  %v2097 = vsub.f32 0.0, %v2017
  %v2098 = vsub.f32 0.0, %v2018
  %v2099 = vsub.f32 0.0, %v2019
  %v2100 = vsub.f32 0.0, %v2020
  %v2101 = vsub.f32 0.0, %v2021
  %v2102 = vsub.f32 0.0, %v2022
  %v2103 = vsub.f32 0.0, %v2023
  %v2104 = vsub.f32 0.0, %v2024
  %v2105 = vsub.f32 0.0, %v2025
  %v2106 = vsub.f32 0.0, %v2026
  %v2107 = vsub.f32 0.0, %v2027
  %v2108 = vsub.f32 0.0, %v2028
  %v2109 = vsub.f32 0.0, %v2029
  %v2110 = vsub.f32 0.0, %v2030
  %v2111 = vsub.f32 0.0, %v2031
  %v2112 = vsub.f32 0.0, %v2032
  %v2113 = vsub.f32 0.0, %v2033
  %v2114 = vsub.f32 0.0, %v2034
  %v2115 = vsub.f32 0.0, %v2035
  %v2116 = vsub.f32 0.0, %v2036
  %v2117 = vsub.f32 0.0, %v2037
  %v2118 = vsub.f32 0.0, %v2038
  %v2119 = vsub.f32 0.0, %v2039
  %v2120 = vsub.f32 0.0, %v2040
  %v2121 = vsub.f32 0.0, %v2041
  %v2122 = vsub.f32 0.0, %v2042
  %v2123 = vsub.f32 0.0, %v2043
  %v2124 = vsub.f32 0.0, %v2044
  %v2125 = vsub.f32 0.0, %v2045
  %v2126 = vsub.f32 0.0, %v2046
  %v2127 = vsub.f32 0.0, %v2047
  %v2128 = vsub.f32 0.0, %v2048
  %v2129 = vsub.f32 0.0, %v2049
  %v2130 = vsub.f32 0.0, %v2050
  %v2131 = vmul.f32 %v2051, 1.442695
  %v2132 = vpow.pop %v2131
  %v2133 = vmul.f32 %v2052, 1.442695
  %v2134 = vpow.pop %v2133
  %v2135 = vmul.f32 %v2053, 1.442695
  %v2136 = vpow.pop %v2135
  %v2137 = vmul.f32 %v2054, 1.442695
  %v2138 = vpow.pop %v2137
  %v2139 = vmul.f32 %v2055, 1.442695
  %v2140 = vpow.pop %v2139
  %v2141 = vmul.f32 %v2056, 1.442695
  %v2142 = vpow.pop %v2141
  %v2143 = vmul.f32 %v2057, 1.442695
  %v2144 = vpow.pop %v2143
  %v2145 = vmul.f32 %v2058, 1.442695
  %v2146 = vpow.pop %v2145
  %v2147 = vmul.f32 %v2059, 1.442695
  %v2148 = vpow.pop %v2147
  %v2149 = vmul.f32 %v2060, 1.442695
  %v2150 = vpow.pop %v2149
  %v2151 = vmul.f32 %v2061, 1.442695
  %v2152 = vpow.pop %v2151
  %v2153 = vmul.f32 %v2062, 1.442695
  %v2154 = vpow.pop %v2153
  %v2155 = vmul.f32 %v2063, 1.442695
  %v2156 = vpow.pop %v2155
  %v2157 = vmul.f32 %v2064, 1.442695
  %v2158 = vpow.pop %v2157
  %v2159 = vmul.f32 %v2065, 1.442695
  %v2160 = vpow.pop %v2159
  %v2161 = vmul.f32 %v2066, 1.442695
  %v2162 = vpow.pop %v2161
  %v2163 = vmul.f32 %v2067, 1.442695
  %v2164 = vpow.pop %v2163
  %v2165 = vmul.f32 %v2068, 1.442695
  %v2166 = vpow.pop %v2165
  %v2167 = vmul.f32 %v2069, 1.442695
  %v2168 = vpow.pop %v2167
  %v2169 = vmul.f32 %v2070, 1.442695
  %v2170 = vpow.pop %v2169
  %v2171 = vmul.f32 %v2071, 1.442695
  %v2172 = vpow.pop %v2171
  %v2173 = vmul.f32 %v2072, 1.442695
  %v2174 = vpow.pop %v2173
  %v2175 = vmul.f32 %v2073, 1.442695
  %v2176 = vpow.pop %v2175
  %v2177 = vmul.f32 %v2074, 1.442695
  %v2178 = vpow.pop %v2177
  %v2179 = vmul.f32 %v2075, 1.442695
  %v2180 = vpow.pop %v2179
  %v2181 = vmul.f32 %v2076, 1.442695
  %v2182 = vpow.pop %v2181
  %v2183 = vmul.f32 %v2077, 1.442695
  %v2184 = vpow.pop %v2183
  %v2185 = vmul.f32 %v2078, 1.442695
  %v2186 = vpow.pop %v2185
  %v2187 = vmul.f32 %v2079, 1.442695
  %v2188 = vpow.pop %v2187
  %v2189 = vmul.f32 %v2080, 1.442695
  %v2190 = vpow.pop %v2189
  %v2191 = vmul.f32 %v2081, 1.442695
  %v2192 = vpow.pop %v2191
  %v2193 = vmul.f32 %v2082, 1.442695
  %v2194 = vpow.pop %v2193
  %v2195 = vmul.f32 %v2083, 1.442695
  %v2196 = vpow.pop %v2195
  %v2197 = vmul.f32 %v2084, 1.442695
  %v2198 = vpow.pop %v2197
  %v2199 = vmul.f32 %v2085, 1.442695
  %v2200 = vpow.pop %v2199
  %v2201 = vmul.f32 %v2086, 1.442695
  %v2202 = vpow.pop %v2201
  %v2203 = vmul.f32 %v2087, 1.442695
  %v2204 = vpow.pop %v2203
  %v2205 = vmul.f32 %v2088, 1.442695
  %v2206 = vpow.pop %v2205
  %v2207 = vmul.f32 %v2089, 1.442695
  %v2208 = vpow.pop %v2207
  %v2209 = vmul.f32 %v2090, 1.442695
  %v2210 = vpow.pop %v2209
  %v2211 = vmul.f32 %v2091, 1.442695
  %v2212 = vpow.pop %v2211
  %v2213 = vmul.f32 %v2092, 1.442695
  %v2214 = vpow.pop %v2213
  %v2215 = vmul.f32 %v2093, 1.442695
  %v2216 = vpow.pop %v2215
  %v2217 = vmul.f32 %v2094, 1.442695
  %v2218 = vpow.pop %v2217
  %v2219 = vmul.f32 %v2095, 1.442695
  %v2220 = vpow.pop %v2219
  %v2221 = vmul.f32 %v2096, 1.442695
  %v2222 = vpow.pop %v2221
  %v2223 = vmul.f32 %v2097, 1.442695
  %v2224 = vpow.pop %v2223
  %v2225 = vmul.f32 %v2098, 1.442695
  %v2226 = vpow.pop %v2225
  %v2227 = vmul.f32 %v2099, 1.442695
  %v2228 = vpow.pop %v2227
  %v2229 = vmul.f32 %v2100, 1.442695
  %v2230 = vpow.pop %v2229
  %v2231 = vmul.f32 %v2101, 1.442695
  %v2232 = vpow.pop %v2231
  %v2233 = vmul.f32 %v2102, 1.442695
  %v2234 = vpow.pop %v2233
  %v2235 = vmul.f32 %v2103, 1.442695
  %v2236 = vpow.pop %v2235
  %v2237 = vmul.f32 %v2104, 1.442695
  %v2238 = vpow.pop %v2237
  %v2239 = vmul.f32 %v2105, 1.442695
  %v2240 = vpow.pop %v2239
  %v2241 = vmul.f32 %v2106, 1.442695
  %v2242 = vpow.pop %v2241
  %v2243 = vmul.f32 %v2107, 1.442695
  %v2244 = vpow.pop %v2243
  %v2245 = vmul.f32 %v2108, 1.442695
  %v2246 = vpow.pop %v2245
  %v2247 = vmul.f32 %v2109, 1.442695
  %v2248 = vpow.pop %v2247
  %v2249 = vmul.f32 %v2110, 1.442695
  %v2250 = vpow.pop %v2249
  %v2251 = vmul.f32 %v2111, 1.442695
  %v2252 = vpow.pop %v2251
  %v2253 = vmul.f32 %v2112, 1.442695
  %v2254 = vpow.pop %v2253
  %v2255 = vmul.f32 %v2113, 1.442695
  %v2256 = vpow.pop %v2255
  %v2257 = vmul.f32 %v2114, 1.442695
  %v2258 = vpow.pop %v2257
  %v2259 = vmul.f32 %v2115, 1.442695
  %v2260 = vpow.pop %v2259
  %v2261 = vmul.f32 %v2116, 1.442695
  %v2262 = vpow.pop %v2261
  %v2263 = vmul.f32 %v2117, 1.442695
  %v2264 = vpow.pop %v2263
  %v2265 = vmul.f32 %v2118, 1.442695
  %v2266 = vpow.pop %v2265
  %v2267 = vmul.f32 %v2119, 1.442695
  %v2268 = vpow.pop %v2267
  %v2269 = vmul.f32 %v2120, 1.442695
  %v2270 = vpow.pop %v2269
  %v2271 = vmul.f32 %v2121, 1.442695
  %v2272 = vpow.pop %v2271
  %v2273 = vmul.f32 %v2122, 1.442695
  %v2274 = vpow.pop %v2273
  %v2275 = vmul.f32 %v2123, 1.442695
  %v2276 = vpow.pop %v2275
  %v2277 = vmul.f32 %v2124, 1.442695
  %v2278 = vpow.pop %v2277
  %v2279 = vmul.f32 %v2125, 1.442695
  %v2280 = vpow.pop %v2279
  %v2281 = vmul.f32 %v2126, 1.442695
  %v2282 = vpow.pop %v2281
  %v2283 = vmul.f32 %v2127, 1.442695
  %v2284 = vpow.pop %v2283
  %v2285 = vmul.f32 %v2128, 1.442695
  %v2286 = vpow.pop %v2285
  %v2287 = vmul.f32 %v2129, 1.442695
  %v2288 = vpow.pop %v2287
  %v2289 = vmul.f32 %v2130, 1.442695
  %v2290 = vpow.pop %v2289
  %v2291 = vadd.f32 %v2132, 1.0
  %v2292 = vadd.f32 %v2134, 1.0
  %v2293 = vadd.f32 %v2136, 1.0
  %v2294 = vadd.f32 %v2138, 1.0
  %v2295 = vadd.f32 %v2140, 1.0
  %v2296 = vadd.f32 %v2142, 1.0
  %v2297 = vadd.f32 %v2144, 1.0
  %v2298 = vadd.f32 %v2146, 1.0
  %v2299 = vadd.f32 %v2148, 1.0
  %v2300 = vadd.f32 %v2150, 1.0
  %v2301 = vadd.f32 %v2152, 1.0
  %v2302 = vadd.f32 %v2154, 1.0
  %v2303 = vadd.f32 %v2156, 1.0
  %v2304 = vadd.f32 %v2158, 1.0
  %v2305 = vadd.f32 %v2160, 1.0
  %v2306 = vadd.f32 %v2162, 1.0
  %v2307 = vadd.f32 %v2164, 1.0
  %v2308 = vadd.f32 %v2166, 1.0
  %v2309 = vadd.f32 %v2168, 1.0
  %v2310 = vadd.f32 %v2170, 1.0
  %v2311 = vadd.f32 %v2172, 1.0
  %v2312 = vadd.f32 %v2174, 1.0
  %v2313 = vadd.f32 %v2176, 1.0
  %v2314 = vadd.f32 %v2178, 1.0
  %v2315 = vadd.f32 %v2180, 1.0
  %v2316 = vadd.f32 %v2182, 1.0
  %v2317 = vadd.f32 %v2184, 1.0
  %v2318 = vadd.f32 %v2186, 1.0
  %v2319 = vadd.f32 %v2188, 1.0
  %v2320 = vadd.f32 %v2190, 1.0
  %v2321 = vadd.f32 %v2192, 1.0
  %v2322 = vadd.f32 %v2194, 1.0
  %v2323 = vadd.f32 %v2196, 1.0
  %v2324 = vadd.f32 %v2198, 1.0
  %v2325 = vadd.f32 %v2200, 1.0
  %v2326 = vadd.f32 %v2202, 1.0
  %v2327 = vadd.f32 %v2204, 1.0
  %v2328 = vadd.f32 %v2206, 1.0
  %v2329 = vadd.f32 %v2208, 1.0
  %v2330 = vadd.f32 %v2210, 1.0
  %v2331 = vadd.f32 %v2212, 1.0
  %v2332 = vadd.f32 %v2214, 1.0
  %v2333 = vadd.f32 %v2216, 1.0
  %v2334 = vadd.f32 %v2218, 1.0
  %v2335 = vadd.f32 %v2220, 1.0
  %v2336 = vadd.f32 %v2222, 1.0
  %v2337 = vadd.f32 %v2224, 1.0
  %v2338 = vadd.f32 %v2226, 1.0
  %v2339 = vadd.f32 %v2228, 1.0
  %v2340 = vadd.f32 %v2230, 1.0
  %v2341 = vadd.f32 %v2232, 1.0
  %v2342 = vadd.f32 %v2234, 1.0
  %v2343 = vadd.f32 %v2236, 1.0
  %v2344 = vadd.f32 %v2238, 1.0
  %v2345 = vadd.f32 %v2240, 1.0
  %v2346 = vadd.f32 %v2242, 1.0
  %v2347 = vadd.f32 %v2244, 1.0
  %v2348 = vadd.f32 %v2246, 1.0
  %v2349 = vadd.f32 %v2248, 1.0
  %v2350 = vadd.f32 %v2250, 1.0
  %v2351 = vadd.f32 %v2252, 1.0
  %v2352 = vadd.f32 %v2254, 1.0
  %v2353 = vadd.f32 %v2256, 1.0
  %v2354 = vadd.f32 %v2258, 1.0
  %v2355 = vadd.f32 %v2260, 1.0
  %v2356 = vadd.f32 %v2262, 1.0
  %v2357 = vadd.f32 %v2264, 1.0
  %v2358 = vadd.f32 %v2266, 1.0
  %v2359 = vadd.f32 %v2268, 1.0
  %v2360 = vadd.f32 %v2270, 1.0
  %v2361 = vadd.f32 %v2272, 1.0
  %v2362 = vadd.f32 %v2274, 1.0
  %v2363 = vadd.f32 %v2276, 1.0
  %v2364 = vadd.f32 %v2278, 1.0
  %v2365 = vadd.f32 %v2280, 1.0
  %v2366 = vadd.f32 %v2282, 1.0
  %v2367 = vadd.f32 %v2284, 1.0
  %v2368 = vadd.f32 %v2286, 1.0
  %v2369 = vadd.f32 %v2288, 1.0
  %v2370 = vadd.f32 %v2290, 1.0
  %v2371 = vrcp.pop %v2291
  %v2372 = vrcp.pop %v2292
  %v2373 = vrcp.pop %v2293
  %v2374 = vrcp.pop %v2294
  %v2375 = vrcp.pop %v2295
  %v2376 = vrcp.pop %v2296
  %v2377 = vrcp.pop %v2297
  %v2378 = vrcp.pop %v2298
  %v2379 = vrcp.pop %v2299
  %v2380 = vrcp.pop %v2300
  %v2381 = vrcp.pop %v2301
  %v2382 = vrcp.pop %v2302
  %v2383 = vrcp.pop %v2303
  %v2384 = vrcp.pop %v2304
  %v2385 = vrcp.pop %v2305
  %v2386 = vrcp.pop %v2306
  %v2387 = vrcp.pop %v2307
  %v2388 = vrcp.pop %v2308
  %v2389 = vrcp.pop %v2309
  %v2390 = vrcp.pop %v2310
  %v2391 = vrcp.pop %v2311
  %v2392 = vrcp.pop %v2312
  %v2393 = vrcp.pop %v2313
  %v2394 = vrcp.pop %v2314
  %v2395 = vrcp.pop %v2315
  %v2396 = vrcp.pop %v2316
  %v2397 = vrcp.pop %v2317
  %v2398 = vrcp.pop %v2318
  %v2399 = vrcp.pop %v2319
  %v2400 = vrcp.pop %v2320
  %v2401 = vrcp.pop %v2321
  %v2402 = vrcp.pop %v2322
  %v2403 = vrcp.pop %v2323
  %v2404 = vrcp.pop %v2324
  %v2405 = vrcp.pop %v2325
  %v2406 = vrcp.pop %v2326
  %v2407 = vrcp.pop %v2327
  %v2408 = vrcp.pop %v2328
  %v2409 = vrcp.pop %v2329
  %v2410 = vrcp.pop %v2330
  %v2411 = vrcp.pop %v2331
  %v2412 = vrcp.pop %v2332
  %v2413 = vrcp.pop %v2333
  %v2414 = vrcp.pop %v2334
  %v2415 = vrcp.pop %v2335
  %v2416 = vrcp.pop %v2336
  %v2417 = vrcp.pop %v2337
  %v2418 = vrcp.pop %v2338
  %v2419 = vrcp.pop %v2339
  %v2420 = vrcp.pop %v2340
  %v2421 = vrcp.pop %v2341
  %v2422 = vrcp.pop %v2342
  %v2423 = vrcp.pop %v2343
  %v2424 = vrcp.pop %v2344
  %v2425 = vrcp.pop %v2345
  %v2426 = vrcp.pop %v2346
  %v2427 = vrcp.pop %v2347
  %v2428 = vrcp.pop %v2348
  %v2429 = vrcp.pop %v2349
  %v2430 = vrcp.pop %v2350
  %v2431 = vrcp.pop %v2351
  %v2432 = vrcp.pop %v2352
  %v2433 = vrcp.pop %v2353
  %v2434 = vrcp.pop %v2354
  %v2435 = vrcp.pop %v2355
  %v2436 = vrcp.pop %v2356
  %v2437 = vrcp.pop %v2357
  %v2438 = vrcp.pop %v2358
  %v2439 = vrcp.pop %v2359
  %v2440 = vrcp.pop %v2360
  %v2441 = vrcp.pop %v2361
  %v2442 = vrcp.pop %v2362
  %v2443 = vrcp.pop %v2363
  %v2444 = vrcp.pop %v2364
  %v2445 = vrcp.pop %v2365
  %v2446 = vrcp.pop %v2366
  %v2447 = vrcp.pop %v2367
  %v2448 = vrcp.pop %v2368
  %v2449 = vrcp.pop %v2369
  %v2450 = vrcp.pop %v2370
  %v2451 = vmul.f32 %v1971, %v2371
  %v2452 = vmul.f32 %v1972, %v2372
  %v2453 = vmul.f32 %v1973, %v2373
  %v2454 = vmul.f32 %v1974, %v2374
  %v2455 = vmul.f32 %v1975, %v2375
  %v2456 = vmul.f32 %v1976, %v2376
  %v2457 = vmul.f32 %v1977, %v2377
  %v2458 = vmul.f32 %v1978, %v2378
  %v2459 = vmul.f32 %v1979, %v2379
  %v2460 = vmul.f32 %v1980, %v2380
  %v2461 = vmul.f32 %v1981, %v2381
  %v2462 = vmul.f32 %v1982, %v2382
  %v2463 = vmul.f32 %v1983, %v2383
  %v2464 = vmul.f32 %v1984, %v2384
  %v2465 = vmul.f32 %v1985, %v2385
  %v2466 = vmul.f32 %v1986, %v2386
  %v2467 = vmul.f32 %v1987, %v2387
  %v2468 = vmul.f32 %v1988, %v2388
  %v2469 = vmul.f32 %v1989, %v2389
  %v2470 = vmul.f32 %v1990, %v2390
  %v2471 = vmul.f32 %v1991, %v2391
  %v2472 = vmul.f32 %v1992, %v2392
  %v2473 = vmul.f32 %v1993, %v2393
  %v2474 = vmul.f32 %v1994, %v2394
  %v2475 = vmul.f32 %v1995, %v2395
  %v2476 = vmul.f32 %v1996, %v2396
  %v2477 = vmul.f32 %v1997, %v2397
  %v2478 = vmul.f32 %v1998, %v2398
  %v2479 = vmul.f32 %v1999, %v2399
  %v2480 = vmul.f32 %v2000, %v2400
  %v2481 = vmul.f32 %v2001, %v2401
  %v2482 = vmul.f32 %v2002, %v2402
  %v2483 = vmul.f32 %v2003, %v2403
  %v2484 = vmul.f32 %v2004, %v2404
  %v2485 = vmul.f32 %v2005, %v2405
  %v2486 = vmul.f32 %v2006, %v2406
  %v2487 = vmul.f32 %v2007, %v2407
  %v2488 = vmul.f32 %v2008, %v2408
  %v2489 = vmul.f32 %v2009, %v2409
  %v2490 = vmul.f32 %v2010, %v2410
  %v2491 = vmul.f32 %v2011, %v2411
  %v2492 = vmul.f32 %v2012, %v2412
  %v2493 = vmul.f32 %v2013, %v2413
  %v2494 = vmul.f32 %v2014, %v2414
  %v2495 = vmul.f32 %v2015, %v2415
  %v2496 = vmul.f32 %v2016, %v2416
  %v2497 = vmul.f32 %v2017, %v2417
  %v2498 = vmul.f32 %v2018, %v2418
  %v2499 = vmul.f32 %v2019, %v2419
  %v2500 = vmul.f32 %v2020, %v2420
  %v2501 = vmul.f32 %v2021, %v2421
  %v2502 = vmul.f32 %v2022, %v2422
  %v2503 = vmul.f32 %v2023, %v2423
  %v2504 = vmul.f32 %v2024, %v2424
  %v2505 = vmul.f32 %v2025, %v2425
  %v2506 = vmul.f32 %v2026, %v2426
  %v2507 = vmul.f32 %v2027, %v2427
  %v2508 = vmul.f32 %v2028, %v2428
  %v2509 = vmul.f32 %v2029, %v2429
  %v2510 = vmul.f32 %v2030, %v2430
  %v2511 = vmul.f32 %v2031, %v2431
  %v2512 = vmul.f32 %v2032, %v2432
  %v2513 = vmul.f32 %v2033, %v2433
  %v2514 = vmul.f32 %v2034, %v2434
  %v2515 = vmul.f32 %v2035, %v2435
  %v2516 = vmul.f32 %v2036, %v2436
  %v2517 = vmul.f32 %v2037, %v2437
  %v2518 = vmul.f32 %v2038, %v2438
  %v2519 = vmul.f32 %v2039, %v2439
  %v2520 = vmul.f32 %v2040, %v2440
  %v2521 = vmul.f32 %v2041, %v2441
  %v2522 = vmul.f32 %v2042, %v2442
  %v2523 = vmul.f32 %v2043, %v2443
  %v2524 = vmul.f32 %v2044, %v2444
  %v2525 = vmul.f32 %v2045, %v2445
  %v2526 = vmul.f32 %v2046, %v2446
  %v2527 = vmul.f32 %v2047, %v2447
  %v2528 = vmul.f32 %v2048, %v2448
  %v2529 = vmul.f32 %v2049, %v2449
  %v2530 = vmul.f32 %v2050, %v2450
  %v2531 = vpack.c.bf16 %v2456, %v2451
  %v2532 = vpack.c.bf16 %v2457, %v2452
  %v2533 = vpack.c.bf16 %v2458, %v2453
  %v2534 = vpack.c.bf16 %v2459, %v2454
  %v2535 = vpack.c.bf16 %v2460, %v2455
  %v2536 = vpack.c.bf16 %v2466, %v2461
  %v2537 = vpack.c.bf16 %v2467, %v2462
  %v2538 = vpack.c.bf16 %v2468, %v2463
  %v2539 = vpack.c.bf16 %v2469, %v2464
  %v2540 = vpack.c.bf16 %v2470, %v2465
  %v2541 = vpack.c.bf16 %v2476, %v2471
  %v2542 = vpack.c.bf16 %v2477, %v2472
  %v2543 = vpack.c.bf16 %v2478, %v2473
  %v2544 = vpack.c.bf16 %v2479, %v2474
  %v2545 = vpack.c.bf16 %v2480, %v2475
  %v2546 = vpack.c.bf16 %v2486, %v2481
  %v2547 = vpack.c.bf16 %v2487, %v2482
  %v2548 = vpack.c.bf16 %v2488, %v2483
  %v2549 = vpack.c.bf16 %v2489, %v2484
  %v2550 = vpack.c.bf16 %v2490, %v2485
  %v2551 = vpack.c.bf16 %v2496, %v2491
  %v2552 = vpack.c.bf16 %v2497, %v2492
  %v2553 = vpack.c.bf16 %v2498, %v2493
  %v2554 = vpack.c.bf16 %v2499, %v2494
  %v2555 = vpack.c.bf16 %v2500, %v2495
  %v2556 = vpack.c.bf16 %v2506, %v2501
  %v2557 = vpack.c.bf16 %v2507, %v2502
  %v2558 = vpack.c.bf16 %v2508, %v2503
  %v2559 = vpack.c.bf16 %v2509, %v2504
  %v2560 = vpack.c.bf16 %v2510, %v2505
  %v2561 = vpack.c.bf16 %v2516, %v2511
  %v2562 = vpack.c.bf16 %v2517, %v2512
  %v2563 = vpack.c.bf16 %v2518, %v2513
  %v2564 = vpack.c.bf16 %v2519, %v2514
  %v2565 = vpack.c.bf16 %v2520, %v2515
  %v2566 = vpack.c.bf16 %v2526, %v2521
  %v2567 = vpack.c.bf16 %v2527, %v2522
  %v2568 = vpack.c.bf16 %v2528, %v2523
  %v2569 = vpack.c.bf16 %v2529, %v2524
  %v2570 = vpack.c.bf16 %v2530, %v2525
  %v2571 = vld [vmem:[%s5] sm:$0xf]
  %v2572 = vld [vmem:[%s5 + $0x4] sm:$0xf]
  %v2573 = vld [vmem:[%s5 + $0x8] sm:$0xf]
  %v2574 = vld [vmem:[%s5 + $0xc] sm:$0xf]
  %v2575 = vld [vmem:[%s5 + $0x10] sm:$0xf]
  %v2576 = vld [vmem:[%s5 + $0x14] sm:$0xf]
  %v2577 = vld [vmem:[%s5 + $0x18] sm:$0xf]
  %v2578 = vld [vmem:[%s5 + $0x1c] sm:$0xf]
  %v2579 = vld [vmem:[%s5 + $0x20] sm:$0xf]
  %v2580 = vld [vmem:[%s5 + $0x24] sm:$0xf]
  %v2581 = vld [vmem:[%s5 + $0x28] sm:$0xf]
  %v2582 = vld [vmem:[%s5 + $0x2c] sm:$0xf]
  %v2583 = vld [vmem:[%s5 + $0x30] sm:$0xf]
  %v2584 = vld [vmem:[%s5 + $0x34] sm:$0xf]
  %v2585 = vld [vmem:[%s5 + $0x38] sm:$0xf]
  %v2586 = vld [vmem:[%s5 + $0x3c] sm:$0xf]
  %v2587 = vld [vmem:[%s5 + $0x40] sm:$0xf]
  %v2588 = vld [vmem:[%s5 + $0x44] sm:$0xf]
  %v2589 = vld [vmem:[%s5 + $0x48] sm:$0xf]
  %v2590 = vld [vmem:[%s5 + $0x4c] sm:$0xf]
  %v2591 = vld [vmem:[%s5 + $0x50] sm:$0xf]
  %v2592 = vld [vmem:[%s5 + $0x54] sm:$0xf]
  %v2593 = vld [vmem:[%s5 + $0x58] sm:$0xf]
  %v2594 = vld [vmem:[%s5 + $0x5c] sm:$0xf]
  %v2595 = vld [vmem:[%s5 + $0x60] sm:$0xf]
  %v2596 = vld [vmem:[%s5 + $0x64] sm:$0xf]
  %v2597 = vld [vmem:[%s5 + $0x68] sm:$0xf]
  %v2598 = vld [vmem:[%s5 + $0x6c] sm:$0xf]
  %v2599 = vld [vmem:[%s5 + $0x70] sm:$0xf]
  %v2600 = vld [vmem:[%s5 + $0x74] sm:$0xf]
  %v2601 = vld [vmem:[%s5 + $0x78] sm:$0xf]
  %v2602 = vld [vmem:[%s5 + $0x7c] sm:$0xf]
  %v2603 = vld [vmem:[%s5 + $0x80] sm:$0xf]
  %v2604 = vld [vmem:[%s5 + $0x84] sm:$0xf]
  %v2605 = vld [vmem:[%s5 + $0x88] sm:$0xf]
  %v2606 = vld [vmem:[%s5 + $0x8c] sm:$0xf]
  %v2607 = vld [vmem:[%s5 + $0x90] sm:$0xf]
  %v2608 = vld [vmem:[%s5 + $0x94] sm:$0xf]
  %v2609 = vld [vmem:[%s5 + $0x98] sm:$0xf]
  %v2610 = vld [vmem:[%s5 + $0x9c] sm:$0xf]
  %v2611 = vld [vmem:[%s5 + $0xa0] sm:$0xf]
  %v2612 = vld [vmem:[%s5 + $0xa4] sm:$0xf]
  %v2613 = vld [vmem:[%s5 + $0xa8] sm:$0xf]
  %v2614 = vld [vmem:[%s5 + $0xac] sm:$0xf]
  %v2615 = vld [vmem:[%s5 + $0xb0] sm:$0xf]
  %v2616 = vld [vmem:[%s5 + $0xb4] sm:$0xf]
  %v2617 = vld [vmem:[%s5 + $0xb8] sm:$0xf]
  %v2618 = vld [vmem:[%s5 + $0xbc] sm:$0xf]
  %v2619 = vld [vmem:[%s5 + $0xc0] sm:$0xf]
  %v2620 = vld [vmem:[%s5 + $0xc4] sm:$0xf]
  %v2621 = vld [vmem:[%s5 + $0xc8] sm:$0xf]
  %v2622 = vld [vmem:[%s5 + $0xcc] sm:$0xf]
  %v2623 = vld [vmem:[%s5 + $0xd0] sm:$0xf]
  %v2624 = vld [vmem:[%s5 + $0xd4] sm:$0xf]
  %v2625 = vld [vmem:[%s5 + $0xd8] sm:$0xf]
  %v2626 = vld [vmem:[%s5 + $0xdc] sm:$0xf]
  %v2627 = vld [vmem:[%s5 + $0xe0] sm:$0xf]
  %v2628 = vld [vmem:[%s5 + $0xe4] sm:$0xf]
  %v2629 = vld [vmem:[%s5 + $0xe8] sm:$0xf]
  %v2630 = vld [vmem:[%s5 + $0xec] sm:$0xf]
  %v2631 = vld [vmem:[%s5 + $0xf0] sm:$0xf]
  %v2632 = vld [vmem:[%s5 + $0xf4] sm:$0xf]
  %v2633 = vld [vmem:[%s5 + $0xf8] sm:$0xf]
  %v2634 = vld [vmem:[%s5 + $0xfc] sm:$0xf]
  %v2635 = vld [vmem:[%s5 + $0x100] sm:$0xf]
  %v2636 = vld [vmem:[%s5 + $0x104] sm:$0xf]
  %v2637 = vld [vmem:[%s5 + $0x108] sm:$0xf]
  %v2638 = vld [vmem:[%s5 + $0x10c] sm:$0xf]
  %v2639 = vld [vmem:[%s5 + $0x110] sm:$0xf]
  %v2640 = vld [vmem:[%s5 + $0x114] sm:$0xf]
  %v2641 = vld [vmem:[%s5 + $0x118] sm:$0xf]
  %v2642 = vld [vmem:[%s5 + $0x11c] sm:$0xf]
  %v2643 = vld [vmem:[%s5 + $0x120] sm:$0xf]
  %v2644 = vld [vmem:[%s5 + $0x124] sm:$0xf]
  %v2645 = vld [vmem:[%s5 + $0x128] sm:$0xf]
  %v2646 = vld [vmem:[%s5 + $0x12c] sm:$0xf]
  %v2647 = vld [vmem:[%s5 + $0x130] sm:$0xf]
  %v2648 = vld [vmem:[%s5 + $0x134] sm:$0xf]
  %v2649 = vld [vmem:[%s5 + $0x138] sm:$0xf]
  %v2650 = vld [vmem:[%s5 + $0x13c] sm:$0xf]
  %v2651 = vld [vmem:[%s6] sm:$0x1]
  %v2652 = vlaneseq
  %v2653 = vshrl.u32 %v2652, 7
  %v2654 = vsub.s32 0, %v2653
  %v2655 = vrot.slane %v2651, %v2654
  %v2736 = vunpack.c.l.b16 %v2571
  %v2737 = vunpack.c.l.b16 %v2572
  %v2738 = vunpack.c.l.b16 %v2573
  %v2739 = vunpack.c.l.b16 %v2574
  %v2740 = vunpack.c.l.b16 %v2575
  %v2741 = vunpack.c.l.b16 %v2576
  %v2742 = vunpack.c.l.b16 %v2577
  %v2743 = vunpack.c.l.b16 %v2578
  %v2744 = vunpack.c.l.b16 %v2579
  %v2745 = vunpack.c.l.b16 %v2580
  %v2746 = vunpack.c.l.b16 %v2581
  %v2747 = vunpack.c.l.b16 %v2582
  %v2748 = vunpack.c.l.b16 %v2583
  %v2749 = vunpack.c.l.b16 %v2584
  %v2750 = vunpack.c.l.b16 %v2585
  %v2751 = vunpack.c.l.b16 %v2586
  %v2752 = vunpack.c.l.b16 %v2587
  %v2753 = vunpack.c.l.b16 %v2588
  %v2754 = vunpack.c.l.b16 %v2589
  %v2755 = vunpack.c.l.b16 %v2590
  %v2756 = vunpack.c.l.b16 %v2591
  %v2757 = vunpack.c.l.b16 %v2592
  %v2758 = vunpack.c.l.b16 %v2593
  %v2759 = vunpack.c.l.b16 %v2594
  %v2760 = vunpack.c.l.b16 %v2595
  %v2761 = vunpack.c.l.b16 %v2596
  %v2762 = vunpack.c.l.b16 %v2597
  %v2763 = vunpack.c.l.b16 %v2598
  %v2764 = vunpack.c.l.b16 %v2599
  %v2765 = vunpack.c.l.b16 %v2600
  %v2766 = vunpack.c.l.b16 %v2601
  %v2767 = vunpack.c.l.b16 %v2602
  %v2768 = vunpack.c.l.b16 %v2603
  %v2769 = vunpack.c.l.b16 %v2604
  %v2770 = vunpack.c.l.b16 %v2605
  %v2771 = vunpack.c.l.b16 %v2606
  %v2772 = vunpack.c.l.b16 %v2607
  %v2773 = vunpack.c.l.b16 %v2608
  %v2774 = vunpack.c.l.b16 %v2609
  %v2775 = vunpack.c.l.b16 %v2610
  %v2776 = vunpack.c.l.b16 %v2611
  %v2777 = vunpack.c.l.b16 %v2612
  %v2778 = vunpack.c.l.b16 %v2613
  %v2779 = vunpack.c.l.b16 %v2614
  %v2780 = vunpack.c.l.b16 %v2615
  %v2781 = vunpack.c.l.b16 %v2616
  %v2782 = vunpack.c.l.b16 %v2617
  %v2783 = vunpack.c.l.b16 %v2618
  %v2784 = vunpack.c.l.b16 %v2619
  %v2785 = vunpack.c.l.b16 %v2620
  %v2786 = vunpack.c.l.b16 %v2621
  %v2787 = vunpack.c.l.b16 %v2622
  %v2788 = vunpack.c.l.b16 %v2623
  %v2789 = vunpack.c.l.b16 %v2624
  %v2790 = vunpack.c.l.b16 %v2625
  %v2791 = vunpack.c.l.b16 %v2626
  %v2792 = vunpack.c.l.b16 %v2627
  %v2793 = vunpack.c.l.b16 %v2628
  %v2794 = vunpack.c.l.b16 %v2629
  %v2795 = vunpack.c.l.b16 %v2630
  %v2796 = vunpack.c.l.b16 %v2631
  %v2797 = vunpack.c.l.b16 %v2632
  %v2798 = vunpack.c.l.b16 %v2633
  %v2799 = vunpack.c.l.b16 %v2634
  %v2800 = vunpack.c.l.b16 %v2635
  %v2801 = vunpack.c.l.b16 %v2636
  %v2802 = vunpack.c.l.b16 %v2637
  %v2803 = vunpack.c.l.b16 %v2638
  %v2804 = vunpack.c.l.b16 %v2639
  %v2805 = vunpack.c.l.b16 %v2640
  %v2806 = vunpack.c.l.b16 %v2641
  %v2807 = vunpack.c.l.b16 %v2642
  %v2808 = vunpack.c.l.b16 %v2643
  %v2809 = vunpack.c.l.b16 %v2644
  %v2810 = vunpack.c.l.b16 %v2645
  %v2811 = vunpack.c.l.b16 %v2646
  %v2812 = vunpack.c.l.b16 %v2647
  %v2813 = vunpack.c.l.b16 %v2648
  %v2814 = vunpack.c.l.b16 %v2649
  %v2815 = vunpack.c.l.b16 %v2650
  %v2816 = vpack.c.b16 %v2737, %v2736
  %v2817 = vpack.c.b16 %v2739, %v2738
  %v2818 = vpack.c.b16 %v2741, %v2740
  %v2819 = vpack.c.b16 %v2743, %v2742
  %v2820 = vpack.c.b16 %v2745, %v2744
  %v2821 = vpack.c.b16 %v2747, %v2746
  %v2822 = vpack.c.b16 %v2749, %v2748
  %v2823 = vpack.c.b16 %v2751, %v2750
  %v2824 = vpack.c.b16 %v2753, %v2752
  %v2825 = vpack.c.b16 %v2755, %v2754
  %v2826 = vpack.c.b16 %v2757, %v2756
  %v2827 = vpack.c.b16 %v2759, %v2758
  %v2828 = vpack.c.b16 %v2761, %v2760
  %v2829 = vpack.c.b16 %v2763, %v2762
  %v2830 = vpack.c.b16 %v2765, %v2764
  %v2831 = vpack.c.b16 %v2767, %v2766
  %v2832 = vpack.c.b16 %v2769, %v2768
  %v2833 = vpack.c.b16 %v2771, %v2770
  %v2834 = vpack.c.b16 %v2773, %v2772
  %v2835 = vpack.c.b16 %v2775, %v2774
  %v2836 = vpack.c.b16 %v2777, %v2776
  %v2837 = vpack.c.b16 %v2779, %v2778
  %v2838 = vpack.c.b16 %v2781, %v2780
  %v2839 = vpack.c.b16 %v2783, %v2782
  %v2840 = vpack.c.b16 %v2785, %v2784
  %v2841 = vpack.c.b16 %v2787, %v2786
  %v2842 = vpack.c.b16 %v2789, %v2788
  %v2843 = vpack.c.b16 %v2791, %v2790
  %v2844 = vpack.c.b16 %v2793, %v2792
  %v2845 = vpack.c.b16 %v2795, %v2794
  %v2846 = vpack.c.b16 %v2797, %v2796
  %v2847 = vpack.c.b16 %v2799, %v2798
  %v2848 = vpack.c.b16 %v2801, %v2800
  %v2849 = vpack.c.b16 %v2803, %v2802
  %v2850 = vpack.c.b16 %v2805, %v2804
  %v2851 = vpack.c.b16 %v2807, %v2806
  %v2852 = vpack.c.b16 %v2809, %v2808
  %v2853 = vpack.c.b16 %v2811, %v2810
  %v2854 = vpack.c.b16 %v2813, %v2812
  %v2855 = vpack.c.b16 %v2815, %v2814
  %2896 = vmatprep.subr.bf16.mxu0 0
  %2897 = vmatpush1.bf16.msra.mxu0 %v2816
  %2898 = vmatprep.subr.bf16.mxu0 0
  %2899 = vmatpush1.bf16.msra.mxu0 %v2817
  %2900 = vmatprep.subr.bf16.mxu0 0
  %2901 = vmatpush1.bf16.msra.mxu0 %v2818
  %2902 = vmatprep.subr.bf16.mxu0 0
  %2903 = vmatpush1.bf16.msra.mxu0 %v2819
  %2904 = vmatprep.subr.bf16.mxu0 0
  %2905 = vmatpush1.bf16.msra.mxu0 %v2820
  %2906 = vmatprep.subr.bf16.mxu0 0
  %2907 = vmatpush1.bf16.msra.mxu0 %v2821
  %2908 = vmatprep.subr.bf16.mxu0 0
  %2909 = vmatpush1.bf16.msra.mxu0 %v2822
  %2910 = vmatprep.subr.bf16.mxu0 0
  %2911 = vmatpush1.bf16.msra.mxu0 %v2823
  %2912 = vmatprep.subr.bf16.mxu0 0
  %2913 = vmatpush1.bf16.msra.mxu0 %v2824
  %2914 = vmatprep.subr.bf16.mxu0 0
  %2915 = vmatpush1.bf16.msra.mxu0 %v2825
  %2916 = vmatprep.subr.bf16.mxu0 0
  %2917 = vmatpush1.bf16.msra.mxu0 %v2826
  %2918 = vmatprep.subr.bf16.mxu0 0
  %2919 = vmatpush1.bf16.msra.mxu0 %v2827
  %2920 = vmatprep.subr.bf16.mxu0 0
  %2921 = vmatpush1.bf16.msra.mxu0 %v2828
  %2922 = vmatprep.subr.bf16.mxu0 0
  %2923 = vmatpush1.bf16.msra.mxu0 %v2829
  %2924 = vmatprep.subr.bf16.mxu0 0
  %2925 = vmatpush1.bf16.msra.mxu0 %v2830
  %2926 = vmatprep.subr.bf16.mxu0 0
  %2927 = vmatpush1.bf16.msra.mxu0 %v2831
  %2928 = vmatprep.mubr.bf16.mxu0 %v2532
  %2929 = vmatmul.mubr.bf16.gmra.mrb[0].mxu0 %v2531
  %v2930 = vpop.f32.mrb[0].mxu0
  %v2931 = vadd.f32 %v2655, %v2930
  %v2932 = vpop.f32.mrb[0].mxu0
  %v2933 = vpop.f32.mrb[0].mxu0
  %v2934 = vadd.f32 %v2655, %v2933
  %v2935 = vpop.f32.mrb[0].mxu0
  %2936 = vmatprep.mubr.bf16.mxu0 %v2537
  %2937 = vmatmul.mubr.bf16.gmra.mrb[0].mxu0 %v2536
  %v2938 = vpop.f32.mrb[0].mxu0
  %v2939 = vadd.f32 %v2655, %v2938
  %v2940 = vpop.f32.mrb[0].mxu0
  %v2941 = vpop.f32.mrb[0].mxu0
  %v2942 = vadd.f32 %v2655, %v2941
  %v2943 = vpop.f32.mrb[0].mxu0
  %2944 = vmatprep.mubr.bf16.mxu0 %v2542
  %2945 = vmatmul.mubr.bf16.gmra.mrb[0].mxu0 %v2541
  %v2946 = vpop.f32.mrb[0].mxu0
  %v2947 = vadd.f32 %v2655, %v2946
  %v2948 = vpop.f32.mrb[0].mxu0
  %v2949 = vpop.f32.mrb[0].mxu0
  %v2950 = vadd.f32 %v2655, %v2949
  %v2951 = vpop.f32.mrb[0].mxu0
  %2952 = vmatprep.mubr.bf16.mxu0 %v2547
  %2953 = vmatmul.mubr.bf16.gmra.mrb[0].mxu0 %v2546
  %v2954 = vpop.f32.mrb[0].mxu0
  %v2955 = vadd.f32 %v2655, %v2954
  %v2956 = vpop.f32.mrb[0].mxu0
  %v2957 = vpop.f32.mrb[0].mxu0
  %v2958 = vadd.f32 %v2655, %v2957
  %v2959 = vpop.f32.mrb[0].mxu0
  %2960 = vmatprep.mubr.bf16.mxu0 %v2552
  %2961 = vmatmul.mubr.bf16.gmra.mrb[0].mxu0 %v2551
  %v2962 = vpop.f32.mrb[0].mxu0
  %v2963 = vadd.f32 %v2655, %v2962
  %v2964 = vpop.f32.mrb[0].mxu0
  %v2965 = vpop.f32.mrb[0].mxu0
  %v2966 = vadd.f32 %v2655, %v2965
  %v2967 = vpop.f32.mrb[0].mxu0
  %2968 = vmatprep.mubr.bf16.mxu0 %v2557
  %2969 = vmatmul.mubr.bf16.gmra.mrb[0].mxu0 %v2556
  %v2970 = vpop.f32.mrb[0].mxu0
  %v2971 = vadd.f32 %v2655, %v2970
  %v2972 = vpop.f32.mrb[0].mxu0
  %v2973 = vpop.f32.mrb[0].mxu0
  %v2974 = vadd.f32 %v2655, %v2973
  %v2975 = vpop.f32.mrb[0].mxu0
  %2976 = vmatprep.mubr.bf16.mxu0 %v2562
  %2977 = vmatmul.mubr.bf16.gmra.mrb[0].mxu0 %v2561
  %v2978 = vpop.f32.mrb[0].mxu0
  %v2979 = vadd.f32 %v2655, %v2978
  %v2980 = vpop.f32.mrb[0].mxu0
  %v2981 = vpop.f32.mrb[0].mxu0
  %v2982 = vadd.f32 %v2655, %v2981
  %v2983 = vpop.f32.mrb[0].mxu0
  %2984 = vmatprep.mubr.bf16.mxu0 %v2567
  %2985 = vmatmul.mubr.bf16.gmra.mrb[0].mxu0 %v2566
  %v2986 = vpop.f32.mrb[0].mxu0
  %v2987 = vadd.f32 %v2655, %v2986
  %v2988 = vpop.f32.mrb[0].mxu0
  %v2989 = vpop.f32.mrb[0].mxu0
  %v2990 = vadd.f32 %v2655, %v2989
  %v2991 = vpop.f32.mrb[0].mxu0
  %2992 = vdwg.mxu0
  %2993 = vmatprep.subr.bf16.mxu0 0
  %2994 = vmatpush1.bf16.msra.mxu0 %v2832
  %2995 = vmatprep.subr.bf16.mxu0 0
  %2996 = vmatpush1.bf16.msra.mxu0 %v2833
  %2997 = vmatprep.subr.bf16.mxu0 0
  %2998 = vmatpush1.bf16.msra.mxu0 %v2834
  %2999 = vmatprep.subr.bf16.mxu0 0
  %3000 = vmatpush1.bf16.msra.mxu0 %v2835
  %3001 = vmatprep.subr.bf16.mxu0 0
  %3002 = vmatpush1.bf16.msra.mxu0 %v2836
  %3003 = vmatprep.subr.bf16.mxu0 0
  %3004 = vmatpush1.bf16.msra.mxu0 %v2837
  %3005 = vmatprep.subr.bf16.mxu0 0
  %3006 = vmatpush1.bf16.msra.mxu0 %v2838
  %3007 = vmatprep.subr.bf16.mxu0 0
  %3008 = vmatpush1.bf16.msra.mxu0 %v2839
  %3009 = vmatprep.subr.bf16.mxu0 0
  %3010 = vmatpush1.bf16.msra.mxu0 %v2840
  %3011 = vmatprep.subr.bf16.mxu0 0
  %3012 = vmatpush1.bf16.msra.mxu0 %v2841
  %3013 = vmatprep.subr.bf16.mxu0 0
  %3014 = vmatpush1.bf16.msra.mxu0 %v2842
  %3015 = vmatprep.subr.bf16.mxu0 0
  %3016 = vmatpush1.bf16.msra.mxu0 %v2843
  %3017 = vmatprep.subr.bf16.mxu0 0
  %3018 = vmatpush1.bf16.msra.mxu0 %v2844
  %3019 = vmatprep.subr.bf16.mxu0 0
  %3020 = vmatpush1.bf16.msra.mxu0 %v2845
  %3021 = vmatprep.subr.bf16.mxu0 0
  %3022 = vmatpush1.bf16.msra.mxu0 %v2846
  %3023 = vmatprep.subr.bf16.mxu0 0
  %3024 = vmatpush1.bf16.msra.mxu0 %v2847
  %3025 = vmatprep.mubr.bf16.mxu0 %v2534
  %3026 = vmatmul.mubr.bf16.gmra.mrb[0].mxu0 %v2533
  %v3027 = vpop.f32.mrb[0].mxu0
  %v3028 = vadd.f32 %v2931, %v3027
  %v3029 = vpop.f32.mrb[0].mxu0
  %v3030 = vpop.f32.mrb[0].mxu0
  %v3031 = vadd.f32 %v2934, %v3030
  %v3032 = vpop.f32.mrb[0].mxu0
  %3033 = vmatprep.mubr.bf16.mxu0 %v2539
  %3034 = vmatmul.mubr.bf16.gmra.mrb[0].mxu0 %v2538
  %v3035 = vpop.f32.mrb[0].mxu0
  %v3036 = vadd.f32 %v2939, %v3035
  %v3037 = vpop.f32.mrb[0].mxu0
  %v3038 = vpop.f32.mrb[0].mxu0
  %v3039 = vadd.f32 %v2942, %v3038
  %v3040 = vpop.f32.mrb[0].mxu0
  %3041 = vmatprep.mubr.bf16.mxu0 %v2544
  %3042 = vmatmul.mubr.bf16.gmra.mrb[0].mxu0 %v2543
  %v3043 = vpop.f32.mrb[0].mxu0
  %v3044 = vadd.f32 %v2947, %v3043
  %v3045 = vpop.f32.mrb[0].mxu0
  %v3046 = vpop.f32.mrb[0].mxu0
  %v3047 = vadd.f32 %v2950, %v3046
  %v3048 = vpop.f32.mrb[0].mxu0
  %3049 = vmatprep.mubr.bf16.mxu0 %v2549
  %3050 = vmatmul.mubr.bf16.gmra.mrb[0].mxu0 %v2548
  %v3051 = vpop.f32.mrb[0].mxu0
  %v3052 = vadd.f32 %v2955, %v3051
  %v3053 = vpop.f32.mrb[0].mxu0
  %v3054 = vpop.f32.mrb[0].mxu0
  %v3055 = vadd.f32 %v2958, %v3054
  %v3056 = vpop.f32.mrb[0].mxu0
  %3057 = vmatprep.mubr.bf16.mxu0 %v2554
  %3058 = vmatmul.mubr.bf16.gmra.mrb[0].mxu0 %v2553
  %v3059 = vpop.f32.mrb[0].mxu0
  %v3060 = vadd.f32 %v2963, %v3059
  %v3061 = vpop.f32.mrb[0].mxu0
  %v3062 = vpop.f32.mrb[0].mxu0
  %v3063 = vadd.f32 %v2966, %v3062
  %v3064 = vpop.f32.mrb[0].mxu0
  %3065 = vmatprep.mubr.bf16.mxu0 %v2559
  %3066 = vmatmul.mubr.bf16.gmra.mrb[0].mxu0 %v2558
  %v3067 = vpop.f32.mrb[0].mxu0
  %v3068 = vadd.f32 %v2971, %v3067
  %v3069 = vpop.f32.mrb[0].mxu0
  %v3070 = vpop.f32.mrb[0].mxu0
  %v3071 = vadd.f32 %v2974, %v3070
  %v3072 = vpop.f32.mrb[0].mxu0
  %3073 = vmatprep.mubr.bf16.mxu0 %v2564
  %3074 = vmatmul.mubr.bf16.gmra.mrb[0].mxu0 %v2563
  %v3075 = vpop.f32.mrb[0].mxu0
  %v3076 = vadd.f32 %v2979, %v3075
  %v3077 = vpop.f32.mrb[0].mxu0
  %v3078 = vpop.f32.mrb[0].mxu0
  %v3079 = vadd.f32 %v2982, %v3078
  %v3080 = vpop.f32.mrb[0].mxu0
  %3081 = vmatprep.mubr.bf16.mxu0 %v2569
  %3082 = vmatmul.mubr.bf16.gmra.mrb[0].mxu0 %v2568
  %v3083 = vpop.f32.mrb[0].mxu0
  %v3084 = vadd.f32 %v2987, %v3083
  %v3085 = vpop.f32.mrb[0].mxu0
  %v3086 = vpop.f32.mrb[0].mxu0
  %v3087 = vadd.f32 %v2990, %v3086
  %v3088 = vpop.f32.mrb[0].mxu0
  %3089 = vdwg.mxu0
  %3090 = vmatprep.subr.bf16.mxu0 0
  %3091 = vmatpush1.bf16.msra.mxu0 %v2848
  %3092 = vmatprep.subr.bf16.mxu0 0
  %3093 = vmatpush1.bf16.msra.mxu0 %v2849
  %3094 = vmatprep.subr.bf16.mxu0 0
  %3095 = vmatpush1.bf16.msra.mxu0 %v2850
  %3096 = vmatprep.subr.bf16.mxu0 0
  %3097 = vmatpush1.bf16.msra.mxu0 %v2851
  %3098 = vmatprep.subr.bf16.mxu0 0
  %3099 = vmatpush1.bf16.msra.mxu0 %v2852
  %3100 = vmatprep.subr.bf16.mxu0 0
  %3101 = vmatpush1.bf16.msra.mxu0 %v2853
  %3102 = vmatprep.subr.bf16.mxu0 0
  %3103 = vmatpush1.bf16.msra.mxu0 %v2854
  %3104 = vmatprep.subr.bf16.mxu0 0
  %3105 = vmatpush1.bf16.msra.mxu0 %v2855
  %3106 = vmatprep.subr.bf16.mxu0 0
  %3107 = vmatpush1.bf16.msra.mxu0 0
  %3108 = vmatprep.subr.bf16.mxu0 0
  %3109 = vmatpush1.bf16.msra.mxu0 0
  %3110 = vmatprep.subr.bf16.mxu0 0
  %3111 = vmatpush1.bf16.msra.mxu0 0
  %3112 = vmatprep.subr.bf16.mxu0 0
  %3113 = vmatpush1.bf16.msra.mxu0 0
  %3114 = vmatprep.subr.bf16.mxu0 0
  %3115 = vmatpush1.bf16.msra.mxu0 0
  %3116 = vmatprep.subr.bf16.mxu0 0
  %3117 = vmatpush1.bf16.msra.mxu0 0
  %3118 = vmatprep.subr.bf16.mxu0 0
  %3119 = vmatpush1.bf16.msra.mxu0 0
  %3120 = vmatprep.subr.bf16.mxu0 0
  %3121 = vmatpush1.bf16.msra.mxu0 0
  %3122 = vmatprep.mubr.bf16.mxu0 0
  %3123 = vmatmul.mubr.bf16.gmra.mrb[0].mxu0 %v2535
  %v3124 = vpop.f32.mrb[0].mxu0
  %v3125 = vadd.f32 %v3028, %v3124
  %v3126 = vpop.f32.mrb[0].mxu0
  %v3127 = vpop.f32.mrb[0].mxu0
  %v3128 = vadd.f32 %v3031, %v3127
  %v3129 = vpop.f32.mrb[0].mxu0
  %3130 = vmatprep.mubr.bf16.mxu0 0
  %3131 = vmatmul.mubr.bf16.gmra.mrb[0].mxu0 %v2540
  %v3132 = vpop.f32.mrb[0].mxu0
  %v3133 = vadd.f32 %v3036, %v3132
  %v3134 = vpop.f32.mrb[0].mxu0
  %v3135 = vpop.f32.mrb[0].mxu0
  %v3136 = vadd.f32 %v3039, %v3135
  %v3137 = vpop.f32.mrb[0].mxu0
  %3138 = vmatprep.mubr.bf16.mxu0 0
  %3139 = vmatmul.mubr.bf16.gmra.mrb[0].mxu0 %v2545
  %v3140 = vpop.f32.mrb[0].mxu0
  %v3141 = vadd.f32 %v3044, %v3140
  %v3142 = vpop.f32.mrb[0].mxu0
  %v3143 = vpop.f32.mrb[0].mxu0
  %v3144 = vadd.f32 %v3047, %v3143
  %v3145 = vpop.f32.mrb[0].mxu0
  %3146 = vmatprep.mubr.bf16.mxu0 0
  %3147 = vmatmul.mubr.bf16.gmra.mrb[0].mxu0 %v2550
  %v3148 = vpop.f32.mrb[0].mxu0
  %v3149 = vadd.f32 %v3052, %v3148
  %v3150 = vpop.f32.mrb[0].mxu0
  %v3151 = vpop.f32.mrb[0].mxu0
  %v3152 = vadd.f32 %v3055, %v3151
  %v3153 = vpop.f32.mrb[0].mxu0
  %3154 = vmatprep.mubr.bf16.mxu0 0
  %3155 = vmatmul.mubr.bf16.gmra.mrb[0].mxu0 %v2555
  %v3156 = vpop.f32.mrb[0].mxu0
  %v3157 = vadd.f32 %v3060, %v3156
  %v3158 = vpop.f32.mrb[0].mxu0
  %v3159 = vpop.f32.mrb[0].mxu0
  %v3160 = vadd.f32 %v3063, %v3159
  %v3161 = vpop.f32.mrb[0].mxu0
  %3162 = vmatprep.mubr.bf16.mxu0 0
  %3163 = vmatmul.mubr.bf16.gmra.mrb[0].mxu0 %v2560
  %v3164 = vpop.f32.mrb[0].mxu0
  %v3165 = vadd.f32 %v3068, %v3164
  %v3166 = vpop.f32.mrb[0].mxu0
  %v3167 = vpop.f32.mrb[0].mxu0
  %v3168 = vadd.f32 %v3071, %v3167
  %v3169 = vpop.f32.mrb[0].mxu0
  %3170 = vmatprep.mubr.bf16.mxu0 0
  %3171 = vmatmul.mubr.bf16.gmra.mrb[0].mxu0 %v2565
  %v3172 = vpop.f32.mrb[0].mxu0
  %v3173 = vadd.f32 %v3076, %v3172
  %v3174 = vpop.f32.mrb[0].mxu0
  %v3175 = vpop.f32.mrb[0].mxu0
  %v3176 = vadd.f32 %v3079, %v3175
  %v3177 = vpop.f32.mrb[0].mxu0
  %3178 = vmatprep.mubr.bf16.mxu0 0
  %3179 = vmatmul.mubr.bf16.gmra.mrb[0].mxu0 %v2570
  %v3180 = vpop.f32.mrb[0].mxu0
  %v3181 = vadd.f32 %v3084, %v3180
  %v3182 = vpop.f32.mrb[0].mxu0
  %v3183 = vpop.f32.mrb[0].mxu0
  %v3184 = vadd.f32 %v3087, %v3183
  %v3185 = vpop.f32.mrb[0].mxu0
  %3186 = vdwg.mxu0
  %v3187 = vxor.u32 %v3125, 2147483648
  %v3188 = vxor.u32 %v3128, 2147483648
  %v3189 = vxor.u32 %v3133, 2147483648
  %v3190 = vxor.u32 %v3136, 2147483648
  %v3191 = vxor.u32 %v3141, 2147483648
  %v3192 = vxor.u32 %v3144, 2147483648
  %v3193 = vxor.u32 %v3149, 2147483648
  %v3194 = vxor.u32 %v3152, 2147483648
  %v3195 = vxor.u32 %v3157, 2147483648
  %v3196 = vxor.u32 %v3160, 2147483648
  %v3197 = vxor.u32 %v3165, 2147483648
  %v3198 = vxor.u32 %v3168, 2147483648
  %v3199 = vxor.u32 %v3173, 2147483648
  %v3200 = vxor.u32 %v3176, 2147483648
  %v3201 = vxor.u32 %v3181, 2147483648
  %v3202 = vxor.u32 %v3184, 2147483648
  %v3203 = vmul.f32 %v3187, 1.442695
  %v3204 = vpow.pop %v3203
  %v3205 = vmul.f32 %v3188, 1.442695
  %v3206 = vpow.pop %v3205
  %v3207 = vmul.f32 %v3189, 1.442695
  %v3208 = vpow.pop %v3207
  %v3209 = vmul.f32 %v3190, 1.442695
  %v3210 = vpow.pop %v3209
  %v3211 = vmul.f32 %v3191, 1.442695
  %v3212 = vpow.pop %v3211
  %v3213 = vmul.f32 %v3192, 1.442695
  %v3214 = vpow.pop %v3213
  %v3215 = vmul.f32 %v3193, 1.442695
  %v3216 = vpow.pop %v3215
  %v3217 = vmul.f32 %v3194, 1.442695
  %v3218 = vpow.pop %v3217
  %v3219 = vmul.f32 %v3195, 1.442695
  %v3220 = vpow.pop %v3219
  %v3221 = vmul.f32 %v3196, 1.442695
  %v3222 = vpow.pop %v3221
  %v3223 = vmul.f32 %v3197, 1.442695
  %v3224 = vpow.pop %v3223
  %v3225 = vmul.f32 %v3198, 1.442695
  %v3226 = vpow.pop %v3225
  %v3227 = vmul.f32 %v3199, 1.442695
  %v3228 = vpow.pop %v3227
  %v3229 = vmul.f32 %v3200, 1.442695
  %v3230 = vpow.pop %v3229
  %v3231 = vmul.f32 %v3201, 1.442695
  %v3232 = vpow.pop %v3231
  %v3233 = vmul.f32 %v3202, 1.442695
  %v3234 = vpow.pop %v3233
  %v3235 = vadd.f32 %v3204, 1.0
  %v3236 = vadd.f32 %v3206, 1.0
  %v3237 = vadd.f32 %v3208, 1.0
  %v3238 = vadd.f32 %v3210, 1.0
  %v3239 = vadd.f32 %v3212, 1.0
  %v3240 = vadd.f32 %v3214, 1.0
  %v3241 = vadd.f32 %v3216, 1.0
  %v3242 = vadd.f32 %v3218, 1.0
  %v3243 = vadd.f32 %v3220, 1.0
  %v3244 = vadd.f32 %v3222, 1.0
  %v3245 = vadd.f32 %v3224, 1.0
  %v3246 = vadd.f32 %v3226, 1.0
  %v3247 = vadd.f32 %v3228, 1.0
  %v3248 = vadd.f32 %v3230, 1.0
  %v3249 = vadd.f32 %v3232, 1.0
  %v3250 = vadd.f32 %v3234, 1.0
  %v3251 = vrcp.pop %v3235
  %v3252 = vmul.f32 1.0, %v3251
  %v3253 = vrcp.pop %v3236
  %v3254 = vmul.f32 1.0, %v3253
  %v3255 = vrcp.pop %v3237
  %v3256 = vmul.f32 1.0, %v3255
  %v3257 = vrcp.pop %v3238
  %v3258 = vmul.f32 1.0, %v3257
  %v3259 = vrcp.pop %v3239
  %v3260 = vmul.f32 1.0, %v3259
  %v3261 = vrcp.pop %v3240
  %v3262 = vmul.f32 1.0, %v3261
  %v3263 = vrcp.pop %v3241
  %v3264 = vmul.f32 1.0, %v3263
  %v3265 = vrcp.pop %v3242
  %v3266 = vmul.f32 1.0, %v3265
  %v3267 = vrcp.pop %v3243
  %v3268 = vmul.f32 1.0, %v3267
  %v3269 = vrcp.pop %v3244
  %v3270 = vmul.f32 1.0, %v3269
  %v3271 = vrcp.pop %v3245
  %v3272 = vmul.f32 1.0, %v3271
  %v3273 = vrcp.pop %v3246
  %v3274 = vmul.f32 1.0, %v3273
  %v3275 = vrcp.pop %v3247
  %v3276 = vmul.f32 1.0, %v3275
  %v3277 = vrcp.pop %v3248
  %v3278 = vmul.f32 1.0, %v3277
  %v3279 = vrcp.pop %v3249
  %v3280 = vmul.f32 1.0, %v3279
  %v3281 = vrcp.pop %v3250
  %v3282 = vmul.f32 1.0, %v3281
  %v3283 = vmul.f32 %v3125, %v3252
  %v3284 = vmul.f32 %v3128, %v3254
  %v3285 = vmul.f32 %v3133, %v3256
  %v3286 = vmul.f32 %v3136, %v3258
  %v3287 = vmul.f32 %v3141, %v3260
  %v3288 = vmul.f32 %v3144, %v3262
  %v3289 = vmul.f32 %v3149, %v3264
  %v3290 = vmul.f32 %v3152, %v3266
  %v3291 = vmul.f32 %v3157, %v3268
  %v3292 = vmul.f32 %v3160, %v3270
  %v3293 = vmul.f32 %v3165, %v3272
  %v3294 = vmul.f32 %v3168, %v3274
  %v3295 = vmul.f32 %v3173, %v3276
  %v3296 = vmul.f32 %v3176, %v3278
  %v3297 = vmul.f32 %v3181, %v3280
  %v3298 = vmul.f32 %v3184, %v3282
  %v3299 = vld [vmem:[%s9] sm:$0xff]
  %v3300 = vld [vmem:[%s9 + $0x8] sm:$0xff]
  %v3301 = vld [vmem:[%s10] sm:$0x1]
  %v3302 = vlaneseq
  %v3303 = vshrl.u32 %v3302, 7
  %v3304 = vsub.s32 0, %v3303
  %v3305 = vrot.slane %v3301, %v3304
  %vm3306 = vcmask 130048
  %v3308 = vsel %vm3306, %v3283, 0
  %v3311 = vsel %vm3306, %v3284, 0
  %v3314 = vsel %vm3306, %v3285, 0
  %v3317 = vsel %vm3306, %v3286, 0
  %v3320 = vsel %vm3306, %v3287, 0
  %v3323 = vsel %vm3306, %v3288, 0
  %v3326 = vsel %vm3306, %v3289, 0
  %v3329 = vsel %vm3306, %v3290, 0
  %v3332 = vsel %vm3306, %v3291, 0
  %v3335 = vsel %vm3306, %v3292, 0
  %v3338 = vsel %vm3306, %v3293, 0
  %v3341 = vsel %vm3306, %v3294, 0
  %v3344 = vsel %vm3306, %v3295, 0
  %v3347 = vsel %vm3306, %v3296, 0
  %v3350 = vsel %vm3306, %v3297, 0
  %v3353 = vsel %vm3306, %v3298, 0
  %3355 = vmatprep.subr.mxu0 0.0
  %3356 = vmatpush1.msra.mxu0 %v3299
  %3357 = vmatprep.subr.mxu0 0.0
  %3358 = vmatpush1.msra.mxu0 %v3300
  %3359 = vmatprep.subr.mxu0 0.0
  %3360 = vmatpush1.msra.mxu0 0.0
  %3361 = vmatprep.subr.mxu0 0.0
  %3362 = vmatpush1.msra.mxu0 0.0
  %3363 = vmatprep.subr.mxu0 0.0
  %3364 = vmatpush1.msra.mxu0 0.0
  %3365 = vmatprep.subr.mxu0 0.0
  %3366 = vmatpush1.msra.mxu0 0.0
  %3367 = vmatprep.subr.mxu0 0.0
  %3368 = vmatpush1.msra.mxu0 0.0
  %3369 = vmatprep.subr.mxu0 0.0
  %3370 = vmatpush1.msra.mxu0 0.0
  %3371 = vmatprep.subr.mxu0 0.0
  %3372 = vmatpush1.msra.mxu0 0.0
  %3373 = vmatprep.subr.mxu0 0.0
  %3374 = vmatpush1.msra.mxu0 0.0
  %3375 = vmatprep.subr.mxu0 0.0
  %3376 = vmatpush1.msra.mxu0 0.0
  %3377 = vmatprep.subr.mxu0 0.0
  %3378 = vmatpush1.msra.mxu0 0.0
  %3379 = vmatprep.subr.mxu0 0.0
  %3380 = vmatpush1.msra.mxu0 0.0
  %3381 = vmatprep.subr.mxu0 0.0
  %3382 = vmatpush1.msra.mxu0 0.0
  %3383 = vmatprep.subr.mxu0 0.0
  %3384 = vmatpush1.msra.mxu0 0.0
  %3385 = vmatprep.subr.mxu0 0.0
  %3386 = vmatpush1.msra.mxu0 0.0
  %3387 = vmatprep.subr.mxu0 0.0
  %3388 = vmatpush1.msra.mxu0 0.0
  %3389 = vmatprep.subr.mxu0 0.0
  %3390 = vmatpush1.msra.mxu0 0.0
  %3391 = vmatprep.subr.mxu0 0.0
  %3392 = vmatpush1.msra.mxu0 0.0
  %3393 = vmatprep.subr.mxu0 0.0
  %3394 = vmatpush1.msra.mxu0 0.0
  %3395 = vmatprep.subr.mxu0 0.0
  %3396 = vmatpush1.msra.mxu0 0.0
  %3397 = vmatprep.subr.mxu0 0.0
  %3398 = vmatpush1.msra.mxu0 0.0
  %3399 = vmatprep.subr.mxu0 0.0
  %3400 = vmatpush1.msra.mxu0 0.0
  %3401 = vmatprep.subr.mxu0 0.0
  %3402 = vmatpush1.msra.mxu0 0.0
  %3403 = vmatprep.subr.mxu0 0.0
  %3404 = vmatpush1.msra.mxu0 0.0
  %3405 = vmatprep.subr.mxu0 0.0
  %3406 = vmatpush1.msra.mxu0 0.0
  %3407 = vmatprep.subr.mxu0 0.0
  %3408 = vmatpush1.msra.mxu0 0.0
  %3409 = vmatprep.subr.mxu0 0.0
  %3410 = vmatpush1.msra.mxu0 0.0
  %3411 = vmatprep.subr.mxu0 0.0
  %3412 = vmatpush1.msra.mxu0 0.0
  %3413 = vmatprep.subr.mxu0 0.0
  %3414 = vmatpush1.msra.mxu0 0.0
  %3415 = vmatprep.subr.mxu0 0.0
  %3416 = vmatpush1.msra.mxu0 0.0
  %3417 = vmatprep.subr.mxu0 0.0
  %3418 = vmatpush1.msra.mxu0 0.0
  %3419 = vmatprep.mubr.f32.mxu0 0.0
  %3420 = vmatmul.mubr.f32.gmra.mrb[0].mxu0 %v3308
  %v3421 = vpop.f32.mrb[0].mxu0
  %v3422 = vadd.f32 %v3305, %v3421
  %v3423 = vpop.f32.mrb[0].mxu0
  %3424 = vmatprep.mubr.f32.mxu0 0.0
  %3425 = vmatmul.mubr.f32.gmra.mrb[0].mxu0 %v3311
  %v3426 = vpop.f32.mrb[0].mxu0
  %v3427 = vadd.f32 %v3305, %v3426
  %v3428 = vpop.f32.mrb[0].mxu0
  %3429 = vmatprep.mubr.f32.mxu0 0.0
  %3430 = vmatmul.mubr.f32.gmra.mrb[0].mxu0 %v3314
  %v3431 = vpop.f32.mrb[0].mxu0
  %v3432 = vadd.f32 %v3305, %v3431
  %v3433 = vpop.f32.mrb[0].mxu0
  %3434 = vmatprep.mubr.f32.mxu0 0.0
  %3435 = vmatmul.mubr.f32.gmra.mrb[0].mxu0 %v3317
  %v3436 = vpop.f32.mrb[0].mxu0
  %v3437 = vadd.f32 %v3305, %v3436
  %v3438 = vpop.f32.mrb[0].mxu0
  %3439 = vmatprep.mubr.f32.mxu0 0.0
  %3440 = vmatmul.mubr.f32.gmra.mrb[0].mxu0 %v3320
  %v3441 = vpop.f32.mrb[0].mxu0
  %v3442 = vadd.f32 %v3305, %v3441
  %v3443 = vpop.f32.mrb[0].mxu0
  %3444 = vmatprep.mubr.f32.mxu0 0.0
  %3445 = vmatmul.mubr.f32.gmra.mrb[0].mxu0 %v3323
  %v3446 = vpop.f32.mrb[0].mxu0
  %v3447 = vadd.f32 %v3305, %v3446
  %v3448 = vpop.f32.mrb[0].mxu0
  %3449 = vmatprep.mubr.f32.mxu0 0.0
  %3450 = vmatmul.mubr.f32.gmra.mrb[0].mxu0 %v3326
  %v3451 = vpop.f32.mrb[0].mxu0
  %v3452 = vadd.f32 %v3305, %v3451
  %v3453 = vpop.f32.mrb[0].mxu0
  %3454 = vmatprep.mubr.f32.mxu0 0.0
  %3455 = vmatmul.mubr.f32.gmra.mrb[0].mxu0 %v3329
  %v3456 = vpop.f32.mrb[0].mxu0
  %v3457 = vadd.f32 %v3305, %v3456
  %v3458 = vpop.f32.mrb[0].mxu0
  %3459 = vmatprep.mubr.f32.mxu0 0.0
  %3460 = vmatmul.mubr.f32.gmra.mrb[0].mxu0 %v3332
  %v3461 = vpop.f32.mrb[0].mxu0
  %v3462 = vadd.f32 %v3305, %v3461
  %v3463 = vpop.f32.mrb[0].mxu0
  %3464 = vmatprep.mubr.f32.mxu0 0.0
  %3465 = vmatmul.mubr.f32.gmra.mrb[0].mxu0 %v3335
  %v3466 = vpop.f32.mrb[0].mxu0
  %v3467 = vadd.f32 %v3305, %v3466
  %v3468 = vpop.f32.mrb[0].mxu0
  %3469 = vmatprep.mubr.f32.mxu0 0.0
  %3470 = vmatmul.mubr.f32.gmra.mrb[0].mxu0 %v3338
  %v3471 = vpop.f32.mrb[0].mxu0
  %v3472 = vadd.f32 %v3305, %v3471
  %v3473 = vpop.f32.mrb[0].mxu0
  %3474 = vmatprep.mubr.f32.mxu0 0.0
  %3475 = vmatmul.mubr.f32.gmra.mrb[0].mxu0 %v3341
  %v3476 = vpop.f32.mrb[0].mxu0
  %v3477 = vadd.f32 %v3305, %v3476
  %v3478 = vpop.f32.mrb[0].mxu0
  %3479 = vmatprep.mubr.f32.mxu0 0.0
  %3480 = vmatmul.mubr.f32.gmra.mrb[0].mxu0 %v3344
  %v3481 = vpop.f32.mrb[0].mxu0
  %v3482 = vadd.f32 %v3305, %v3481
  %v3483 = vpop.f32.mrb[0].mxu0
  %3484 = vmatprep.mubr.f32.mxu0 0.0
  %3485 = vmatmul.mubr.f32.gmra.mrb[0].mxu0 %v3347
  %v3486 = vpop.f32.mrb[0].mxu0
  %v3487 = vadd.f32 %v3305, %v3486
  %v3488 = vpop.f32.mrb[0].mxu0
  %3489 = vmatprep.mubr.f32.mxu0 0.0
  %3490 = vmatmul.mubr.f32.gmra.mrb[0].mxu0 %v3350
  %v3491 = vpop.f32.mrb[0].mxu0
  %v3492 = vadd.f32 %v3305, %v3491
  %v3493 = vpop.f32.mrb[0].mxu0
  %3494 = vmatprep.mubr.f32.mxu0 0.0
  %3495 = vmatmul.mubr.f32.gmra.mrb[0].mxu0 %v3353
  %v3496 = vpop.f32.mrb[0].mxu0
  %v3497 = vadd.f32 %v3305, %v3496
  %v3498 = vpop.f32.mrb[0].mxu0
  %3499 = vdwg.mxu0
  %v3500 = vxor.u32 %v3422, 2147483648
  %v3501 = vxor.u32 %v3427, 2147483648
  %v3502 = vxor.u32 %v3432, 2147483648
  %v3503 = vxor.u32 %v3437, 2147483648
  %v3504 = vxor.u32 %v3442, 2147483648
  %v3505 = vxor.u32 %v3447, 2147483648
  %v3506 = vxor.u32 %v3452, 2147483648
  %v3507 = vxor.u32 %v3457, 2147483648
  %v3508 = vxor.u32 %v3462, 2147483648
  %v3509 = vxor.u32 %v3467, 2147483648
  %v3510 = vxor.u32 %v3472, 2147483648
  %v3511 = vxor.u32 %v3477, 2147483648
  %v3512 = vxor.u32 %v3482, 2147483648
  %v3513 = vxor.u32 %v3487, 2147483648
  %v3514 = vxor.u32 %v3492, 2147483648
  %v3515 = vxor.u32 %v3497, 2147483648
  %v3516 = vmul.f32 %v3500, 1.442695
  %v3517 = vpow.pop %v3516
  %v3518 = vmul.f32 %v3501, 1.442695
  %v3519 = vpow.pop %v3518
  %v3520 = vmul.f32 %v3502, 1.442695
  %v3521 = vpow.pop %v3520
  %v3522 = vmul.f32 %v3503, 1.442695
  %v3523 = vpow.pop %v3522
  %v3524 = vmul.f32 %v3504, 1.442695
  %v3525 = vpow.pop %v3524
  %v3526 = vmul.f32 %v3505, 1.442695
  %v3527 = vpow.pop %v3526
  %v3528 = vmul.f32 %v3506, 1.442695
  %v3529 = vpow.pop %v3528
  %v3530 = vmul.f32 %v3507, 1.442695
  %v3531 = vpow.pop %v3530
  %v3532 = vmul.f32 %v3508, 1.442695
  %v3533 = vpow.pop %v3532
  %v3534 = vmul.f32 %v3509, 1.442695
  %v3535 = vpow.pop %v3534
  %v3536 = vmul.f32 %v3510, 1.442695
  %v3537 = vpow.pop %v3536
  %v3538 = vmul.f32 %v3511, 1.442695
  %v3539 = vpow.pop %v3538
  %v3540 = vmul.f32 %v3512, 1.442695
  %v3541 = vpow.pop %v3540
  %v3542 = vmul.f32 %v3513, 1.442695
  %v3543 = vpow.pop %v3542
  %v3544 = vmul.f32 %v3514, 1.442695
  %v3545 = vpow.pop %v3544
  %v3546 = vmul.f32 %v3515, 1.442695
  %v3547 = vpow.pop %v3546
  %v3548 = vadd.f32 %v3517, 1.0
  %v3549 = vadd.f32 %v3519, 1.0
  %v3550 = vadd.f32 %v3521, 1.0
  %v3551 = vadd.f32 %v3523, 1.0
  %v3552 = vadd.f32 %v3525, 1.0
  %v3553 = vadd.f32 %v3527, 1.0
  %v3554 = vadd.f32 %v3529, 1.0
  %v3555 = vadd.f32 %v3531, 1.0
  %v3556 = vadd.f32 %v3533, 1.0
  %v3557 = vadd.f32 %v3535, 1.0
  %v3558 = vadd.f32 %v3537, 1.0
  %v3559 = vadd.f32 %v3539, 1.0
  %v3560 = vadd.f32 %v3541, 1.0
  %v3561 = vadd.f32 %v3543, 1.0
  %v3562 = vadd.f32 %v3545, 1.0
  %v3563 = vadd.f32 %v3547, 1.0
  %v3564 = vrcp.pop %v3548
  %v3565 = vmul.f32 1.0, %v3564
  %v3566 = vrcp.pop %v3549
  %v3567 = vmul.f32 1.0, %v3566
  %v3568 = vrcp.pop %v3550
  %v3569 = vmul.f32 1.0, %v3568
  %v3570 = vrcp.pop %v3551
  %v3571 = vmul.f32 1.0, %v3570
  %v3572 = vrcp.pop %v3552
  %v3573 = vmul.f32 1.0, %v3572
  %v3574 = vrcp.pop %v3553
  %v3575 = vmul.f32 1.0, %v3574
  %v3576 = vrcp.pop %v3554
  %v3577 = vmul.f32 1.0, %v3576
  %v3578 = vrcp.pop %v3555
  %v3579 = vmul.f32 1.0, %v3578
  %v3580 = vrcp.pop %v3556
  %v3581 = vmul.f32 1.0, %v3580
  %v3582 = vrcp.pop %v3557
  %v3583 = vmul.f32 1.0, %v3582
  %v3584 = vrcp.pop %v3558
  %v3585 = vmul.f32 1.0, %v3584
  %v3586 = vrcp.pop %v3559
  %v3587 = vmul.f32 1.0, %v3586
  %v3588 = vrcp.pop %v3560
  %v3589 = vmul.f32 1.0, %v3588
  %v3590 = vrcp.pop %v3561
  %v3591 = vmul.f32 1.0, %v3590
  %v3592 = vrcp.pop %v3562
  %v3593 = vmul.f32 1.0, %v3592
  %v3594 = vrcp.pop %v3563
  %v3595 = vmul.f32 1.0, %v3594
  %v3596 = vmul.f32 %v3422, %v3565
  %v3597 = vmul.f32 %v3427, %v3567
  %v3598 = vmul.f32 %v3432, %v3569
  %v3599 = vmul.f32 %v3437, %v3571
  %v3600 = vmul.f32 %v3442, %v3573
  %v3601 = vmul.f32 %v3447, %v3575
  %v3602 = vmul.f32 %v3452, %v3577
  %v3603 = vmul.f32 %v3457, %v3579
  %v3604 = vmul.f32 %v3462, %v3581
  %v3605 = vmul.f32 %v3467, %v3583
  %v3606 = vmul.f32 %v3472, %v3585
  %v3607 = vmul.f32 %v3477, %v3587
  %v3608 = vmul.f32 %v3482, %v3589
  %v3609 = vmul.f32 %v3487, %v3591
  %v3610 = vmul.f32 %v3492, %v3593
  %v3611 = vmul.f32 %v3497, %v3595
  %v3612 = vld [vmem:[%s11] sm:$0x1]
  %v3614 = vlaneseq
  %v3615 = vshrl.u32 %v3614, 7
  %v3616 = vsub.s32 0, %v3615
  %v3617 = vrot.slane %v3612, %v3616
  %v3619 = vmul.f32 %v3596, %v3617
  %v3620 = vmul.f32 %v3597, %v3617
  %v3621 = vmul.f32 %v3598, %v3617
  %v3622 = vmul.f32 %v3599, %v3617
  %v3623 = vmul.f32 %v3600, %v3617
  %v3624 = vmul.f32 %v3601, %v3617
  %v3625 = vmul.f32 %v3602, %v3617
  %v3626 = vmul.f32 %v3603, %v3617
  %v3627 = vmul.f32 %v3604, %v3617
  %v3628 = vmul.f32 %v3605, %v3617
  %v3629 = vmul.f32 %v3606, %v3617
  %v3630 = vmul.f32 %v3607, %v3617
  %v3631 = vmul.f32 %v3608, %v3617
  %v3632 = vmul.f32 %v3609, %v3617
  %v3633 = vmul.f32 %v3610, %v3617
  %v3634 = vmul.f32 %v3611, %v3617
  %vm3635 = vcmask 523264
  %v3636 = vsel %vm3635, %v3619, 0.0
  %3637 = vadd.xlane.f32.xlu0 %v3636
  %v3638 = vpop.xlane.xlu0 %3637
  %v3639 = vsel %vm3635, %v3620, 0.0
  %3640 = vadd.xlane.f32.xlu0 %v3639
  %v3641 = vpop.xlane.xlu0 %3640
  %v3642 = vsel %vm3635, %v3621, 0.0
  %3643 = vadd.xlane.f32.xlu0 %v3642
  %v3644 = vpop.xlane.xlu0 %3643
  %v3645 = vsel %vm3635, %v3622, 0.0
  %3646 = vadd.xlane.f32.xlu0 %v3645
  %v3647 = vpop.xlane.xlu0 %3646
  %v3648 = vsel %vm3635, %v3623, 0.0
  %3649 = vadd.xlane.f32.xlu0 %v3648
  %v3650 = vpop.xlane.xlu0 %3649
  %v3651 = vsel %vm3635, %v3624, 0.0
  %3652 = vadd.xlane.f32.xlu0 %v3651
  %v3653 = vpop.xlane.xlu0 %3652
  %v3654 = vsel %vm3635, %v3625, 0.0
  %3655 = vadd.xlane.f32.xlu0 %v3654
  %v3656 = vpop.xlane.xlu0 %3655
  %v3657 = vsel %vm3635, %v3626, 0.0
  %3658 = vadd.xlane.f32.xlu0 %v3657
  %v3659 = vpop.xlane.xlu0 %3658
  %v3660 = vsel %vm3635, %v3627, 0.0
  %3661 = vadd.xlane.f32.xlu0 %v3660
  %v3662 = vpop.xlane.xlu0 %3661
  %v3663 = vsel %vm3635, %v3628, 0.0
  %3664 = vadd.xlane.f32.xlu0 %v3663
  %v3665 = vpop.xlane.xlu0 %3664
  %v3666 = vsel %vm3635, %v3629, 0.0
  %3667 = vadd.xlane.f32.xlu0 %v3666
  %v3668 = vpop.xlane.xlu0 %3667
  %v3669 = vsel %vm3635, %v3630, 0.0
  %3670 = vadd.xlane.f32.xlu0 %v3669
  %v3671 = vpop.xlane.xlu0 %3670
  %v3672 = vsel %vm3635, %v3631, 0.0
  %3673 = vadd.xlane.f32.xlu0 %v3672
  %v3674 = vpop.xlane.xlu0 %3673
  %v3675 = vsel %vm3635, %v3632, 0.0
  %3676 = vadd.xlane.f32.xlu0 %v3675
  %v3677 = vpop.xlane.xlu0 %3676
  %v3678 = vsel %vm3635, %v3633, 0.0
  %3679 = vadd.xlane.f32.xlu0 %v3678
  %v3680 = vpop.xlane.xlu0 %3679
  %v3681 = vsel %vm3635, %v3634, 0.0
  %3682 = vadd.xlane.f32.xlu0 %v3681
  %v3683 = vpop.xlane.xlu0 %3682
  %v3684 = vld [vmem:[%s12] sm:$0x1]
  %v3685 = vlaneseq
  %v3686 = vshrl.u32 %v3685, 7
  %v3687 = vsub.s32 0, %v3686
  %v3688 = vrot.slane %v3684, %v3687
  %v3689 = vadd.f32 %v3638, %v3688
  %v3690 = vadd.f32 %v3641, %v3688
  %v3691 = vadd.f32 %v3644, %v3688
  %v3692 = vadd.f32 %v3647, %v3688
  %v3693 = vadd.f32 %v3650, %v3688
  %v3694 = vadd.f32 %v3653, %v3688
  %v3695 = vadd.f32 %v3656, %v3688
  %v3696 = vadd.f32 %v3659, %v3688
  %v3697 = vadd.f32 %v3662, %v3688
  %v3698 = vadd.f32 %v3665, %v3688
  %v3699 = vadd.f32 %v3668, %v3688
  %v3700 = vadd.f32 %v3671, %v3688
  %v3701 = vadd.f32 %v3674, %v3688
  %v3702 = vadd.f32 %v3677, %v3688
  %v3703 = vadd.f32 %v3680, %v3688
  %v3704 = vadd.f32 %v3683, %v3688
  %3706 = vset.pattern.permute.xlu0 0
  %3707 = vperm.xlu0 %3706, %v3689
  %v3708 = vpop.permute.xlu0 %3707
  %3711 = vset.pattern.permute.xlu0 0
  %3712 = vperm.xlu0 %3711, %v3690
  %v3713 = vpop.permute.xlu0 %3712
  %3716 = vset.pattern.permute.xlu0 0
  %3717 = vperm.xlu0 %3716, %v3691
  %v3718 = vpop.permute.xlu0 %3717
  %3721 = vset.pattern.permute.xlu0 0
  %3722 = vperm.xlu0 %3721, %v3692
  %v3723 = vpop.permute.xlu0 %3722
  %3726 = vset.pattern.permute.xlu0 0
  %3727 = vperm.xlu0 %3726, %v3693
  %v3728 = vpop.permute.xlu0 %3727
  %3731 = vset.pattern.permute.xlu0 0
  %3732 = vperm.xlu0 %3731, %v3694
  %v3733 = vpop.permute.xlu0 %3732
  %3736 = vset.pattern.permute.xlu0 0
  %3737 = vperm.xlu0 %3736, %v3695
  %v3738 = vpop.permute.xlu0 %3737
  %3741 = vset.pattern.permute.xlu0 0
  %3742 = vperm.xlu0 %3741, %v3696
  %v3743 = vpop.permute.xlu0 %3742
  %3746 = vset.pattern.permute.xlu0 0
  %3747 = vperm.xlu0 %3746, %v3697
  %v3748 = vpop.permute.xlu0 %3747
  %3751 = vset.pattern.permute.xlu0 0
  %3752 = vperm.xlu0 %3751, %v3698
  %v3753 = vpop.permute.xlu0 %3752
  %3756 = vset.pattern.permute.xlu0 0
  %3757 = vperm.xlu0 %3756, %v3699
  %v3758 = vpop.permute.xlu0 %3757
  %3761 = vset.pattern.permute.xlu0 0
  %3762 = vperm.xlu0 %3761, %v3700
  %v3763 = vpop.permute.xlu0 %3762
  %3766 = vset.pattern.permute.xlu0 0
  %3767 = vperm.xlu0 %3766, %v3701
  %v3768 = vpop.permute.xlu0 %3767
  %3771 = vset.pattern.permute.xlu0 0
  %3772 = vperm.xlu0 %3771, %v3702
  %v3773 = vpop.permute.xlu0 %3772
  %3776 = vset.pattern.permute.xlu0 0
  %3777 = vperm.xlu0 %3776, %v3703
  %v3778 = vpop.permute.xlu0 %3777
  %3781 = vset.pattern.permute.xlu0 0
  %3782 = vperm.xlu0 %3781, %v3704
  %v3783 = vpop.permute.xlu0 %3782
  %v3785 = vmul.f32 %v3708, %v256
  %v3786 = vmul.f32 %v3713, %v257
  %v3787 = vmul.f32 %v3718, %v258
  %v3788 = vmul.f32 %v3723, %v259
  %v3789 = vmul.f32 %v3728, %v260
  %v3790 = vmul.f32 %v3733, %v261
  %v3791 = vmul.f32 %v3738, %v262
  %v3792 = vmul.f32 %v3743, %v263
  %v3793 = vmul.f32 %v3748, %v264
  %v3794 = vmul.f32 %v3753, %v265
  %v3795 = vmul.f32 %v3758, %v266
  %v3796 = vmul.f32 %v3763, %v267
  %v3797 = vmul.f32 %v3768, %v268
  %v3798 = vmul.f32 %v3773, %v269
  %v3799 = vmul.f32 %v3778, %v270
  %v3800 = vmul.f32 %v3783, %v271
  %v3801 = vsel %vm288, %v3785, 0.0
  %v3802 = vrot.slane %v3801, 4
  %v3803 = vadd.f32 %v3801, %v3802
  %v3804 = vrot.slane %v3803, 2
  %v3805 = vadd.f32 %v3803, %v3804
  %v3806 = vrot.slane %v3805, 1
  %v3807 = vadd.f32 %v3805, %v3806
  %v3808 = vsel %vm288, %v3786, 0.0
  %v3809 = vrot.slane %v3808, 4
  %v3810 = vadd.f32 %v3808, %v3809
  %v3811 = vrot.slane %v3810, 2
  %v3812 = vadd.f32 %v3810, %v3811
  %v3813 = vrot.slane %v3812, 1
  %v3814 = vadd.f32 %v3812, %v3813
  %v3815 = vsel %vm288, %v3787, 0.0
  %v3816 = vrot.slane %v3815, 4
  %v3817 = vadd.f32 %v3815, %v3816
  %v3818 = vrot.slane %v3817, 2
  %v3819 = vadd.f32 %v3817, %v3818
  %v3820 = vrot.slane %v3819, 1
  %v3821 = vadd.f32 %v3819, %v3820
  %v3822 = vsel %vm288, %v3788, 0.0
  %v3823 = vrot.slane %v3822, 4
  %v3824 = vadd.f32 %v3822, %v3823
  %v3825 = vrot.slane %v3824, 2
  %v3826 = vadd.f32 %v3824, %v3825
  %v3827 = vrot.slane %v3826, 1
  %v3828 = vadd.f32 %v3826, %v3827
  %v3829 = vsel %vm288, %v3789, 0.0
  %v3830 = vrot.slane %v3829, 4
  %v3831 = vadd.f32 %v3829, %v3830
  %v3832 = vrot.slane %v3831, 2
  %v3833 = vadd.f32 %v3831, %v3832
  %v3834 = vrot.slane %v3833, 1
  %v3835 = vadd.f32 %v3833, %v3834
  %v3836 = vsel %vm288, %v3790, 0.0
  %v3837 = vrot.slane %v3836, 4
  %v3838 = vadd.f32 %v3836, %v3837
  %v3839 = vrot.slane %v3838, 2
  %v3840 = vadd.f32 %v3838, %v3839
  %v3841 = vrot.slane %v3840, 1
  %v3842 = vadd.f32 %v3840, %v3841
  %v3843 = vsel %vm288, %v3791, 0.0
  %v3844 = vrot.slane %v3843, 4
  %v3845 = vadd.f32 %v3843, %v3844
  %v3846 = vrot.slane %v3845, 2
  %v3847 = vadd.f32 %v3845, %v3846
  %v3848 = vrot.slane %v3847, 1
  %v3849 = vadd.f32 %v3847, %v3848
  %v3850 = vsel %vm288, %v3792, 0.0
  %v3851 = vrot.slane %v3850, 4
  %v3852 = vadd.f32 %v3850, %v3851
  %v3853 = vrot.slane %v3852, 2
  %v3854 = vadd.f32 %v3852, %v3853
  %v3855 = vrot.slane %v3854, 1
  %v3856 = vadd.f32 %v3854, %v3855
  %v3857 = vsel %vm288, %v3793, 0.0
  %v3858 = vrot.slane %v3857, 4
  %v3859 = vadd.f32 %v3857, %v3858
  %v3860 = vrot.slane %v3859, 2
  %v3861 = vadd.f32 %v3859, %v3860
  %v3862 = vrot.slane %v3861, 1
  %v3863 = vadd.f32 %v3861, %v3862
  %v3864 = vsel %vm288, %v3794, 0.0
  %v3865 = vrot.slane %v3864, 4
  %v3866 = vadd.f32 %v3864, %v3865
  %v3867 = vrot.slane %v3866, 2
  %v3868 = vadd.f32 %v3866, %v3867
  %v3869 = vrot.slane %v3868, 1
  %v3870 = vadd.f32 %v3868, %v3869
  %v3871 = vsel %vm288, %v3795, 0.0
  %v3872 = vrot.slane %v3871, 4
  %v3873 = vadd.f32 %v3871, %v3872
  %v3874 = vrot.slane %v3873, 2
  %v3875 = vadd.f32 %v3873, %v3874
  %v3876 = vrot.slane %v3875, 1
  %v3877 = vadd.f32 %v3875, %v3876
  %v3878 = vsel %vm288, %v3796, 0.0
  %v3879 = vrot.slane %v3878, 4
  %v3880 = vadd.f32 %v3878, %v3879
  %v3881 = vrot.slane %v3880, 2
  %v3882 = vadd.f32 %v3880, %v3881
  %v3883 = vrot.slane %v3882, 1
  %v3884 = vadd.f32 %v3882, %v3883
  %v3885 = vsel %vm288, %v3797, 0.0
  %v3886 = vrot.slane %v3885, 4
  %v3887 = vadd.f32 %v3885, %v3886
  %v3888 = vrot.slane %v3887, 2
  %v3889 = vadd.f32 %v3887, %v3888
  %v3890 = vrot.slane %v3889, 1
  %v3891 = vadd.f32 %v3889, %v3890
  %v3892 = vsel %vm288, %v3798, 0.0
  %v3893 = vrot.slane %v3892, 4
  %v3894 = vadd.f32 %v3892, %v3893
  %v3895 = vrot.slane %v3894, 2
  %v3896 = vadd.f32 %v3894, %v3895
  %v3897 = vrot.slane %v3896, 1
  %v3898 = vadd.f32 %v3896, %v3897
  %v3899 = vsel %vm288, %v3799, 0.0
  %v3900 = vrot.slane %v3899, 4
  %v3901 = vadd.f32 %v3899, %v3900
  %v3902 = vrot.slane %v3901, 2
  %v3903 = vadd.f32 %v3901, %v3902
  %v3904 = vrot.slane %v3903, 1
  %v3905 = vadd.f32 %v3903, %v3904
  %v3906 = vsel %vm288, %v3800, 0.0
  %v3907 = vrot.slane %v3906, 4
  %v3908 = vadd.f32 %v3906, %v3907
  %v3909 = vrot.slane %v3908, 2
  %v3910 = vadd.f32 %v3908, %v3909
  %v3911 = vrot.slane %v3910, 1
  %v3912 = vadd.f32 %v3910, %v3911
  %vm3929 = vcmask 1041409
  %v3930 = vsel %vm3929, %v3814, %v3807
  %vm3931 = vcmask 1042434
  %v3932 = vsel %vm3931, %v3821, %v3930
  %vm3933 = vcmask 1043459
  %v3934 = vsel %vm3933, %v3828, %v3932
  %vm3935 = vcmask 1044484
  %v3936 = vsel %vm3935, %v3835, %v3934
  %vm3937 = vcmask 1045509
  %v3938 = vsel %vm3937, %v3842, %v3936
  %vm3939 = vcmask 1046534
  %v3940 = vsel %vm3939, %v3849, %v3938
  %vm3941 = vcmask 1047559
  %v3942 = vsel %vm3941, %v3856, %v3940
  %v3943 = vsel %vm3929, %v3870, %v3863
  %v3944 = vsel %vm3931, %v3877, %v3943
  %v3945 = vsel %vm3933, %v3884, %v3944
  %v3946 = vsel %vm3935, %v3891, %v3945
  %v3947 = vsel %vm3937, %v3898, %v3946
  %v3948 = vsel %vm3939, %v3905, %v3947
  %v3949 = vsel %vm3941, %v3912, %v3948
  %v3952 = vadd.f32 %v74, %v3942
  %v3953 = vadd.f32 %v75, %v3949
  %v3954 = vsel %vm3306, %v3283, 0.0
  %v3955 = vrot.slane %v3954, 4
  %v3956 = vadd.f32 %v3954, %v3955
  %v3957 = vrot.slane %v3956, 2
  %v3958 = vadd.f32 %v3956, %v3957
  %v3959 = vrot.slane %v3958, 1
  %v3960 = vadd.f32 %v3958, %v3959
  %v3961 = vsel %vm3306, %v3284, 0.0
  %v3962 = vrot.slane %v3961, 4
  %v3963 = vadd.f32 %v3961, %v3962
  %v3964 = vrot.slane %v3963, 2
  %v3965 = vadd.f32 %v3963, %v3964
  %v3966 = vrot.slane %v3965, 1
  %v3967 = vadd.f32 %v3965, %v3966
  %v3968 = vsel %vm3306, %v3285, 0.0
  %v3969 = vrot.slane %v3968, 4
  %v3970 = vadd.f32 %v3968, %v3969
  %v3971 = vrot.slane %v3970, 2
  %v3972 = vadd.f32 %v3970, %v3971
  %v3973 = vrot.slane %v3972, 1
  %v3974 = vadd.f32 %v3972, %v3973
  %v3975 = vsel %vm3306, %v3286, 0.0
  %v3976 = vrot.slane %v3975, 4
  %v3977 = vadd.f32 %v3975, %v3976
  %v3978 = vrot.slane %v3977, 2
  %v3979 = vadd.f32 %v3977, %v3978
  %v3980 = vrot.slane %v3979, 1
  %v3981 = vadd.f32 %v3979, %v3980
  %v3982 = vsel %vm3306, %v3287, 0.0
  %v3983 = vrot.slane %v3982, 4
  %v3984 = vadd.f32 %v3982, %v3983
  %v3985 = vrot.slane %v3984, 2
  %v3986 = vadd.f32 %v3984, %v3985
  %v3987 = vrot.slane %v3986, 1
  %v3988 = vadd.f32 %v3986, %v3987
  %v3989 = vsel %vm3306, %v3288, 0.0
  %v3990 = vrot.slane %v3989, 4
  %v3991 = vadd.f32 %v3989, %v3990
  %v3992 = vrot.slane %v3991, 2
  %v3993 = vadd.f32 %v3991, %v3992
  %v3994 = vrot.slane %v3993, 1
  %v3995 = vadd.f32 %v3993, %v3994
  %v3996 = vsel %vm3306, %v3289, 0.0
  %v3997 = vrot.slane %v3996, 4
  %v3998 = vadd.f32 %v3996, %v3997
  %v3999 = vrot.slane %v3998, 2
  %v4000 = vadd.f32 %v3998, %v3999
  %v4001 = vrot.slane %v4000, 1
  %v4002 = vadd.f32 %v4000, %v4001
  %v4003 = vsel %vm3306, %v3290, 0.0
  %v4004 = vrot.slane %v4003, 4
  %v4005 = vadd.f32 %v4003, %v4004
  %v4006 = vrot.slane %v4005, 2
  %v4007 = vadd.f32 %v4005, %v4006
  %v4008 = vrot.slane %v4007, 1
  %v4009 = vadd.f32 %v4007, %v4008
  %v4010 = vsel %vm3306, %v3291, 0.0
  %v4011 = vrot.slane %v4010, 4
  %v4012 = vadd.f32 %v4010, %v4011
  %v4013 = vrot.slane %v4012, 2
  %v4014 = vadd.f32 %v4012, %v4013
  %v4015 = vrot.slane %v4014, 1
  %v4016 = vadd.f32 %v4014, %v4015
  %v4017 = vsel %vm3306, %v3292, 0.0
  %v4018 = vrot.slane %v4017, 4
  %v4019 = vadd.f32 %v4017, %v4018
  %v4020 = vrot.slane %v4019, 2
  %v4021 = vadd.f32 %v4019, %v4020
  %v4022 = vrot.slane %v4021, 1
  %v4023 = vadd.f32 %v4021, %v4022
  %v4024 = vsel %vm3306, %v3293, 0.0
  %v4025 = vrot.slane %v4024, 4
  %v4026 = vadd.f32 %v4024, %v4025
  %v4027 = vrot.slane %v4026, 2
  %v4028 = vadd.f32 %v4026, %v4027
  %v4029 = vrot.slane %v4028, 1
  %v4030 = vadd.f32 %v4028, %v4029
  %v4031 = vsel %vm3306, %v3294, 0.0
  %v4032 = vrot.slane %v4031, 4
  %v4033 = vadd.f32 %v4031, %v4032
  %v4034 = vrot.slane %v4033, 2
  %v4035 = vadd.f32 %v4033, %v4034
  %v4036 = vrot.slane %v4035, 1
  %v4037 = vadd.f32 %v4035, %v4036
  %v4038 = vsel %vm3306, %v3295, 0.0
  %v4039 = vrot.slane %v4038, 4
  %v4040 = vadd.f32 %v4038, %v4039
  %v4041 = vrot.slane %v4040, 2
  %v4042 = vadd.f32 %v4040, %v4041
  %v4043 = vrot.slane %v4042, 1
  %v4044 = vadd.f32 %v4042, %v4043
  %v4045 = vsel %vm3306, %v3296, 0.0
  %v4046 = vrot.slane %v4045, 4
  %v4047 = vadd.f32 %v4045, %v4046
  %v4048 = vrot.slane %v4047, 2
  %v4049 = vadd.f32 %v4047, %v4048
  %v4050 = vrot.slane %v4049, 1
  %v4051 = vadd.f32 %v4049, %v4050
  %v4052 = vsel %vm3306, %v3297, 0.0
  %v4053 = vrot.slane %v4052, 4
  %v4054 = vadd.f32 %v4052, %v4053
  %v4055 = vrot.slane %v4054, 2
  %v4056 = vadd.f32 %v4054, %v4055
  %v4057 = vrot.slane %v4056, 1
  %v4058 = vadd.f32 %v4056, %v4057
  %v4059 = vsel %vm3306, %v3298, 0.0
  %v4060 = vrot.slane %v4059, 4
  %v4061 = vadd.f32 %v4059, %v4060
  %v4062 = vrot.slane %v4061, 2
  %v4063 = vadd.f32 %v4061, %v4062
  %v4064 = vrot.slane %v4063, 1
  %v4065 = vadd.f32 %v4063, %v4064
  %4066 = vadd.xlane.f32.xlu0 %v72
  %v4067 = vpop.xlane.xlu0 %4066
  %4068 = vadd.xlane.f32.xlu0 %v73
  %v4069 = vpop.xlane.xlu0 %4068
  %v4070 = vrcp.pop 128.0
  %v4071 = vmul.f32 %v4067, %v4070
  %v4072 = vmul.f32 %v4069, %v4070
  %v4073 = vsub.f32 %v72, %v4071
  %v4074 = vsub.f32 %v73, %v4072
  %v4075 = vmul.f32 %v4073, %v4073
  %v4076 = vmul.f32 %v4074, %v4074
  %4077 = vadd.xlane.f32.xlu0 %v4075
  %v4078 = vpop.xlane.xlu0 %4077
  %4079 = vadd.xlane.f32.xlu0 %v4076
  %v4080 = vpop.xlane.xlu0 %4079
  %v4081 = vmul.f32 %v4078, %v4070
  %v4082 = vmul.f32 %v4080, %v4070
  %v4083 = vadd.f32 %v4081, 1e-05
  %v4084 = vadd.f32 %v4082, 1e-05
  %v4085 = vrsqrt.pop %v4083
  %v4086 = vrsqrt.pop %v4084
  %v4087 = vmul.f32 %v4073, %v4085
  %v4088 = vmul.f32 %v4074, %v4086
  %v4089 = vld [vmem:[%s7] sm:$0x1]
  %v4090 = vlaneseq
  %v4091 = vshrl.u32 %v4090, 7
  %v4092 = vsub.s32 0, %v4091
  %v4093 = vrot.slane %v4089, %v4092
  %v4094 = vmul.f32 %v4087, %v4093
  %v4095 = vmul.f32 %v4088, %v4093
  %v4096 = vld [vmem:[%s8] sm:$0x1]
  %v4097 = vlaneseq
  %v4098 = vshrl.u32 %v4097, 7
  %v4099 = vsub.s32 0, %v4098
  %v4100 = vrot.slane %v4096, %v4099
  %v4101 = vadd.f32 %v4094, %v4100
  %v4102 = vadd.f32 %v4095, %v4100
  %v4103 = vld [vmem:[%s13] sm:$0xff]
  %v4104 = vld [vmem:[%s13 + $0x8] sm:$0xff]
  %v4105 = vld [vmem:[%s13 + $0x10] sm:$0xff]
  %v4106 = vld [vmem:[%s13 + $0x18] sm:$0xff]
  %v4107 = vld [vmem:[%s13 + $0x20] sm:$0xff]
  %v4108 = vld [vmem:[%s13 + $0x28] sm:$0xff]
  %v4109 = vld [vmem:[%s13 + $0x30] sm:$0xff]
  %v4110 = vld [vmem:[%s13 + $0x38] sm:$0xff]
  %v4111 = vld [vmem:[%s13 + $0x40] sm:$0xff]
  %v4112 = vld [vmem:[%s13 + $0x48] sm:$0xff]
  %v4113 = vld [vmem:[%s13 + $0x50] sm:$0xff]
  %v4114 = vld [vmem:[%s13 + $0x58] sm:$0xff]
  %v4115 = vld [vmem:[%s13 + $0x60] sm:$0xff]
  %v4116 = vld [vmem:[%s13 + $0x68] sm:$0xff]
  %v4117 = vld [vmem:[%s13 + $0x70] sm:$0xff]
  %v4118 = vld [vmem:[%s13 + $0x78] sm:$0xff]
  %v4119 = vld [vmem:[%s13 + $0x80] sm:$0xff]
  %v4120 = vld [vmem:[%s13 + $0x88] sm:$0xff]
  %v4121 = vld [vmem:[%s13 + $0x90] sm:$0xff]
  %v4122 = vld [vmem:[%s13 + $0x98] sm:$0xff]
  %v4123 = vld [vmem:[%s13 + $0xa0] sm:$0xff]
  %v4124 = vld [vmem:[%s13 + $0xa8] sm:$0xff]
  %v4125 = vld [vmem:[%s13 + $0xb0] sm:$0xff]
  %v4126 = vld [vmem:[%s13 + $0xb8] sm:$0xff]
  %v4127 = vld [vmem:[%s13 + $0xc0] sm:$0xff]
  %v4128 = vld [vmem:[%s13 + $0xc8] sm:$0xff]
  %v4129 = vld [vmem:[%s13 + $0xd0] sm:$0xff]
  %v4130 = vld [vmem:[%s13 + $0xd8] sm:$0xff]
  %v4131 = vld [vmem:[%s13 + $0xe0] sm:$0xff]
  %v4132 = vld [vmem:[%s13 + $0xe8] sm:$0xff]
  %v4133 = vld [vmem:[%s13 + $0xf0] sm:$0xff]
  %v4134 = vld [vmem:[%s13 + $0xf8] sm:$0xff]
  %v4135 = vld [vmem:[%s14] sm:$0xff]
  %v4136 = vld [vmem:[%s14 + $0x8] sm:$0xff]
  %v4137 = vld [vmem:[%s14 + $0x10] sm:$0xff]
  %v4138 = vld [vmem:[%s14 + $0x18] sm:$0xff]
  %v4155 = vsel %vm3929, %v3967, %v3960
  %v4156 = vsel %vm3931, %v3974, %v4155
  %v4157 = vsel %vm3933, %v3981, %v4156
  %v4158 = vsel %vm3935, %v3988, %v4157
  %v4159 = vsel %vm3937, %v3995, %v4158
  %v4160 = vsel %vm3939, %v4002, %v4159
  %v4161 = vsel %vm3941, %v4009, %v4160
  %v4162 = vsel %vm3929, %v4023, %v4016
  %v4163 = vsel %vm3931, %v4030, %v4162
  %v4164 = vsel %vm3933, %v4037, %v4163
  %v4165 = vsel %vm3935, %v4044, %v4164
  %v4166 = vsel %vm3937, %v4051, %v4165
  %v4167 = vsel %vm3939, %v4058, %v4166
  %v4168 = vsel %vm3941, %v4065, %v4167
  %v4169 = vsel %vm3306, %v4161, 0
  %v4171 = vsel %vm3306, %v4168, 0
  %4173 = vmatprep.subr.mxu0 %v4136
  %4174 = vmatpush1.msra.mxu0 %v4135
  %4175 = vmatprep.subr.mxu0 %v4138
  %4176 = vmatpush1.msra.mxu0 %v4137
  %4177 = vmatprep.subr.mxu0 0.0
  %4178 = vmatpush1.msra.mxu0 0.0
  %4179 = vmatprep.subr.mxu0 0.0
  %4180 = vmatpush1.msra.mxu0 0.0
  %4181 = vmatprep.subr.mxu0 0.0
  %4182 = vmatpush1.msra.mxu0 0.0
  %4183 = vmatprep.subr.mxu0 0.0
  %4184 = vmatpush1.msra.mxu0 0.0
  %4185 = vmatprep.subr.mxu0 0.0
  %4186 = vmatpush1.msra.mxu0 0.0
  %4187 = vmatprep.subr.mxu0 0.0
  %4188 = vmatpush1.msra.mxu0 0.0
  %4189 = vmatprep.subr.mxu0 0.0
  %4190 = vmatpush1.msra.mxu0 0.0
  %4191 = vmatprep.subr.mxu0 0.0
  %4192 = vmatpush1.msra.mxu0 0.0
  %4193 = vmatprep.subr.mxu0 0.0
  %4194 = vmatpush1.msra.mxu0 0.0
  %4195 = vmatprep.subr.mxu0 0.0
  %4196 = vmatpush1.msra.mxu0 0.0
  %4197 = vmatprep.subr.mxu0 0.0
  %4198 = vmatpush1.msra.mxu0 0.0
  %4199 = vmatprep.subr.mxu0 0.0
  %4200 = vmatpush1.msra.mxu0 0.0
  %4201 = vmatprep.subr.mxu0 0.0
  %4202 = vmatpush1.msra.mxu0 0.0
  %4203 = vmatprep.subr.mxu0 0.0
  %4204 = vmatpush1.msra.mxu0 0.0
  %4205 = vmatprep.subr.mxu0 0.0
  %4206 = vmatpush1.msra.mxu0 0.0
  %4207 = vmatprep.subr.mxu0 0.0
  %4208 = vmatpush1.msra.mxu0 0.0
  %4209 = vmatprep.subr.mxu0 0.0
  %4210 = vmatpush1.msra.mxu0 0.0
  %4211 = vmatprep.subr.mxu0 0.0
  %4212 = vmatpush1.msra.mxu0 0.0
  %4213 = vmatprep.subr.mxu0 0.0
  %4214 = vmatpush1.msra.mxu0 0.0
  %4215 = vmatprep.subr.mxu0 0.0
  %4216 = vmatpush1.msra.mxu0 0.0
  %4217 = vmatprep.subr.mxu0 0.0
  %4218 = vmatpush1.msra.mxu0 0.0
  %4219 = vmatprep.subr.mxu0 0.0
  %4220 = vmatpush1.msra.mxu0 0.0
  %4221 = vmatprep.subr.mxu0 0.0
  %4222 = vmatpush1.msra.mxu0 0.0
  %4223 = vmatprep.subr.mxu0 0.0
  %4224 = vmatpush1.msra.mxu0 0.0
  %4225 = vmatprep.subr.mxu0 0.0
  %4226 = vmatpush1.msra.mxu0 0.0
  %4227 = vmatprep.subr.mxu0 0.0
  %4228 = vmatpush1.msra.mxu0 0.0
  %4229 = vmatprep.subr.mxu0 0.0
  %4230 = vmatpush1.msra.mxu0 0.0
  %4231 = vmatprep.subr.mxu0 0.0
  %4232 = vmatpush1.msra.mxu0 0.0
  %4233 = vmatprep.subr.mxu0 0.0
  %4234 = vmatpush1.msra.mxu0 0.0
  %4235 = vmatprep.subr.mxu0 0.0
  %4236 = vmatpush1.msra.mxu0 0.0
  %4237 = vmatprep.mubr.f32.mxu0 0.0
  %4238 = vmatmul.mubr.f32.gmra.mrb[0].mxu0 %v4169
  %v4239 = vpop.f32.mrb[0].mxu0
  %v4240 = vadd.f32 0.0, %v4239
  %v4241 = vpop.f32.mrb[0].mxu0
  %v4242 = vadd.f32 0.0, %v4241
  %4243 = vmatprep.mubr.f32.mxu0 0.0
  %4244 = vmatmul.mubr.f32.gmra.mrb[0].mxu0 %v4171
  %v4245 = vpop.f32.mrb[0].mxu0
  %v4246 = vadd.f32 0.0, %v4245
  %v4247 = vpop.f32.mrb[0].mxu0
  %v4248 = vadd.f32 0.0, %v4247
  %4249 = vdwg.mxu0
  %4250 = vmatprep.subr.mxu0 %v4104
  %4251 = vmatpush1.msra.mxu0 %v4103
  %4252 = vmatprep.subr.mxu0 %v4106
  %4253 = vmatpush1.msra.mxu0 %v4105
  %4254 = vmatprep.subr.mxu0 %v4108
  %4255 = vmatpush1.msra.mxu0 %v4107
  %4256 = vmatprep.subr.mxu0 %v4110
  %4257 = vmatpush1.msra.mxu0 %v4109
  %4258 = vmatprep.subr.mxu0 %v4112
  %4259 = vmatpush1.msra.mxu0 %v4111
  %4260 = vmatprep.subr.mxu0 %v4114
  %4261 = vmatpush1.msra.mxu0 %v4113
  %4262 = vmatprep.subr.mxu0 %v4116
  %4263 = vmatpush1.msra.mxu0 %v4115
  %4264 = vmatprep.subr.mxu0 %v4118
  %4265 = vmatpush1.msra.mxu0 %v4117
  %4266 = vmatprep.subr.mxu0 %v4120
  %4267 = vmatpush1.msra.mxu0 %v4119
  %4268 = vmatprep.subr.mxu0 %v4122
  %4269 = vmatpush1.msra.mxu0 %v4121
  %4270 = vmatprep.subr.mxu0 %v4124
  %4271 = vmatpush1.msra.mxu0 %v4123
  %4272 = vmatprep.subr.mxu0 %v4126
  %4273 = vmatpush1.msra.mxu0 %v4125
  %4274 = vmatprep.subr.mxu0 %v4128
  %4275 = vmatpush1.msra.mxu0 %v4127
  %4276 = vmatprep.subr.mxu0 %v4130
  %4277 = vmatpush1.msra.mxu0 %v4129
  %4278 = vmatprep.subr.mxu0 %v4132
  %4279 = vmatpush1.msra.mxu0 %v4131
  %4280 = vmatprep.subr.mxu0 %v4134
  %4281 = vmatpush1.msra.mxu0 %v4133
  %4282 = vmatprep.subr.mxu0 0.0
  %4283 = vmatpush1.msra.mxu0 0.0
  %4284 = vmatprep.subr.mxu0 0.0
  %4285 = vmatpush1.msra.mxu0 0.0
  %4286 = vmatprep.subr.mxu0 0.0
  %4287 = vmatpush1.msra.mxu0 0.0
  %4288 = vmatprep.subr.mxu0 0.0
  %4289 = vmatpush1.msra.mxu0 0.0
  %4290 = vmatprep.subr.mxu0 0.0
  %4291 = vmatpush1.msra.mxu0 0.0
  %4292 = vmatprep.subr.mxu0 0.0
  %4293 = vmatpush1.msra.mxu0 0.0
  %4294 = vmatprep.subr.mxu0 0.0
  %4295 = vmatpush1.msra.mxu0 0.0
  %4296 = vmatprep.subr.mxu0 0.0
  %4297 = vmatpush1.msra.mxu0 0.0
  %4298 = vmatprep.subr.mxu0 0.0
  %4299 = vmatpush1.msra.mxu0 0.0
  %4300 = vmatprep.subr.mxu0 0.0
  %4301 = vmatpush1.msra.mxu0 0.0
  %4302 = vmatprep.subr.mxu0 0.0
  %4303 = vmatpush1.msra.mxu0 0.0
  %4304 = vmatprep.subr.mxu0 0.0
  %4305 = vmatpush1.msra.mxu0 0.0
  %4306 = vmatprep.subr.mxu0 0.0
  %4307 = vmatpush1.msra.mxu0 0.0
  %4308 = vmatprep.subr.mxu0 0.0
  %4309 = vmatpush1.msra.mxu0 0.0
  %4310 = vmatprep.subr.mxu0 0.0
  %4311 = vmatpush1.msra.mxu0 0.0
  %4312 = vmatprep.subr.mxu0 0.0
  %4313 = vmatpush1.msra.mxu0 0.0
  %4314 = vmatprep.mubr.f32.mxu0 0.0
  %4315 = vmatmul.mubr.f32.gmra.mrb[0].mxu0 %v4101
  %v4316 = vpop.f32.mrb[0].mxu0
  %v4317 = vadd.f32 %v4240, %v4316
  %v4318 = vpop.f32.mrb[0].mxu0
  %v4319 = vadd.f32 %v4242, %v4318
  %4320 = vmatprep.mubr.f32.mxu0 0.0
  %4321 = vmatmul.mubr.f32.gmra.mrb[0].mxu0 %v4102
  %v4322 = vpop.f32.mrb[0].mxu0
  %v4323 = vadd.f32 %v4246, %v4322
  %v4324 = vpop.f32.mrb[0].mxu0
  %v4325 = vadd.f32 %v4248, %v4324
  %4326 = vdwg.mxu0
  %v4327 = vld [vmem:[%s15] ss:$4 sm:$0x3]
  %v4329 = vlaneseq
  %v4330 = vshrl.u32 %v4329, 7
  %v4331 = vsub.s32 0, %v4330
  %v4332 = vrot.slane %v4327, %v4331
  %v4333 = vlaneseq
  %v4334 = vshrl.u32 %v4333, 7
  %v4335 = vsub.s32 1, %v4334
  %v4336 = vrot.slane %v4327, %v4335
  %v4339 = vadd.f32 %v4317, %v4332
  %v4340 = vadd.f32 %v4319, %v4336
  %v4341 = vadd.f32 %v4323, %v4332
  %v4342 = vadd.f32 %v4325, %v4336
  %v4343 = vxor.u32 %v4339, 2147483648
  %v4344 = vxor.u32 %v4340, 2147483648
  %v4345 = vxor.u32 %v4341, 2147483648
  %v4346 = vxor.u32 %v4342, 2147483648
  %v4347 = vmul.f32 %v4343, 1.442695
  %v4348 = vpow.pop %v4347
  %v4349 = vmul.f32 %v4344, 1.442695
  %v4350 = vpow.pop %v4349
  %v4351 = vmul.f32 %v4345, 1.442695
  %v4352 = vpow.pop %v4351
  %v4353 = vmul.f32 %v4346, 1.442695
  %v4354 = vpow.pop %v4353
  %v4355 = vadd.f32 %v4348, 1.0
  %v4356 = vadd.f32 %v4350, 1.0
  %v4357 = vadd.f32 %v4352, 1.0
  %v4358 = vadd.f32 %v4354, 1.0
  %v4359 = vrcp.pop %v4355
  %v4360 = vmul.f32 1.0, %v4359
  %v4361 = vrcp.pop %v4356
  %v4362 = vmul.f32 1.0, %v4361
  %v4363 = vrcp.pop %v4357
  %v4364 = vmul.f32 1.0, %v4363
  %v4365 = vrcp.pop %v4358
  %v4366 = vmul.f32 1.0, %v4365
  %v4367 = vmul.f32 %v4339, %v4360
  %v4368 = vmul.f32 %v4340, %v4362
  %v4369 = vmul.f32 %v4341, %v4364
  %v4370 = vmul.f32 %v4342, %v4366
  %v4371 = vld [vmem:[%s16] sm:$0xff]
  %v4372 = vld [vmem:[%s16 + $0x8] sm:$0xff]
  %v4373 = vld [vmem:[%s16 + $0x10] sm:$0xff]
  %v4374 = vld [vmem:[%s16 + $0x18] sm:$0xff]
  %v4375 = vld [vmem:[%s16 + $0x20] sm:$0xff]
  %v4376 = vld [vmem:[%s16 + $0x28] sm:$0xff]
  %v4377 = vld [vmem:[%s16 + $0x30] sm:$0xff]
  %v4378 = vld [vmem:[%s16 + $0x38] sm:$0xff]
  %v4379 = vld [vmem:[%s16 + $0x40] sm:$0xff]
  %v4380 = vld [vmem:[%s16 + $0x48] sm:$0xff]
  %v4381 = vld [vmem:[%s16 + $0x50] sm:$0xff]
  %v4382 = vld [vmem:[%s16 + $0x58] sm:$0xff]
  %v4383 = vld [vmem:[%s16 + $0x60] sm:$0xff]
  %v4384 = vld [vmem:[%s16 + $0x68] sm:$0xff]
  %v4385 = vld [vmem:[%s16 + $0x70] sm:$0xff]
  %v4386 = vld [vmem:[%s16 + $0x78] sm:$0xff]
  %v4387 = vld [vmem:[%s16 + $0x80] sm:$0xff]
  %v4388 = vld [vmem:[%s16 + $0x88] sm:$0xff]
  %v4389 = vld [vmem:[%s16 + $0x90] sm:$0xff]
  %v4390 = vld [vmem:[%s16 + $0x98] sm:$0xff]
  %v4391 = vld [vmem:[%s16 + $0xa0] sm:$0xff]
  %v4392 = vld [vmem:[%s16 + $0xa8] sm:$0xff]
  %v4393 = vld [vmem:[%s16 + $0xb0] sm:$0xff]
  %v4394 = vld [vmem:[%s16 + $0xb8] sm:$0xff]
  %v4395 = vld [vmem:[%s16 + $0xc0] sm:$0xff]
  %v4396 = vld [vmem:[%s16 + $0xc8] sm:$0xff]
  %v4397 = vld [vmem:[%s16 + $0xd0] sm:$0xff]
  %v4398 = vld [vmem:[%s16 + $0xd8] sm:$0xff]
  %v4399 = vld [vmem:[%s16 + $0xe0] sm:$0xff]
  %v4400 = vld [vmem:[%s16 + $0xe8] sm:$0xff]
  %v4401 = vld [vmem:[%s16 + $0xf0] sm:$0xff]
  %v4402 = vld [vmem:[%s16 + $0xf8] sm:$0xff]
  %v4403 = vld [vmem:[%s17] sm:$0x1]
  %v4404 = vlaneseq
  %v4405 = vshrl.u32 %v4404, 7
  %v4406 = vsub.s32 0, %v4405
  %v4407 = vrot.slane %v4403, %v4406
  %4408 = vmatprep.subr.mxu0 0.0
  %4409 = vmatpush1.msra.mxu0 %v4371
  %4410 = vmatprep.subr.mxu0 0.0
  %4411 = vmatpush1.msra.mxu0 %v4372
  %4412 = vmatprep.subr.mxu0 0.0
  %4413 = vmatpush1.msra.mxu0 %v4373
  %4414 = vmatprep.subr.mxu0 0.0
  %4415 = vmatpush1.msra.mxu0 %v4374
  %4416 = vmatprep.subr.mxu0 0.0
  %4417 = vmatpush1.msra.mxu0 %v4375
  %4418 = vmatprep.subr.mxu0 0.0
  %4419 = vmatpush1.msra.mxu0 %v4376
  %4420 = vmatprep.subr.mxu0 0.0
  %4421 = vmatpush1.msra.mxu0 %v4377
  %4422 = vmatprep.subr.mxu0 0.0
  %4423 = vmatpush1.msra.mxu0 %v4378
  %4424 = vmatprep.subr.mxu0 0.0
  %4425 = vmatpush1.msra.mxu0 %v4379
  %4426 = vmatprep.subr.mxu0 0.0
  %4427 = vmatpush1.msra.mxu0 %v4380
  %4428 = vmatprep.subr.mxu0 0.0
  %4429 = vmatpush1.msra.mxu0 %v4381
  %4430 = vmatprep.subr.mxu0 0.0
  %4431 = vmatpush1.msra.mxu0 %v4382
  %4432 = vmatprep.subr.mxu0 0.0
  %4433 = vmatpush1.msra.mxu0 %v4383
  %4434 = vmatprep.subr.mxu0 0.0
  %4435 = vmatpush1.msra.mxu0 %v4384
  %4436 = vmatprep.subr.mxu0 0.0
  %4437 = vmatpush1.msra.mxu0 %v4385
  %4438 = vmatprep.subr.mxu0 0.0
  %4439 = vmatpush1.msra.mxu0 %v4386
  %4440 = vmatprep.subr.mxu0 0.0
  %4441 = vmatpush1.msra.mxu0 %v4387
  %4442 = vmatprep.subr.mxu0 0.0
  %4443 = vmatpush1.msra.mxu0 %v4388
  %4444 = vmatprep.subr.mxu0 0.0
  %4445 = vmatpush1.msra.mxu0 %v4389
  %4446 = vmatprep.subr.mxu0 0.0
  %4447 = vmatpush1.msra.mxu0 %v4390
  %4448 = vmatprep.subr.mxu0 0.0
  %4449 = vmatpush1.msra.mxu0 %v4391
  %4450 = vmatprep.subr.mxu0 0.0
  %4451 = vmatpush1.msra.mxu0 %v4392
  %4452 = vmatprep.subr.mxu0 0.0
  %4453 = vmatpush1.msra.mxu0 %v4393
  %4454 = vmatprep.subr.mxu0 0.0
  %4455 = vmatpush1.msra.mxu0 %v4394
  %4456 = vmatprep.subr.mxu0 0.0
  %4457 = vmatpush1.msra.mxu0 %v4395
  %4458 = vmatprep.subr.mxu0 0.0
  %4459 = vmatpush1.msra.mxu0 %v4396
  %4460 = vmatprep.subr.mxu0 0.0
  %4461 = vmatpush1.msra.mxu0 %v4397
  %4462 = vmatprep.subr.mxu0 0.0
  %4463 = vmatpush1.msra.mxu0 %v4398
  %4464 = vmatprep.subr.mxu0 0.0
  %4465 = vmatpush1.msra.mxu0 %v4399
  %4466 = vmatprep.subr.mxu0 0.0
  %4467 = vmatpush1.msra.mxu0 %v4400
  %4468 = vmatprep.subr.mxu0 0.0
  %4469 = vmatpush1.msra.mxu0 %v4401
  %4470 = vmatprep.subr.mxu0 0.0
  %4471 = vmatpush1.msra.mxu0 %v4402
  %4472 = vmatprep.mubr.f32.mxu0 %v4368
  %4473 = vmatmul.mubr.f32.gmra.mrb[0].mxu0 %v4367
  %v4474 = vpop.f32.mrb[0].mxu0
  %v4475 = vadd.f32 %v4407, %v4474
  %v4476 = vpop.f32.mrb[0].mxu0
  %4477 = vmatprep.mubr.f32.mxu0 %v4370
  %4478 = vmatmul.mubr.f32.gmra.mrb[0].mxu0 %v4369
  %v4479 = vpop.f32.mrb[0].mxu0
  %v4480 = vadd.f32 %v4407, %v4479
  %v4481 = vpop.f32.mrb[0].mxu0
  %4482 = vdwg.mxu0
  %v4483 = vadd.f32 %v4475, %v72
  %v4484 = vadd.f32 %v4480, %v73
  %v4487 = vcombine.high %v3952, %v3952
  %v4489 = vunpack.c.l.s4 1966171168
  %v4490 = vunpack.c.0.s8 %v4489
  %v4491 = vlaneseq
  %v4492 = vshrl.u32 %v4491, 7
  %v4493 = vsub.s32 %v4490, %v4492
  %v4494 = vrot.slane %v3952, %v4493
  %v4496 = vunpack.c.l.s4 1966171168
  %v4497 = vunpack.c.0.s8 %v4496
  %v4498 = vlaneseq
  %v4499 = vshrl.u32 %v4498, 7
  %v4500 = vsub.s32 %v4497, %v4499
  %v4501 = vrot.slane %v4487, %v4500
  %v4502 = vcombine.high %v4494, %v4494
  %v4503 = vcombine.high %v4501, %v4501
  %v4505 = vunpack.c.l.s4 1966171168
  %v4506 = vunpack.c.0.s8 %v4505
  %v4507 = vlaneseq
  %v4508 = vshrl.u32 %v4507, 7
  %v4509 = vsub.s32 %v4506, %v4508
  %v4510 = vrot.slane %v4494, %v4509
  %v4512 = vunpack.c.l.s4 1966171168
  %v4513 = vunpack.c.0.s8 %v4512
  %v4514 = vlaneseq
  %v4515 = vshrl.u32 %v4514, 7
  %v4516 = vsub.s32 %v4513, %v4515
  %v4517 = vrot.slane %v4501, %v4516
  %v4519 = vunpack.c.l.s4 1966171168
  %v4520 = vunpack.c.0.s8 %v4519
  %v4521 = vlaneseq
  %v4522 = vshrl.u32 %v4521, 7
  %v4523 = vsub.s32 %v4520, %v4522
  %v4524 = vrot.slane %v4502, %v4523
  %v4526 = vunpack.c.l.s4 1966171168
  %v4527 = vunpack.c.0.s8 %v4526
  %v4528 = vlaneseq
  %v4529 = vshrl.u32 %v4528, 7
  %v4530 = vsub.s32 %v4527, %v4529
  %v4531 = vrot.slane %v4503, %v4530
  %v4532 = vcombine.high %v4510, %v4510
  %v4533 = vcombine.high %v4517, %v4517
  %v4534 = vcombine.high %v4524, %v4524
  %v4535 = vcombine.high %v4531, %v4531
  %v4536 = vcombine.high %v3953, %v3953
  %v4538 = vunpack.c.l.s4 1966171168
  %v4539 = vunpack.c.0.s8 %v4538
  %v4540 = vlaneseq
  %v4541 = vshrl.u32 %v4540, 7
  %v4542 = vsub.s32 %v4539, %v4541
  %v4543 = vrot.slane %v3953, %v4542
  %v4545 = vunpack.c.l.s4 1966171168
  %v4546 = vunpack.c.0.s8 %v4545
  %v4547 = vlaneseq
  %v4548 = vshrl.u32 %v4547, 7
  %v4549 = vsub.s32 %v4546, %v4548
  %v4550 = vrot.slane %v4536, %v4549
  %v4551 = vcombine.high %v4543, %v4543
  %v4552 = vcombine.high %v4550, %v4550
  %v4554 = vunpack.c.l.s4 1966171168
  %v4555 = vunpack.c.0.s8 %v4554
  %v4556 = vlaneseq
  %v4557 = vshrl.u32 %v4556, 7
  %v4558 = vsub.s32 %v4555, %v4557
  %v4559 = vrot.slane %v4543, %v4558
  %v4561 = vunpack.c.l.s4 1966171168
  %v4562 = vunpack.c.0.s8 %v4561
  %v4563 = vlaneseq
  %v4564 = vshrl.u32 %v4563, 7
  %v4565 = vsub.s32 %v4562, %v4564
  %v4566 = vrot.slane %v4550, %v4565
  %v4568 = vunpack.c.l.s4 1966171168
  %v4569 = vunpack.c.0.s8 %v4568
  %v4570 = vlaneseq
  %v4571 = vshrl.u32 %v4570, 7
  %v4572 = vsub.s32 %v4569, %v4571
  %v4573 = vrot.slane %v4551, %v4572
  %v4575 = vunpack.c.l.s4 1966171168
  %v4576 = vunpack.c.0.s8 %v4575
  %v4577 = vlaneseq
  %v4578 = vshrl.u32 %v4577, 7
  %v4579 = vsub.s32 %v4576, %v4578
  %v4580 = vrot.slane %v4552, %v4579
  %v4581 = vcombine.high %v4559, %v4559
  %v4582 = vcombine.high %v4566, %v4566
  %v4583 = vcombine.high %v4573, %v4573
  %v4584 = vcombine.high %v4580, %v4580
  %v4585 = vlaneseq
  %v4586 = vshrl.u32 %v4585, 7
  %v4587 = vsub.s32 0, %v4586
  %v4588 = vrot.slane %v4510, %v4587
  %v4589 = vlaneseq
  %v4590 = vshrl.u32 %v4589, 7
  %v4591 = vsub.s32 0, %v4590
  %v4592 = vrot.slane %v4524, %v4591
  %v4593 = vlaneseq
  %v4594 = vshrl.u32 %v4593, 7
  %v4595 = vsub.s32 0, %v4594
  %v4596 = vrot.slane %v4532, %v4595
  %v4597 = vlaneseq
  %v4598 = vshrl.u32 %v4597, 7
  %v4599 = vsub.s32 0, %v4598
  %v4600 = vrot.slane %v4534, %v4599
  %v4601 = vlaneseq
  %v4602 = vshrl.u32 %v4601, 7
  %v4603 = vsub.s32 0, %v4602
  %v4604 = vrot.slane %v4517, %v4603
  %v4605 = vlaneseq
  %v4606 = vshrl.u32 %v4605, 7
  %v4607 = vsub.s32 0, %v4606
  %v4608 = vrot.slane %v4531, %v4607
  %v4609 = vlaneseq
  %v4610 = vshrl.u32 %v4609, 7
  %v4611 = vsub.s32 0, %v4610
  %v4612 = vrot.slane %v4533, %v4611
  %v4613 = vlaneseq
  %v4614 = vshrl.u32 %v4613, 7
  %v4615 = vsub.s32 0, %v4614
  %v4616 = vrot.slane %v4535, %v4615
  %v4617 = vlaneseq
  %v4618 = vshrl.u32 %v4617, 7
  %v4619 = vsub.s32 0, %v4618
  %v4620 = vrot.slane %v4559, %v4619
  %v4621 = vlaneseq
  %v4622 = vshrl.u32 %v4621, 7
  %v4623 = vsub.s32 0, %v4622
  %v4624 = vrot.slane %v4573, %v4623
  %v4625 = vlaneseq
  %v4626 = vshrl.u32 %v4625, 7
  %v4627 = vsub.s32 0, %v4626
  %v4628 = vrot.slane %v4581, %v4627
  %v4629 = vlaneseq
  %v4630 = vshrl.u32 %v4629, 7
  %v4631 = vsub.s32 0, %v4630
  %v4632 = vrot.slane %v4583, %v4631
  %v4633 = vlaneseq
  %v4634 = vshrl.u32 %v4633, 7
  %v4635 = vsub.s32 0, %v4634
  %v4636 = vrot.slane %v4566, %v4635
  %v4637 = vlaneseq
  %v4638 = vshrl.u32 %v4637, 7
  %v4639 = vsub.s32 0, %v4638
  %v4640 = vrot.slane %v4580, %v4639
  %v4641 = vlaneseq
  %v4642 = vshrl.u32 %v4641, 7
  %v4643 = vsub.s32 0, %v4642
  %v4644 = vrot.slane %v4582, %v4643
  %v4645 = vlaneseq
  %v4646 = vshrl.u32 %v4645, 7
  %v4647 = vsub.s32 0, %v4646
  %v4648 = vrot.slane %v4584, %v4647
  %v4665 = vsub.f32 %v4588, %v3952
  %v4666 = vsub.f32 %v4592, %v3952
  %v4667 = vsub.f32 %v4596, %v3952
  %v4668 = vsub.f32 %v4600, %v3952
  %v4669 = vsub.f32 %v4604, %v3952
  %v4670 = vsub.f32 %v4608, %v3952
  %v4671 = vsub.f32 %v4612, %v3952
  %v4672 = vsub.f32 %v4616, %v3952
  %v4673 = vsub.f32 %v4620, %v3953
  %v4674 = vsub.f32 %v4624, %v3953
  %v4675 = vsub.f32 %v4628, %v3953
  %v4676 = vsub.f32 %v4632, %v3953
  %v4677 = vsub.f32 %v4636, %v3953
  %v4678 = vsub.f32 %v4640, %v3953
  %v4679 = vsub.f32 %v4644, %v3953
  %v4680 = vsub.f32 %v4648, %v3953
  %v4681 = vmul.f32 %v4665, %v4665
  %v4682 = vmul.f32 %v4666, %v4666
  %v4683 = vmul.f32 %v4667, %v4667
  %v4684 = vmul.f32 %v4668, %v4668
  %v4685 = vmul.f32 %v4669, %v4669
  %v4686 = vmul.f32 %v4670, %v4670
  %v4687 = vmul.f32 %v4671, %v4671
  %v4688 = vmul.f32 %v4672, %v4672
  %v4689 = vmul.f32 %v4673, %v4673
  %v4690 = vmul.f32 %v4674, %v4674
  %v4691 = vmul.f32 %v4675, %v4675
  %v4692 = vmul.f32 %v4676, %v4676
  %v4693 = vmul.f32 %v4677, %v4677
  %v4694 = vmul.f32 %v4678, %v4678
  %v4695 = vmul.f32 %v4679, %v4679
  %v4696 = vmul.f32 %v4680, %v4680
  %v4697 = vsel %vm288, %v4681, 0.0
  %4698 = vadd.xlane.f32.xlu0 %v4697
  %v4699 = vpop.xlane.xlu0 %4698
  %v4700 = vsel %vm288, %v4682, 0.0
  %4701 = vadd.xlane.f32.xlu0 %v4700
  %v4702 = vpop.xlane.xlu0 %4701
  %v4703 = vsel %vm288, %v4683, 0.0
  %4704 = vadd.xlane.f32.xlu0 %v4703
  %v4705 = vpop.xlane.xlu0 %4704
  %v4706 = vsel %vm288, %v4684, 0.0
  %4707 = vadd.xlane.f32.xlu0 %v4706
  %v4708 = vpop.xlane.xlu0 %4707
  %v4709 = vsel %vm288, %v4685, 0.0
  %4710 = vadd.xlane.f32.xlu0 %v4709
  %v4711 = vpop.xlane.xlu0 %4710
  %v4712 = vsel %vm288, %v4686, 0.0
  %4713 = vadd.xlane.f32.xlu0 %v4712
  %v4714 = vpop.xlane.xlu0 %4713
  %v4715 = vsel %vm288, %v4687, 0.0
  %4716 = vadd.xlane.f32.xlu0 %v4715
  %v4717 = vpop.xlane.xlu0 %4716
  %v4718 = vsel %vm288, %v4688, 0.0
  %4719 = vadd.xlane.f32.xlu0 %v4718
  %v4720 = vpop.xlane.xlu0 %4719
  %v4721 = vsel %vm288, %v4689, 0.0
  %4722 = vadd.xlane.f32.xlu0 %v4721
  %v4723 = vpop.xlane.xlu0 %4722
  %v4724 = vsel %vm288, %v4690, 0.0
  %4725 = vadd.xlane.f32.xlu0 %v4724
  %v4726 = vpop.xlane.xlu0 %4725
  %v4727 = vsel %vm288, %v4691, 0.0
  %4728 = vadd.xlane.f32.xlu0 %v4727
  %v4729 = vpop.xlane.xlu0 %4728
  %v4730 = vsel %vm288, %v4692, 0.0
  %4731 = vadd.xlane.f32.xlu0 %v4730
  %v4732 = vpop.xlane.xlu0 %4731
  %v4733 = vsel %vm288, %v4693, 0.0
  %4734 = vadd.xlane.f32.xlu0 %v4733
  %v4735 = vpop.xlane.xlu0 %4734
  %v4736 = vsel %vm288, %v4694, 0.0
  %4737 = vadd.xlane.f32.xlu0 %v4736
  %v4738 = vpop.xlane.xlu0 %4737
  %v4739 = vsel %vm288, %v4695, 0.0
  %4740 = vadd.xlane.f32.xlu0 %v4739
  %v4741 = vpop.xlane.xlu0 %4740
  %v4742 = vsel %vm288, %v4696, 0.0
  %4743 = vadd.xlane.f32.xlu0 %v4742
  %v4744 = vpop.xlane.xlu0 %4743
  %v4745 = vpack.c.bf16 %v4484, %v4483
  %s4746 = scalar_lea.vmem %s2, 640
  %v4747 = vld [vmem:[%s4746] sm:$0xff]
  %v4748 = vld [vmem:[%s4746 + $0x8] sm:$0xff]
  %v4749 = vld [vmem:[%s4746 + $0x10] sm:$0xff]
  %v4750 = vld [vmem:[%s4746 + $0x18] sm:$0xff]
  %v4751 = vld [vmem:[%s4746 + $0x20] sm:$0xff]
  %v4752 = vld [vmem:[%s4746 + $0x28] sm:$0xff]
  %v4753 = vld [vmem:[%s4746 + $0x30] sm:$0xff]
  %v4754 = vld [vmem:[%s4746 + $0x38] sm:$0xff]
  %v4755 = vld [vmem:[%s4746 + $0x40] sm:$0xff]
  %v4756 = vld [vmem:[%s4746 + $0x48] sm:$0xff]
  %v4757 = vld [vmem:[%s4746 + $0x50] sm:$0xff]
  %v4758 = vld [vmem:[%s4746 + $0x58] sm:$0xff]
  %v4759 = vld [vmem:[%s4746 + $0x60] sm:$0xff]
  %v4760 = vld [vmem:[%s4746 + $0x68] sm:$0xff]
  %v4761 = vld [vmem:[%s4746 + $0x70] sm:$0xff]
  %v4762 = vld [vmem:[%s4746 + $0x78] sm:$0xff]
  %v4763 = vld [vmem:[%s4746 + $0x80] sm:$0xff]
  %v4764 = vld [vmem:[%s4746 + $0x88] sm:$0xff]
  %v4765 = vld [vmem:[%s4746 + $0x90] sm:$0xff]
  %v4766 = vld [vmem:[%s4746 + $0x98] sm:$0xff]
  %v4767 = vld [vmem:[%s4746 + $0xa0] sm:$0xff]
  %v4768 = vld [vmem:[%s4746 + $0xa8] sm:$0xff]
  %v4769 = vld [vmem:[%s4746 + $0xb0] sm:$0xff]
  %v4770 = vld [vmem:[%s4746 + $0xb8] sm:$0xff]
  %v4771 = vld [vmem:[%s4746 + $0xc0] sm:$0xff]
  %v4772 = vld [vmem:[%s4746 + $0xc8] sm:$0xff]
  %v4773 = vld [vmem:[%s4746 + $0xd0] sm:$0xff]
  %v4774 = vld [vmem:[%s4746 + $0xd8] sm:$0xff]
  %v4775 = vld [vmem:[%s4746 + $0xe0] sm:$0xff]
  %v4776 = vld [vmem:[%s4746 + $0xe8] sm:$0xff]
  %v4777 = vld [vmem:[%s4746 + $0xf0] sm:$0xff]
  %v4778 = vld [vmem:[%s4746 + $0xf8] sm:$0xff]
  %v4779 = vld [vmem:[%s4746 + $0x100] sm:$0xff]
  %v4780 = vld [vmem:[%s4746 + $0x108] sm:$0xff]
  %v4781 = vld [vmem:[%s4746 + $0x110] sm:$0xff]
  %v4782 = vld [vmem:[%s4746 + $0x118] sm:$0xff]
  %v4783 = vld [vmem:[%s4746 + $0x120] sm:$0xff]
  %v4784 = vld [vmem:[%s4746 + $0x128] sm:$0xff]
  %v4785 = vld [vmem:[%s4746 + $0x130] sm:$0xff]
  %v4786 = vld [vmem:[%s4746 + $0x138] sm:$0xff]
  %v4787 = vld [vmem:[%s4746 + $0x140] sm:$0xff]
  %v4788 = vld [vmem:[%s4746 + $0x148] sm:$0xff]
  %v4789 = vld [vmem:[%s4746 + $0x150] sm:$0xff]
  %v4790 = vld [vmem:[%s4746 + $0x158] sm:$0xff]
  %v4791 = vld [vmem:[%s4746 + $0x160] sm:$0xff]
  %v4792 = vld [vmem:[%s4746 + $0x168] sm:$0xff]
  %v4793 = vld [vmem:[%s4746 + $0x170] sm:$0xff]
  %v4794 = vld [vmem:[%s4746 + $0x178] sm:$0xff]
  %v4795 = vld [vmem:[%s4746 + $0x180] sm:$0xff]
  %v4796 = vld [vmem:[%s4746 + $0x188] sm:$0xff]
  %v4797 = vld [vmem:[%s4746 + $0x190] sm:$0xff]
  %v4798 = vld [vmem:[%s4746 + $0x198] sm:$0xff]
  %v4799 = vld [vmem:[%s4746 + $0x1a0] sm:$0xff]
  %v4800 = vld [vmem:[%s4746 + $0x1a8] sm:$0xff]
  %v4801 = vld [vmem:[%s4746 + $0x1b0] sm:$0xff]
  %v4802 = vld [vmem:[%s4746 + $0x1b8] sm:$0xff]
  %v4803 = vld [vmem:[%s4746 + $0x1c0] sm:$0xff]
  %v4804 = vld [vmem:[%s4746 + $0x1c8] sm:$0xff]
  %v4805 = vld [vmem:[%s4746 + $0x1d0] sm:$0xff]
  %v4806 = vld [vmem:[%s4746 + $0x1d8] sm:$0xff]
  %v4807 = vld [vmem:[%s4746 + $0x1e0] sm:$0xff]
  %v4808 = vld [vmem:[%s4746 + $0x1e8] sm:$0xff]
  %v4809 = vld [vmem:[%s4746 + $0x1f0] sm:$0xff]
  %v4810 = vld [vmem:[%s4746 + $0x1f8] sm:$0xff]
  %v4811 = vld [vmem:[%s4746 + $0x200] sm:$0xff]
  %v4812 = vld [vmem:[%s4746 + $0x208] sm:$0xff]
  %v4813 = vld [vmem:[%s4746 + $0x210] sm:$0xff]
  %v4814 = vld [vmem:[%s4746 + $0x218] sm:$0xff]
  %v4815 = vld [vmem:[%s4746 + $0x220] sm:$0xff]
  %v4816 = vld [vmem:[%s4746 + $0x228] sm:$0xff]
  %v4817 = vld [vmem:[%s4746 + $0x230] sm:$0xff]
  %v4818 = vld [vmem:[%s4746 + $0x238] sm:$0xff]
  %v4819 = vld [vmem:[%s4746 + $0x240] sm:$0xff]
  %v4820 = vld [vmem:[%s4746 + $0x248] sm:$0xff]
  %v4821 = vld [vmem:[%s4746 + $0x250] sm:$0xff]
  %v4822 = vld [vmem:[%s4746 + $0x258] sm:$0xff]
  %v4823 = vld [vmem:[%s4746 + $0x260] sm:$0xff]
  %v4824 = vld [vmem:[%s4746 + $0x268] sm:$0xff]
  %v4825 = vld [vmem:[%s4746 + $0x270] sm:$0xff]
  %v4826 = vld [vmem:[%s4746 + $0x278] sm:$0xff]
  %v4907 = vunpack.c.l.b16 %v4747
  %v4908 = vunpack.c.h.b16 %v4747
  %v4909 = vunpack.c.l.b16 %v4748
  %v4910 = vunpack.c.h.b16 %v4748
  %v4911 = vunpack.c.l.b16 %v4749
  %v4912 = vunpack.c.h.b16 %v4749
  %v4913 = vunpack.c.l.b16 %v4750
  %v4914 = vunpack.c.h.b16 %v4750
  %v4915 = vunpack.c.l.b16 %v4751
  %v4916 = vunpack.c.h.b16 %v4751
  %v4917 = vunpack.c.l.b16 %v4752
  %v4918 = vunpack.c.h.b16 %v4752
  %v4919 = vunpack.c.l.b16 %v4753
  %v4920 = vunpack.c.h.b16 %v4753
  %v4921 = vunpack.c.l.b16 %v4754
  %v4922 = vunpack.c.h.b16 %v4754
  %v4923 = vunpack.c.l.b16 %v4755
  %v4924 = vunpack.c.h.b16 %v4755
  %v4925 = vunpack.c.l.b16 %v4756
  %v4926 = vunpack.c.h.b16 %v4756
  %v4927 = vunpack.c.l.b16 %v4757
  %v4928 = vunpack.c.h.b16 %v4757
  %v4929 = vunpack.c.l.b16 %v4758
  %v4930 = vunpack.c.h.b16 %v4758
  %v4931 = vunpack.c.l.b16 %v4759
  %v4932 = vunpack.c.h.b16 %v4759
  %v4933 = vunpack.c.l.b16 %v4760
  %v4934 = vunpack.c.h.b16 %v4760
  %v4935 = vunpack.c.l.b16 %v4761
  %v4936 = vunpack.c.h.b16 %v4761
  %v4937 = vunpack.c.l.b16 %v4762
  %v4938 = vunpack.c.h.b16 %v4762
  %v4939 = vunpack.c.l.b16 %v4763
  %v4940 = vunpack.c.h.b16 %v4763
  %v4941 = vunpack.c.l.b16 %v4764
  %v4942 = vunpack.c.h.b16 %v4764
  %v4943 = vunpack.c.l.b16 %v4765
  %v4944 = vunpack.c.h.b16 %v4765
  %v4945 = vunpack.c.l.b16 %v4766
  %v4946 = vunpack.c.h.b16 %v4766
  %v4947 = vunpack.c.l.b16 %v4767
  %v4948 = vunpack.c.h.b16 %v4767
  %v4949 = vunpack.c.l.b16 %v4768
  %v4950 = vunpack.c.h.b16 %v4768
  %v4951 = vunpack.c.l.b16 %v4769
  %v4952 = vunpack.c.h.b16 %v4769
  %v4953 = vunpack.c.l.b16 %v4770
  %v4954 = vunpack.c.h.b16 %v4770
  %v4955 = vunpack.c.l.b16 %v4771
  %v4956 = vunpack.c.h.b16 %v4771
  %v4957 = vunpack.c.l.b16 %v4772
  %v4958 = vunpack.c.h.b16 %v4772
  %v4959 = vunpack.c.l.b16 %v4773
  %v4960 = vunpack.c.h.b16 %v4773
  %v4961 = vunpack.c.l.b16 %v4774
  %v4962 = vunpack.c.h.b16 %v4774
  %v4963 = vunpack.c.l.b16 %v4775
  %v4964 = vunpack.c.h.b16 %v4775
  %v4965 = vunpack.c.l.b16 %v4776
  %v4966 = vunpack.c.h.b16 %v4776
  %v4967 = vunpack.c.l.b16 %v4777
  %v4968 = vunpack.c.h.b16 %v4777
  %v4969 = vunpack.c.l.b16 %v4778
  %v4970 = vunpack.c.h.b16 %v4778
  %v4971 = vunpack.c.l.b16 %v4779
  %v4972 = vunpack.c.h.b16 %v4779
  %v4973 = vunpack.c.l.b16 %v4780
  %v4974 = vunpack.c.h.b16 %v4780
  %v4975 = vunpack.c.l.b16 %v4781
  %v4976 = vunpack.c.h.b16 %v4781
  %v4977 = vunpack.c.l.b16 %v4782
  %v4978 = vunpack.c.h.b16 %v4782
  %v4979 = vunpack.c.l.b16 %v4783
  %v4980 = vunpack.c.h.b16 %v4783
  %v4981 = vunpack.c.l.b16 %v4784
  %v4982 = vunpack.c.h.b16 %v4784
  %v4983 = vunpack.c.l.b16 %v4785
  %v4984 = vunpack.c.h.b16 %v4785
  %v4985 = vunpack.c.l.b16 %v4786
  %v4986 = vunpack.c.h.b16 %v4786
  %v4987 = vunpack.c.l.b16 %v4787
  %v4988 = vunpack.c.h.b16 %v4787
  %v4989 = vunpack.c.l.b16 %v4788
  %v4990 = vunpack.c.h.b16 %v4788
  %v4991 = vunpack.c.l.b16 %v4789
  %v4992 = vunpack.c.h.b16 %v4789
  %v4993 = vunpack.c.l.b16 %v4790
  %v4994 = vunpack.c.h.b16 %v4790
  %v4995 = vunpack.c.l.b16 %v4791
  %v4996 = vunpack.c.h.b16 %v4791
  %v4997 = vunpack.c.l.b16 %v4792
  %v4998 = vunpack.c.h.b16 %v4792
  %v4999 = vunpack.c.l.b16 %v4793
  %v5000 = vunpack.c.h.b16 %v4793
  %v5001 = vunpack.c.l.b16 %v4794
  %v5002 = vunpack.c.h.b16 %v4794
  %v5003 = vunpack.c.l.b16 %v4795
  %v5004 = vunpack.c.h.b16 %v4795
  %v5005 = vunpack.c.l.b16 %v4796
  %v5006 = vunpack.c.h.b16 %v4796
  %v5007 = vunpack.c.l.b16 %v4797
  %v5008 = vunpack.c.h.b16 %v4797
  %v5009 = vunpack.c.l.b16 %v4798
  %v5010 = vunpack.c.h.b16 %v4798
  %v5011 = vunpack.c.l.b16 %v4799
  %v5012 = vunpack.c.h.b16 %v4799
  %v5013 = vunpack.c.l.b16 %v4800
  %v5014 = vunpack.c.h.b16 %v4800
  %v5015 = vunpack.c.l.b16 %v4801
  %v5016 = vunpack.c.h.b16 %v4801
  %v5017 = vunpack.c.l.b16 %v4802
  %v5018 = vunpack.c.h.b16 %v4802
  %v5019 = vunpack.c.l.b16 %v4803
  %v5020 = vunpack.c.h.b16 %v4803
  %v5021 = vunpack.c.l.b16 %v4804
  %v5022 = vunpack.c.h.b16 %v4804
  %v5023 = vunpack.c.l.b16 %v4805
  %v5024 = vunpack.c.h.b16 %v4805
  %v5025 = vunpack.c.l.b16 %v4806
  %v5026 = vunpack.c.h.b16 %v4806
  %v5027 = vunpack.c.l.b16 %v4807
  %v5028 = vunpack.c.h.b16 %v4807
  %v5029 = vunpack.c.l.b16 %v4808
  %v5030 = vunpack.c.h.b16 %v4808
  %v5031 = vunpack.c.l.b16 %v4809
  %v5032 = vunpack.c.h.b16 %v4809
  %v5033 = vunpack.c.l.b16 %v4810
  %v5034 = vunpack.c.h.b16 %v4810
  %v5035 = vunpack.c.l.b16 %v4811
  %v5036 = vunpack.c.h.b16 %v4811
  %v5037 = vunpack.c.l.b16 %v4812
  %v5038 = vunpack.c.h.b16 %v4812
  %v5039 = vunpack.c.l.b16 %v4813
  %v5040 = vunpack.c.h.b16 %v4813
  %v5041 = vunpack.c.l.b16 %v4814
  %v5042 = vunpack.c.h.b16 %v4814
  %v5043 = vunpack.c.l.b16 %v4815
  %v5044 = vunpack.c.h.b16 %v4815
  %v5045 = vunpack.c.l.b16 %v4816
  %v5046 = vunpack.c.h.b16 %v4816
  %v5047 = vunpack.c.l.b16 %v4817
  %v5048 = vunpack.c.h.b16 %v4817
  %v5049 = vunpack.c.l.b16 %v4818
  %v5050 = vunpack.c.h.b16 %v4818
  %v5051 = vunpack.c.l.b16 %v4819
  %v5052 = vunpack.c.h.b16 %v4819
  %v5053 = vunpack.c.l.b16 %v4820
  %v5054 = vunpack.c.h.b16 %v4820
  %v5055 = vunpack.c.l.b16 %v4821
  %v5056 = vunpack.c.h.b16 %v4821
  %v5057 = vunpack.c.l.b16 %v4822
  %v5058 = vunpack.c.h.b16 %v4822
  %v5059 = vunpack.c.l.b16 %v4823
  %v5060 = vunpack.c.h.b16 %v4823
  %v5061 = vunpack.c.l.b16 %v4824
  %v5062 = vunpack.c.h.b16 %v4824
  %v5063 = vunpack.c.l.b16 %v4825
  %v5064 = vunpack.c.h.b16 %v4825
  %v5065 = vunpack.c.l.b16 %v4826
  %v5066 = vunpack.c.h.b16 %v4826
  %v5067 = vpack.c.b16 %v4917, %v4907
  %v5068 = vpack.c.b16 %v4918, %v4908
  %v5069 = vpack.c.b16 %v4919, %v4909
  %v5070 = vpack.c.b16 %v4920, %v4910
  %v5071 = vpack.c.b16 %v4921, %v4911
  %v5072 = vpack.c.b16 %v4922, %v4912
  %v5073 = vpack.c.b16 %v4923, %v4913
  %v5074 = vpack.c.b16 %v4924, %v4914
  %v5075 = vpack.c.b16 %v4925, %v4915
  %v5076 = vpack.c.b16 %v4926, %v4916
  %v5077 = vpack.c.b16 %v4937, %v4927
  %v5078 = vpack.c.b16 %v4938, %v4928
  %v5079 = vpack.c.b16 %v4939, %v4929
  %v5080 = vpack.c.b16 %v4940, %v4930
  %v5081 = vpack.c.b16 %v4941, %v4931
  %v5082 = vpack.c.b16 %v4942, %v4932
  %v5083 = vpack.c.b16 %v4943, %v4933
  %v5084 = vpack.c.b16 %v4944, %v4934
  %v5085 = vpack.c.b16 %v4945, %v4935
  %v5086 = vpack.c.b16 %v4946, %v4936
  %v5087 = vpack.c.b16 %v4957, %v4947
  %v5088 = vpack.c.b16 %v4958, %v4948
  %v5089 = vpack.c.b16 %v4959, %v4949
  %v5090 = vpack.c.b16 %v4960, %v4950
  %v5091 = vpack.c.b16 %v4961, %v4951
  %v5092 = vpack.c.b16 %v4962, %v4952
  %v5093 = vpack.c.b16 %v4963, %v4953
  %v5094 = vpack.c.b16 %v4964, %v4954
  %v5095 = vpack.c.b16 %v4965, %v4955
  %v5096 = vpack.c.b16 %v4966, %v4956
  %v5097 = vpack.c.b16 %v4977, %v4967
  %v5098 = vpack.c.b16 %v4978, %v4968
  %v5099 = vpack.c.b16 %v4979, %v4969
  %v5100 = vpack.c.b16 %v4980, %v4970
  %v5101 = vpack.c.b16 %v4981, %v4971
  %v5102 = vpack.c.b16 %v4982, %v4972
  %v5103 = vpack.c.b16 %v4983, %v4973
  %v5104 = vpack.c.b16 %v4984, %v4974
  %v5105 = vpack.c.b16 %v4985, %v4975
  %v5106 = vpack.c.b16 %v4986, %v4976
  %v5107 = vpack.c.b16 %v4997, %v4987
  %v5108 = vpack.c.b16 %v4998, %v4988
  %v5109 = vpack.c.b16 %v4999, %v4989
  %v5110 = vpack.c.b16 %v5000, %v4990
  %v5111 = vpack.c.b16 %v5001, %v4991
  %v5112 = vpack.c.b16 %v5002, %v4992
  %v5113 = vpack.c.b16 %v5003, %v4993
  %v5114 = vpack.c.b16 %v5004, %v4994
  %v5115 = vpack.c.b16 %v5005, %v4995
  %v5116 = vpack.c.b16 %v5006, %v4996
  %v5117 = vpack.c.b16 %v5017, %v5007
  %v5118 = vpack.c.b16 %v5018, %v5008
  %v5119 = vpack.c.b16 %v5019, %v5009
  %v5120 = vpack.c.b16 %v5020, %v5010
  %v5121 = vpack.c.b16 %v5021, %v5011
  %v5122 = vpack.c.b16 %v5022, %v5012
  %v5123 = vpack.c.b16 %v5023, %v5013
  %v5124 = vpack.c.b16 %v5024, %v5014
  %v5125 = vpack.c.b16 %v5025, %v5015
  %v5126 = vpack.c.b16 %v5026, %v5016
  %v5127 = vpack.c.b16 %v5037, %v5027
  %v5128 = vpack.c.b16 %v5038, %v5028
  %v5129 = vpack.c.b16 %v5039, %v5029
  %v5130 = vpack.c.b16 %v5040, %v5030
  %v5131 = vpack.c.b16 %v5041, %v5031
  %v5132 = vpack.c.b16 %v5042, %v5032
  %v5133 = vpack.c.b16 %v5043, %v5033
  %v5134 = vpack.c.b16 %v5044, %v5034
  %v5135 = vpack.c.b16 %v5045, %v5035
  %v5136 = vpack.c.b16 %v5046, %v5036
  %v5137 = vpack.c.b16 %v5057, %v5047
  %v5138 = vpack.c.b16 %v5058, %v5048
  %v5139 = vpack.c.b16 %v5059, %v5049
  %v5140 = vpack.c.b16 %v5060, %v5050
  %v5141 = vpack.c.b16 %v5061, %v5051
  %v5142 = vpack.c.b16 %v5062, %v5052
  %v5143 = vpack.c.b16 %v5063, %v5053
  %v5144 = vpack.c.b16 %v5064, %v5054
  %v5145 = vpack.c.b16 %v5065, %v5055
  %v5146 = vpack.c.b16 %v5066, %v5056
  %5227 = vmatprep.subr.bf16.mxu0 %v5068
  %5228 = vmatpush1.bf16.msra.mxu0 %v5067
  %5229 = vmatprep.subr.bf16.mxu0 %v5078
  %5230 = vmatpush1.bf16.msra.mxu0 %v5077
  %5231 = vmatprep.subr.bf16.mxu0 %v5088
  %5232 = vmatpush1.bf16.msra.mxu0 %v5087
  %5233 = vmatprep.subr.bf16.mxu0 %v5098
  %5234 = vmatpush1.bf16.msra.mxu0 %v5097
  %5235 = vmatprep.subr.bf16.mxu0 %v5108
  %5236 = vmatpush1.bf16.msra.mxu0 %v5107
  %5237 = vmatprep.subr.bf16.mxu0 %v5118
  %5238 = vmatpush1.bf16.msra.mxu0 %v5117
  %5239 = vmatprep.subr.bf16.mxu0 %v5128
  %5240 = vmatpush1.bf16.msra.mxu0 %v5127
  %5241 = vmatprep.subr.bf16.mxu0 %v5138
  %5242 = vmatpush1.bf16.msra.mxu0 %v5137
  %5243 = vmatprep.subr.bf16.mxu0 0
  %5244 = vmatpush1.bf16.msra.mxu0 0
  %5245 = vmatprep.subr.bf16.mxu0 0
  %5246 = vmatpush1.bf16.msra.mxu0 0
  %5247 = vmatprep.subr.bf16.mxu0 0
  %5248 = vmatpush1.bf16.msra.mxu0 0
  %5249 = vmatprep.subr.bf16.mxu0 0
  %5250 = vmatpush1.bf16.msra.mxu0 0
  %5251 = vmatprep.subr.bf16.mxu0 0
  %5252 = vmatpush1.bf16.msra.mxu0 0
  %5253 = vmatprep.subr.bf16.mxu0 0
  %5254 = vmatpush1.bf16.msra.mxu0 0
  %5255 = vmatprep.subr.bf16.mxu0 0
  %5256 = vmatpush1.bf16.msra.mxu0 0
  %5257 = vmatprep.subr.bf16.mxu0 0
  %5258 = vmatpush1.bf16.msra.mxu0 0
  %5259 = vmatprep.mubr.bf16.mxu0 0
  %5260 = vmatmul.mubr.bf16.gmra.mrb[0].mxu0 %v4745
  %v5261 = vpop.f32.mrb[0].mxu0
  %v5262 = vadd.f32 0.0, %v5261
  %v5263 = vpop.f32.mrb[0].mxu0
  %v5264 = vadd.f32 0.0, %v5263
  %v5265 = vpop.f32.mrb[0].mxu0
  %v5266 = vadd.f32 0.0, %v5265
  %v5267 = vpop.f32.mrb[0].mxu0
  %v5268 = vadd.f32 0.0, %v5267
  %5269 = vdwg.mxu0
  %5270 = vmatprep.subr.bf16.mxu0 %v5070
  %5271 = vmatpush1.bf16.msra.mxu0 %v5069
  %5272 = vmatprep.subr.bf16.mxu0 %v5080
  %5273 = vmatpush1.bf16.msra.mxu0 %v5079
  %5274 = vmatprep.subr.bf16.mxu0 %v5090
  %5275 = vmatpush1.bf16.msra.mxu0 %v5089
  %5276 = vmatprep.subr.bf16.mxu0 %v5100
  %5277 = vmatpush1.bf16.msra.mxu0 %v5099
  %5278 = vmatprep.subr.bf16.mxu0 %v5110
  %5279 = vmatpush1.bf16.msra.mxu0 %v5109
  %5280 = vmatprep.subr.bf16.mxu0 %v5120
  %5281 = vmatpush1.bf16.msra.mxu0 %v5119
  %5282 = vmatprep.subr.bf16.mxu0 %v5130
  %5283 = vmatpush1.bf16.msra.mxu0 %v5129
  %5284 = vmatprep.subr.bf16.mxu0 %v5140
  %5285 = vmatpush1.bf16.msra.mxu0 %v5139
  %5286 = vmatprep.subr.bf16.mxu0 0
  %5287 = vmatpush1.bf16.msra.mxu0 0
  %5288 = vmatprep.subr.bf16.mxu0 0
  %5289 = vmatpush1.bf16.msra.mxu0 0
  %5290 = vmatprep.subr.bf16.mxu0 0
  %5291 = vmatpush1.bf16.msra.mxu0 0
  %5292 = vmatprep.subr.bf16.mxu0 0
  %5293 = vmatpush1.bf16.msra.mxu0 0
  %5294 = vmatprep.subr.bf16.mxu0 0
  %5295 = vmatpush1.bf16.msra.mxu0 0
  %5296 = vmatprep.subr.bf16.mxu0 0
  %5297 = vmatpush1.bf16.msra.mxu0 0
  %5298 = vmatprep.subr.bf16.mxu0 0
  %5299 = vmatpush1.bf16.msra.mxu0 0
  %5300 = vmatprep.subr.bf16.mxu0 0
  %5301 = vmatpush1.bf16.msra.mxu0 0
  %5302 = vmatprep.mubr.bf16.mxu0 0
  %5303 = vmatmul.mubr.bf16.gmra.mrb[0].mxu0 %v4745
  %v5304 = vpop.f32.mrb[0].mxu0
  %v5305 = vadd.f32 0.0, %v5304
  %v5306 = vpop.f32.mrb[0].mxu0
  %v5307 = vadd.f32 0.0, %v5306
  %v5308 = vpop.f32.mrb[0].mxu0
  %v5309 = vadd.f32 0.0, %v5308
  %v5310 = vpop.f32.mrb[0].mxu0
  %v5311 = vadd.f32 0.0, %v5310
  %5312 = vdwg.mxu0
  %5313 = vmatprep.subr.bf16.mxu0 %v5072
  %5314 = vmatpush1.bf16.msra.mxu0 %v5071
  %5315 = vmatprep.subr.bf16.mxu0 %v5082
  %5316 = vmatpush1.bf16.msra.mxu0 %v5081
  %5317 = vmatprep.subr.bf16.mxu0 %v5092
  %5318 = vmatpush1.bf16.msra.mxu0 %v5091
  %5319 = vmatprep.subr.bf16.mxu0 %v5102
  %5320 = vmatpush1.bf16.msra.mxu0 %v5101
  %5321 = vmatprep.subr.bf16.mxu0 %v5112
  %5322 = vmatpush1.bf16.msra.mxu0 %v5111
  %5323 = vmatprep.subr.bf16.mxu0 %v5122
  %5324 = vmatpush1.bf16.msra.mxu0 %v5121
  %5325 = vmatprep.subr.bf16.mxu0 %v5132
  %5326 = vmatpush1.bf16.msra.mxu0 %v5131
  %5327 = vmatprep.subr.bf16.mxu0 %v5142
  %5328 = vmatpush1.bf16.msra.mxu0 %v5141
  %5329 = vmatprep.subr.bf16.mxu0 0
  %5330 = vmatpush1.bf16.msra.mxu0 0
  %5331 = vmatprep.subr.bf16.mxu0 0
  %5332 = vmatpush1.bf16.msra.mxu0 0
  %5333 = vmatprep.subr.bf16.mxu0 0
  %5334 = vmatpush1.bf16.msra.mxu0 0
  %5335 = vmatprep.subr.bf16.mxu0 0
  %5336 = vmatpush1.bf16.msra.mxu0 0
  %5337 = vmatprep.subr.bf16.mxu0 0
  %5338 = vmatpush1.bf16.msra.mxu0 0
  %5339 = vmatprep.subr.bf16.mxu0 0
  %5340 = vmatpush1.bf16.msra.mxu0 0
  %5341 = vmatprep.subr.bf16.mxu0 0
  %5342 = vmatpush1.bf16.msra.mxu0 0
  %5343 = vmatprep.subr.bf16.mxu0 0
  %5344 = vmatpush1.bf16.msra.mxu0 0
  %5345 = vmatprep.mubr.bf16.mxu0 0
  %5346 = vmatmul.mubr.bf16.gmra.mrb[0].mxu0 %v4745
  %v5347 = vpop.f32.mrb[0].mxu0
  %v5348 = vadd.f32 0.0, %v5347
  %v5349 = vpop.f32.mrb[0].mxu0
  %v5350 = vadd.f32 0.0, %v5349
  %v5351 = vpop.f32.mrb[0].mxu0
  %v5352 = vadd.f32 0.0, %v5351
  %v5353 = vpop.f32.mrb[0].mxu0
  %v5354 = vadd.f32 0.0, %v5353
  %5355 = vdwg.mxu0
  %5356 = vmatprep.subr.bf16.mxu0 %v5074
  %5357 = vmatpush1.bf16.msra.mxu0 %v5073
  %5358 = vmatprep.subr.bf16.mxu0 %v5084
  %5359 = vmatpush1.bf16.msra.mxu0 %v5083
  %5360 = vmatprep.subr.bf16.mxu0 %v5094
  %5361 = vmatpush1.bf16.msra.mxu0 %v5093
  %5362 = vmatprep.subr.bf16.mxu0 %v5104
  %5363 = vmatpush1.bf16.msra.mxu0 %v5103
  %5364 = vmatprep.subr.bf16.mxu0 %v5114
  %5365 = vmatpush1.bf16.msra.mxu0 %v5113
  %5366 = vmatprep.subr.bf16.mxu0 %v5124
  %5367 = vmatpush1.bf16.msra.mxu0 %v5123
  %5368 = vmatprep.subr.bf16.mxu0 %v5134
  %5369 = vmatpush1.bf16.msra.mxu0 %v5133
  %5370 = vmatprep.subr.bf16.mxu0 %v5144
  %5371 = vmatpush1.bf16.msra.mxu0 %v5143
  %5372 = vmatprep.subr.bf16.mxu0 0
  %5373 = vmatpush1.bf16.msra.mxu0 0
  %5374 = vmatprep.subr.bf16.mxu0 0
  %5375 = vmatpush1.bf16.msra.mxu0 0
  %5376 = vmatprep.subr.bf16.mxu0 0
  %5377 = vmatpush1.bf16.msra.mxu0 0
  %5378 = vmatprep.subr.bf16.mxu0 0
  %5379 = vmatpush1.bf16.msra.mxu0 0
  %5380 = vmatprep.subr.bf16.mxu0 0
  %5381 = vmatpush1.bf16.msra.mxu0 0
  %5382 = vmatprep.subr.bf16.mxu0 0
  %5383 = vmatpush1.bf16.msra.mxu0 0
  %5384 = vmatprep.subr.bf16.mxu0 0
  %5385 = vmatpush1.bf16.msra.mxu0 0
  %5386 = vmatprep.subr.bf16.mxu0 0
  %5387 = vmatpush1.bf16.msra.mxu0 0
  %5388 = vmatprep.mubr.bf16.mxu0 0
  %5389 = vmatmul.mubr.bf16.gmra.mrb[0].mxu0 %v4745
  %v5390 = vpop.f32.mrb[0].mxu0
  %v5391 = vadd.f32 0.0, %v5390
  %v5392 = vpop.f32.mrb[0].mxu0
  %v5393 = vadd.f32 0.0, %v5392
  %v5394 = vpop.f32.mrb[0].mxu0
  %v5395 = vadd.f32 0.0, %v5394
  %v5396 = vpop.f32.mrb[0].mxu0
  %v5397 = vadd.f32 0.0, %v5396
  %5398 = vdwg.mxu0
  %5399 = vmatprep.subr.bf16.mxu0 %v5076
  %5400 = vmatpush1.bf16.msra.mxu0 %v5075
  %5401 = vmatprep.subr.bf16.mxu0 %v5086
  %5402 = vmatpush1.bf16.msra.mxu0 %v5085
  %5403 = vmatprep.subr.bf16.mxu0 %v5096
  %5404 = vmatpush1.bf16.msra.mxu0 %v5095
  %5405 = vmatprep.subr.bf16.mxu0 %v5106
  %5406 = vmatpush1.bf16.msra.mxu0 %v5105
  %5407 = vmatprep.subr.bf16.mxu0 %v5116
  %5408 = vmatpush1.bf16.msra.mxu0 %v5115
  %5409 = vmatprep.subr.bf16.mxu0 %v5126
  %5410 = vmatpush1.bf16.msra.mxu0 %v5125
  %5411 = vmatprep.subr.bf16.mxu0 %v5136
  %5412 = vmatpush1.bf16.msra.mxu0 %v5135
  %5413 = vmatprep.subr.bf16.mxu0 %v5146
  %5414 = vmatpush1.bf16.msra.mxu0 %v5145
  %5415 = vmatprep.subr.bf16.mxu0 0
  %5416 = vmatpush1.bf16.msra.mxu0 0
  %5417 = vmatprep.subr.bf16.mxu0 0
  %5418 = vmatpush1.bf16.msra.mxu0 0
  %5419 = vmatprep.subr.bf16.mxu0 0
  %5420 = vmatpush1.bf16.msra.mxu0 0
  %5421 = vmatprep.subr.bf16.mxu0 0
  %5422 = vmatpush1.bf16.msra.mxu0 0
  %5423 = vmatprep.subr.bf16.mxu0 0
  %5424 = vmatpush1.bf16.msra.mxu0 0
  %5425 = vmatprep.subr.bf16.mxu0 0
  %5426 = vmatpush1.bf16.msra.mxu0 0
  %5427 = vmatprep.subr.bf16.mxu0 0
  %5428 = vmatpush1.bf16.msra.mxu0 0
  %5429 = vmatprep.subr.bf16.mxu0 0
  %5430 = vmatpush1.bf16.msra.mxu0 0
  %5431 = vmatprep.mubr.bf16.mxu0 0
  %5432 = vmatmul.mubr.bf16.gmra.mrb[0].mxu0 %v4745
  %v5433 = vpop.f32.mrb[0].mxu0
  %v5434 = vadd.f32 0.0, %v5433
  %v5435 = vpop.f32.mrb[0].mxu0
  %v5436 = vadd.f32 0.0, %v5435
  %v5437 = vpop.f32.mrb[0].mxu0
  %v5438 = vadd.f32 0.0, %v5437
  %v5439 = vpop.f32.mrb[0].mxu0
  %v5440 = vadd.f32 0.0, %v5439
  %5441 = vdwg.mxu0
  %v5452 = vcombine.low %v5262, %v5264
  %v5453 = vcombine.high %v5262, %v5264
  %v5454 = vcombine.low %v5305, %v5307
  %v5455 = vcombine.high %v5305, %v5307
  %v5456 = vcombine.high %v5348, %v5348
  %v5458 = vunpack.c.l.s4 1966171168
  %v5459 = vunpack.c.0.s8 %v5458
  %v5460 = vlaneseq
  %v5461 = vshrl.u32 %v5460, 7
  %v5462 = vsub.s32 %v5459, %v5461
  %v5463 = vrot.slane %v5452, %v5462
  %v5465 = vunpack.c.l.s4 1966171168
  %v5466 = vunpack.c.0.s8 %v5465
  %v5467 = vlaneseq
  %v5468 = vshrl.u32 %v5467, 7
  %v5469 = vsub.s32 %v5466, %v5468
  %v5470 = vrot.slane %v5453, %v5469
  %v5472 = vunpack.c.l.s4 1966171168
  %v5473 = vunpack.c.0.s8 %v5472
  %v5474 = vlaneseq
  %v5475 = vshrl.u32 %v5474, 7
  %v5476 = vsub.s32 %v5473, %v5475
  %v5477 = vrot.slane %v5454, %v5476
  %v5479 = vunpack.c.l.s4 1966171168
  %v5480 = vunpack.c.0.s8 %v5479
  %v5481 = vlaneseq
  %v5482 = vshrl.u32 %v5481, 7
  %v5483 = vsub.s32 %v5480, %v5482
  %v5484 = vrot.slane %v5455, %v5483
  %v5486 = vunpack.c.l.s4 1966171168
  %v5487 = vunpack.c.0.s8 %v5486
  %v5488 = vlaneseq
  %v5489 = vshrl.u32 %v5488, 7
  %v5490 = vsub.s32 %v5487, %v5489
  %v5491 = vrot.slane %v5348, %v5490
  %v5493 = vunpack.c.l.s4 1966171168
  %v5494 = vunpack.c.0.s8 %v5493
  %v5495 = vlaneseq
  %v5496 = vshrl.u32 %v5495, 7
  %v5497 = vsub.s32 %v5494, %v5496
  %v5498 = vrot.slane %v5456, %v5497
  %v5499 = vcombine.low %v5463, %v5477
  %v5500 = vcombine.high %v5463, %v5477
  %v5501 = vcombine.low %v5470, %v5484
  %v5502 = vcombine.high %v5470, %v5484
  %v5503 = vcombine.high %v5491, %v5491
  %v5504 = vcombine.high %v5498, %v5498
  %v5506 = vunpack.c.l.s4 1966171168
  %v5507 = vunpack.c.0.s8 %v5506
  %v5508 = vlaneseq
  %v5509 = vshrl.u32 %v5508, 7
  %v5510 = vsub.s32 %v5507, %v5509
  %v5511 = vrot.slane %v5499, %v5510
  %v5513 = vunpack.c.l.s4 1966171168
  %v5514 = vunpack.c.0.s8 %v5513
  %v5515 = vlaneseq
  %v5516 = vshrl.u32 %v5515, 7
  %v5517 = vsub.s32 %v5514, %v5516
  %v5518 = vrot.slane %v5501, %v5517
  %v5520 = vunpack.c.l.s4 1966171168
  %v5521 = vunpack.c.0.s8 %v5520
  %v5522 = vlaneseq
  %v5523 = vshrl.u32 %v5522, 7
  %v5524 = vsub.s32 %v5521, %v5523
  %v5525 = vrot.slane %v5500, %v5524
  %v5527 = vunpack.c.l.s4 1966171168
  %v5528 = vunpack.c.0.s8 %v5527
  %v5529 = vlaneseq
  %v5530 = vshrl.u32 %v5529, 7
  %v5531 = vsub.s32 %v5528, %v5530
  %v5532 = vrot.slane %v5502, %v5531
  %v5534 = vunpack.c.l.s4 1966171168
  %v5535 = vunpack.c.0.s8 %v5534
  %v5536 = vlaneseq
  %v5537 = vshrl.u32 %v5536, 7
  %v5538 = vsub.s32 %v5535, %v5537
  %v5539 = vrot.slane %v5491, %v5538
  %v5541 = vunpack.c.l.s4 1966171168
  %v5542 = vunpack.c.0.s8 %v5541
  %v5543 = vlaneseq
  %v5544 = vshrl.u32 %v5543, 7
  %v5545 = vsub.s32 %v5542, %v5544
  %v5546 = vrot.slane %v5498, %v5545
  %v5548 = vunpack.c.l.s4 1966171168
  %v5549 = vunpack.c.0.s8 %v5548
  %v5550 = vlaneseq
  %v5551 = vshrl.u32 %v5550, 7
  %v5552 = vsub.s32 %v5549, %v5551
  %v5553 = vrot.slane %v5503, %v5552
  %v5555 = vunpack.c.l.s4 1966171168
  %v5556 = vunpack.c.0.s8 %v5555
  %v5557 = vlaneseq
  %v5558 = vshrl.u32 %v5557, 7
  %v5559 = vsub.s32 %v5556, %v5558
  %v5560 = vrot.slane %v5504, %v5559
  %v5561 = vcombine.low %v5511, %v5539
  %v5562 = vcombine.high %v5511, %v5539
  %v5563 = vcombine.low %v5518, %v5546
  %v5564 = vcombine.high %v5518, %v5546
  %v5565 = vcombine.low %v5525, %v5553
  %v5566 = vcombine.high %v5525, %v5553
  %v5567 = vcombine.low %v5532, %v5560
  %v5568 = vcombine.high %v5532, %v5560
  %v5569 = vcombine.low %v5266, %v5268
  %v5570 = vcombine.high %v5266, %v5268
  %v5571 = vcombine.low %v5309, %v5311
  %v5572 = vcombine.high %v5309, %v5311
  %v5573 = vcombine.high %v5352, %v5352
  %v5575 = vunpack.c.l.s4 1966171168
  %v5576 = vunpack.c.0.s8 %v5575
  %v5577 = vlaneseq
  %v5578 = vshrl.u32 %v5577, 7
  %v5579 = vsub.s32 %v5576, %v5578
  %v5580 = vrot.slane %v5569, %v5579
  %v5582 = vunpack.c.l.s4 1966171168
  %v5583 = vunpack.c.0.s8 %v5582
  %v5584 = vlaneseq
  %v5585 = vshrl.u32 %v5584, 7
  %v5586 = vsub.s32 %v5583, %v5585
  %v5587 = vrot.slane %v5570, %v5586
  %v5589 = vunpack.c.l.s4 1966171168
  %v5590 = vunpack.c.0.s8 %v5589
  %v5591 = vlaneseq
  %v5592 = vshrl.u32 %v5591, 7
  %v5593 = vsub.s32 %v5590, %v5592
  %v5594 = vrot.slane %v5571, %v5593
  %v5596 = vunpack.c.l.s4 1966171168
  %v5597 = vunpack.c.0.s8 %v5596
  %v5598 = vlaneseq
  %v5599 = vshrl.u32 %v5598, 7
  %v5600 = vsub.s32 %v5597, %v5599
  %v5601 = vrot.slane %v5572, %v5600
  %v5603 = vunpack.c.l.s4 1966171168
  %v5604 = vunpack.c.0.s8 %v5603
  %v5605 = vlaneseq
  %v5606 = vshrl.u32 %v5605, 7
  %v5607 = vsub.s32 %v5604, %v5606
  %v5608 = vrot.slane %v5352, %v5607
  %v5610 = vunpack.c.l.s4 1966171168
  %v5611 = vunpack.c.0.s8 %v5610
  %v5612 = vlaneseq
  %v5613 = vshrl.u32 %v5612, 7
  %v5614 = vsub.s32 %v5611, %v5613
  %v5615 = vrot.slane %v5573, %v5614
  %v5616 = vcombine.low %v5580, %v5594
  %v5617 = vcombine.high %v5580, %v5594
  %v5618 = vcombine.low %v5587, %v5601
  %v5619 = vcombine.high %v5587, %v5601
  %v5620 = vcombine.high %v5608, %v5608
  %v5621 = vcombine.high %v5615, %v5615
  %v5623 = vunpack.c.l.s4 1966171168
  %v5624 = vunpack.c.0.s8 %v5623
  %v5625 = vlaneseq
  %v5626 = vshrl.u32 %v5625, 7
  %v5627 = vsub.s32 %v5624, %v5626
  %v5628 = vrot.slane %v5616, %v5627
  %v5630 = vunpack.c.l.s4 1966171168
  %v5631 = vunpack.c.0.s8 %v5630
  %v5632 = vlaneseq
  %v5633 = vshrl.u32 %v5632, 7
  %v5634 = vsub.s32 %v5631, %v5633
  %v5635 = vrot.slane %v5618, %v5634
  %v5637 = vunpack.c.l.s4 1966171168
  %v5638 = vunpack.c.0.s8 %v5637
  %v5639 = vlaneseq
  %v5640 = vshrl.u32 %v5639, 7
  %v5641 = vsub.s32 %v5638, %v5640
  %v5642 = vrot.slane %v5617, %v5641
  %v5644 = vunpack.c.l.s4 1966171168
  %v5645 = vunpack.c.0.s8 %v5644
  %v5646 = vlaneseq
  %v5647 = vshrl.u32 %v5646, 7
  %v5648 = vsub.s32 %v5645, %v5647
  %v5649 = vrot.slane %v5619, %v5648
  %v5651 = vunpack.c.l.s4 1966171168
  %v5652 = vunpack.c.0.s8 %v5651
  %v5653 = vlaneseq
  %v5654 = vshrl.u32 %v5653, 7
  %v5655 = vsub.s32 %v5652, %v5654
  %v5656 = vrot.slane %v5608, %v5655
  %v5658 = vunpack.c.l.s4 1966171168
  %v5659 = vunpack.c.0.s8 %v5658
  %v5660 = vlaneseq
  %v5661 = vshrl.u32 %v5660, 7
  %v5662 = vsub.s32 %v5659, %v5661
  %v5663 = vrot.slane %v5615, %v5662
  %v5665 = vunpack.c.l.s4 1966171168
  %v5666 = vunpack.c.0.s8 %v5665
  %v5667 = vlaneseq
  %v5668 = vshrl.u32 %v5667, 7
  %v5669 = vsub.s32 %v5666, %v5668
  %v5670 = vrot.slane %v5620, %v5669
  %v5672 = vunpack.c.l.s4 1966171168
  %v5673 = vunpack.c.0.s8 %v5672
  %v5674 = vlaneseq
  %v5675 = vshrl.u32 %v5674, 7
  %v5676 = vsub.s32 %v5673, %v5675
  %v5677 = vrot.slane %v5621, %v5676
  %v5678 = vcombine.low %v5628, %v5656
  %v5679 = vcombine.high %v5628, %v5656
  %v5680 = vcombine.low %v5635, %v5663
  %v5681 = vcombine.high %v5635, %v5663
  %v5682 = vcombine.low %v5642, %v5670
  %v5683 = vcombine.high %v5642, %v5670
  %v5684 = vcombine.low %v5649, %v5677
  %v5685 = vcombine.high %v5649, %v5677
  %v5686 = vlaneseq
  %v5687 = vshrl.u32 %v5686, 7
  %v5688 = vsub.s32 0, %v5687
  %v5689 = vrot.slane %v5561, %v5688
  %v5690 = vlaneseq
  %v5691 = vshrl.u32 %v5690, 7
  %v5692 = vsub.s32 1, %v5691
  %v5693 = vrot.slane %v5561, %v5692
  %v5694 = vlaneseq
  %v5695 = vshrl.u32 %v5694, 7
  %v5696 = vsub.s32 2, %v5695
  %v5697 = vrot.slane %v5561, %v5696
  %v5698 = vlaneseq
  %v5699 = vshrl.u32 %v5698, 7
  %v5700 = vsub.s32 3, %v5699
  %v5701 = vrot.slane %v5561, %v5700
  %v5702 = vlaneseq
  %v5703 = vshrl.u32 %v5702, 7
  %v5704 = vsub.s32 4, %v5703
  %v5705 = vrot.slane %v5561, %v5704
  %v5706 = vlaneseq
  %v5707 = vshrl.u32 %v5706, 7
  %v5708 = vsub.s32 0, %v5707
  %v5709 = vrot.slane %v5565, %v5708
  %v5710 = vlaneseq
  %v5711 = vshrl.u32 %v5710, 7
  %v5712 = vsub.s32 1, %v5711
  %v5713 = vrot.slane %v5565, %v5712
  %v5714 = vlaneseq
  %v5715 = vshrl.u32 %v5714, 7
  %v5716 = vsub.s32 2, %v5715
  %v5717 = vrot.slane %v5565, %v5716
  %v5718 = vlaneseq
  %v5719 = vshrl.u32 %v5718, 7
  %v5720 = vsub.s32 3, %v5719
  %v5721 = vrot.slane %v5565, %v5720
  %v5722 = vlaneseq
  %v5723 = vshrl.u32 %v5722, 7
  %v5724 = vsub.s32 4, %v5723
  %v5725 = vrot.slane %v5565, %v5724
  %v5726 = vlaneseq
  %v5727 = vshrl.u32 %v5726, 7
  %v5728 = vsub.s32 0, %v5727
  %v5729 = vrot.slane %v5562, %v5728
  %v5730 = vlaneseq
  %v5731 = vshrl.u32 %v5730, 7
  %v5732 = vsub.s32 1, %v5731
  %v5733 = vrot.slane %v5562, %v5732
  %v5734 = vlaneseq
  %v5735 = vshrl.u32 %v5734, 7
  %v5736 = vsub.s32 2, %v5735
  %v5737 = vrot.slane %v5562, %v5736
  %v5738 = vlaneseq
  %v5739 = vshrl.u32 %v5738, 7
  %v5740 = vsub.s32 3, %v5739
  %v5741 = vrot.slane %v5562, %v5740
  %v5742 = vlaneseq
  %v5743 = vshrl.u32 %v5742, 7
  %v5744 = vsub.s32 4, %v5743
  %v5745 = vrot.slane %v5562, %v5744
  %v5746 = vlaneseq
  %v5747 = vshrl.u32 %v5746, 7
  %v5748 = vsub.s32 0, %v5747
  %v5749 = vrot.slane %v5566, %v5748
  %v5750 = vlaneseq
  %v5751 = vshrl.u32 %v5750, 7
  %v5752 = vsub.s32 1, %v5751
  %v5753 = vrot.slane %v5566, %v5752
  %v5754 = vlaneseq
  %v5755 = vshrl.u32 %v5754, 7
  %v5756 = vsub.s32 2, %v5755
  %v5757 = vrot.slane %v5566, %v5756
  %v5758 = vlaneseq
  %v5759 = vshrl.u32 %v5758, 7
  %v5760 = vsub.s32 3, %v5759
  %v5761 = vrot.slane %v5566, %v5760
  %v5762 = vlaneseq
  %v5763 = vshrl.u32 %v5762, 7
  %v5764 = vsub.s32 4, %v5763
  %v5765 = vrot.slane %v5566, %v5764
  %v5766 = vlaneseq
  %v5767 = vshrl.u32 %v5766, 7
  %v5768 = vsub.s32 0, %v5767
  %v5769 = vrot.slane %v5563, %v5768
  %v5770 = vlaneseq
  %v5771 = vshrl.u32 %v5770, 7
  %v5772 = vsub.s32 1, %v5771
  %v5773 = vrot.slane %v5563, %v5772
  %v5774 = vlaneseq
  %v5775 = vshrl.u32 %v5774, 7
  %v5776 = vsub.s32 2, %v5775
  %v5777 = vrot.slane %v5563, %v5776
  %v5778 = vlaneseq
  %v5779 = vshrl.u32 %v5778, 7
  %v5780 = vsub.s32 3, %v5779
  %v5781 = vrot.slane %v5563, %v5780
  %v5782 = vlaneseq
  %v5783 = vshrl.u32 %v5782, 7
  %v5784 = vsub.s32 4, %v5783
  %v5785 = vrot.slane %v5563, %v5784
  %v5786 = vlaneseq
  %v5787 = vshrl.u32 %v5786, 7
  %v5788 = vsub.s32 0, %v5787
  %v5789 = vrot.slane %v5567, %v5788
  %v5790 = vlaneseq
  %v5791 = vshrl.u32 %v5790, 7
  %v5792 = vsub.s32 1, %v5791
  %v5793 = vrot.slane %v5567, %v5792
  %v5794 = vlaneseq
  %v5795 = vshrl.u32 %v5794, 7
  %v5796 = vsub.s32 2, %v5795
  %v5797 = vrot.slane %v5567, %v5796
  %v5798 = vlaneseq
  %v5799 = vshrl.u32 %v5798, 7
  %v5800 = vsub.s32 3, %v5799
  %v5801 = vrot.slane %v5567, %v5800
  %v5802 = vlaneseq
  %v5803 = vshrl.u32 %v5802, 7
  %v5804 = vsub.s32 4, %v5803
  %v5805 = vrot.slane %v5567, %v5804
  %v5806 = vlaneseq
  %v5807 = vshrl.u32 %v5806, 7
  %v5808 = vsub.s32 0, %v5807
  %v5809 = vrot.slane %v5564, %v5808
  %v5810 = vlaneseq
  %v5811 = vshrl.u32 %v5810, 7
  %v5812 = vsub.s32 1, %v5811
  %v5813 = vrot.slane %v5564, %v5812
  %v5814 = vlaneseq
  %v5815 = vshrl.u32 %v5814, 7
  %v5816 = vsub.s32 2, %v5815
  %v5817 = vrot.slane %v5564, %v5816
  %v5818 = vlaneseq
  %v5819 = vshrl.u32 %v5818, 7
  %v5820 = vsub.s32 3, %v5819
  %v5821 = vrot.slane %v5564, %v5820
  %v5822 = vlaneseq
  %v5823 = vshrl.u32 %v5822, 7
  %v5824 = vsub.s32 4, %v5823
  %v5825 = vrot.slane %v5564, %v5824
  %v5826 = vlaneseq
  %v5827 = vshrl.u32 %v5826, 7
  %v5828 = vsub.s32 0, %v5827
  %v5829 = vrot.slane %v5568, %v5828
  %v5830 = vlaneseq
  %v5831 = vshrl.u32 %v5830, 7
  %v5832 = vsub.s32 1, %v5831
  %v5833 = vrot.slane %v5568, %v5832
  %v5834 = vlaneseq
  %v5835 = vshrl.u32 %v5834, 7
  %v5836 = vsub.s32 2, %v5835
  %v5837 = vrot.slane %v5568, %v5836
  %v5838 = vlaneseq
  %v5839 = vshrl.u32 %v5838, 7
  %v5840 = vsub.s32 3, %v5839
  %v5841 = vrot.slane %v5568, %v5840
  %v5842 = vlaneseq
  %v5843 = vshrl.u32 %v5842, 7
  %v5844 = vsub.s32 4, %v5843
  %v5845 = vrot.slane %v5568, %v5844
  %v5846 = vlaneseq
  %v5847 = vshrl.u32 %v5846, 7
  %v5848 = vsub.s32 0, %v5847
  %v5849 = vrot.slane %v5678, %v5848
  %v5850 = vlaneseq
  %v5851 = vshrl.u32 %v5850, 7
  %v5852 = vsub.s32 1, %v5851
  %v5853 = vrot.slane %v5678, %v5852
  %v5854 = vlaneseq
  %v5855 = vshrl.u32 %v5854, 7
  %v5856 = vsub.s32 2, %v5855
  %v5857 = vrot.slane %v5678, %v5856
  %v5858 = vlaneseq
  %v5859 = vshrl.u32 %v5858, 7
  %v5860 = vsub.s32 3, %v5859
  %v5861 = vrot.slane %v5678, %v5860
  %v5862 = vlaneseq
  %v5863 = vshrl.u32 %v5862, 7
  %v5864 = vsub.s32 4, %v5863
  %v5865 = vrot.slane %v5678, %v5864
  %v5866 = vlaneseq
  %v5867 = vshrl.u32 %v5866, 7
  %v5868 = vsub.s32 0, %v5867
  %v5869 = vrot.slane %v5682, %v5868
  %v5870 = vlaneseq
  %v5871 = vshrl.u32 %v5870, 7
  %v5872 = vsub.s32 1, %v5871
  %v5873 = vrot.slane %v5682, %v5872
  %v5874 = vlaneseq
  %v5875 = vshrl.u32 %v5874, 7
  %v5876 = vsub.s32 2, %v5875
  %v5877 = vrot.slane %v5682, %v5876
  %v5878 = vlaneseq
  %v5879 = vshrl.u32 %v5878, 7
  %v5880 = vsub.s32 3, %v5879
  %v5881 = vrot.slane %v5682, %v5880
  %v5882 = vlaneseq
  %v5883 = vshrl.u32 %v5882, 7
  %v5884 = vsub.s32 4, %v5883
  %v5885 = vrot.slane %v5682, %v5884
  %v5886 = vlaneseq
  %v5887 = vshrl.u32 %v5886, 7
  %v5888 = vsub.s32 0, %v5887
  %v5889 = vrot.slane %v5679, %v5888
  %v5890 = vlaneseq
  %v5891 = vshrl.u32 %v5890, 7
  %v5892 = vsub.s32 1, %v5891
  %v5893 = vrot.slane %v5679, %v5892
  %v5894 = vlaneseq
  %v5895 = vshrl.u32 %v5894, 7
  %v5896 = vsub.s32 2, %v5895
  %v5897 = vrot.slane %v5679, %v5896
  %v5898 = vlaneseq
  %v5899 = vshrl.u32 %v5898, 7
  %v5900 = vsub.s32 3, %v5899
  %v5901 = vrot.slane %v5679, %v5900
  %v5902 = vlaneseq
  %v5903 = vshrl.u32 %v5902, 7
  %v5904 = vsub.s32 4, %v5903
  %v5905 = vrot.slane %v5679, %v5904
  %v5906 = vlaneseq
  %v5907 = vshrl.u32 %v5906, 7
  %v5908 = vsub.s32 0, %v5907
  %v5909 = vrot.slane %v5683, %v5908
  %v5910 = vlaneseq
  %v5911 = vshrl.u32 %v5910, 7
  %v5912 = vsub.s32 1, %v5911
  %v5913 = vrot.slane %v5683, %v5912
  %v5914 = vlaneseq
  %v5915 = vshrl.u32 %v5914, 7
  %v5916 = vsub.s32 2, %v5915
  %v5917 = vrot.slane %v5683, %v5916
  %v5918 = vlaneseq
  %v5919 = vshrl.u32 %v5918, 7
  %v5920 = vsub.s32 3, %v5919
  %v5921 = vrot.slane %v5683, %v5920
  %v5922 = vlaneseq
  %v5923 = vshrl.u32 %v5922, 7
  %v5924 = vsub.s32 4, %v5923
  %v5925 = vrot.slane %v5683, %v5924
  %v5926 = vlaneseq
  %v5927 = vshrl.u32 %v5926, 7
  %v5928 = vsub.s32 0, %v5927
  %v5929 = vrot.slane %v5680, %v5928
  %v5930 = vlaneseq
  %v5931 = vshrl.u32 %v5930, 7
  %v5932 = vsub.s32 1, %v5931
  %v5933 = vrot.slane %v5680, %v5932
  %v5934 = vlaneseq
  %v5935 = vshrl.u32 %v5934, 7
  %v5936 = vsub.s32 2, %v5935
  %v5937 = vrot.slane %v5680, %v5936
  %v5938 = vlaneseq
  %v5939 = vshrl.u32 %v5938, 7
  %v5940 = vsub.s32 3, %v5939
  %v5941 = vrot.slane %v5680, %v5940
  %v5942 = vlaneseq
  %v5943 = vshrl.u32 %v5942, 7
  %v5944 = vsub.s32 4, %v5943
  %v5945 = vrot.slane %v5680, %v5944
  %v5946 = vlaneseq
  %v5947 = vshrl.u32 %v5946, 7
  %v5948 = vsub.s32 0, %v5947
  %v5949 = vrot.slane %v5684, %v5948
  %v5950 = vlaneseq
  %v5951 = vshrl.u32 %v5950, 7
  %v5952 = vsub.s32 1, %v5951
  %v5953 = vrot.slane %v5684, %v5952
  %v5954 = vlaneseq
  %v5955 = vshrl.u32 %v5954, 7
  %v5956 = vsub.s32 2, %v5955
  %v5957 = vrot.slane %v5684, %v5956
  %v5958 = vlaneseq
  %v5959 = vshrl.u32 %v5958, 7
  %v5960 = vsub.s32 3, %v5959
  %v5961 = vrot.slane %v5684, %v5960
  %v5962 = vlaneseq
  %v5963 = vshrl.u32 %v5962, 7
  %v5964 = vsub.s32 4, %v5963
  %v5965 = vrot.slane %v5684, %v5964
  %v5966 = vlaneseq
  %v5967 = vshrl.u32 %v5966, 7
  %v5968 = vsub.s32 0, %v5967
  %v5969 = vrot.slane %v5681, %v5968
  %v5970 = vlaneseq
  %v5971 = vshrl.u32 %v5970, 7
  %v5972 = vsub.s32 1, %v5971
  %v5973 = vrot.slane %v5681, %v5972
  %v5974 = vlaneseq
  %v5975 = vshrl.u32 %v5974, 7
  %v5976 = vsub.s32 2, %v5975
  %v5977 = vrot.slane %v5681, %v5976
  %v5978 = vlaneseq
  %v5979 = vshrl.u32 %v5978, 7
  %v5980 = vsub.s32 3, %v5979
  %v5981 = vrot.slane %v5681, %v5980
  %v5982 = vlaneseq
  %v5983 = vshrl.u32 %v5982, 7
  %v5984 = vsub.s32 4, %v5983
  %v5985 = vrot.slane %v5681, %v5984
  %v5986 = vlaneseq
  %v5987 = vshrl.u32 %v5986, 7
  %v5988 = vsub.s32 0, %v5987
  %v5989 = vrot.slane %v5685, %v5988
  %v5990 = vlaneseq
  %v5991 = vshrl.u32 %v5990, 7
  %v5992 = vsub.s32 1, %v5991
  %v5993 = vrot.slane %v5685, %v5992
  %v5994 = vlaneseq
  %v5995 = vshrl.u32 %v5994, 7
  %v5996 = vsub.s32 2, %v5995
  %v5997 = vrot.slane %v5685, %v5996
  %v5998 = vlaneseq
  %v5999 = vshrl.u32 %v5998, 7
  %v6000 = vsub.s32 3, %v5999
  %v6001 = vrot.slane %v5685, %v6000
  %v6002 = vlaneseq
  %v6003 = vshrl.u32 %v6002, 7
  %v6004 = vsub.s32 4, %v6003
  %v6005 = vrot.slane %v5685, %v6004
  %v6086 = vadd.f32 %v5689, %v5350
  %v6087 = vadd.f32 %v5693, %v5391
  %v6088 = vadd.f32 %v5697, %v5393
  %v6089 = vadd.f32 %v5701, %v5434
  %v6090 = vadd.f32 %v5705, %v5436
  %v6091 = vadd.f32 %v5709, %v5350
  %v6092 = vadd.f32 %v5713, %v5391
  %v6093 = vadd.f32 %v5717, %v5393
  %v6094 = vadd.f32 %v5721, %v5434
  %v6095 = vadd.f32 %v5725, %v5436
  %v6096 = vadd.f32 %v5729, %v5350
  %v6097 = vadd.f32 %v5733, %v5391
  %v6098 = vadd.f32 %v5737, %v5393
  %v6099 = vadd.f32 %v5741, %v5434
  %v6100 = vadd.f32 %v5745, %v5436
  %v6101 = vadd.f32 %v5749, %v5350
  %v6102 = vadd.f32 %v5753, %v5391
  %v6103 = vadd.f32 %v5757, %v5393
  %v6104 = vadd.f32 %v5761, %v5434
  %v6105 = vadd.f32 %v5765, %v5436
  %v6106 = vadd.f32 %v5769, %v5350
  %v6107 = vadd.f32 %v5773, %v5391
  %v6108 = vadd.f32 %v5777, %v5393
  %v6109 = vadd.f32 %v5781, %v5434
  %v6110 = vadd.f32 %v5785, %v5436
  %v6111 = vadd.f32 %v5789, %v5350
  %v6112 = vadd.f32 %v5793, %v5391
  %v6113 = vadd.f32 %v5797, %v5393
  %v6114 = vadd.f32 %v5801, %v5434
  %v6115 = vadd.f32 %v5805, %v5436
  %v6116 = vadd.f32 %v5809, %v5350
  %v6117 = vadd.f32 %v5813, %v5391
  %v6118 = vadd.f32 %v5817, %v5393
  %v6119 = vadd.f32 %v5821, %v5434
  %v6120 = vadd.f32 %v5825, %v5436
  %v6121 = vadd.f32 %v5829, %v5350
  %v6122 = vadd.f32 %v5833, %v5391
  %v6123 = vadd.f32 %v5837, %v5393
  %v6124 = vadd.f32 %v5841, %v5434
  %v6125 = vadd.f32 %v5845, %v5436
  %v6126 = vadd.f32 %v5849, %v5354
  %v6127 = vadd.f32 %v5853, %v5395
  %v6128 = vadd.f32 %v5857, %v5397
  %v6129 = vadd.f32 %v5861, %v5438
  %v6130 = vadd.f32 %v5865, %v5440
  %v6131 = vadd.f32 %v5869, %v5354
  %v6132 = vadd.f32 %v5873, %v5395
  %v6133 = vadd.f32 %v5877, %v5397
  %v6134 = vadd.f32 %v5881, %v5438
  %v6135 = vadd.f32 %v5885, %v5440
  %v6136 = vadd.f32 %v5889, %v5354
  %v6137 = vadd.f32 %v5893, %v5395
  %v6138 = vadd.f32 %v5897, %v5397
  %v6139 = vadd.f32 %v5901, %v5438
  %v6140 = vadd.f32 %v5905, %v5440
  %v6141 = vadd.f32 %v5909, %v5354
  %v6142 = vadd.f32 %v5913, %v5395
  %v6143 = vadd.f32 %v5917, %v5397
  %v6144 = vadd.f32 %v5921, %v5438
  %v6145 = vadd.f32 %v5925, %v5440
  %v6146 = vadd.f32 %v5929, %v5354
  %v6147 = vadd.f32 %v5933, %v5395
  %v6148 = vadd.f32 %v5937, %v5397
  %v6149 = vadd.f32 %v5941, %v5438
  %v6150 = vadd.f32 %v5945, %v5440
  %v6151 = vadd.f32 %v5949, %v5354
  %v6152 = vadd.f32 %v5953, %v5395
  %v6153 = vadd.f32 %v5957, %v5397
  %v6154 = vadd.f32 %v5961, %v5438
  %v6155 = vadd.f32 %v5965, %v5440
  %v6156 = vadd.f32 %v5969, %v5354
  %v6157 = vadd.f32 %v5973, %v5395
  %v6158 = vadd.f32 %v5977, %v5397
  %v6159 = vadd.f32 %v5981, %v5438
  %v6160 = vadd.f32 %v5985, %v5440
  %v6161 = vadd.f32 %v5989, %v5354
  %v6162 = vadd.f32 %v5993, %v5395
  %v6163 = vadd.f32 %v5997, %v5397
  %v6164 = vadd.f32 %v6001, %v5438
  %v6165 = vadd.f32 %v6005, %v5440
  %s6166 = scalar_lea.vmem %s3, 5
  %v6167 = vld [vmem:[%s6166] sm:$0x1f]
  %v6169 = vlaneseq
  %v6170 = vshrl.u32 %v6169, 7
  %v6171 = vsub.s32 0, %v6170
  %v6172 = vrot.slane %v6167, %v6171
  %v6173 = vlaneseq
  %v6174 = vshrl.u32 %v6173, 7
  %v6175 = vsub.s32 1, %v6174
  %v6176 = vrot.slane %v6167, %v6175
  %v6177 = vlaneseq
  %v6178 = vshrl.u32 %v6177, 7
  %v6179 = vsub.s32 2, %v6178
  %v6180 = vrot.slane %v6167, %v6179
  %v6181 = vlaneseq
  %v6182 = vshrl.u32 %v6181, 7
  %v6183 = vsub.s32 3, %v6182
  %v6184 = vrot.slane %v6167, %v6183
  %v6185 = vlaneseq
  %v6186 = vshrl.u32 %v6185, 7
  %v6187 = vsub.s32 4, %v6186
  %v6188 = vrot.slane %v6167, %v6187
  %v6194 = vmul.f32 %v4699, %v6172
  %v6195 = vmul.f32 %v4699, %v6176
  %v6196 = vmul.f32 %v4699, %v6180
  %v6197 = vmul.f32 %v4699, %v6184
  %v6198 = vmul.f32 %v4699, %v6188
  %v6199 = vmul.f32 %v4702, %v6172
  %v6200 = vmul.f32 %v4702, %v6176
  %v6201 = vmul.f32 %v4702, %v6180
  %v6202 = vmul.f32 %v4702, %v6184
  %v6203 = vmul.f32 %v4702, %v6188
  %v6204 = vmul.f32 %v4705, %v6172
  %v6205 = vmul.f32 %v4705, %v6176
  %v6206 = vmul.f32 %v4705, %v6180
  %v6207 = vmul.f32 %v4705, %v6184
  %v6208 = vmul.f32 %v4705, %v6188
  %v6209 = vmul.f32 %v4708, %v6172
  %v6210 = vmul.f32 %v4708, %v6176
  %v6211 = vmul.f32 %v4708, %v6180
  %v6212 = vmul.f32 %v4708, %v6184
  %v6213 = vmul.f32 %v4708, %v6188
  %v6214 = vmul.f32 %v4711, %v6172
  %v6215 = vmul.f32 %v4711, %v6176
  %v6216 = vmul.f32 %v4711, %v6180
  %v6217 = vmul.f32 %v4711, %v6184
  %v6218 = vmul.f32 %v4711, %v6188
  %v6219 = vmul.f32 %v4714, %v6172
  %v6220 = vmul.f32 %v4714, %v6176
  %v6221 = vmul.f32 %v4714, %v6180
  %v6222 = vmul.f32 %v4714, %v6184
  %v6223 = vmul.f32 %v4714, %v6188
  %v6224 = vmul.f32 %v4717, %v6172
  %v6225 = vmul.f32 %v4717, %v6176
  %v6226 = vmul.f32 %v4717, %v6180
  %v6227 = vmul.f32 %v4717, %v6184
  %v6228 = vmul.f32 %v4717, %v6188
  %v6229 = vmul.f32 %v4720, %v6172
  %v6230 = vmul.f32 %v4720, %v6176
  %v6231 = vmul.f32 %v4720, %v6180
  %v6232 = vmul.f32 %v4720, %v6184
  %v6233 = vmul.f32 %v4720, %v6188
  %v6234 = vmul.f32 %v4723, %v6172
  %v6235 = vmul.f32 %v4723, %v6176
  %v6236 = vmul.f32 %v4723, %v6180
  %v6237 = vmul.f32 %v4723, %v6184
  %v6238 = vmul.f32 %v4723, %v6188
  %v6239 = vmul.f32 %v4726, %v6172
  %v6240 = vmul.f32 %v4726, %v6176
  %v6241 = vmul.f32 %v4726, %v6180
  %v6242 = vmul.f32 %v4726, %v6184
  %v6243 = vmul.f32 %v4726, %v6188
  %v6244 = vmul.f32 %v4729, %v6172
  %v6245 = vmul.f32 %v4729, %v6176
  %v6246 = vmul.f32 %v4729, %v6180
  %v6247 = vmul.f32 %v4729, %v6184
  %v6248 = vmul.f32 %v4729, %v6188
  %v6249 = vmul.f32 %v4732, %v6172
  %v6250 = vmul.f32 %v4732, %v6176
  %v6251 = vmul.f32 %v4732, %v6180
  %v6252 = vmul.f32 %v4732, %v6184
  %v6253 = vmul.f32 %v4732, %v6188
  %v6254 = vmul.f32 %v4735, %v6172
  %v6255 = vmul.f32 %v4735, %v6176
  %v6256 = vmul.f32 %v4735, %v6180
  %v6257 = vmul.f32 %v4735, %v6184
  %v6258 = vmul.f32 %v4735, %v6188
  %v6259 = vmul.f32 %v4738, %v6172
  %v6260 = vmul.f32 %v4738, %v6176
  %v6261 = vmul.f32 %v4738, %v6180
  %v6262 = vmul.f32 %v4738, %v6184
  %v6263 = vmul.f32 %v4738, %v6188
  %v6264 = vmul.f32 %v4741, %v6172
  %v6265 = vmul.f32 %v4741, %v6176
  %v6266 = vmul.f32 %v4741, %v6180
  %v6267 = vmul.f32 %v4741, %v6184
  %v6268 = vmul.f32 %v4741, %v6188
  %v6269 = vmul.f32 %v4744, %v6172
  %v6270 = vmul.f32 %v4744, %v6176
  %v6271 = vmul.f32 %v4744, %v6180
  %v6272 = vmul.f32 %v4744, %v6184
  %v6273 = vmul.f32 %v4744, %v6188
  %v6274 = vadd.f32 %v6086, %v6194
  %v6275 = vadd.f32 %v6087, %v6195
  %v6276 = vadd.f32 %v6088, %v6196
  %v6277 = vadd.f32 %v6089, %v6197
  %v6278 = vadd.f32 %v6090, %v6198
  %v6279 = vadd.f32 %v6091, %v6199
  %v6280 = vadd.f32 %v6092, %v6200
  %v6281 = vadd.f32 %v6093, %v6201
  %v6282 = vadd.f32 %v6094, %v6202
  %v6283 = vadd.f32 %v6095, %v6203
  %v6284 = vadd.f32 %v6096, %v6204
  %v6285 = vadd.f32 %v6097, %v6205
  %v6286 = vadd.f32 %v6098, %v6206
  %v6287 = vadd.f32 %v6099, %v6207
  %v6288 = vadd.f32 %v6100, %v6208
  %v6289 = vadd.f32 %v6101, %v6209
  %v6290 = vadd.f32 %v6102, %v6210
  %v6291 = vadd.f32 %v6103, %v6211
  %v6292 = vadd.f32 %v6104, %v6212
  %v6293 = vadd.f32 %v6105, %v6213
  %v6294 = vadd.f32 %v6106, %v6214
  %v6295 = vadd.f32 %v6107, %v6215
  %v6296 = vadd.f32 %v6108, %v6216
  %v6297 = vadd.f32 %v6109, %v6217
  %v6298 = vadd.f32 %v6110, %v6218
  %v6299 = vadd.f32 %v6111, %v6219
  %v6300 = vadd.f32 %v6112, %v6220
  %v6301 = vadd.f32 %v6113, %v6221
  %v6302 = vadd.f32 %v6114, %v6222
  %v6303 = vadd.f32 %v6115, %v6223
  %v6304 = vadd.f32 %v6116, %v6224
  %v6305 = vadd.f32 %v6117, %v6225
  %v6306 = vadd.f32 %v6118, %v6226
  %v6307 = vadd.f32 %v6119, %v6227
  %v6308 = vadd.f32 %v6120, %v6228
  %v6309 = vadd.f32 %v6121, %v6229
  %v6310 = vadd.f32 %v6122, %v6230
  %v6311 = vadd.f32 %v6123, %v6231
  %v6312 = vadd.f32 %v6124, %v6232
  %v6313 = vadd.f32 %v6125, %v6233
  %v6314 = vadd.f32 %v6126, %v6234
  %v6315 = vadd.f32 %v6127, %v6235
  %v6316 = vadd.f32 %v6128, %v6236
  %v6317 = vadd.f32 %v6129, %v6237
  %v6318 = vadd.f32 %v6130, %v6238
  %v6319 = vadd.f32 %v6131, %v6239
  %v6320 = vadd.f32 %v6132, %v6240
  %v6321 = vadd.f32 %v6133, %v6241
  %v6322 = vadd.f32 %v6134, %v6242
  %v6323 = vadd.f32 %v6135, %v6243
  %v6324 = vadd.f32 %v6136, %v6244
  %v6325 = vadd.f32 %v6137, %v6245
  %v6326 = vadd.f32 %v6138, %v6246
  %v6327 = vadd.f32 %v6139, %v6247
  %v6328 = vadd.f32 %v6140, %v6248
  %v6329 = vadd.f32 %v6141, %v6249
  %v6330 = vadd.f32 %v6142, %v6250
  %v6331 = vadd.f32 %v6143, %v6251
  %v6332 = vadd.f32 %v6144, %v6252
  %v6333 = vadd.f32 %v6145, %v6253
  %v6334 = vadd.f32 %v6146, %v6254
  %v6335 = vadd.f32 %v6147, %v6255
  %v6336 = vadd.f32 %v6148, %v6256
  %v6337 = vadd.f32 %v6149, %v6257
  %v6338 = vadd.f32 %v6150, %v6258
  %v6339 = vadd.f32 %v6151, %v6259
  %v6340 = vadd.f32 %v6152, %v6260
  %v6341 = vadd.f32 %v6153, %v6261
  %v6342 = vadd.f32 %v6154, %v6262
  %v6343 = vadd.f32 %v6155, %v6263
  %v6344 = vadd.f32 %v6156, %v6264
  %v6345 = vadd.f32 %v6157, %v6265
  %v6346 = vadd.f32 %v6158, %v6266
  %v6347 = vadd.f32 %v6159, %v6267
  %v6348 = vadd.f32 %v6160, %v6268
  %v6349 = vadd.f32 %v6161, %v6269
  %v6350 = vadd.f32 %v6162, %v6270
  %v6351 = vadd.f32 %v6163, %v6271
  %v6352 = vadd.f32 %v6164, %v6272
  %v6353 = vadd.f32 %v6165, %v6273
  %s6354 = scalar_lea.vmem %s4, 1
  %v6355 = vld [vmem:[%s6354] ss:$4 sm:$0x1f]
  %v6357 = vlaneseq
  %v6358 = vshrl.u32 %v6357, 7
  %v6359 = vsub.s32 0, %v6358
  %v6360 = vrot.slane %v6355, %v6359
  %v6361 = vlaneseq
  %v6362 = vshrl.u32 %v6361, 7
  %v6363 = vsub.s32 1, %v6362
  %v6364 = vrot.slane %v6355, %v6363
  %v6365 = vlaneseq
  %v6366 = vshrl.u32 %v6365, 7
  %v6367 = vsub.s32 2, %v6366
  %v6368 = vrot.slane %v6355, %v6367
  %v6369 = vlaneseq
  %v6370 = vshrl.u32 %v6369, 7
  %v6371 = vsub.s32 3, %v6370
  %v6372 = vrot.slane %v6355, %v6371
  %v6373 = vlaneseq
  %v6374 = vshrl.u32 %v6373, 7
  %v6375 = vsub.s32 4, %v6374
  %v6376 = vrot.slane %v6355, %v6375
  %v6382 = vadd.f32 %v6274, %v6360
  %v6383 = vadd.f32 %v6275, %v6364
  %v6384 = vadd.f32 %v6276, %v6368
  %v6385 = vadd.f32 %v6277, %v6372
  %v6386 = vadd.f32 %v6278, %v6376
  %v6387 = vadd.f32 %v6279, %v6360
  %v6388 = vadd.f32 %v6280, %v6364
  %v6389 = vadd.f32 %v6281, %v6368
  %v6390 = vadd.f32 %v6282, %v6372
  %v6391 = vadd.f32 %v6283, %v6376
  %v6392 = vadd.f32 %v6284, %v6360
  %v6393 = vadd.f32 %v6285, %v6364
  %v6394 = vadd.f32 %v6286, %v6368
  %v6395 = vadd.f32 %v6287, %v6372
  %v6396 = vadd.f32 %v6288, %v6376
  %v6397 = vadd.f32 %v6289, %v6360
  %v6398 = vadd.f32 %v6290, %v6364
  %v6399 = vadd.f32 %v6291, %v6368
  %v6400 = vadd.f32 %v6292, %v6372
  %v6401 = vadd.f32 %v6293, %v6376
  %v6402 = vadd.f32 %v6294, %v6360
  %v6403 = vadd.f32 %v6295, %v6364
  %v6404 = vadd.f32 %v6296, %v6368
  %v6405 = vadd.f32 %v6297, %v6372
  %v6406 = vadd.f32 %v6298, %v6376
  %v6407 = vadd.f32 %v6299, %v6360
  %v6408 = vadd.f32 %v6300, %v6364
  %v6409 = vadd.f32 %v6301, %v6368
  %v6410 = vadd.f32 %v6302, %v6372
  %v6411 = vadd.f32 %v6303, %v6376
  %v6412 = vadd.f32 %v6304, %v6360
  %v6413 = vadd.f32 %v6305, %v6364
  %v6414 = vadd.f32 %v6306, %v6368
  %v6415 = vadd.f32 %v6307, %v6372
  %v6416 = vadd.f32 %v6308, %v6376
  %v6417 = vadd.f32 %v6309, %v6360
  %v6418 = vadd.f32 %v6310, %v6364
  %v6419 = vadd.f32 %v6311, %v6368
  %v6420 = vadd.f32 %v6312, %v6372
  %v6421 = vadd.f32 %v6313, %v6376
  %v6422 = vadd.f32 %v6314, %v6360
  %v6423 = vadd.f32 %v6315, %v6364
  %v6424 = vadd.f32 %v6316, %v6368
  %v6425 = vadd.f32 %v6317, %v6372
  %v6426 = vadd.f32 %v6318, %v6376
  %v6427 = vadd.f32 %v6319, %v6360
  %v6428 = vadd.f32 %v6320, %v6364
  %v6429 = vadd.f32 %v6321, %v6368
  %v6430 = vadd.f32 %v6322, %v6372
  %v6431 = vadd.f32 %v6323, %v6376
  %v6432 = vadd.f32 %v6324, %v6360
  %v6433 = vadd.f32 %v6325, %v6364
  %v6434 = vadd.f32 %v6326, %v6368
  %v6435 = vadd.f32 %v6327, %v6372
  %v6436 = vadd.f32 %v6328, %v6376
  %v6437 = vadd.f32 %v6329, %v6360
  %v6438 = vadd.f32 %v6330, %v6364
  %v6439 = vadd.f32 %v6331, %v6368
  %v6440 = vadd.f32 %v6332, %v6372
  %v6441 = vadd.f32 %v6333, %v6376
  %v6442 = vadd.f32 %v6334, %v6360
  %v6443 = vadd.f32 %v6335, %v6364
  %v6444 = vadd.f32 %v6336, %v6368
  %v6445 = vadd.f32 %v6337, %v6372
  %v6446 = vadd.f32 %v6338, %v6376
  %v6447 = vadd.f32 %v6339, %v6360
  %v6448 = vadd.f32 %v6340, %v6364
  %v6449 = vadd.f32 %v6341, %v6368
  %v6450 = vadd.f32 %v6342, %v6372
  %v6451 = vadd.f32 %v6343, %v6376
  %v6452 = vadd.f32 %v6344, %v6360
  %v6453 = vadd.f32 %v6345, %v6364
  %v6454 = vadd.f32 %v6346, %v6368
  %v6455 = vadd.f32 %v6347, %v6372
  %v6456 = vadd.f32 %v6348, %v6376
  %v6457 = vadd.f32 %v6349, %v6360
  %v6458 = vadd.f32 %v6350, %v6364
  %v6459 = vadd.f32 %v6351, %v6368
  %v6460 = vadd.f32 %v6352, %v6372
  %v6461 = vadd.f32 %v6353, %v6376
  %v6462 = vsub.f32 0.0, %v6382
  %v6463 = vsub.f32 0.0, %v6383
  %v6464 = vsub.f32 0.0, %v6384
  %v6465 = vsub.f32 0.0, %v6385
  %v6466 = vsub.f32 0.0, %v6386
  %v6467 = vsub.f32 0.0, %v6387
  %v6468 = vsub.f32 0.0, %v6388
  %v6469 = vsub.f32 0.0, %v6389
  %v6470 = vsub.f32 0.0, %v6390
  %v6471 = vsub.f32 0.0, %v6391
  %v6472 = vsub.f32 0.0, %v6392
  %v6473 = vsub.f32 0.0, %v6393
  %v6474 = vsub.f32 0.0, %v6394
  %v6475 = vsub.f32 0.0, %v6395
  %v6476 = vsub.f32 0.0, %v6396
  %v6477 = vsub.f32 0.0, %v6397
  %v6478 = vsub.f32 0.0, %v6398
  %v6479 = vsub.f32 0.0, %v6399
  %v6480 = vsub.f32 0.0, %v6400
  %v6481 = vsub.f32 0.0, %v6401
  %v6482 = vsub.f32 0.0, %v6402
  %v6483 = vsub.f32 0.0, %v6403
  %v6484 = vsub.f32 0.0, %v6404
  %v6485 = vsub.f32 0.0, %v6405
  %v6486 = vsub.f32 0.0, %v6406
  %v6487 = vsub.f32 0.0, %v6407
  %v6488 = vsub.f32 0.0, %v6408
  %v6489 = vsub.f32 0.0, %v6409
  %v6490 = vsub.f32 0.0, %v6410
  %v6491 = vsub.f32 0.0, %v6411
  %v6492 = vsub.f32 0.0, %v6412
  %v6493 = vsub.f32 0.0, %v6413
  %v6494 = vsub.f32 0.0, %v6414
  %v6495 = vsub.f32 0.0, %v6415
  %v6496 = vsub.f32 0.0, %v6416
  %v6497 = vsub.f32 0.0, %v6417
  %v6498 = vsub.f32 0.0, %v6418
  %v6499 = vsub.f32 0.0, %v6419
  %v6500 = vsub.f32 0.0, %v6420
  %v6501 = vsub.f32 0.0, %v6421
  %v6502 = vsub.f32 0.0, %v6422
  %v6503 = vsub.f32 0.0, %v6423
  %v6504 = vsub.f32 0.0, %v6424
  %v6505 = vsub.f32 0.0, %v6425
  %v6506 = vsub.f32 0.0, %v6426
  %v6507 = vsub.f32 0.0, %v6427
  %v6508 = vsub.f32 0.0, %v6428
  %v6509 = vsub.f32 0.0, %v6429
  %v6510 = vsub.f32 0.0, %v6430
  %v6511 = vsub.f32 0.0, %v6431
  %v6512 = vsub.f32 0.0, %v6432
  %v6513 = vsub.f32 0.0, %v6433
  %v6514 = vsub.f32 0.0, %v6434
  %v6515 = vsub.f32 0.0, %v6435
  %v6516 = vsub.f32 0.0, %v6436
  %v6517 = vsub.f32 0.0, %v6437
  %v6518 = vsub.f32 0.0, %v6438
  %v6519 = vsub.f32 0.0, %v6439
  %v6520 = vsub.f32 0.0, %v6440
  %v6521 = vsub.f32 0.0, %v6441
  %v6522 = vsub.f32 0.0, %v6442
  %v6523 = vsub.f32 0.0, %v6443
  %v6524 = vsub.f32 0.0, %v6444
  %v6525 = vsub.f32 0.0, %v6445
  %v6526 = vsub.f32 0.0, %v6446
  %v6527 = vsub.f32 0.0, %v6447
  %v6528 = vsub.f32 0.0, %v6448
  %v6529 = vsub.f32 0.0, %v6449
  %v6530 = vsub.f32 0.0, %v6450
  %v6531 = vsub.f32 0.0, %v6451
  %v6532 = vsub.f32 0.0, %v6452
  %v6533 = vsub.f32 0.0, %v6453
  %v6534 = vsub.f32 0.0, %v6454
  %v6535 = vsub.f32 0.0, %v6455
  %v6536 = vsub.f32 0.0, %v6456
  %v6537 = vsub.f32 0.0, %v6457
  %v6538 = vsub.f32 0.0, %v6458
  %v6539 = vsub.f32 0.0, %v6459
  %v6540 = vsub.f32 0.0, %v6460
  %v6541 = vsub.f32 0.0, %v6461
  %v6542 = vmul.f32 %v6462, 1.442695
  %v6543 = vpow.pop %v6542
  %v6544 = vmul.f32 %v6463, 1.442695
  %v6545 = vpow.pop %v6544
  %v6546 = vmul.f32 %v6464, 1.442695
  %v6547 = vpow.pop %v6546
  %v6548 = vmul.f32 %v6465, 1.442695
  %v6549 = vpow.pop %v6548
  %v6550 = vmul.f32 %v6466, 1.442695
  %v6551 = vpow.pop %v6550
  %v6552 = vmul.f32 %v6467, 1.442695
  %v6553 = vpow.pop %v6552
  %v6554 = vmul.f32 %v6468, 1.442695
  %v6555 = vpow.pop %v6554
  %v6556 = vmul.f32 %v6469, 1.442695
  %v6557 = vpow.pop %v6556
  %v6558 = vmul.f32 %v6470, 1.442695
  %v6559 = vpow.pop %v6558
  %v6560 = vmul.f32 %v6471, 1.442695
  %v6561 = vpow.pop %v6560
  %v6562 = vmul.f32 %v6472, 1.442695
  %v6563 = vpow.pop %v6562
  %v6564 = vmul.f32 %v6473, 1.442695
  %v6565 = vpow.pop %v6564
  %v6566 = vmul.f32 %v6474, 1.442695
  %v6567 = vpow.pop %v6566
  %v6568 = vmul.f32 %v6475, 1.442695
  %v6569 = vpow.pop %v6568
  %v6570 = vmul.f32 %v6476, 1.442695
  %v6571 = vpow.pop %v6570
  %v6572 = vmul.f32 %v6477, 1.442695
  %v6573 = vpow.pop %v6572
  %v6574 = vmul.f32 %v6478, 1.442695
  %v6575 = vpow.pop %v6574
  %v6576 = vmul.f32 %v6479, 1.442695
  %v6577 = vpow.pop %v6576
  %v6578 = vmul.f32 %v6480, 1.442695
  %v6579 = vpow.pop %v6578
  %v6580 = vmul.f32 %v6481, 1.442695
  %v6581 = vpow.pop %v6580
  %v6582 = vmul.f32 %v6482, 1.442695
  %v6583 = vpow.pop %v6582
  %v6584 = vmul.f32 %v6483, 1.442695
  %v6585 = vpow.pop %v6584
  %v6586 = vmul.f32 %v6484, 1.442695
  %v6587 = vpow.pop %v6586
  %v6588 = vmul.f32 %v6485, 1.442695
  %v6589 = vpow.pop %v6588
  %v6590 = vmul.f32 %v6486, 1.442695
  %v6591 = vpow.pop %v6590
  %v6592 = vmul.f32 %v6487, 1.442695
  %v6593 = vpow.pop %v6592
  %v6594 = vmul.f32 %v6488, 1.442695
  %v6595 = vpow.pop %v6594
  %v6596 = vmul.f32 %v6489, 1.442695
  %v6597 = vpow.pop %v6596
  %v6598 = vmul.f32 %v6490, 1.442695
  %v6599 = vpow.pop %v6598
  %v6600 = vmul.f32 %v6491, 1.442695
  %v6601 = vpow.pop %v6600
  %v6602 = vmul.f32 %v6492, 1.442695
  %v6603 = vpow.pop %v6602
  %v6604 = vmul.f32 %v6493, 1.442695
  %v6605 = vpow.pop %v6604
  %v6606 = vmul.f32 %v6494, 1.442695
  %v6607 = vpow.pop %v6606
  %v6608 = vmul.f32 %v6495, 1.442695
  %v6609 = vpow.pop %v6608
  %v6610 = vmul.f32 %v6496, 1.442695
  %v6611 = vpow.pop %v6610
  %v6612 = vmul.f32 %v6497, 1.442695
  %v6613 = vpow.pop %v6612
  %v6614 = vmul.f32 %v6498, 1.442695
  %v6615 = vpow.pop %v6614
  %v6616 = vmul.f32 %v6499, 1.442695
  %v6617 = vpow.pop %v6616
  %v6618 = vmul.f32 %v6500, 1.442695
  %v6619 = vpow.pop %v6618
  %v6620 = vmul.f32 %v6501, 1.442695
  %v6621 = vpow.pop %v6620
  %v6622 = vmul.f32 %v6502, 1.442695
  %v6623 = vpow.pop %v6622
  %v6624 = vmul.f32 %v6503, 1.442695
  %v6625 = vpow.pop %v6624
  %v6626 = vmul.f32 %v6504, 1.442695
  %v6627 = vpow.pop %v6626
  %v6628 = vmul.f32 %v6505, 1.442695
  %v6629 = vpow.pop %v6628
  %v6630 = vmul.f32 %v6506, 1.442695
  %v6631 = vpow.pop %v6630
  %v6632 = vmul.f32 %v6507, 1.442695
  %v6633 = vpow.pop %v6632
  %v6634 = vmul.f32 %v6508, 1.442695
  %v6635 = vpow.pop %v6634
  %v6636 = vmul.f32 %v6509, 1.442695
  %v6637 = vpow.pop %v6636
  %v6638 = vmul.f32 %v6510, 1.442695
  %v6639 = vpow.pop %v6638
  %v6640 = vmul.f32 %v6511, 1.442695
  %v6641 = vpow.pop %v6640
  %v6642 = vmul.f32 %v6512, 1.442695
  %v6643 = vpow.pop %v6642
  %v6644 = vmul.f32 %v6513, 1.442695
  %v6645 = vpow.pop %v6644
  %v6646 = vmul.f32 %v6514, 1.442695
  %v6647 = vpow.pop %v6646
  %v6648 = vmul.f32 %v6515, 1.442695
  %v6649 = vpow.pop %v6648
  %v6650 = vmul.f32 %v6516, 1.442695
  %v6651 = vpow.pop %v6650
  %v6652 = vmul.f32 %v6517, 1.442695
  %v6653 = vpow.pop %v6652
  %v6654 = vmul.f32 %v6518, 1.442695
  %v6655 = vpow.pop %v6654
  %v6656 = vmul.f32 %v6519, 1.442695
  %v6657 = vpow.pop %v6656
  %v6658 = vmul.f32 %v6520, 1.442695
  %v6659 = vpow.pop %v6658
  %v6660 = vmul.f32 %v6521, 1.442695
  %v6661 = vpow.pop %v6660
  %v6662 = vmul.f32 %v6522, 1.442695
  %v6663 = vpow.pop %v6662
  %v6664 = vmul.f32 %v6523, 1.442695
  %v6665 = vpow.pop %v6664
  %v6666 = vmul.f32 %v6524, 1.442695
  %v6667 = vpow.pop %v6666
  %v6668 = vmul.f32 %v6525, 1.442695
  %v6669 = vpow.pop %v6668
  %v6670 = vmul.f32 %v6526, 1.442695
  %v6671 = vpow.pop %v6670
  %v6672 = vmul.f32 %v6527, 1.442695
  %v6673 = vpow.pop %v6672
  %v6674 = vmul.f32 %v6528, 1.442695
  %v6675 = vpow.pop %v6674
  %v6676 = vmul.f32 %v6529, 1.442695
  %v6677 = vpow.pop %v6676
  %v6678 = vmul.f32 %v6530, 1.442695
  %v6679 = vpow.pop %v6678
  %v6680 = vmul.f32 %v6531, 1.442695
  %v6681 = vpow.pop %v6680
  %v6682 = vmul.f32 %v6532, 1.442695
  %v6683 = vpow.pop %v6682
  %v6684 = vmul.f32 %v6533, 1.442695
  %v6685 = vpow.pop %v6684
  %v6686 = vmul.f32 %v6534, 1.442695
  %v6687 = vpow.pop %v6686
  %v6688 = vmul.f32 %v6535, 1.442695
  %v6689 = vpow.pop %v6688
  %v6690 = vmul.f32 %v6536, 1.442695
  %v6691 = vpow.pop %v6690
  %v6692 = vmul.f32 %v6537, 1.442695
  %v6693 = vpow.pop %v6692
  %v6694 = vmul.f32 %v6538, 1.442695
  %v6695 = vpow.pop %v6694
  %v6696 = vmul.f32 %v6539, 1.442695
  %v6697 = vpow.pop %v6696
  %v6698 = vmul.f32 %v6540, 1.442695
  %v6699 = vpow.pop %v6698
  %v6700 = vmul.f32 %v6541, 1.442695
  %v6701 = vpow.pop %v6700
  %v6702 = vadd.f32 %v6543, 1.0
  %v6703 = vadd.f32 %v6545, 1.0
  %v6704 = vadd.f32 %v6547, 1.0
  %v6705 = vadd.f32 %v6549, 1.0
  %v6706 = vadd.f32 %v6551, 1.0
  %v6707 = vadd.f32 %v6553, 1.0
  %v6708 = vadd.f32 %v6555, 1.0
  %v6709 = vadd.f32 %v6557, 1.0
  %v6710 = vadd.f32 %v6559, 1.0
  %v6711 = vadd.f32 %v6561, 1.0
  %v6712 = vadd.f32 %v6563, 1.0
  %v6713 = vadd.f32 %v6565, 1.0
  %v6714 = vadd.f32 %v6567, 1.0
  %v6715 = vadd.f32 %v6569, 1.0
  %v6716 = vadd.f32 %v6571, 1.0
  %v6717 = vadd.f32 %v6573, 1.0
  %v6718 = vadd.f32 %v6575, 1.0
  %v6719 = vadd.f32 %v6577, 1.0
  %v6720 = vadd.f32 %v6579, 1.0
  %v6721 = vadd.f32 %v6581, 1.0
  %v6722 = vadd.f32 %v6583, 1.0
  %v6723 = vadd.f32 %v6585, 1.0
  %v6724 = vadd.f32 %v6587, 1.0
  %v6725 = vadd.f32 %v6589, 1.0
  %v6726 = vadd.f32 %v6591, 1.0
  %v6727 = vadd.f32 %v6593, 1.0
  %v6728 = vadd.f32 %v6595, 1.0
  %v6729 = vadd.f32 %v6597, 1.0
  %v6730 = vadd.f32 %v6599, 1.0
  %v6731 = vadd.f32 %v6601, 1.0
  %v6732 = vadd.f32 %v6603, 1.0
  %v6733 = vadd.f32 %v6605, 1.0
  %v6734 = vadd.f32 %v6607, 1.0
  %v6735 = vadd.f32 %v6609, 1.0
  %v6736 = vadd.f32 %v6611, 1.0
  %v6737 = vadd.f32 %v6613, 1.0
  %v6738 = vadd.f32 %v6615, 1.0
  %v6739 = vadd.f32 %v6617, 1.0
  %v6740 = vadd.f32 %v6619, 1.0
  %v6741 = vadd.f32 %v6621, 1.0
  %v6742 = vadd.f32 %v6623, 1.0
  %v6743 = vadd.f32 %v6625, 1.0
  %v6744 = vadd.f32 %v6627, 1.0
  %v6745 = vadd.f32 %v6629, 1.0
  %v6746 = vadd.f32 %v6631, 1.0
  %v6747 = vadd.f32 %v6633, 1.0
  %v6748 = vadd.f32 %v6635, 1.0
  %v6749 = vadd.f32 %v6637, 1.0
  %v6750 = vadd.f32 %v6639, 1.0
  %v6751 = vadd.f32 %v6641, 1.0
  %v6752 = vadd.f32 %v6643, 1.0
  %v6753 = vadd.f32 %v6645, 1.0
  %v6754 = vadd.f32 %v6647, 1.0
  %v6755 = vadd.f32 %v6649, 1.0
  %v6756 = vadd.f32 %v6651, 1.0
  %v6757 = vadd.f32 %v6653, 1.0
  %v6758 = vadd.f32 %v6655, 1.0
  %v6759 = vadd.f32 %v6657, 1.0
  %v6760 = vadd.f32 %v6659, 1.0
  %v6761 = vadd.f32 %v6661, 1.0
  %v6762 = vadd.f32 %v6663, 1.0
  %v6763 = vadd.f32 %v6665, 1.0
  %v6764 = vadd.f32 %v6667, 1.0
  %v6765 = vadd.f32 %v6669, 1.0
  %v6766 = vadd.f32 %v6671, 1.0
  %v6767 = vadd.f32 %v6673, 1.0
  %v6768 = vadd.f32 %v6675, 1.0
  %v6769 = vadd.f32 %v6677, 1.0
  %v6770 = vadd.f32 %v6679, 1.0
  %v6771 = vadd.f32 %v6681, 1.0
  %v6772 = vadd.f32 %v6683, 1.0
  %v6773 = vadd.f32 %v6685, 1.0
  %v6774 = vadd.f32 %v6687, 1.0
  %v6775 = vadd.f32 %v6689, 1.0
  %v6776 = vadd.f32 %v6691, 1.0
  %v6777 = vadd.f32 %v6693, 1.0
  %v6778 = vadd.f32 %v6695, 1.0
  %v6779 = vadd.f32 %v6697, 1.0
  %v6780 = vadd.f32 %v6699, 1.0
  %v6781 = vadd.f32 %v6701, 1.0
  %v6782 = vrcp.pop %v6702
  %v6783 = vrcp.pop %v6703
  %v6784 = vrcp.pop %v6704
  %v6785 = vrcp.pop %v6705
  %v6786 = vrcp.pop %v6706
  %v6787 = vrcp.pop %v6707
  %v6788 = vrcp.pop %v6708
  %v6789 = vrcp.pop %v6709
  %v6790 = vrcp.pop %v6710
  %v6791 = vrcp.pop %v6711
  %v6792 = vrcp.pop %v6712
  %v6793 = vrcp.pop %v6713
  %v6794 = vrcp.pop %v6714
  %v6795 = vrcp.pop %v6715
  %v6796 = vrcp.pop %v6716
  %v6797 = vrcp.pop %v6717
  %v6798 = vrcp.pop %v6718
  %v6799 = vrcp.pop %v6719
  %v6800 = vrcp.pop %v6720
  %v6801 = vrcp.pop %v6721
  %v6802 = vrcp.pop %v6722
  %v6803 = vrcp.pop %v6723
  %v6804 = vrcp.pop %v6724
  %v6805 = vrcp.pop %v6725
  %v6806 = vrcp.pop %v6726
  %v6807 = vrcp.pop %v6727
  %v6808 = vrcp.pop %v6728
  %v6809 = vrcp.pop %v6729
  %v6810 = vrcp.pop %v6730
  %v6811 = vrcp.pop %v6731
  %v6812 = vrcp.pop %v6732
  %v6813 = vrcp.pop %v6733
  %v6814 = vrcp.pop %v6734
  %v6815 = vrcp.pop %v6735
  %v6816 = vrcp.pop %v6736
  %v6817 = vrcp.pop %v6737
  %v6818 = vrcp.pop %v6738
  %v6819 = vrcp.pop %v6739
  %v6820 = vrcp.pop %v6740
  %v6821 = vrcp.pop %v6741
  %v6822 = vrcp.pop %v6742
  %v6823 = vrcp.pop %v6743
  %v6824 = vrcp.pop %v6744
  %v6825 = vrcp.pop %v6745
  %v6826 = vrcp.pop %v6746
  %v6827 = vrcp.pop %v6747
  %v6828 = vrcp.pop %v6748
  %v6829 = vrcp.pop %v6749
  %v6830 = vrcp.pop %v6750
  %v6831 = vrcp.pop %v6751
  %v6832 = vrcp.pop %v6752
  %v6833 = vrcp.pop %v6753
  %v6834 = vrcp.pop %v6754
  %v6835 = vrcp.pop %v6755
  %v6836 = vrcp.pop %v6756
  %v6837 = vrcp.pop %v6757
  %v6838 = vrcp.pop %v6758
  %v6839 = vrcp.pop %v6759
  %v6840 = vrcp.pop %v6760
  %v6841 = vrcp.pop %v6761
  %v6842 = vrcp.pop %v6762
  %v6843 = vrcp.pop %v6763
  %v6844 = vrcp.pop %v6764
  %v6845 = vrcp.pop %v6765
  %v6846 = vrcp.pop %v6766
  %v6847 = vrcp.pop %v6767
  %v6848 = vrcp.pop %v6768
  %v6849 = vrcp.pop %v6769
  %v6850 = vrcp.pop %v6770
  %v6851 = vrcp.pop %v6771
  %v6852 = vrcp.pop %v6772
  %v6853 = vrcp.pop %v6773
  %v6854 = vrcp.pop %v6774
  %v6855 = vrcp.pop %v6775
  %v6856 = vrcp.pop %v6776
  %v6857 = vrcp.pop %v6777
  %v6858 = vrcp.pop %v6778
  %v6859 = vrcp.pop %v6779
  %v6860 = vrcp.pop %v6780
  %v6861 = vrcp.pop %v6781
  %v6862 = vmul.f32 %v6382, %v6782
  %v6863 = vmul.f32 %v6383, %v6783
  %v6864 = vmul.f32 %v6384, %v6784
  %v6865 = vmul.f32 %v6385, %v6785
  %v6866 = vmul.f32 %v6386, %v6786
  %v6867 = vmul.f32 %v6387, %v6787
  %v6868 = vmul.f32 %v6388, %v6788
  %v6869 = vmul.f32 %v6389, %v6789
  %v6870 = vmul.f32 %v6390, %v6790
  %v6871 = vmul.f32 %v6391, %v6791
  %v6872 = vmul.f32 %v6392, %v6792
  %v6873 = vmul.f32 %v6393, %v6793
  %v6874 = vmul.f32 %v6394, %v6794
  %v6875 = vmul.f32 %v6395, %v6795
  %v6876 = vmul.f32 %v6396, %v6796
  %v6877 = vmul.f32 %v6397, %v6797
  %v6878 = vmul.f32 %v6398, %v6798
  %v6879 = vmul.f32 %v6399, %v6799
  %v6880 = vmul.f32 %v6400, %v6800
  %v6881 = vmul.f32 %v6401, %v6801
  %v6882 = vmul.f32 %v6402, %v6802
  %v6883 = vmul.f32 %v6403, %v6803
  %v6884 = vmul.f32 %v6404, %v6804
  %v6885 = vmul.f32 %v6405, %v6805
  %v6886 = vmul.f32 %v6406, %v6806
  %v6887 = vmul.f32 %v6407, %v6807
  %v6888 = vmul.f32 %v6408, %v6808
  %v6889 = vmul.f32 %v6409, %v6809
  %v6890 = vmul.f32 %v6410, %v6810
  %v6891 = vmul.f32 %v6411, %v6811
  %v6892 = vmul.f32 %v6412, %v6812
  %v6893 = vmul.f32 %v6413, %v6813
  %v6894 = vmul.f32 %v6414, %v6814
  %v6895 = vmul.f32 %v6415, %v6815
  %v6896 = vmul.f32 %v6416, %v6816
  %v6897 = vmul.f32 %v6417, %v6817
  %v6898 = vmul.f32 %v6418, %v6818
  %v6899 = vmul.f32 %v6419, %v6819
  %v6900 = vmul.f32 %v6420, %v6820
  %v6901 = vmul.f32 %v6421, %v6821
  %v6902 = vmul.f32 %v6422, %v6822
  %v6903 = vmul.f32 %v6423, %v6823
  %v6904 = vmul.f32 %v6424, %v6824
  %v6905 = vmul.f32 %v6425, %v6825
  %v6906 = vmul.f32 %v6426, %v6826
  %v6907 = vmul.f32 %v6427, %v6827
  %v6908 = vmul.f32 %v6428, %v6828
  %v6909 = vmul.f32 %v6429, %v6829
  %v6910 = vmul.f32 %v6430, %v6830
  %v6911 = vmul.f32 %v6431, %v6831
  %v6912 = vmul.f32 %v6432, %v6832
  %v6913 = vmul.f32 %v6433, %v6833
  %v6914 = vmul.f32 %v6434, %v6834
  %v6915 = vmul.f32 %v6435, %v6835
  %v6916 = vmul.f32 %v6436, %v6836
  %v6917 = vmul.f32 %v6437, %v6837
  %v6918 = vmul.f32 %v6438, %v6838
  %v6919 = vmul.f32 %v6439, %v6839
  %v6920 = vmul.f32 %v6440, %v6840
  %v6921 = vmul.f32 %v6441, %v6841
  %v6922 = vmul.f32 %v6442, %v6842
  %v6923 = vmul.f32 %v6443, %v6843
  %v6924 = vmul.f32 %v6444, %v6844
  %v6925 = vmul.f32 %v6445, %v6845
  %v6926 = vmul.f32 %v6446, %v6846
  %v6927 = vmul.f32 %v6447, %v6847
  %v6928 = vmul.f32 %v6448, %v6848
  %v6929 = vmul.f32 %v6449, %v6849
  %v6930 = vmul.f32 %v6450, %v6850
  %v6931 = vmul.f32 %v6451, %v6851
  %v6932 = vmul.f32 %v6452, %v6852
  %v6933 = vmul.f32 %v6453, %v6853
  %v6934 = vmul.f32 %v6454, %v6854
  %v6935 = vmul.f32 %v6455, %v6855
  %v6936 = vmul.f32 %v6456, %v6856
  %v6937 = vmul.f32 %v6457, %v6857
  %v6938 = vmul.f32 %v6458, %v6858
  %v6939 = vmul.f32 %v6459, %v6859
  %v6940 = vmul.f32 %v6460, %v6860
  %v6941 = vmul.f32 %v6461, %v6861
  %v6942 = vpack.c.bf16 %v6867, %v6862
  %v6943 = vpack.c.bf16 %v6868, %v6863
  %v6944 = vpack.c.bf16 %v6869, %v6864
  %v6945 = vpack.c.bf16 %v6870, %v6865
  %v6946 = vpack.c.bf16 %v6871, %v6866
  %v6947 = vpack.c.bf16 %v6877, %v6872
  %v6948 = vpack.c.bf16 %v6878, %v6873
  %v6949 = vpack.c.bf16 %v6879, %v6874
  %v6950 = vpack.c.bf16 %v6880, %v6875
  %v6951 = vpack.c.bf16 %v6881, %v6876
  %v6952 = vpack.c.bf16 %v6887, %v6882
  %v6953 = vpack.c.bf16 %v6888, %v6883
  %v6954 = vpack.c.bf16 %v6889, %v6884
  %v6955 = vpack.c.bf16 %v6890, %v6885
  %v6956 = vpack.c.bf16 %v6891, %v6886
  %v6957 = vpack.c.bf16 %v6897, %v6892
  %v6958 = vpack.c.bf16 %v6898, %v6893
  %v6959 = vpack.c.bf16 %v6899, %v6894
  %v6960 = vpack.c.bf16 %v6900, %v6895
  %v6961 = vpack.c.bf16 %v6901, %v6896
  %v6962 = vpack.c.bf16 %v6907, %v6902
  %v6963 = vpack.c.bf16 %v6908, %v6903
  %v6964 = vpack.c.bf16 %v6909, %v6904
  %v6965 = vpack.c.bf16 %v6910, %v6905
  %v6966 = vpack.c.bf16 %v6911, %v6906
  %v6967 = vpack.c.bf16 %v6917, %v6912
  %v6968 = vpack.c.bf16 %v6918, %v6913
  %v6969 = vpack.c.bf16 %v6919, %v6914
  %v6970 = vpack.c.bf16 %v6920, %v6915
  %v6971 = vpack.c.bf16 %v6921, %v6916
  %v6972 = vpack.c.bf16 %v6927, %v6922
  %v6973 = vpack.c.bf16 %v6928, %v6923
  %v6974 = vpack.c.bf16 %v6929, %v6924
  %v6975 = vpack.c.bf16 %v6930, %v6925
  %v6976 = vpack.c.bf16 %v6931, %v6926
  %v6977 = vpack.c.bf16 %v6937, %v6932
  %v6978 = vpack.c.bf16 %v6938, %v6933
  %v6979 = vpack.c.bf16 %v6939, %v6934
  %v6980 = vpack.c.bf16 %v6940, %v6935
  %v6981 = vpack.c.bf16 %v6941, %v6936
  %s6982 = scalar_lea.vmem %s5, 320
  %v6983 = vld [vmem:[%s6982] sm:$0xf]
  %v6984 = vld [vmem:[%s6982 + $0x4] sm:$0xf]
  %v6985 = vld [vmem:[%s6982 + $0x8] sm:$0xf]
  %v6986 = vld [vmem:[%s6982 + $0xc] sm:$0xf]
  %v6987 = vld [vmem:[%s6982 + $0x10] sm:$0xf]
  %v6988 = vld [vmem:[%s6982 + $0x14] sm:$0xf]
  %v6989 = vld [vmem:[%s6982 + $0x18] sm:$0xf]
  %v6990 = vld [vmem:[%s6982 + $0x1c] sm:$0xf]
  %v6991 = vld [vmem:[%s6982 + $0x20] sm:$0xf]
  %v6992 = vld [vmem:[%s6982 + $0x24] sm:$0xf]
  %v6993 = vld [vmem:[%s6982 + $0x28] sm:$0xf]
  %v6994 = vld [vmem:[%s6982 + $0x2c] sm:$0xf]
  %v6995 = vld [vmem:[%s6982 + $0x30] sm:$0xf]
  %v6996 = vld [vmem:[%s6982 + $0x34] sm:$0xf]
  %v6997 = vld [vmem:[%s6982 + $0x38] sm:$0xf]
  %v6998 = vld [vmem:[%s6982 + $0x3c] sm:$0xf]
  %v6999 = vld [vmem:[%s6982 + $0x40] sm:$0xf]
  %v7000 = vld [vmem:[%s6982 + $0x44] sm:$0xf]
  %v7001 = vld [vmem:[%s6982 + $0x48] sm:$0xf]
  %v7002 = vld [vmem:[%s6982 + $0x4c] sm:$0xf]
  %v7003 = vld [vmem:[%s6982 + $0x50] sm:$0xf]
  %v7004 = vld [vmem:[%s6982 + $0x54] sm:$0xf]
  %v7005 = vld [vmem:[%s6982 + $0x58] sm:$0xf]
  %v7006 = vld [vmem:[%s6982 + $0x5c] sm:$0xf]
  %v7007 = vld [vmem:[%s6982 + $0x60] sm:$0xf]
  %v7008 = vld [vmem:[%s6982 + $0x64] sm:$0xf]
  %v7009 = vld [vmem:[%s6982 + $0x68] sm:$0xf]
  %v7010 = vld [vmem:[%s6982 + $0x6c] sm:$0xf]
  %v7011 = vld [vmem:[%s6982 + $0x70] sm:$0xf]
  %v7012 = vld [vmem:[%s6982 + $0x74] sm:$0xf]
  %v7013 = vld [vmem:[%s6982 + $0x78] sm:$0xf]
  %v7014 = vld [vmem:[%s6982 + $0x7c] sm:$0xf]
  %v7015 = vld [vmem:[%s6982 + $0x80] sm:$0xf]
  %v7016 = vld [vmem:[%s6982 + $0x84] sm:$0xf]
  %v7017 = vld [vmem:[%s6982 + $0x88] sm:$0xf]
  %v7018 = vld [vmem:[%s6982 + $0x8c] sm:$0xf]
  %v7019 = vld [vmem:[%s6982 + $0x90] sm:$0xf]
  %v7020 = vld [vmem:[%s6982 + $0x94] sm:$0xf]
  %v7021 = vld [vmem:[%s6982 + $0x98] sm:$0xf]
  %v7022 = vld [vmem:[%s6982 + $0x9c] sm:$0xf]
  %v7023 = vld [vmem:[%s6982 + $0xa0] sm:$0xf]
  %v7024 = vld [vmem:[%s6982 + $0xa4] sm:$0xf]
  %v7025 = vld [vmem:[%s6982 + $0xa8] sm:$0xf]
  %v7026 = vld [vmem:[%s6982 + $0xac] sm:$0xf]
  %v7027 = vld [vmem:[%s6982 + $0xb0] sm:$0xf]
  %v7028 = vld [vmem:[%s6982 + $0xb4] sm:$0xf]
  %v7029 = vld [vmem:[%s6982 + $0xb8] sm:$0xf]
  %v7030 = vld [vmem:[%s6982 + $0xbc] sm:$0xf]
  %v7031 = vld [vmem:[%s6982 + $0xc0] sm:$0xf]
  %v7032 = vld [vmem:[%s6982 + $0xc4] sm:$0xf]
  %v7033 = vld [vmem:[%s6982 + $0xc8] sm:$0xf]
  %v7034 = vld [vmem:[%s6982 + $0xcc] sm:$0xf]
  %v7035 = vld [vmem:[%s6982 + $0xd0] sm:$0xf]
  %v7036 = vld [vmem:[%s6982 + $0xd4] sm:$0xf]
  %v7037 = vld [vmem:[%s6982 + $0xd8] sm:$0xf]
  %v7038 = vld [vmem:[%s6982 + $0xdc] sm:$0xf]
  %v7039 = vld [vmem:[%s6982 + $0xe0] sm:$0xf]
  %v7040 = vld [vmem:[%s6982 + $0xe4] sm:$0xf]
  %v7041 = vld [vmem:[%s6982 + $0xe8] sm:$0xf]
  %v7042 = vld [vmem:[%s6982 + $0xec] sm:$0xf]
  %v7043 = vld [vmem:[%s6982 + $0xf0] sm:$0xf]
  %v7044 = vld [vmem:[%s6982 + $0xf4] sm:$0xf]
  %v7045 = vld [vmem:[%s6982 + $0xf8] sm:$0xf]
  %v7046 = vld [vmem:[%s6982 + $0xfc] sm:$0xf]
  %v7047 = vld [vmem:[%s6982 + $0x100] sm:$0xf]
  %v7048 = vld [vmem:[%s6982 + $0x104] sm:$0xf]
  %v7049 = vld [vmem:[%s6982 + $0x108] sm:$0xf]
  %v7050 = vld [vmem:[%s6982 + $0x10c] sm:$0xf]
  %v7051 = vld [vmem:[%s6982 + $0x110] sm:$0xf]
  %v7052 = vld [vmem:[%s6982 + $0x114] sm:$0xf]
  %v7053 = vld [vmem:[%s6982 + $0x118] sm:$0xf]
  %v7054 = vld [vmem:[%s6982 + $0x11c] sm:$0xf]
  %v7055 = vld [vmem:[%s6982 + $0x120] sm:$0xf]
  %v7056 = vld [vmem:[%s6982 + $0x124] sm:$0xf]
  %v7057 = vld [vmem:[%s6982 + $0x128] sm:$0xf]
  %v7058 = vld [vmem:[%s6982 + $0x12c] sm:$0xf]
  %v7059 = vld [vmem:[%s6982 + $0x130] sm:$0xf]
  %v7060 = vld [vmem:[%s6982 + $0x134] sm:$0xf]
  %v7061 = vld [vmem:[%s6982 + $0x138] sm:$0xf]
  %v7062 = vld [vmem:[%s6982 + $0x13c] sm:$0xf]
  %v7063 = vld [vmem:[%s6 + $0x1] sm:$0x1]
  %v7064 = vlaneseq
  %v7065 = vshrl.u32 %v7064, 7
  %v7066 = vsub.s32 0, %v7065
  %v7067 = vrot.slane %v7063, %v7066
  %v7148 = vunpack.c.l.b16 %v6983
  %v7149 = vunpack.c.l.b16 %v6984
  %v7150 = vunpack.c.l.b16 %v6985
  %v7151 = vunpack.c.l.b16 %v6986
  %v7152 = vunpack.c.l.b16 %v6987
  %v7153 = vunpack.c.l.b16 %v6988
  %v7154 = vunpack.c.l.b16 %v6989
  %v7155 = vunpack.c.l.b16 %v6990
  %v7156 = vunpack.c.l.b16 %v6991
  %v7157 = vunpack.c.l.b16 %v6992
  %v7158 = vunpack.c.l.b16 %v6993
  %v7159 = vunpack.c.l.b16 %v6994
  %v7160 = vunpack.c.l.b16 %v6995
  %v7161 = vunpack.c.l.b16 %v6996
  %v7162 = vunpack.c.l.b16 %v6997
  %v7163 = vunpack.c.l.b16 %v6998
  %v7164 = vunpack.c.l.b16 %v6999
  %v7165 = vunpack.c.l.b16 %v7000
  %v7166 = vunpack.c.l.b16 %v7001
  %v7167 = vunpack.c.l.b16 %v7002
  %v7168 = vunpack.c.l.b16 %v7003
  %v7169 = vunpack.c.l.b16 %v7004
  %v7170 = vunpack.c.l.b16 %v7005
  %v7171 = vunpack.c.l.b16 %v7006
  %v7172 = vunpack.c.l.b16 %v7007
  %v7173 = vunpack.c.l.b16 %v7008
  %v7174 = vunpack.c.l.b16 %v7009
  %v7175 = vunpack.c.l.b16 %v7010
  %v7176 = vunpack.c.l.b16 %v7011
  %v7177 = vunpack.c.l.b16 %v7012
  %v7178 = vunpack.c.l.b16 %v7013
  %v7179 = vunpack.c.l.b16 %v7014
  %v7180 = vunpack.c.l.b16 %v7015
  %v7181 = vunpack.c.l.b16 %v7016
  %v7182 = vunpack.c.l.b16 %v7017
  %v7183 = vunpack.c.l.b16 %v7018
  %v7184 = vunpack.c.l.b16 %v7019
  %v7185 = vunpack.c.l.b16 %v7020
  %v7186 = vunpack.c.l.b16 %v7021
  %v7187 = vunpack.c.l.b16 %v7022
  %v7188 = vunpack.c.l.b16 %v7023
  %v7189 = vunpack.c.l.b16 %v7024
  %v7190 = vunpack.c.l.b16 %v7025
  %v7191 = vunpack.c.l.b16 %v7026
  %v7192 = vunpack.c.l.b16 %v7027
  %v7193 = vunpack.c.l.b16 %v7028
  %v7194 = vunpack.c.l.b16 %v7029
  %v7195 = vunpack.c.l.b16 %v7030
  %v7196 = vunpack.c.l.b16 %v7031
  %v7197 = vunpack.c.l.b16 %v7032
  %v7198 = vunpack.c.l.b16 %v7033
  %v7199 = vunpack.c.l.b16 %v7034
  %v7200 = vunpack.c.l.b16 %v7035
  %v7201 = vunpack.c.l.b16 %v7036
  %v7202 = vunpack.c.l.b16 %v7037
  %v7203 = vunpack.c.l.b16 %v7038
  %v7204 = vunpack.c.l.b16 %v7039
  %v7205 = vunpack.c.l.b16 %v7040
  %v7206 = vunpack.c.l.b16 %v7041
  %v7207 = vunpack.c.l.b16 %v7042
  %v7208 = vunpack.c.l.b16 %v7043
  %v7209 = vunpack.c.l.b16 %v7044
  %v7210 = vunpack.c.l.b16 %v7045
  %v7211 = vunpack.c.l.b16 %v7046
  %v7212 = vunpack.c.l.b16 %v7047
  %v7213 = vunpack.c.l.b16 %v7048
  %v7214 = vunpack.c.l.b16 %v7049
  %v7215 = vunpack.c.l.b16 %v7050
  %v7216 = vunpack.c.l.b16 %v7051
  %v7217 = vunpack.c.l.b16 %v7052
  %v7218 = vunpack.c.l.b16 %v7053
  %v7219 = vunpack.c.l.b16 %v7054
  %v7220 = vunpack.c.l.b16 %v7055
  %v7221 = vunpack.c.l.b16 %v7056
  %v7222 = vunpack.c.l.b16 %v7057
  %v7223 = vunpack.c.l.b16 %v7058
  %v7224 = vunpack.c.l.b16 %v7059
  %v7225 = vunpack.c.l.b16 %v7060
  %v7226 = vunpack.c.l.b16 %v7061
  %v7227 = vunpack.c.l.b16 %v7062
  %v7228 = vpack.c.b16 %v7149, %v7148
  %v7229 = vpack.c.b16 %v7151, %v7150
  %v7230 = vpack.c.b16 %v7153, %v7152
  %v7231 = vpack.c.b16 %v7155, %v7154
  %v7232 = vpack.c.b16 %v7157, %v7156
  %v7233 = vpack.c.b16 %v7159, %v7158
  %v7234 = vpack.c.b16 %v7161, %v7160
  %v7235 = vpack.c.b16 %v7163, %v7162
  %v7236 = vpack.c.b16 %v7165, %v7164
  %v7237 = vpack.c.b16 %v7167, %v7166
  %v7238 = vpack.c.b16 %v7169, %v7168
  %v7239 = vpack.c.b16 %v7171, %v7170
  %v7240 = vpack.c.b16 %v7173, %v7172
  %v7241 = vpack.c.b16 %v7175, %v7174
  %v7242 = vpack.c.b16 %v7177, %v7176
  %v7243 = vpack.c.b16 %v7179, %v7178
  %v7244 = vpack.c.b16 %v7181, %v7180
  %v7245 = vpack.c.b16 %v7183, %v7182
  %v7246 = vpack.c.b16 %v7185, %v7184
  %v7247 = vpack.c.b16 %v7187, %v7186
  %v7248 = vpack.c.b16 %v7189, %v7188
  %v7249 = vpack.c.b16 %v7191, %v7190
  %v7250 = vpack.c.b16 %v7193, %v7192
  %v7251 = vpack.c.b16 %v7195, %v7194
  %v7252 = vpack.c.b16 %v7197, %v7196
  %v7253 = vpack.c.b16 %v7199, %v7198
  %v7254 = vpack.c.b16 %v7201, %v7200
  %v7255 = vpack.c.b16 %v7203, %v7202
  %v7256 = vpack.c.b16 %v7205, %v7204
  %v7257 = vpack.c.b16 %v7207, %v7206
  %v7258 = vpack.c.b16 %v7209, %v7208
  %v7259 = vpack.c.b16 %v7211, %v7210
  %v7260 = vpack.c.b16 %v7213, %v7212
  %v7261 = vpack.c.b16 %v7215, %v7214
  %v7262 = vpack.c.b16 %v7217, %v7216
  %v7263 = vpack.c.b16 %v7219, %v7218
  %v7264 = vpack.c.b16 %v7221, %v7220
  %v7265 = vpack.c.b16 %v7223, %v7222
  %v7266 = vpack.c.b16 %v7225, %v7224
  %v7267 = vpack.c.b16 %v7227, %v7226
  %7308 = vmatprep.subr.bf16.mxu0 0
  %7309 = vmatpush1.bf16.msra.mxu0 %v7228
  %7310 = vmatprep.subr.bf16.mxu0 0
  %7311 = vmatpush1.bf16.msra.mxu0 %v7229
  %7312 = vmatprep.subr.bf16.mxu0 0
  %7313 = vmatpush1.bf16.msra.mxu0 %v7230
  %7314 = vmatprep.subr.bf16.mxu0 0
  %7315 = vmatpush1.bf16.msra.mxu0 %v7231
  %7316 = vmatprep.subr.bf16.mxu0 0
  %7317 = vmatpush1.bf16.msra.mxu0 %v7232
  %7318 = vmatprep.subr.bf16.mxu0 0
  %7319 = vmatpush1.bf16.msra.mxu0 %v7233
  %7320 = vmatprep.subr.bf16.mxu0 0
  %7321 = vmatpush1.bf16.msra.mxu0 %v7234
  %7322 = vmatprep.subr.bf16.mxu0 0
  %7323 = vmatpush1.bf16.msra.mxu0 %v7235
  %7324 = vmatprep.subr.bf16.mxu0 0
  %7325 = vmatpush1.bf16.msra.mxu0 %v7236
  %7326 = vmatprep.subr.bf16.mxu0 0
  %7327 = vmatpush1.bf16.msra.mxu0 %v7237
  %7328 = vmatprep.subr.bf16.mxu0 0
  %7329 = vmatpush1.bf16.msra.mxu0 %v7238
  %7330 = vmatprep.subr.bf16.mxu0 0
  %7331 = vmatpush1.bf16.msra.mxu0 %v7239
  %7332 = vmatprep.subr.bf16.mxu0 0
  %7333 = vmatpush1.bf16.msra.mxu0 %v7240
  %7334 = vmatprep.subr.bf16.mxu0 0
  %7335 = vmatpush1.bf16.msra.mxu0 %v7241
  %7336 = vmatprep.subr.bf16.mxu0 0
  %7337 = vmatpush1.bf16.msra.mxu0 %v7242
  %7338 = vmatprep.subr.bf16.mxu0 0
  %7339 = vmatpush1.bf16.msra.mxu0 %v7243
  %7340 = vmatprep.mubr.bf16.mxu0 %v6943
  %7341 = vmatmul.mubr.bf16.gmra.mrb[0].mxu0 %v6942
  %v7342 = vpop.f32.mrb[0].mxu0
  %v7343 = vadd.f32 %v7067, %v7342
  %v7344 = vpop.f32.mrb[0].mxu0
  %v7345 = vpop.f32.mrb[0].mxu0
  %v7346 = vadd.f32 %v7067, %v7345
  %v7347 = vpop.f32.mrb[0].mxu0
  %7348 = vmatprep.mubr.bf16.mxu0 %v6948
  %7349 = vmatmul.mubr.bf16.gmra.mrb[0].mxu0 %v6947
  %v7350 = vpop.f32.mrb[0].mxu0
  %v7351 = vadd.f32 %v7067, %v7350
  %v7352 = vpop.f32.mrb[0].mxu0
  %v7353 = vpop.f32.mrb[0].mxu0
  %v7354 = vadd.f32 %v7067, %v7353
  %v7355 = vpop.f32.mrb[0].mxu0
  %7356 = vmatprep.mubr.bf16.mxu0 %v6953
  %7357 = vmatmul.mubr.bf16.gmra.mrb[0].mxu0 %v6952
  %v7358 = vpop.f32.mrb[0].mxu0
  %v7359 = vadd.f32 %v7067, %v7358
  %v7360 = vpop.f32.mrb[0].mxu0
  %v7361 = vpop.f32.mrb[0].mxu0
  %v7362 = vadd.f32 %v7067, %v7361
  %v7363 = vpop.f32.mrb[0].mxu0
  %7364 = vmatprep.mubr.bf16.mxu0 %v6958
  %7365 = vmatmul.mubr.bf16.gmra.mrb[0].mxu0 %v6957
  %v7366 = vpop.f32.mrb[0].mxu0
  %v7367 = vadd.f32 %v7067, %v7366
  %v7368 = vpop.f32.mrb[0].mxu0
  %v7369 = vpop.f32.mrb[0].mxu0
  %v7370 = vadd.f32 %v7067, %v7369
  %v7371 = vpop.f32.mrb[0].mxu0
  %7372 = vmatprep.mubr.bf16.mxu0 %v6963
  %7373 = vmatmul.mubr.bf16.gmra.mrb[0].mxu0 %v6962
  %v7374 = vpop.f32.mrb[0].mxu0
  %v7375 = vadd.f32 %v7067, %v7374
  %v7376 = vpop.f32.mrb[0].mxu0
  %v7377 = vpop.f32.mrb[0].mxu0
  %v7378 = vadd.f32 %v7067, %v7377
  %v7379 = vpop.f32.mrb[0].mxu0
  %7380 = vmatprep.mubr.bf16.mxu0 %v6968
  %7381 = vmatmul.mubr.bf16.gmra.mrb[0].mxu0 %v6967
  %v7382 = vpop.f32.mrb[0].mxu0
  %v7383 = vadd.f32 %v7067, %v7382
  %v7384 = vpop.f32.mrb[0].mxu0
  %v7385 = vpop.f32.mrb[0].mxu0
  %v7386 = vadd.f32 %v7067, %v7385
  %v7387 = vpop.f32.mrb[0].mxu0
  %7388 = vmatprep.mubr.bf16.mxu0 %v6973
  %7389 = vmatmul.mubr.bf16.gmra.mrb[0].mxu0 %v6972
  %v7390 = vpop.f32.mrb[0].mxu0
  %v7391 = vadd.f32 %v7067, %v7390
  %v7392 = vpop.f32.mrb[0].mxu0
  %v7393 = vpop.f32.mrb[0].mxu0
  %v7394 = vadd.f32 %v7067, %v7393
  %v7395 = vpop.f32.mrb[0].mxu0
  %7396 = vmatprep.mubr.bf16.mxu0 %v6978
  %7397 = vmatmul.mubr.bf16.gmra.mrb[0].mxu0 %v6977
  %v7398 = vpop.f32.mrb[0].mxu0
  %v7399 = vadd.f32 %v7067, %v7398
  %v7400 = vpop.f32.mrb[0].mxu0
  %v7401 = vpop.f32.mrb[0].mxu0
  %v7402 = vadd.f32 %v7067, %v7401
  %v7403 = vpop.f32.mrb[0].mxu0
  %7404 = vdwg.mxu0
  %7405 = vmatprep.subr.bf16.mxu0 0
  %7406 = vmatpush1.bf16.msra.mxu0 %v7244
  %7407 = vmatprep.subr.bf16.mxu0 0
  %7408 = vmatpush1.bf16.msra.mxu0 %v7245
  %7409 = vmatprep.subr.bf16.mxu0 0
  %7410 = vmatpush1.bf16.msra.mxu0 %v7246
  %7411 = vmatprep.subr.bf16.mxu0 0
  %7412 = vmatpush1.bf16.msra.mxu0 %v7247
  %7413 = vmatprep.subr.bf16.mxu0 0
  %7414 = vmatpush1.bf16.msra.mxu0 %v7248
  %7415 = vmatprep.subr.bf16.mxu0 0
  %7416 = vmatpush1.bf16.msra.mxu0 %v7249
  %7417 = vmatprep.subr.bf16.mxu0 0
  %7418 = vmatpush1.bf16.msra.mxu0 %v7250
  %7419 = vmatprep.subr.bf16.mxu0 0
  %7420 = vmatpush1.bf16.msra.mxu0 %v7251
  %7421 = vmatprep.subr.bf16.mxu0 0
  %7422 = vmatpush1.bf16.msra.mxu0 %v7252
  %7423 = vmatprep.subr.bf16.mxu0 0
  %7424 = vmatpush1.bf16.msra.mxu0 %v7253
  %7425 = vmatprep.subr.bf16.mxu0 0
  %7426 = vmatpush1.bf16.msra.mxu0 %v7254
  %7427 = vmatprep.subr.bf16.mxu0 0
  %7428 = vmatpush1.bf16.msra.mxu0 %v7255
  %7429 = vmatprep.subr.bf16.mxu0 0
  %7430 = vmatpush1.bf16.msra.mxu0 %v7256
  %7431 = vmatprep.subr.bf16.mxu0 0
  %7432 = vmatpush1.bf16.msra.mxu0 %v7257
  %7433 = vmatprep.subr.bf16.mxu0 0
  %7434 = vmatpush1.bf16.msra.mxu0 %v7258
  %7435 = vmatprep.subr.bf16.mxu0 0
  %7436 = vmatpush1.bf16.msra.mxu0 %v7259
  %7437 = vmatprep.mubr.bf16.mxu0 %v6945
  %7438 = vmatmul.mubr.bf16.gmra.mrb[0].mxu0 %v6944
  %v7439 = vpop.f32.mrb[0].mxu0
  %v7440 = vadd.f32 %v7343, %v7439
  %v7441 = vpop.f32.mrb[0].mxu0
  %v7442 = vpop.f32.mrb[0].mxu0
  %v7443 = vadd.f32 %v7346, %v7442
  %v7444 = vpop.f32.mrb[0].mxu0
  %7445 = vmatprep.mubr.bf16.mxu0 %v6950
  %7446 = vmatmul.mubr.bf16.gmra.mrb[0].mxu0 %v6949
  %v7447 = vpop.f32.mrb[0].mxu0
  %v7448 = vadd.f32 %v7351, %v7447
  %v7449 = vpop.f32.mrb[0].mxu0
  %v7450 = vpop.f32.mrb[0].mxu0
  %v7451 = vadd.f32 %v7354, %v7450
  %v7452 = vpop.f32.mrb[0].mxu0
  %7453 = vmatprep.mubr.bf16.mxu0 %v6955
  %7454 = vmatmul.mubr.bf16.gmra.mrb[0].mxu0 %v6954
  %v7455 = vpop.f32.mrb[0].mxu0
  %v7456 = vadd.f32 %v7359, %v7455
  %v7457 = vpop.f32.mrb[0].mxu0
  %v7458 = vpop.f32.mrb[0].mxu0
  %v7459 = vadd.f32 %v7362, %v7458
  %v7460 = vpop.f32.mrb[0].mxu0
  %7461 = vmatprep.mubr.bf16.mxu0 %v6960
  %7462 = vmatmul.mubr.bf16.gmra.mrb[0].mxu0 %v6959
  %v7463 = vpop.f32.mrb[0].mxu0
  %v7464 = vadd.f32 %v7367, %v7463
  %v7465 = vpop.f32.mrb[0].mxu0
  %v7466 = vpop.f32.mrb[0].mxu0
  %v7467 = vadd.f32 %v7370, %v7466
  %v7468 = vpop.f32.mrb[0].mxu0
  %7469 = vmatprep.mubr.bf16.mxu0 %v6965
  %7470 = vmatmul.mubr.bf16.gmra.mrb[0].mxu0 %v6964
  %v7471 = vpop.f32.mrb[0].mxu0
  %v7472 = vadd.f32 %v7375, %v7471
  %v7473 = vpop.f32.mrb[0].mxu0
  %v7474 = vpop.f32.mrb[0].mxu0
  %v7475 = vadd.f32 %v7378, %v7474
  %v7476 = vpop.f32.mrb[0].mxu0
  %7477 = vmatprep.mubr.bf16.mxu0 %v6970
  %7478 = vmatmul.mubr.bf16.gmra.mrb[0].mxu0 %v6969
  %v7479 = vpop.f32.mrb[0].mxu0
  %v7480 = vadd.f32 %v7383, %v7479
  %v7481 = vpop.f32.mrb[0].mxu0
  %v7482 = vpop.f32.mrb[0].mxu0
  %v7483 = vadd.f32 %v7386, %v7482
  %v7484 = vpop.f32.mrb[0].mxu0
  %7485 = vmatprep.mubr.bf16.mxu0 %v6975
  %7486 = vmatmul.mubr.bf16.gmra.mrb[0].mxu0 %v6974
  %v7487 = vpop.f32.mrb[0].mxu0
  %v7488 = vadd.f32 %v7391, %v7487
  %v7489 = vpop.f32.mrb[0].mxu0
  %v7490 = vpop.f32.mrb[0].mxu0
  %v7491 = vadd.f32 %v7394, %v7490
  %v7492 = vpop.f32.mrb[0].mxu0
  %7493 = vmatprep.mubr.bf16.mxu0 %v6980
  %7494 = vmatmul.mubr.bf16.gmra.mrb[0].mxu0 %v6979
  %v7495 = vpop.f32.mrb[0].mxu0
  %v7496 = vadd.f32 %v7399, %v7495
  %v7497 = vpop.f32.mrb[0].mxu0
  %v7498 = vpop.f32.mrb[0].mxu0
  %v7499 = vadd.f32 %v7402, %v7498
  %v7500 = vpop.f32.mrb[0].mxu0
  %7501 = vdwg.mxu0
  %7502 = vmatprep.subr.bf16.mxu0 0
  %7503 = vmatpush1.bf16.msra.mxu0 %v7260
  %7504 = vmatprep.subr.bf16.mxu0 0
  %7505 = vmatpush1.bf16.msra.mxu0 %v7261
  %7506 = vmatprep.subr.bf16.mxu0 0
  %7507 = vmatpush1.bf16.msra.mxu0 %v7262
  %7508 = vmatprep.subr.bf16.mxu0 0
  %7509 = vmatpush1.bf16.msra.mxu0 %v7263
  %7510 = vmatprep.subr.bf16.mxu0 0
  %7511 = vmatpush1.bf16.msra.mxu0 %v7264
  %7512 = vmatprep.subr.bf16.mxu0 0
  %7513 = vmatpush1.bf16.msra.mxu0 %v7265
  %7514 = vmatprep.subr.bf16.mxu0 0
  %7515 = vmatpush1.bf16.msra.mxu0 %v7266
  %7516 = vmatprep.subr.bf16.mxu0 0
  %7517 = vmatpush1.bf16.msra.mxu0 %v7267
  %7518 = vmatprep.subr.bf16.mxu0 0
  %7519 = vmatpush1.bf16.msra.mxu0 0
  %7520 = vmatprep.subr.bf16.mxu0 0
  %7521 = vmatpush1.bf16.msra.mxu0 0
  %7522 = vmatprep.subr.bf16.mxu0 0
  %7523 = vmatpush1.bf16.msra.mxu0 0
  %7524 = vmatprep.subr.bf16.mxu0 0
  %7525 = vmatpush1.bf16.msra.mxu0 0
  %7526 = vmatprep.subr.bf16.mxu0 0
  %7527 = vmatpush1.bf16.msra.mxu0 0
  %7528 = vmatprep.subr.bf16.mxu0 0
  %7529 = vmatpush1.bf16.msra.mxu0 0
  %7530 = vmatprep.subr.bf16.mxu0 0
  %7531 = vmatpush1.bf16.msra.mxu0 0
  %7532 = vmatprep.subr.bf16.mxu0 0
  %7533 = vmatpush1.bf16.msra.mxu0 0
  %7534 = vmatprep.mubr.bf16.mxu0 0
  %7535 = vmatmul.mubr.bf16.gmra.mrb[0].mxu0 %v6946
  %v7536 = vpop.f32.mrb[0].mxu0
  %v7537 = vadd.f32 %v7440, %v7536
  %v7538 = vpop.f32.mrb[0].mxu0
  %v7539 = vpop.f32.mrb[0].mxu0
  %v7540 = vadd.f32 %v7443, %v7539
  %v7541 = vpop.f32.mrb[0].mxu0
  %7542 = vmatprep.mubr.bf16.mxu0 0
  %7543 = vmatmul.mubr.bf16.gmra.mrb[0].mxu0 %v6951
  %v7544 = vpop.f32.mrb[0].mxu0
  %v7545 = vadd.f32 %v7448, %v7544
  %v7546 = vpop.f32.mrb[0].mxu0
  %v7547 = vpop.f32.mrb[0].mxu0
  %v7548 = vadd.f32 %v7451, %v7547
  %v7549 = vpop.f32.mrb[0].mxu0
  %7550 = vmatprep.mubr.bf16.mxu0 0
  %7551 = vmatmul.mubr.bf16.gmra.mrb[0].mxu0 %v6956
  %v7552 = vpop.f32.mrb[0].mxu0
  %v7553 = vadd.f32 %v7456, %v7552
  %v7554 = vpop.f32.mrb[0].mxu0
  %v7555 = vpop.f32.mrb[0].mxu0
  %v7556 = vadd.f32 %v7459, %v7555
  %v7557 = vpop.f32.mrb[0].mxu0
  %7558 = vmatprep.mubr.bf16.mxu0 0
  %7559 = vmatmul.mubr.bf16.gmra.mrb[0].mxu0 %v6961
  %v7560 = vpop.f32.mrb[0].mxu0
  %v7561 = vadd.f32 %v7464, %v7560
  %v7562 = vpop.f32.mrb[0].mxu0
  %v7563 = vpop.f32.mrb[0].mxu0
  %v7564 = vadd.f32 %v7467, %v7563
  %v7565 = vpop.f32.mrb[0].mxu0
  %7566 = vmatprep.mubr.bf16.mxu0 0
  %7567 = vmatmul.mubr.bf16.gmra.mrb[0].mxu0 %v6966
  %v7568 = vpop.f32.mrb[0].mxu0
  %v7569 = vadd.f32 %v7472, %v7568
  %v7570 = vpop.f32.mrb[0].mxu0
  %v7571 = vpop.f32.mrb[0].mxu0
  %v7572 = vadd.f32 %v7475, %v7571
  %v7573 = vpop.f32.mrb[0].mxu0
  %7574 = vmatprep.mubr.bf16.mxu0 0
  %7575 = vmatmul.mubr.bf16.gmra.mrb[0].mxu0 %v6971
  %v7576 = vpop.f32.mrb[0].mxu0
  %v7577 = vadd.f32 %v7480, %v7576
  %v7578 = vpop.f32.mrb[0].mxu0
  %v7579 = vpop.f32.mrb[0].mxu0
  %v7580 = vadd.f32 %v7483, %v7579
  %v7581 = vpop.f32.mrb[0].mxu0
  %7582 = vmatprep.mubr.bf16.mxu0 0
  %7583 = vmatmul.mubr.bf16.gmra.mrb[0].mxu0 %v6976
  %v7584 = vpop.f32.mrb[0].mxu0
  %v7585 = vadd.f32 %v7488, %v7584
  %v7586 = vpop.f32.mrb[0].mxu0
  %v7587 = vpop.f32.mrb[0].mxu0
  %v7588 = vadd.f32 %v7491, %v7587
  %v7589 = vpop.f32.mrb[0].mxu0
  %7590 = vmatprep.mubr.bf16.mxu0 0
  %7591 = vmatmul.mubr.bf16.gmra.mrb[0].mxu0 %v6981
  %v7592 = vpop.f32.mrb[0].mxu0
  %v7593 = vadd.f32 %v7496, %v7592
  %v7594 = vpop.f32.mrb[0].mxu0
  %v7595 = vpop.f32.mrb[0].mxu0
  %v7596 = vadd.f32 %v7499, %v7595
  %v7597 = vpop.f32.mrb[0].mxu0
  %7598 = vdwg.mxu0
  %v7599 = vxor.u32 %v7537, 2147483648
  %v7600 = vxor.u32 %v7540, 2147483648
  %v7601 = vxor.u32 %v7545, 2147483648
  %v7602 = vxor.u32 %v7548, 2147483648
  %v7603 = vxor.u32 %v7553, 2147483648
  %v7604 = vxor.u32 %v7556, 2147483648
  %v7605 = vxor.u32 %v7561, 2147483648
  %v7606 = vxor.u32 %v7564, 2147483648
  %v7607 = vxor.u32 %v7569, 2147483648
  %v7608 = vxor.u32 %v7572, 2147483648
  %v7609 = vxor.u32 %v7577, 2147483648
  %v7610 = vxor.u32 %v7580, 2147483648
  %v7611 = vxor.u32 %v7585, 2147483648
  %v7612 = vxor.u32 %v7588, 2147483648
  %v7613 = vxor.u32 %v7593, 2147483648
  %v7614 = vxor.u32 %v7596, 2147483648
  %v7615 = vmul.f32 %v7599, 1.442695
  %v7616 = vpow.pop %v7615
  %v7617 = vmul.f32 %v7600, 1.442695
  %v7618 = vpow.pop %v7617
  %v7619 = vmul.f32 %v7601, 1.442695
  %v7620 = vpow.pop %v7619
  %v7621 = vmul.f32 %v7602, 1.442695
  %v7622 = vpow.pop %v7621
  %v7623 = vmul.f32 %v7603, 1.442695
  %v7624 = vpow.pop %v7623
  %v7625 = vmul.f32 %v7604, 1.442695
  %v7626 = vpow.pop %v7625
  %v7627 = vmul.f32 %v7605, 1.442695
  %v7628 = vpow.pop %v7627
  %v7629 = vmul.f32 %v7606, 1.442695
  %v7630 = vpow.pop %v7629
  %v7631 = vmul.f32 %v7607, 1.442695
  %v7632 = vpow.pop %v7631
  %v7633 = vmul.f32 %v7608, 1.442695
  %v7634 = vpow.pop %v7633
  %v7635 = vmul.f32 %v7609, 1.442695
  %v7636 = vpow.pop %v7635
  %v7637 = vmul.f32 %v7610, 1.442695
  %v7638 = vpow.pop %v7637
  %v7639 = vmul.f32 %v7611, 1.442695
  %v7640 = vpow.pop %v7639
  %v7641 = vmul.f32 %v7612, 1.442695
  %v7642 = vpow.pop %v7641
  %v7643 = vmul.f32 %v7613, 1.442695
  %v7644 = vpow.pop %v7643
  %v7645 = vmul.f32 %v7614, 1.442695
  %v7646 = vpow.pop %v7645
  %v7647 = vadd.f32 %v7616, 1.0
  %v7648 = vadd.f32 %v7618, 1.0
  %v7649 = vadd.f32 %v7620, 1.0
  %v7650 = vadd.f32 %v7622, 1.0
  %v7651 = vadd.f32 %v7624, 1.0
  %v7652 = vadd.f32 %v7626, 1.0
  %v7653 = vadd.f32 %v7628, 1.0
  %v7654 = vadd.f32 %v7630, 1.0
  %v7655 = vadd.f32 %v7632, 1.0
  %v7656 = vadd.f32 %v7634, 1.0
  %v7657 = vadd.f32 %v7636, 1.0
  %v7658 = vadd.f32 %v7638, 1.0
  %v7659 = vadd.f32 %v7640, 1.0
  %v7660 = vadd.f32 %v7642, 1.0
  %v7661 = vadd.f32 %v7644, 1.0
  %v7662 = vadd.f32 %v7646, 1.0
  %v7663 = vrcp.pop %v7647
  %v7664 = vmul.f32 1.0, %v7663
  %v7665 = vrcp.pop %v7648
  %v7666 = vmul.f32 1.0, %v7665
  %v7667 = vrcp.pop %v7649
  %v7668 = vmul.f32 1.0, %v7667
  %v7669 = vrcp.pop %v7650
  %v7670 = vmul.f32 1.0, %v7669
  %v7671 = vrcp.pop %v7651
  %v7672 = vmul.f32 1.0, %v7671
  %v7673 = vrcp.pop %v7652
  %v7674 = vmul.f32 1.0, %v7673
  %v7675 = vrcp.pop %v7653
  %v7676 = vmul.f32 1.0, %v7675
  %v7677 = vrcp.pop %v7654
  %v7678 = vmul.f32 1.0, %v7677
  %v7679 = vrcp.pop %v7655
  %v7680 = vmul.f32 1.0, %v7679
  %v7681 = vrcp.pop %v7656
  %v7682 = vmul.f32 1.0, %v7681
  %v7683 = vrcp.pop %v7657
  %v7684 = vmul.f32 1.0, %v7683
  %v7685 = vrcp.pop %v7658
  %v7686 = vmul.f32 1.0, %v7685
  %v7687 = vrcp.pop %v7659
  %v7688 = vmul.f32 1.0, %v7687
  %v7689 = vrcp.pop %v7660
  %v7690 = vmul.f32 1.0, %v7689
  %v7691 = vrcp.pop %v7661
  %v7692 = vmul.f32 1.0, %v7691
  %v7693 = vrcp.pop %v7662
  %v7694 = vmul.f32 1.0, %v7693
  %v7695 = vmul.f32 %v7537, %v7664
  %v7696 = vmul.f32 %v7540, %v7666
  %v7697 = vmul.f32 %v7545, %v7668
  %v7698 = vmul.f32 %v7548, %v7670
  %v7699 = vmul.f32 %v7553, %v7672
  %v7700 = vmul.f32 %v7556, %v7674
  %v7701 = vmul.f32 %v7561, %v7676
  %v7702 = vmul.f32 %v7564, %v7678
  %v7703 = vmul.f32 %v7569, %v7680
  %v7704 = vmul.f32 %v7572, %v7682
  %v7705 = vmul.f32 %v7577, %v7684
  %v7706 = vmul.f32 %v7580, %v7686
  %v7707 = vmul.f32 %v7585, %v7688
  %v7708 = vmul.f32 %v7588, %v7690
  %v7709 = vmul.f32 %v7593, %v7692
  %v7710 = vmul.f32 %v7596, %v7694
  %s7711 = scalar_lea.vmem %s9, 16
  %v7712 = vld [vmem:[%s7711] sm:$0xff]
  %v7713 = vld [vmem:[%s7711 + $0x8] sm:$0xff]
  %v7714 = vld [vmem:[%s10 + $0x1] sm:$0x1]
  %v7715 = vlaneseq
  %v7716 = vshrl.u32 %v7715, 7
  %v7717 = vsub.s32 0, %v7716
  %v7718 = vrot.slane %v7714, %v7717
  %v7720 = vsel %vm3306, %v7695, 0
  %v7723 = vsel %vm3306, %v7696, 0
  %v7726 = vsel %vm3306, %v7697, 0
  %v7729 = vsel %vm3306, %v7698, 0
  %v7732 = vsel %vm3306, %v7699, 0
  %v7735 = vsel %vm3306, %v7700, 0
  %v7738 = vsel %vm3306, %v7701, 0
  %v7741 = vsel %vm3306, %v7702, 0
  %v7744 = vsel %vm3306, %v7703, 0
  %v7747 = vsel %vm3306, %v7704, 0
  %v7750 = vsel %vm3306, %v7705, 0
  %v7753 = vsel %vm3306, %v7706, 0
  %v7756 = vsel %vm3306, %v7707, 0
  %v7759 = vsel %vm3306, %v7708, 0
  %v7762 = vsel %vm3306, %v7709, 0
  %v7765 = vsel %vm3306, %v7710, 0
  %7767 = vmatprep.subr.mxu0 0.0
  %7768 = vmatpush1.msra.mxu0 %v7712
  %7769 = vmatprep.subr.mxu0 0.0
  %7770 = vmatpush1.msra.mxu0 %v7713
  %7771 = vmatprep.subr.mxu0 0.0
  %7772 = vmatpush1.msra.mxu0 0.0
  %7773 = vmatprep.subr.mxu0 0.0
  %7774 = vmatpush1.msra.mxu0 0.0
  %7775 = vmatprep.subr.mxu0 0.0
  %7776 = vmatpush1.msra.mxu0 0.0
  %7777 = vmatprep.subr.mxu0 0.0
  %7778 = vmatpush1.msra.mxu0 0.0
  %7779 = vmatprep.subr.mxu0 0.0
  %7780 = vmatpush1.msra.mxu0 0.0
  %7781 = vmatprep.subr.mxu0 0.0
  %7782 = vmatpush1.msra.mxu0 0.0
  %7783 = vmatprep.subr.mxu0 0.0
  %7784 = vmatpush1.msra.mxu0 0.0
  %7785 = vmatprep.subr.mxu0 0.0
  %7786 = vmatpush1.msra.mxu0 0.0
  %7787 = vmatprep.subr.mxu0 0.0
  %7788 = vmatpush1.msra.mxu0 0.0
  %7789 = vmatprep.subr.mxu0 0.0
  %7790 = vmatpush1.msra.mxu0 0.0
  %7791 = vmatprep.subr.mxu0 0.0
  %7792 = vmatpush1.msra.mxu0 0.0
  %7793 = vmatprep.subr.mxu0 0.0
  %7794 = vmatpush1.msra.mxu0 0.0
  %7795 = vmatprep.subr.mxu0 0.0
  %7796 = vmatpush1.msra.mxu0 0.0
  %7797 = vmatprep.subr.mxu0 0.0
  %7798 = vmatpush1.msra.mxu0 0.0
  %7799 = vmatprep.subr.mxu0 0.0
  %7800 = vmatpush1.msra.mxu0 0.0
  %7801 = vmatprep.subr.mxu0 0.0
  %7802 = vmatpush1.msra.mxu0 0.0
  %7803 = vmatprep.subr.mxu0 0.0
  %7804 = vmatpush1.msra.mxu0 0.0
  %7805 = vmatprep.subr.mxu0 0.0
  %7806 = vmatpush1.msra.mxu0 0.0
  %7807 = vmatprep.subr.mxu0 0.0
  %7808 = vmatpush1.msra.mxu0 0.0
  %7809 = vmatprep.subr.mxu0 0.0
  %7810 = vmatpush1.msra.mxu0 0.0
  %7811 = vmatprep.subr.mxu0 0.0
  %7812 = vmatpush1.msra.mxu0 0.0
  %7813 = vmatprep.subr.mxu0 0.0
  %7814 = vmatpush1.msra.mxu0 0.0
  %7815 = vmatprep.subr.mxu0 0.0
  %7816 = vmatpush1.msra.mxu0 0.0
  %7817 = vmatprep.subr.mxu0 0.0
  %7818 = vmatpush1.msra.mxu0 0.0
  %7819 = vmatprep.subr.mxu0 0.0
  %7820 = vmatpush1.msra.mxu0 0.0
  %7821 = vmatprep.subr.mxu0 0.0
  %7822 = vmatpush1.msra.mxu0 0.0
  %7823 = vmatprep.subr.mxu0 0.0
  %7824 = vmatpush1.msra.mxu0 0.0
  %7825 = vmatprep.subr.mxu0 0.0
  %7826 = vmatpush1.msra.mxu0 0.0
  %7827 = vmatprep.subr.mxu0 0.0
  %7828 = vmatpush1.msra.mxu0 0.0
  %7829 = vmatprep.subr.mxu0 0.0
  %7830 = vmatpush1.msra.mxu0 0.0
  %7831 = vmatprep.mubr.f32.mxu0 0.0
  %7832 = vmatmul.mubr.f32.gmra.mrb[0].mxu0 %v7720
  %v7833 = vpop.f32.mrb[0].mxu0
  %v7834 = vadd.f32 %v7718, %v7833
  %v7835 = vpop.f32.mrb[0].mxu0
  %7836 = vmatprep.mubr.f32.mxu0 0.0
  %7837 = vmatmul.mubr.f32.gmra.mrb[0].mxu0 %v7723
  %v7838 = vpop.f32.mrb[0].mxu0
  %v7839 = vadd.f32 %v7718, %v7838
  %v7840 = vpop.f32.mrb[0].mxu0
  %7841 = vmatprep.mubr.f32.mxu0 0.0
  %7842 = vmatmul.mubr.f32.gmra.mrb[0].mxu0 %v7726
  %v7843 = vpop.f32.mrb[0].mxu0
  %v7844 = vadd.f32 %v7718, %v7843
  %v7845 = vpop.f32.mrb[0].mxu0
  %7846 = vmatprep.mubr.f32.mxu0 0.0
  %7847 = vmatmul.mubr.f32.gmra.mrb[0].mxu0 %v7729
  %v7848 = vpop.f32.mrb[0].mxu0
  %v7849 = vadd.f32 %v7718, %v7848
  %v7850 = vpop.f32.mrb[0].mxu0
  %7851 = vmatprep.mubr.f32.mxu0 0.0
  %7852 = vmatmul.mubr.f32.gmra.mrb[0].mxu0 %v7732
  %v7853 = vpop.f32.mrb[0].mxu0
  %v7854 = vadd.f32 %v7718, %v7853
  %v7855 = vpop.f32.mrb[0].mxu0
  %7856 = vmatprep.mubr.f32.mxu0 0.0
  %7857 = vmatmul.mubr.f32.gmra.mrb[0].mxu0 %v7735
  %v7858 = vpop.f32.mrb[0].mxu0
  %v7859 = vadd.f32 %v7718, %v7858
  %v7860 = vpop.f32.mrb[0].mxu0
  %7861 = vmatprep.mubr.f32.mxu0 0.0
  %7862 = vmatmul.mubr.f32.gmra.mrb[0].mxu0 %v7738
  %v7863 = vpop.f32.mrb[0].mxu0
  %v7864 = vadd.f32 %v7718, %v7863
  %v7865 = vpop.f32.mrb[0].mxu0
  %7866 = vmatprep.mubr.f32.mxu0 0.0
  %7867 = vmatmul.mubr.f32.gmra.mrb[0].mxu0 %v7741
  %v7868 = vpop.f32.mrb[0].mxu0
  %v7869 = vadd.f32 %v7718, %v7868
  %v7870 = vpop.f32.mrb[0].mxu0
  %7871 = vmatprep.mubr.f32.mxu0 0.0
  %7872 = vmatmul.mubr.f32.gmra.mrb[0].mxu0 %v7744
  %v7873 = vpop.f32.mrb[0].mxu0
  %v7874 = vadd.f32 %v7718, %v7873
  %v7875 = vpop.f32.mrb[0].mxu0
  %7876 = vmatprep.mubr.f32.mxu0 0.0
  %7877 = vmatmul.mubr.f32.gmra.mrb[0].mxu0 %v7747
  %v7878 = vpop.f32.mrb[0].mxu0
  %v7879 = vadd.f32 %v7718, %v7878
  %v7880 = vpop.f32.mrb[0].mxu0
  %7881 = vmatprep.mubr.f32.mxu0 0.0
  %7882 = vmatmul.mubr.f32.gmra.mrb[0].mxu0 %v7750
  %v7883 = vpop.f32.mrb[0].mxu0
  %v7884 = vadd.f32 %v7718, %v7883
  %v7885 = vpop.f32.mrb[0].mxu0
  %7886 = vmatprep.mubr.f32.mxu0 0.0
  %7887 = vmatmul.mubr.f32.gmra.mrb[0].mxu0 %v7753
  %v7888 = vpop.f32.mrb[0].mxu0
  %v7889 = vadd.f32 %v7718, %v7888
  %v7890 = vpop.f32.mrb[0].mxu0
  %7891 = vmatprep.mubr.f32.mxu0 0.0
  %7892 = vmatmul.mubr.f32.gmra.mrb[0].mxu0 %v7756
  %v7893 = vpop.f32.mrb[0].mxu0
  %v7894 = vadd.f32 %v7718, %v7893
  %v7895 = vpop.f32.mrb[0].mxu0
  %7896 = vmatprep.mubr.f32.mxu0 0.0
  %7897 = vmatmul.mubr.f32.gmra.mrb[0].mxu0 %v7759
  %v7898 = vpop.f32.mrb[0].mxu0
  %v7899 = vadd.f32 %v7718, %v7898
  %v7900 = vpop.f32.mrb[0].mxu0
  %7901 = vmatprep.mubr.f32.mxu0 0.0
  %7902 = vmatmul.mubr.f32.gmra.mrb[0].mxu0 %v7762
  %v7903 = vpop.f32.mrb[0].mxu0
  %v7904 = vadd.f32 %v7718, %v7903
  %v7905 = vpop.f32.mrb[0].mxu0
  %7906 = vmatprep.mubr.f32.mxu0 0.0
  %7907 = vmatmul.mubr.f32.gmra.mrb[0].mxu0 %v7765
  %v7908 = vpop.f32.mrb[0].mxu0
  %v7909 = vadd.f32 %v7718, %v7908
  %v7910 = vpop.f32.mrb[0].mxu0
  %7911 = vdwg.mxu0
  %v7912 = vxor.u32 %v7834, 2147483648
  %v7913 = vxor.u32 %v7839, 2147483648
  %v7914 = vxor.u32 %v7844, 2147483648
  %v7915 = vxor.u32 %v7849, 2147483648
  %v7916 = vxor.u32 %v7854, 2147483648
  %v7917 = vxor.u32 %v7859, 2147483648
  %v7918 = vxor.u32 %v7864, 2147483648
  %v7919 = vxor.u32 %v7869, 2147483648
  %v7920 = vxor.u32 %v7874, 2147483648
  %v7921 = vxor.u32 %v7879, 2147483648
  %v7922 = vxor.u32 %v7884, 2147483648
  %v7923 = vxor.u32 %v7889, 2147483648
  %v7924 = vxor.u32 %v7894, 2147483648
  %v7925 = vxor.u32 %v7899, 2147483648
  %v7926 = vxor.u32 %v7904, 2147483648
  %v7927 = vxor.u32 %v7909, 2147483648
  %v7928 = vmul.f32 %v7912, 1.442695
  %v7929 = vpow.pop %v7928
  %v7930 = vmul.f32 %v7913, 1.442695
  %v7931 = vpow.pop %v7930
  %v7932 = vmul.f32 %v7914, 1.442695
  %v7933 = vpow.pop %v7932
  %v7934 = vmul.f32 %v7915, 1.442695
  %v7935 = vpow.pop %v7934
  %v7936 = vmul.f32 %v7916, 1.442695
  %v7937 = vpow.pop %v7936
  %v7938 = vmul.f32 %v7917, 1.442695
  %v7939 = vpow.pop %v7938
  %v7940 = vmul.f32 %v7918, 1.442695
  %v7941 = vpow.pop %v7940
  %v7942 = vmul.f32 %v7919, 1.442695
  %v7943 = vpow.pop %v7942
  %v7944 = vmul.f32 %v7920, 1.442695
  %v7945 = vpow.pop %v7944
  %v7946 = vmul.f32 %v7921, 1.442695
  %v7947 = vpow.pop %v7946
  %v7948 = vmul.f32 %v7922, 1.442695
  %v7949 = vpow.pop %v7948
  %v7950 = vmul.f32 %v7923, 1.442695
  %v7951 = vpow.pop %v7950
  %v7952 = vmul.f32 %v7924, 1.442695
  %v7953 = vpow.pop %v7952
  %v7954 = vmul.f32 %v7925, 1.442695
  %v7955 = vpow.pop %v7954
  %v7956 = vmul.f32 %v7926, 1.442695
  %v7957 = vpow.pop %v7956
  %v7958 = vmul.f32 %v7927, 1.442695
  %v7959 = vpow.pop %v7958
  %v7960 = vadd.f32 %v7929, 1.0
  %v7961 = vadd.f32 %v7931, 1.0
  %v7962 = vadd.f32 %v7933, 1.0
  %v7963 = vadd.f32 %v7935, 1.0
  %v7964 = vadd.f32 %v7937, 1.0
  %v7965 = vadd.f32 %v7939, 1.0
  %v7966 = vadd.f32 %v7941, 1.0
  %v7967 = vadd.f32 %v7943, 1.0
  %v7968 = vadd.f32 %v7945, 1.0
  %v7969 = vadd.f32 %v7947, 1.0
  %v7970 = vadd.f32 %v7949, 1.0
  %v7971 = vadd.f32 %v7951, 1.0
  %v7972 = vadd.f32 %v7953, 1.0
  %v7973 = vadd.f32 %v7955, 1.0
  %v7974 = vadd.f32 %v7957, 1.0
  %v7975 = vadd.f32 %v7959, 1.0
  %v7976 = vrcp.pop %v7960
  %v7977 = vmul.f32 1.0, %v7976
  %v7978 = vrcp.pop %v7961
  %v7979 = vmul.f32 1.0, %v7978
  %v7980 = vrcp.pop %v7962
  %v7981 = vmul.f32 1.0, %v7980
  %v7982 = vrcp.pop %v7963
  %v7983 = vmul.f32 1.0, %v7982
  %v7984 = vrcp.pop %v7964
  %v7985 = vmul.f32 1.0, %v7984
  %v7986 = vrcp.pop %v7965
  %v7987 = vmul.f32 1.0, %v7986
  %v7988 = vrcp.pop %v7966
  %v7989 = vmul.f32 1.0, %v7988
  %v7990 = vrcp.pop %v7967
  %v7991 = vmul.f32 1.0, %v7990
  %v7992 = vrcp.pop %v7968
  %v7993 = vmul.f32 1.0, %v7992
  %v7994 = vrcp.pop %v7969
  %v7995 = vmul.f32 1.0, %v7994
  %v7996 = vrcp.pop %v7970
  %v7997 = vmul.f32 1.0, %v7996
  %v7998 = vrcp.pop %v7971
  %v7999 = vmul.f32 1.0, %v7998
  %v8000 = vrcp.pop %v7972
  %v8001 = vmul.f32 1.0, %v8000
  %v8002 = vrcp.pop %v7973
  %v8003 = vmul.f32 1.0, %v8002
  %v8004 = vrcp.pop %v7974
  %v8005 = vmul.f32 1.0, %v8004
  %v8006 = vrcp.pop %v7975
  %v8007 = vmul.f32 1.0, %v8006
  %v8008 = vmul.f32 %v7834, %v7977
  %v8009 = vmul.f32 %v7839, %v7979
  %v8010 = vmul.f32 %v7844, %v7981
  %v8011 = vmul.f32 %v7849, %v7983
  %v8012 = vmul.f32 %v7854, %v7985
  %v8013 = vmul.f32 %v7859, %v7987
  %v8014 = vmul.f32 %v7864, %v7989
  %v8015 = vmul.f32 %v7869, %v7991
  %v8016 = vmul.f32 %v7874, %v7993
  %v8017 = vmul.f32 %v7879, %v7995
  %v8018 = vmul.f32 %v7884, %v7997
  %v8019 = vmul.f32 %v7889, %v7999
  %v8020 = vmul.f32 %v7894, %v8001
  %v8021 = vmul.f32 %v7899, %v8003
  %v8022 = vmul.f32 %v7904, %v8005
  %v8023 = vmul.f32 %v7909, %v8007
  %s8024 = scalar_lea.vmem %s11, 1
  %v8025 = vld [vmem:[%s8024] sm:$0x1]
  %v8027 = vlaneseq
  %v8028 = vshrl.u32 %v8027, 7
  %v8029 = vsub.s32 0, %v8028
  %v8030 = vrot.slane %v8025, %v8029
  %v8032 = vmul.f32 %v8008, %v8030
  %v8033 = vmul.f32 %v8009, %v8030
  %v8034 = vmul.f32 %v8010, %v8030
  %v8035 = vmul.f32 %v8011, %v8030
  %v8036 = vmul.f32 %v8012, %v8030
  %v8037 = vmul.f32 %v8013, %v8030
  %v8038 = vmul.f32 %v8014, %v8030
  %v8039 = vmul.f32 %v8015, %v8030
  %v8040 = vmul.f32 %v8016, %v8030
  %v8041 = vmul.f32 %v8017, %v8030
  %v8042 = vmul.f32 %v8018, %v8030
  %v8043 = vmul.f32 %v8019, %v8030
  %v8044 = vmul.f32 %v8020, %v8030
  %v8045 = vmul.f32 %v8021, %v8030
  %v8046 = vmul.f32 %v8022, %v8030
  %v8047 = vmul.f32 %v8023, %v8030
  %v8048 = vsel %vm3635, %v8032, 0.0
  %8049 = vadd.xlane.f32.xlu0 %v8048
  %v8050 = vpop.xlane.xlu0 %8049
  %v8051 = vsel %vm3635, %v8033, 0.0
  %8052 = vadd.xlane.f32.xlu0 %v8051
  %v8053 = vpop.xlane.xlu0 %8052
  %v8054 = vsel %vm3635, %v8034, 0.0
  %8055 = vadd.xlane.f32.xlu0 %v8054
  %v8056 = vpop.xlane.xlu0 %8055
  %v8057 = vsel %vm3635, %v8035, 0.0
  %8058 = vadd.xlane.f32.xlu0 %v8057
  %v8059 = vpop.xlane.xlu0 %8058
  %v8060 = vsel %vm3635, %v8036, 0.0
  %8061 = vadd.xlane.f32.xlu0 %v8060
  %v8062 = vpop.xlane.xlu0 %8061
  %v8063 = vsel %vm3635, %v8037, 0.0
  %8064 = vadd.xlane.f32.xlu0 %v8063
  %v8065 = vpop.xlane.xlu0 %8064
  %v8066 = vsel %vm3635, %v8038, 0.0
  %8067 = vadd.xlane.f32.xlu0 %v8066
  %v8068 = vpop.xlane.xlu0 %8067
  %v8069 = vsel %vm3635, %v8039, 0.0
  %8070 = vadd.xlane.f32.xlu0 %v8069
  %v8071 = vpop.xlane.xlu0 %8070
  %v8072 = vsel %vm3635, %v8040, 0.0
  %8073 = vadd.xlane.f32.xlu0 %v8072
  %v8074 = vpop.xlane.xlu0 %8073
  %v8075 = vsel %vm3635, %v8041, 0.0
  %8076 = vadd.xlane.f32.xlu0 %v8075
  %v8077 = vpop.xlane.xlu0 %8076
  %v8078 = vsel %vm3635, %v8042, 0.0
  %8079 = vadd.xlane.f32.xlu0 %v8078
  %v8080 = vpop.xlane.xlu0 %8079
  %v8081 = vsel %vm3635, %v8043, 0.0
  %8082 = vadd.xlane.f32.xlu0 %v8081
  %v8083 = vpop.xlane.xlu0 %8082
  %v8084 = vsel %vm3635, %v8044, 0.0
  %8085 = vadd.xlane.f32.xlu0 %v8084
  %v8086 = vpop.xlane.xlu0 %8085
  %v8087 = vsel %vm3635, %v8045, 0.0
  %8088 = vadd.xlane.f32.xlu0 %v8087
  %v8089 = vpop.xlane.xlu0 %8088
  %v8090 = vsel %vm3635, %v8046, 0.0
  %8091 = vadd.xlane.f32.xlu0 %v8090
  %v8092 = vpop.xlane.xlu0 %8091
  %v8093 = vsel %vm3635, %v8047, 0.0
  %8094 = vadd.xlane.f32.xlu0 %v8093
  %v8095 = vpop.xlane.xlu0 %8094
  %v8096 = vld [vmem:[%s12 + $0x1] sm:$0x1]
  %v8097 = vlaneseq
  %v8098 = vshrl.u32 %v8097, 7
  %v8099 = vsub.s32 0, %v8098
  %v8100 = vrot.slane %v8096, %v8099
  %v8101 = vadd.f32 %v8050, %v8100
  %v8102 = vadd.f32 %v8053, %v8100
  %v8103 = vadd.f32 %v8056, %v8100
  %v8104 = vadd.f32 %v8059, %v8100
  %v8105 = vadd.f32 %v8062, %v8100
  %v8106 = vadd.f32 %v8065, %v8100
  %v8107 = vadd.f32 %v8068, %v8100
  %v8108 = vadd.f32 %v8071, %v8100
  %v8109 = vadd.f32 %v8074, %v8100
  %v8110 = vadd.f32 %v8077, %v8100
  %v8111 = vadd.f32 %v8080, %v8100
  %v8112 = vadd.f32 %v8083, %v8100
  %v8113 = vadd.f32 %v8086, %v8100
  %v8114 = vadd.f32 %v8089, %v8100
  %v8115 = vadd.f32 %v8092, %v8100
  %v8116 = vadd.f32 %v8095, %v8100
  %8118 = vset.pattern.permute.xlu0 0
  %8119 = vperm.xlu0 %8118, %v8101
  %v8120 = vpop.permute.xlu0 %8119
  %8123 = vset.pattern.permute.xlu0 0
  %8124 = vperm.xlu0 %8123, %v8102
  %v8125 = vpop.permute.xlu0 %8124
  %8128 = vset.pattern.permute.xlu0 0
  %8129 = vperm.xlu0 %8128, %v8103
  %v8130 = vpop.permute.xlu0 %8129
  %8133 = vset.pattern.permute.xlu0 0
  %8134 = vperm.xlu0 %8133, %v8104
  %v8135 = vpop.permute.xlu0 %8134
  %8138 = vset.pattern.permute.xlu0 0
  %8139 = vperm.xlu0 %8138, %v8105
  %v8140 = vpop.permute.xlu0 %8139
  %8143 = vset.pattern.permute.xlu0 0
  %8144 = vperm.xlu0 %8143, %v8106
  %v8145 = vpop.permute.xlu0 %8144
  %8148 = vset.pattern.permute.xlu0 0
  %8149 = vperm.xlu0 %8148, %v8107
  %v8150 = vpop.permute.xlu0 %8149
  %8153 = vset.pattern.permute.xlu0 0
  %8154 = vperm.xlu0 %8153, %v8108
  %v8155 = vpop.permute.xlu0 %8154
  %8158 = vset.pattern.permute.xlu0 0
  %8159 = vperm.xlu0 %8158, %v8109
  %v8160 = vpop.permute.xlu0 %8159
  %8163 = vset.pattern.permute.xlu0 0
  %8164 = vperm.xlu0 %8163, %v8110
  %v8165 = vpop.permute.xlu0 %8164
  %8168 = vset.pattern.permute.xlu0 0
  %8169 = vperm.xlu0 %8168, %v8111
  %v8170 = vpop.permute.xlu0 %8169
  %8173 = vset.pattern.permute.xlu0 0
  %8174 = vperm.xlu0 %8173, %v8112
  %v8175 = vpop.permute.xlu0 %8174
  %8178 = vset.pattern.permute.xlu0 0
  %8179 = vperm.xlu0 %8178, %v8113
  %v8180 = vpop.permute.xlu0 %8179
  %8183 = vset.pattern.permute.xlu0 0
  %8184 = vperm.xlu0 %8183, %v8114
  %v8185 = vpop.permute.xlu0 %8184
  %8188 = vset.pattern.permute.xlu0 0
  %8189 = vperm.xlu0 %8188, %v8115
  %v8190 = vpop.permute.xlu0 %8189
  %8193 = vset.pattern.permute.xlu0 0
  %8194 = vperm.xlu0 %8193, %v8116
  %v8195 = vpop.permute.xlu0 %8194
  %v8197 = vmul.f32 %v8120, %v4665
  %v8198 = vmul.f32 %v8125, %v4666
  %v8199 = vmul.f32 %v8130, %v4667
  %v8200 = vmul.f32 %v8135, %v4668
  %v8201 = vmul.f32 %v8140, %v4669
  %v8202 = vmul.f32 %v8145, %v4670
  %v8203 = vmul.f32 %v8150, %v4671
  %v8204 = vmul.f32 %v8155, %v4672
  %v8205 = vmul.f32 %v8160, %v4673
  %v8206 = vmul.f32 %v8165, %v4674
  %v8207 = vmul.f32 %v8170, %v4675
  %v8208 = vmul.f32 %v8175, %v4676
  %v8209 = vmul.f32 %v8180, %v4677
  %v8210 = vmul.f32 %v8185, %v4678
  %v8211 = vmul.f32 %v8190, %v4679
  %v8212 = vmul.f32 %v8195, %v4680
  %v8213 = vsel %vm288, %v8197, 0.0
  %v8214 = vrot.slane %v8213, 4
  %v8215 = vadd.f32 %v8213, %v8214
  %v8216 = vrot.slane %v8215, 2
  %v8217 = vadd.f32 %v8215, %v8216
  %v8218 = vrot.slane %v8217, 1
  %v8219 = vadd.f32 %v8217, %v8218
  %v8220 = vsel %vm288, %v8198, 0.0
  %v8221 = vrot.slane %v8220, 4
  %v8222 = vadd.f32 %v8220, %v8221
  %v8223 = vrot.slane %v8222, 2
  %v8224 = vadd.f32 %v8222, %v8223
  %v8225 = vrot.slane %v8224, 1
  %v8226 = vadd.f32 %v8224, %v8225
  %v8227 = vsel %vm288, %v8199, 0.0
  %v8228 = vrot.slane %v8227, 4
  %v8229 = vadd.f32 %v8227, %v8228
  %v8230 = vrot.slane %v8229, 2
  %v8231 = vadd.f32 %v8229, %v8230
  %v8232 = vrot.slane %v8231, 1
  %v8233 = vadd.f32 %v8231, %v8232
  %v8234 = vsel %vm288, %v8200, 0.0
  %v8235 = vrot.slane %v8234, 4
  %v8236 = vadd.f32 %v8234, %v8235
  %v8237 = vrot.slane %v8236, 2
  %v8238 = vadd.f32 %v8236, %v8237
  %v8239 = vrot.slane %v8238, 1
  %v8240 = vadd.f32 %v8238, %v8239
  %v8241 = vsel %vm288, %v8201, 0.0
  %v8242 = vrot.slane %v8241, 4
  %v8243 = vadd.f32 %v8241, %v8242
  %v8244 = vrot.slane %v8243, 2
  %v8245 = vadd.f32 %v8243, %v8244
  %v8246 = vrot.slane %v8245, 1
  %v8247 = vadd.f32 %v8245, %v8246
  %v8248 = vsel %vm288, %v8202, 0.0
  %v8249 = vrot.slane %v8248, 4
  %v8250 = vadd.f32 %v8248, %v8249
  %v8251 = vrot.slane %v8250, 2
  %v8252 = vadd.f32 %v8250, %v8251
  %v8253 = vrot.slane %v8252, 1
  %v8254 = vadd.f32 %v8252, %v8253
  %v8255 = vsel %vm288, %v8203, 0.0
  %v8256 = vrot.slane %v8255, 4
  %v8257 = vadd.f32 %v8255, %v8256
  %v8258 = vrot.slane %v8257, 2
  %v8259 = vadd.f32 %v8257, %v8258
  %v8260 = vrot.slane %v8259, 1
  %v8261 = vadd.f32 %v8259, %v8260
  %v8262 = vsel %vm288, %v8204, 0.0
  %v8263 = vrot.slane %v8262, 4
  %v8264 = vadd.f32 %v8262, %v8263
  %v8265 = vrot.slane %v8264, 2
  %v8266 = vadd.f32 %v8264, %v8265
  %v8267 = vrot.slane %v8266, 1
  %v8268 = vadd.f32 %v8266, %v8267
  %v8269 = vsel %vm288, %v8205, 0.0
  %v8270 = vrot.slane %v8269, 4
  %v8271 = vadd.f32 %v8269, %v8270
  %v8272 = vrot.slane %v8271, 2
  %v8273 = vadd.f32 %v8271, %v8272
  %v8274 = vrot.slane %v8273, 1
  %v8275 = vadd.f32 %v8273, %v8274
  %v8276 = vsel %vm288, %v8206, 0.0
  %v8277 = vrot.slane %v8276, 4
  %v8278 = vadd.f32 %v8276, %v8277
  %v8279 = vrot.slane %v8278, 2
  %v8280 = vadd.f32 %v8278, %v8279
  %v8281 = vrot.slane %v8280, 1
  %v8282 = vadd.f32 %v8280, %v8281
  %v8283 = vsel %vm288, %v8207, 0.0
  %v8284 = vrot.slane %v8283, 4
  %v8285 = vadd.f32 %v8283, %v8284
  %v8286 = vrot.slane %v8285, 2
  %v8287 = vadd.f32 %v8285, %v8286
  %v8288 = vrot.slane %v8287, 1
  %v8289 = vadd.f32 %v8287, %v8288
  %v8290 = vsel %vm288, %v8208, 0.0
  %v8291 = vrot.slane %v8290, 4
  %v8292 = vadd.f32 %v8290, %v8291
  %v8293 = vrot.slane %v8292, 2
  %v8294 = vadd.f32 %v8292, %v8293
  %v8295 = vrot.slane %v8294, 1
  %v8296 = vadd.f32 %v8294, %v8295
  %v8297 = vsel %vm288, %v8209, 0.0
  %v8298 = vrot.slane %v8297, 4
  %v8299 = vadd.f32 %v8297, %v8298
  %v8300 = vrot.slane %v8299, 2
  %v8301 = vadd.f32 %v8299, %v8300
  %v8302 = vrot.slane %v8301, 1
  %v8303 = vadd.f32 %v8301, %v8302
  %v8304 = vsel %vm288, %v8210, 0.0
  %v8305 = vrot.slane %v8304, 4
  %v8306 = vadd.f32 %v8304, %v8305
  %v8307 = vrot.slane %v8306, 2
  %v8308 = vadd.f32 %v8306, %v8307
  %v8309 = vrot.slane %v8308, 1
  %v8310 = vadd.f32 %v8308, %v8309
  %v8311 = vsel %vm288, %v8211, 0.0
  %v8312 = vrot.slane %v8311, 4
  %v8313 = vadd.f32 %v8311, %v8312
  %v8314 = vrot.slane %v8313, 2
  %v8315 = vadd.f32 %v8313, %v8314
  %v8316 = vrot.slane %v8315, 1
  %v8317 = vadd.f32 %v8315, %v8316
  %v8318 = vsel %vm288, %v8212, 0.0
  %v8319 = vrot.slane %v8318, 4
  %v8320 = vadd.f32 %v8318, %v8319
  %v8321 = vrot.slane %v8320, 2
  %v8322 = vadd.f32 %v8320, %v8321
  %v8323 = vrot.slane %v8322, 1
  %v8324 = vadd.f32 %v8322, %v8323
  %v8341 = vsel %vm3929, %v8226, %v8219
  %v8342 = vsel %vm3931, %v8233, %v8341
  %v8343 = vsel %vm3933, %v8240, %v8342
  %v8344 = vsel %vm3935, %v8247, %v8343
  %v8345 = vsel %vm3937, %v8254, %v8344
  %v8346 = vsel %vm3939, %v8261, %v8345
  %v8347 = vsel %vm3941, %v8268, %v8346
  %v8348 = vsel %vm3929, %v8282, %v8275
  %v8349 = vsel %vm3931, %v8289, %v8348
  %v8350 = vsel %vm3933, %v8296, %v8349
  %v8351 = vsel %vm3935, %v8303, %v8350
  %v8352 = vsel %vm3937, %v8310, %v8351
  %v8353 = vsel %vm3939, %v8317, %v8352
  %v8354 = vsel %vm3941, %v8324, %v8353
  %v8357 = vadd.f32 %v3952, %v8347
  %v8358 = vadd.f32 %v3953, %v8354
  %v8359 = vsel %vm3306, %v7695, 0.0
  %v8360 = vrot.slane %v8359, 4
  %v8361 = vadd.f32 %v8359, %v8360
  %v8362 = vrot.slane %v8361, 2
  %v8363 = vadd.f32 %v8361, %v8362
  %v8364 = vrot.slane %v8363, 1
  %v8365 = vadd.f32 %v8363, %v8364
  %v8366 = vsel %vm3306, %v7696, 0.0
  %v8367 = vrot.slane %v8366, 4
  %v8368 = vadd.f32 %v8366, %v8367
  %v8369 = vrot.slane %v8368, 2
  %v8370 = vadd.f32 %v8368, %v8369
  %v8371 = vrot.slane %v8370, 1
  %v8372 = vadd.f32 %v8370, %v8371
  %v8373 = vsel %vm3306, %v7697, 0.0
  %v8374 = vrot.slane %v8373, 4
  %v8375 = vadd.f32 %v8373, %v8374
  %v8376 = vrot.slane %v8375, 2
  %v8377 = vadd.f32 %v8375, %v8376
  %v8378 = vrot.slane %v8377, 1
  %v8379 = vadd.f32 %v8377, %v8378
  %v8380 = vsel %vm3306, %v7698, 0.0
  %v8381 = vrot.slane %v8380, 4
  %v8382 = vadd.f32 %v8380, %v8381
  %v8383 = vrot.slane %v8382, 2
  %v8384 = vadd.f32 %v8382, %v8383
  %v8385 = vrot.slane %v8384, 1
  %v8386 = vadd.f32 %v8384, %v8385
  %v8387 = vsel %vm3306, %v7699, 0.0
  %v8388 = vrot.slane %v8387, 4
  %v8389 = vadd.f32 %v8387, %v8388
  %v8390 = vrot.slane %v8389, 2
  %v8391 = vadd.f32 %v8389, %v8390
  %v8392 = vrot.slane %v8391, 1
  %v8393 = vadd.f32 %v8391, %v8392
  %v8394 = vsel %vm3306, %v7700, 0.0
  %v8395 = vrot.slane %v8394, 4
  %v8396 = vadd.f32 %v8394, %v8395
  %v8397 = vrot.slane %v8396, 2
  %v8398 = vadd.f32 %v8396, %v8397
  %v8399 = vrot.slane %v8398, 1
  %v8400 = vadd.f32 %v8398, %v8399
  %v8401 = vsel %vm3306, %v7701, 0.0
  %v8402 = vrot.slane %v8401, 4
  %v8403 = vadd.f32 %v8401, %v8402
  %v8404 = vrot.slane %v8403, 2
  %v8405 = vadd.f32 %v8403, %v8404
  %v8406 = vrot.slane %v8405, 1
  %v8407 = vadd.f32 %v8405, %v8406
  %v8408 = vsel %vm3306, %v7702, 0.0
  %v8409 = vrot.slane %v8408, 4
  %v8410 = vadd.f32 %v8408, %v8409
  %v8411 = vrot.slane %v8410, 2
  %v8412 = vadd.f32 %v8410, %v8411
  %v8413 = vrot.slane %v8412, 1
  %v8414 = vadd.f32 %v8412, %v8413
  %v8415 = vsel %vm3306, %v7703, 0.0
  %v8416 = vrot.slane %v8415, 4
  %v8417 = vadd.f32 %v8415, %v8416
  %v8418 = vrot.slane %v8417, 2
  %v8419 = vadd.f32 %v8417, %v8418
  %v8420 = vrot.slane %v8419, 1
  %v8421 = vadd.f32 %v8419, %v8420
  %v8422 = vsel %vm3306, %v7704, 0.0
  %v8423 = vrot.slane %v8422, 4
  %v8424 = vadd.f32 %v8422, %v8423
  %v8425 = vrot.slane %v8424, 2
  %v8426 = vadd.f32 %v8424, %v8425
  %v8427 = vrot.slane %v8426, 1
  %v8428 = vadd.f32 %v8426, %v8427
  %v8429 = vsel %vm3306, %v7705, 0.0
  %v8430 = vrot.slane %v8429, 4
  %v8431 = vadd.f32 %v8429, %v8430
  %v8432 = vrot.slane %v8431, 2
  %v8433 = vadd.f32 %v8431, %v8432
  %v8434 = vrot.slane %v8433, 1
  %v8435 = vadd.f32 %v8433, %v8434
  %v8436 = vsel %vm3306, %v7706, 0.0
  %v8437 = vrot.slane %v8436, 4
  %v8438 = vadd.f32 %v8436, %v8437
  %v8439 = vrot.slane %v8438, 2
  %v8440 = vadd.f32 %v8438, %v8439
  %v8441 = vrot.slane %v8440, 1
  %v8442 = vadd.f32 %v8440, %v8441
  %v8443 = vsel %vm3306, %v7707, 0.0
  %v8444 = vrot.slane %v8443, 4
  %v8445 = vadd.f32 %v8443, %v8444
  %v8446 = vrot.slane %v8445, 2
  %v8447 = vadd.f32 %v8445, %v8446
  %v8448 = vrot.slane %v8447, 1
  %v8449 = vadd.f32 %v8447, %v8448
  %v8450 = vsel %vm3306, %v7708, 0.0
  %v8451 = vrot.slane %v8450, 4
  %v8452 = vadd.f32 %v8450, %v8451
  %v8453 = vrot.slane %v8452, 2
  %v8454 = vadd.f32 %v8452, %v8453
  %v8455 = vrot.slane %v8454, 1
  %v8456 = vadd.f32 %v8454, %v8455
  %v8457 = vsel %vm3306, %v7709, 0.0
  %v8458 = vrot.slane %v8457, 4
  %v8459 = vadd.f32 %v8457, %v8458
  %v8460 = vrot.slane %v8459, 2
  %v8461 = vadd.f32 %v8459, %v8460
  %v8462 = vrot.slane %v8461, 1
  %v8463 = vadd.f32 %v8461, %v8462
  %v8464 = vsel %vm3306, %v7710, 0.0
  %v8465 = vrot.slane %v8464, 4
  %v8466 = vadd.f32 %v8464, %v8465
  %v8467 = vrot.slane %v8466, 2
  %v8468 = vadd.f32 %v8466, %v8467
  %v8469 = vrot.slane %v8468, 1
  %v8470 = vadd.f32 %v8468, %v8469
  %8471 = vadd.xlane.f32.xlu0 %v4483
  %v8472 = vpop.xlane.xlu0 %8471
  %8473 = vadd.xlane.f32.xlu0 %v4484
  %v8474 = vpop.xlane.xlu0 %8473
  %v8475 = vmul.f32 %v8472, %v4070
  %v8476 = vmul.f32 %v8474, %v4070
  %v8477 = vsub.f32 %v4483, %v8475
  %v8478 = vsub.f32 %v4484, %v8476
  %v8479 = vmul.f32 %v8477, %v8477
  %v8480 = vmul.f32 %v8478, %v8478
  %8481 = vadd.xlane.f32.xlu0 %v8479
  %v8482 = vpop.xlane.xlu0 %8481
  %8483 = vadd.xlane.f32.xlu0 %v8480
  %v8484 = vpop.xlane.xlu0 %8483
  %v8485 = vmul.f32 %v8482, %v4070
  %v8486 = vmul.f32 %v8484, %v4070
  %v8487 = vadd.f32 %v8485, 1e-05
  %v8488 = vadd.f32 %v8486, 1e-05
  %v8489 = vrsqrt.pop %v8487
  %v8490 = vrsqrt.pop %v8488
  %v8491 = vmul.f32 %v8477, %v8489
  %v8492 = vmul.f32 %v8478, %v8490
  %v8493 = vld [vmem:[%s7 + $0x1] sm:$0x1]
  %v8494 = vlaneseq
  %v8495 = vshrl.u32 %v8494, 7
  %v8496 = vsub.s32 0, %v8495
  %v8497 = vrot.slane %v8493, %v8496
  %v8498 = vmul.f32 %v8491, %v8497
  %v8499 = vmul.f32 %v8492, %v8497
  %v8500 = vld [vmem:[%s8 + $0x1] sm:$0x1]
  %v8501 = vlaneseq
  %v8502 = vshrl.u32 %v8501, 7
  %v8503 = vsub.s32 0, %v8502
  %v8504 = vrot.slane %v8500, %v8503
  %v8505 = vadd.f32 %v8498, %v8504
  %v8506 = vadd.f32 %v8499, %v8504
  %s8507 = scalar_lea.vmem %s13, 256
  %v8508 = vld [vmem:[%s8507] sm:$0xff]
  %v8509 = vld [vmem:[%s8507 + $0x8] sm:$0xff]
  %v8510 = vld [vmem:[%s8507 + $0x10] sm:$0xff]
  %v8511 = vld [vmem:[%s8507 + $0x18] sm:$0xff]
  %v8512 = vld [vmem:[%s8507 + $0x20] sm:$0xff]
  %v8513 = vld [vmem:[%s8507 + $0x28] sm:$0xff]
  %v8514 = vld [vmem:[%s8507 + $0x30] sm:$0xff]
  %v8515 = vld [vmem:[%s8507 + $0x38] sm:$0xff]
  %v8516 = vld [vmem:[%s8507 + $0x40] sm:$0xff]
  %v8517 = vld [vmem:[%s8507 + $0x48] sm:$0xff]
  %v8518 = vld [vmem:[%s8507 + $0x50] sm:$0xff]
  %v8519 = vld [vmem:[%s8507 + $0x58] sm:$0xff]
  %v8520 = vld [vmem:[%s8507 + $0x60] sm:$0xff]
  %v8521 = vld [vmem:[%s8507 + $0x68] sm:$0xff]
  %v8522 = vld [vmem:[%s8507 + $0x70] sm:$0xff]
  %v8523 = vld [vmem:[%s8507 + $0x78] sm:$0xff]
  %v8524 = vld [vmem:[%s8507 + $0x80] sm:$0xff]
  %v8525 = vld [vmem:[%s8507 + $0x88] sm:$0xff]
  %v8526 = vld [vmem:[%s8507 + $0x90] sm:$0xff]
  %v8527 = vld [vmem:[%s8507 + $0x98] sm:$0xff]
  %v8528 = vld [vmem:[%s8507 + $0xa0] sm:$0xff]
  %v8529 = vld [vmem:[%s8507 + $0xa8] sm:$0xff]
  %v8530 = vld [vmem:[%s8507 + $0xb0] sm:$0xff]
  %v8531 = vld [vmem:[%s8507 + $0xb8] sm:$0xff]
  %v8532 = vld [vmem:[%s8507 + $0xc0] sm:$0xff]
  %v8533 = vld [vmem:[%s8507 + $0xc8] sm:$0xff]
  %v8534 = vld [vmem:[%s8507 + $0xd0] sm:$0xff]
  %v8535 = vld [vmem:[%s8507 + $0xd8] sm:$0xff]
  %v8536 = vld [vmem:[%s8507 + $0xe0] sm:$0xff]
  %v8537 = vld [vmem:[%s8507 + $0xe8] sm:$0xff]
  %v8538 = vld [vmem:[%s8507 + $0xf0] sm:$0xff]
  %v8539 = vld [vmem:[%s8507 + $0xf8] sm:$0xff]
  %s8540 = scalar_lea.vmem %s14, 32
  %v8541 = vld [vmem:[%s8540] sm:$0xff]
  %v8542 = vld [vmem:[%s8540 + $0x8] sm:$0xff]
  %v8543 = vld [vmem:[%s8540 + $0x10] sm:$0xff]
  %v8544 = vld [vmem:[%s8540 + $0x18] sm:$0xff]
  %v8561 = vsel %vm3929, %v8372, %v8365
  %v8562 = vsel %vm3931, %v8379, %v8561
  %v8563 = vsel %vm3933, %v8386, %v8562
  %v8564 = vsel %vm3935, %v8393, %v8563
  %v8565 = vsel %vm3937, %v8400, %v8564
  %v8566 = vsel %vm3939, %v8407, %v8565
  %v8567 = vsel %vm3941, %v8414, %v8566
  %v8568 = vsel %vm3929, %v8428, %v8421
  %v8569 = vsel %vm3931, %v8435, %v8568
  %v8570 = vsel %vm3933, %v8442, %v8569
  %v8571 = vsel %vm3935, %v8449, %v8570
  %v8572 = vsel %vm3937, %v8456, %v8571
  %v8573 = vsel %vm3939, %v8463, %v8572
  %v8574 = vsel %vm3941, %v8470, %v8573
  %v8575 = vsel %vm3306, %v8567, 0
  %v8577 = vsel %vm3306, %v8574, 0
  %8579 = vmatprep.subr.mxu0 %v8542
  %8580 = vmatpush1.msra.mxu0 %v8541
  %8581 = vmatprep.subr.mxu0 %v8544
  %8582 = vmatpush1.msra.mxu0 %v8543
  %8583 = vmatprep.subr.mxu0 0.0
  %8584 = vmatpush1.msra.mxu0 0.0
  %8585 = vmatprep.subr.mxu0 0.0
  %8586 = vmatpush1.msra.mxu0 0.0
  %8587 = vmatprep.subr.mxu0 0.0
  %8588 = vmatpush1.msra.mxu0 0.0
  %8589 = vmatprep.subr.mxu0 0.0
  %8590 = vmatpush1.msra.mxu0 0.0
  %8591 = vmatprep.subr.mxu0 0.0
  %8592 = vmatpush1.msra.mxu0 0.0
  %8593 = vmatprep.subr.mxu0 0.0
  %8594 = vmatpush1.msra.mxu0 0.0
  %8595 = vmatprep.subr.mxu0 0.0
  %8596 = vmatpush1.msra.mxu0 0.0
  %8597 = vmatprep.subr.mxu0 0.0
  %8598 = vmatpush1.msra.mxu0 0.0
  %8599 = vmatprep.subr.mxu0 0.0
  %8600 = vmatpush1.msra.mxu0 0.0
  %8601 = vmatprep.subr.mxu0 0.0
  %8602 = vmatpush1.msra.mxu0 0.0
  %8603 = vmatprep.subr.mxu0 0.0
  %8604 = vmatpush1.msra.mxu0 0.0
  %8605 = vmatprep.subr.mxu0 0.0
  %8606 = vmatpush1.msra.mxu0 0.0
  %8607 = vmatprep.subr.mxu0 0.0
  %8608 = vmatpush1.msra.mxu0 0.0
  %8609 = vmatprep.subr.mxu0 0.0
  %8610 = vmatpush1.msra.mxu0 0.0
  %8611 = vmatprep.subr.mxu0 0.0
  %8612 = vmatpush1.msra.mxu0 0.0
  %8613 = vmatprep.subr.mxu0 0.0
  %8614 = vmatpush1.msra.mxu0 0.0
  %8615 = vmatprep.subr.mxu0 0.0
  %8616 = vmatpush1.msra.mxu0 0.0
  %8617 = vmatprep.subr.mxu0 0.0
  %8618 = vmatpush1.msra.mxu0 0.0
  %8619 = vmatprep.subr.mxu0 0.0
  %8620 = vmatpush1.msra.mxu0 0.0
  %8621 = vmatprep.subr.mxu0 0.0
  %8622 = vmatpush1.msra.mxu0 0.0
  %8623 = vmatprep.subr.mxu0 0.0
  %8624 = vmatpush1.msra.mxu0 0.0
  %8625 = vmatprep.subr.mxu0 0.0
  %8626 = vmatpush1.msra.mxu0 0.0
  %8627 = vmatprep.subr.mxu0 0.0
  %8628 = vmatpush1.msra.mxu0 0.0
  %8629 = vmatprep.subr.mxu0 0.0
  %8630 = vmatpush1.msra.mxu0 0.0
  %8631 = vmatprep.subr.mxu0 0.0
  %8632 = vmatpush1.msra.mxu0 0.0
  %8633 = vmatprep.subr.mxu0 0.0
  %8634 = vmatpush1.msra.mxu0 0.0
  %8635 = vmatprep.subr.mxu0 0.0
  %8636 = vmatpush1.msra.mxu0 0.0
  %8637 = vmatprep.subr.mxu0 0.0
  %8638 = vmatpush1.msra.mxu0 0.0
  %8639 = vmatprep.subr.mxu0 0.0
  %8640 = vmatpush1.msra.mxu0 0.0
  %8641 = vmatprep.subr.mxu0 0.0
  %8642 = vmatpush1.msra.mxu0 0.0
  %8643 = vmatprep.mubr.f32.mxu0 0.0
  %8644 = vmatmul.mubr.f32.gmra.mrb[0].mxu0 %v8575
  %v8645 = vpop.f32.mrb[0].mxu0
  %v8646 = vadd.f32 0.0, %v8645
  %v8647 = vpop.f32.mrb[0].mxu0
  %v8648 = vadd.f32 0.0, %v8647
  %8649 = vmatprep.mubr.f32.mxu0 0.0
  %8650 = vmatmul.mubr.f32.gmra.mrb[0].mxu0 %v8577
  %v8651 = vpop.f32.mrb[0].mxu0
  %v8652 = vadd.f32 0.0, %v8651
  %v8653 = vpop.f32.mrb[0].mxu0
  %v8654 = vadd.f32 0.0, %v8653
  %8655 = vdwg.mxu0
  %8656 = vmatprep.subr.mxu0 %v8509
  %8657 = vmatpush1.msra.mxu0 %v8508
  %8658 = vmatprep.subr.mxu0 %v8511
  %8659 = vmatpush1.msra.mxu0 %v8510
  %8660 = vmatprep.subr.mxu0 %v8513
  %8661 = vmatpush1.msra.mxu0 %v8512
  %8662 = vmatprep.subr.mxu0 %v8515
  %8663 = vmatpush1.msra.mxu0 %v8514
  %8664 = vmatprep.subr.mxu0 %v8517
  %8665 = vmatpush1.msra.mxu0 %v8516
  %8666 = vmatprep.subr.mxu0 %v8519
  %8667 = vmatpush1.msra.mxu0 %v8518
  %8668 = vmatprep.subr.mxu0 %v8521
  %8669 = vmatpush1.msra.mxu0 %v8520
  %8670 = vmatprep.subr.mxu0 %v8523
  %8671 = vmatpush1.msra.mxu0 %v8522
  %8672 = vmatprep.subr.mxu0 %v8525
  %8673 = vmatpush1.msra.mxu0 %v8524
  %8674 = vmatprep.subr.mxu0 %v8527
  %8675 = vmatpush1.msra.mxu0 %v8526
  %8676 = vmatprep.subr.mxu0 %v8529
  %8677 = vmatpush1.msra.mxu0 %v8528
  %8678 = vmatprep.subr.mxu0 %v8531
  %8679 = vmatpush1.msra.mxu0 %v8530
  %8680 = vmatprep.subr.mxu0 %v8533
  %8681 = vmatpush1.msra.mxu0 %v8532
  %8682 = vmatprep.subr.mxu0 %v8535
  %8683 = vmatpush1.msra.mxu0 %v8534
  %8684 = vmatprep.subr.mxu0 %v8537
  %8685 = vmatpush1.msra.mxu0 %v8536
  %8686 = vmatprep.subr.mxu0 %v8539
  %8687 = vmatpush1.msra.mxu0 %v8538
  %8688 = vmatprep.subr.mxu0 0.0
  %8689 = vmatpush1.msra.mxu0 0.0
  %8690 = vmatprep.subr.mxu0 0.0
  %8691 = vmatpush1.msra.mxu0 0.0
  %8692 = vmatprep.subr.mxu0 0.0
  %8693 = vmatpush1.msra.mxu0 0.0
  %8694 = vmatprep.subr.mxu0 0.0
  %8695 = vmatpush1.msra.mxu0 0.0
  %8696 = vmatprep.subr.mxu0 0.0
  %8697 = vmatpush1.msra.mxu0 0.0
  %8698 = vmatprep.subr.mxu0 0.0
  %8699 = vmatpush1.msra.mxu0 0.0
  %8700 = vmatprep.subr.mxu0 0.0
  %8701 = vmatpush1.msra.mxu0 0.0
  %8702 = vmatprep.subr.mxu0 0.0
  %8703 = vmatpush1.msra.mxu0 0.0
  %8704 = vmatprep.subr.mxu0 0.0
  %8705 = vmatpush1.msra.mxu0 0.0
  %8706 = vmatprep.subr.mxu0 0.0
  %8707 = vmatpush1.msra.mxu0 0.0
  %8708 = vmatprep.subr.mxu0 0.0
  %8709 = vmatpush1.msra.mxu0 0.0
  %8710 = vmatprep.subr.mxu0 0.0
  %8711 = vmatpush1.msra.mxu0 0.0
  %8712 = vmatprep.subr.mxu0 0.0
  %8713 = vmatpush1.msra.mxu0 0.0
  %8714 = vmatprep.subr.mxu0 0.0
  %8715 = vmatpush1.msra.mxu0 0.0
  %8716 = vmatprep.subr.mxu0 0.0
  %8717 = vmatpush1.msra.mxu0 0.0
  %8718 = vmatprep.subr.mxu0 0.0
  %8719 = vmatpush1.msra.mxu0 0.0
  %8720 = vmatprep.mubr.f32.mxu0 0.0
  %8721 = vmatmul.mubr.f32.gmra.mrb[0].mxu0 %v8505
  %v8722 = vpop.f32.mrb[0].mxu0
  %v8723 = vadd.f32 %v8646, %v8722
  %v8724 = vpop.f32.mrb[0].mxu0
  %v8725 = vadd.f32 %v8648, %v8724
  %8726 = vmatprep.mubr.f32.mxu0 0.0
  %8727 = vmatmul.mubr.f32.gmra.mrb[0].mxu0 %v8506
  %v8728 = vpop.f32.mrb[0].mxu0
  %v8729 = vadd.f32 %v8652, %v8728
  %v8730 = vpop.f32.mrb[0].mxu0
  %v8731 = vadd.f32 %v8654, %v8730
  %8732 = vdwg.mxu0
  %s8733 = scalar_lea.vmem %s15, 1
  %v8734 = vld [vmem:[%s8733] ss:$4 sm:$0x3]
  %v8736 = vlaneseq
  %v8737 = vshrl.u32 %v8736, 7
  %v8738 = vsub.s32 0, %v8737
  %v8739 = vrot.slane %v8734, %v8738
  %v8740 = vlaneseq
  %v8741 = vshrl.u32 %v8740, 7
  %v8742 = vsub.s32 1, %v8741
  %v8743 = vrot.slane %v8734, %v8742
  %v8746 = vadd.f32 %v8723, %v8739
  %v8747 = vadd.f32 %v8725, %v8743
  %v8748 = vadd.f32 %v8729, %v8739
  %v8749 = vadd.f32 %v8731, %v8743
  %v8750 = vxor.u32 %v8746, 2147483648
  %v8751 = vxor.u32 %v8747, 2147483648
  %v8752 = vxor.u32 %v8748, 2147483648
  %v8753 = vxor.u32 %v8749, 2147483648
  %v8754 = vmul.f32 %v8750, 1.442695
  %v8755 = vpow.pop %v8754
  %v8756 = vmul.f32 %v8751, 1.442695
  %v8757 = vpow.pop %v8756
  %v8758 = vmul.f32 %v8752, 1.442695
  %v8759 = vpow.pop %v8758
  %v8760 = vmul.f32 %v8753, 1.442695
  %v8761 = vpow.pop %v8760
  %v8762 = vadd.f32 %v8755, 1.0
  %v8763 = vadd.f32 %v8757, 1.0
  %v8764 = vadd.f32 %v8759, 1.0
  %v8765 = vadd.f32 %v8761, 1.0
  %v8766 = vrcp.pop %v8762
  %v8767 = vmul.f32 1.0, %v8766
  %v8768 = vrcp.pop %v8763
  %v8769 = vmul.f32 1.0, %v8768
  %v8770 = vrcp.pop %v8764
  %v8771 = vmul.f32 1.0, %v8770
  %v8772 = vrcp.pop %v8765
  %v8773 = vmul.f32 1.0, %v8772
  %v8774 = vmul.f32 %v8746, %v8767
  %v8775 = vmul.f32 %v8747, %v8769
  %v8776 = vmul.f32 %v8748, %v8771
  %v8777 = vmul.f32 %v8749, %v8773
  %s8778 = scalar_lea.vmem %s16, 256
  %v8779 = vld [vmem:[%s8778] sm:$0xff]
  %v8780 = vld [vmem:[%s8778 + $0x8] sm:$0xff]
  %v8781 = vld [vmem:[%s8778 + $0x10] sm:$0xff]
  %v8782 = vld [vmem:[%s8778 + $0x18] sm:$0xff]
  %v8783 = vld [vmem:[%s8778 + $0x20] sm:$0xff]
  %v8784 = vld [vmem:[%s8778 + $0x28] sm:$0xff]
  %v8785 = vld [vmem:[%s8778 + $0x30] sm:$0xff]
  %v8786 = vld [vmem:[%s8778 + $0x38] sm:$0xff]
  %v8787 = vld [vmem:[%s8778 + $0x40] sm:$0xff]
  %v8788 = vld [vmem:[%s8778 + $0x48] sm:$0xff]
  %v8789 = vld [vmem:[%s8778 + $0x50] sm:$0xff]
  %v8790 = vld [vmem:[%s8778 + $0x58] sm:$0xff]
  %v8791 = vld [vmem:[%s8778 + $0x60] sm:$0xff]
  %v8792 = vld [vmem:[%s8778 + $0x68] sm:$0xff]
  %v8793 = vld [vmem:[%s8778 + $0x70] sm:$0xff]
  %v8794 = vld [vmem:[%s8778 + $0x78] sm:$0xff]
  %v8795 = vld [vmem:[%s8778 + $0x80] sm:$0xff]
  %v8796 = vld [vmem:[%s8778 + $0x88] sm:$0xff]
  %v8797 = vld [vmem:[%s8778 + $0x90] sm:$0xff]
  %v8798 = vld [vmem:[%s8778 + $0x98] sm:$0xff]
  %v8799 = vld [vmem:[%s8778 + $0xa0] sm:$0xff]
  %v8800 = vld [vmem:[%s8778 + $0xa8] sm:$0xff]
  %v8801 = vld [vmem:[%s8778 + $0xb0] sm:$0xff]
  %v8802 = vld [vmem:[%s8778 + $0xb8] sm:$0xff]
  %v8803 = vld [vmem:[%s8778 + $0xc0] sm:$0xff]
  %v8804 = vld [vmem:[%s8778 + $0xc8] sm:$0xff]
  %v8805 = vld [vmem:[%s8778 + $0xd0] sm:$0xff]
  %v8806 = vld [vmem:[%s8778 + $0xd8] sm:$0xff]
  %v8807 = vld [vmem:[%s8778 + $0xe0] sm:$0xff]
  %v8808 = vld [vmem:[%s8778 + $0xe8] sm:$0xff]
  %v8809 = vld [vmem:[%s8778 + $0xf0] sm:$0xff]
  %v8810 = vld [vmem:[%s8778 + $0xf8] sm:$0xff]
  %v8811 = vld [vmem:[%s17 + $0x1] sm:$0x1]
  %v8812 = vlaneseq
  %v8813 = vshrl.u32 %v8812, 7
  %v8814 = vsub.s32 0, %v8813
  %v8815 = vrot.slane %v8811, %v8814
  %8816 = vmatprep.subr.mxu0 0.0
  %8817 = vmatpush1.msra.mxu0 %v8779
  %8818 = vmatprep.subr.mxu0 0.0
  %8819 = vmatpush1.msra.mxu0 %v8780
  %8820 = vmatprep.subr.mxu0 0.0
  %8821 = vmatpush1.msra.mxu0 %v8781
  %8822 = vmatprep.subr.mxu0 0.0
  %8823 = vmatpush1.msra.mxu0 %v8782
  %8824 = vmatprep.subr.mxu0 0.0
  %8825 = vmatpush1.msra.mxu0 %v8783
  %8826 = vmatprep.subr.mxu0 0.0
  %8827 = vmatpush1.msra.mxu0 %v8784
  %8828 = vmatprep.subr.mxu0 0.0
  %8829 = vmatpush1.msra.mxu0 %v8785
  %8830 = vmatprep.subr.mxu0 0.0
  %8831 = vmatpush1.msra.mxu0 %v8786
  %8832 = vmatprep.subr.mxu0 0.0
  %8833 = vmatpush1.msra.mxu0 %v8787
  %8834 = vmatprep.subr.mxu0 0.0
  %8835 = vmatpush1.msra.mxu0 %v8788
  %8836 = vmatprep.subr.mxu0 0.0
  %8837 = vmatpush1.msra.mxu0 %v8789
  %8838 = vmatprep.subr.mxu0 0.0
  %8839 = vmatpush1.msra.mxu0 %v8790
  %8840 = vmatprep.subr.mxu0 0.0
  %8841 = vmatpush1.msra.mxu0 %v8791
  %8842 = vmatprep.subr.mxu0 0.0
  %8843 = vmatpush1.msra.mxu0 %v8792
  %8844 = vmatprep.subr.mxu0 0.0
  %8845 = vmatpush1.msra.mxu0 %v8793
  %8846 = vmatprep.subr.mxu0 0.0
  %8847 = vmatpush1.msra.mxu0 %v8794
  %8848 = vmatprep.subr.mxu0 0.0
  %8849 = vmatpush1.msra.mxu0 %v8795
  %8850 = vmatprep.subr.mxu0 0.0
  %8851 = vmatpush1.msra.mxu0 %v8796
  %8852 = vmatprep.subr.mxu0 0.0
  %8853 = vmatpush1.msra.mxu0 %v8797
  %8854 = vmatprep.subr.mxu0 0.0
  %8855 = vmatpush1.msra.mxu0 %v8798
  %8856 = vmatprep.subr.mxu0 0.0
  %8857 = vmatpush1.msra.mxu0 %v8799
  %8858 = vmatprep.subr.mxu0 0.0
  %8859 = vmatpush1.msra.mxu0 %v8800
  %8860 = vmatprep.subr.mxu0 0.0
  %8861 = vmatpush1.msra.mxu0 %v8801
  %8862 = vmatprep.subr.mxu0 0.0
  %8863 = vmatpush1.msra.mxu0 %v8802
  %8864 = vmatprep.subr.mxu0 0.0
  %8865 = vmatpush1.msra.mxu0 %v8803
  %8866 = vmatprep.subr.mxu0 0.0
  %8867 = vmatpush1.msra.mxu0 %v8804
  %8868 = vmatprep.subr.mxu0 0.0
  %8869 = vmatpush1.msra.mxu0 %v8805
  %8870 = vmatprep.subr.mxu0 0.0
  %8871 = vmatpush1.msra.mxu0 %v8806
  %8872 = vmatprep.subr.mxu0 0.0
  %8873 = vmatpush1.msra.mxu0 %v8807
  %8874 = vmatprep.subr.mxu0 0.0
  %8875 = vmatpush1.msra.mxu0 %v8808
  %8876 = vmatprep.subr.mxu0 0.0
  %8877 = vmatpush1.msra.mxu0 %v8809
  %8878 = vmatprep.subr.mxu0 0.0
  %8879 = vmatpush1.msra.mxu0 %v8810
  %8880 = vmatprep.mubr.f32.mxu0 %v8775
  %8881 = vmatmul.mubr.f32.gmra.mrb[0].mxu0 %v8774
  %v8882 = vpop.f32.mrb[0].mxu0
  %v8883 = vadd.f32 %v8815, %v8882
  %v8884 = vpop.f32.mrb[0].mxu0
  %8885 = vmatprep.mubr.f32.mxu0 %v8777
  %8886 = vmatmul.mubr.f32.gmra.mrb[0].mxu0 %v8776
  %v8887 = vpop.f32.mrb[0].mxu0
  %v8888 = vadd.f32 %v8815, %v8887
  %v8889 = vpop.f32.mrb[0].mxu0
  %8890 = vdwg.mxu0
  %v8891 = vadd.f32 %v8883, %v4483
  %v8892 = vadd.f32 %v8888, %v4484
  %v8895 = vcombine.high %v8357, %v8357
  %v8897 = vunpack.c.l.s4 1966171168
  %v8898 = vunpack.c.0.s8 %v8897
  %v8899 = vlaneseq
  %v8900 = vshrl.u32 %v8899, 7
  %v8901 = vsub.s32 %v8898, %v8900
  %v8902 = vrot.slane %v8357, %v8901
  %v8904 = vunpack.c.l.s4 1966171168
  %v8905 = vunpack.c.0.s8 %v8904
  %v8906 = vlaneseq
  %v8907 = vshrl.u32 %v8906, 7
  %v8908 = vsub.s32 %v8905, %v8907
  %v8909 = vrot.slane %v8895, %v8908
  %v8910 = vcombine.high %v8902, %v8902
  %v8911 = vcombine.high %v8909, %v8909
  %v8913 = vunpack.c.l.s4 1966171168
  %v8914 = vunpack.c.0.s8 %v8913
  %v8915 = vlaneseq
  %v8916 = vshrl.u32 %v8915, 7
  %v8917 = vsub.s32 %v8914, %v8916
  %v8918 = vrot.slane %v8902, %v8917
  %v8920 = vunpack.c.l.s4 1966171168
  %v8921 = vunpack.c.0.s8 %v8920
  %v8922 = vlaneseq
  %v8923 = vshrl.u32 %v8922, 7
  %v8924 = vsub.s32 %v8921, %v8923
  %v8925 = vrot.slane %v8909, %v8924
  %v8927 = vunpack.c.l.s4 1966171168
  %v8928 = vunpack.c.0.s8 %v8927
  %v8929 = vlaneseq
  %v8930 = vshrl.u32 %v8929, 7
  %v8931 = vsub.s32 %v8928, %v8930
  %v8932 = vrot.slane %v8910, %v8931
  %v8934 = vunpack.c.l.s4 1966171168
  %v8935 = vunpack.c.0.s8 %v8934
  %v8936 = vlaneseq
  %v8937 = vshrl.u32 %v8936, 7
  %v8938 = vsub.s32 %v8935, %v8937
  %v8939 = vrot.slane %v8911, %v8938
  %v8940 = vcombine.high %v8918, %v8918
  %v8941 = vcombine.high %v8925, %v8925
  %v8942 = vcombine.high %v8932, %v8932
  %v8943 = vcombine.high %v8939, %v8939
  %v8944 = vcombine.high %v8358, %v8358
  %v8946 = vunpack.c.l.s4 1966171168
  %v8947 = vunpack.c.0.s8 %v8946
  %v8948 = vlaneseq
  %v8949 = vshrl.u32 %v8948, 7
  %v8950 = vsub.s32 %v8947, %v8949
  %v8951 = vrot.slane %v8358, %v8950
  %v8953 = vunpack.c.l.s4 1966171168
  %v8954 = vunpack.c.0.s8 %v8953
  %v8955 = vlaneseq
  %v8956 = vshrl.u32 %v8955, 7
  %v8957 = vsub.s32 %v8954, %v8956
  %v8958 = vrot.slane %v8944, %v8957
  %v8959 = vcombine.high %v8951, %v8951
  %v8960 = vcombine.high %v8958, %v8958
  %v8962 = vunpack.c.l.s4 1966171168
  %v8963 = vunpack.c.0.s8 %v8962
  %v8964 = vlaneseq
  %v8965 = vshrl.u32 %v8964, 7
  %v8966 = vsub.s32 %v8963, %v8965
  %v8967 = vrot.slane %v8951, %v8966
  %v8969 = vunpack.c.l.s4 1966171168
  %v8970 = vunpack.c.0.s8 %v8969
  %v8971 = vlaneseq
  %v8972 = vshrl.u32 %v8971, 7
  %v8973 = vsub.s32 %v8970, %v8972
  %v8974 = vrot.slane %v8958, %v8973
  %v8976 = vunpack.c.l.s4 1966171168
  %v8977 = vunpack.c.0.s8 %v8976
  %v8978 = vlaneseq
  %v8979 = vshrl.u32 %v8978, 7
  %v8980 = vsub.s32 %v8977, %v8979
  %v8981 = vrot.slane %v8959, %v8980
  %v8983 = vunpack.c.l.s4 1966171168
  %v8984 = vunpack.c.0.s8 %v8983
  %v8985 = vlaneseq
  %v8986 = vshrl.u32 %v8985, 7
  %v8987 = vsub.s32 %v8984, %v8986
  %v8988 = vrot.slane %v8960, %v8987
  %v8989 = vcombine.high %v8967, %v8967
  %v8990 = vcombine.high %v8974, %v8974
  %v8991 = vcombine.high %v8981, %v8981
  %v8992 = vcombine.high %v8988, %v8988
  %v8993 = vlaneseq
  %v8994 = vshrl.u32 %v8993, 7
  %v8995 = vsub.s32 0, %v8994
  %v8996 = vrot.slane %v8918, %v8995
  %v8997 = vlaneseq
  %v8998 = vshrl.u32 %v8997, 7
  %v8999 = vsub.s32 0, %v8998
  %v9000 = vrot.slane %v8932, %v8999
  %v9001 = vlaneseq
  %v9002 = vshrl.u32 %v9001, 7
  %v9003 = vsub.s32 0, %v9002
  %v9004 = vrot.slane %v8940, %v9003
  %v9005 = vlaneseq
  %v9006 = vshrl.u32 %v9005, 7
  %v9007 = vsub.s32 0, %v9006
  %v9008 = vrot.slane %v8942, %v9007
  %v9009 = vlaneseq
  %v9010 = vshrl.u32 %v9009, 7
  %v9011 = vsub.s32 0, %v9010
  %v9012 = vrot.slane %v8925, %v9011
  %v9013 = vlaneseq
  %v9014 = vshrl.u32 %v9013, 7
  %v9015 = vsub.s32 0, %v9014
  %v9016 = vrot.slane %v8939, %v9015
  %v9017 = vlaneseq
  %v9018 = vshrl.u32 %v9017, 7
  %v9019 = vsub.s32 0, %v9018
  %v9020 = vrot.slane %v8941, %v9019
  %v9021 = vlaneseq
  %v9022 = vshrl.u32 %v9021, 7
  %v9023 = vsub.s32 0, %v9022
  %v9024 = vrot.slane %v8943, %v9023
  %v9025 = vlaneseq
  %v9026 = vshrl.u32 %v9025, 7
  %v9027 = vsub.s32 0, %v9026
  %v9028 = vrot.slane %v8967, %v9027
  %v9029 = vlaneseq
  %v9030 = vshrl.u32 %v9029, 7
  %v9031 = vsub.s32 0, %v9030
  %v9032 = vrot.slane %v8981, %v9031
  %v9033 = vlaneseq
  %v9034 = vshrl.u32 %v9033, 7
  %v9035 = vsub.s32 0, %v9034
  %v9036 = vrot.slane %v8989, %v9035
  %v9037 = vlaneseq
  %v9038 = vshrl.u32 %v9037, 7
  %v9039 = vsub.s32 0, %v9038
  %v9040 = vrot.slane %v8991, %v9039
  %v9041 = vlaneseq
  %v9042 = vshrl.u32 %v9041, 7
  %v9043 = vsub.s32 0, %v9042
  %v9044 = vrot.slane %v8974, %v9043
  %v9045 = vlaneseq
  %v9046 = vshrl.u32 %v9045, 7
  %v9047 = vsub.s32 0, %v9046
  %v9048 = vrot.slane %v8988, %v9047
  %v9049 = vlaneseq
  %v9050 = vshrl.u32 %v9049, 7
  %v9051 = vsub.s32 0, %v9050
  %v9052 = vrot.slane %v8990, %v9051
  %v9053 = vlaneseq
  %v9054 = vshrl.u32 %v9053, 7
  %v9055 = vsub.s32 0, %v9054
  %v9056 = vrot.slane %v8992, %v9055
  %v9073 = vsub.f32 %v8996, %v8357
  %v9074 = vsub.f32 %v9000, %v8357
  %v9075 = vsub.f32 %v9004, %v8357
  %v9076 = vsub.f32 %v9008, %v8357
  %v9077 = vsub.f32 %v9012, %v8357
  %v9078 = vsub.f32 %v9016, %v8357
  %v9079 = vsub.f32 %v9020, %v8357
  %v9080 = vsub.f32 %v9024, %v8357
  %v9081 = vsub.f32 %v9028, %v8358
  %v9082 = vsub.f32 %v9032, %v8358
  %v9083 = vsub.f32 %v9036, %v8358
  %v9084 = vsub.f32 %v9040, %v8358
  %v9085 = vsub.f32 %v9044, %v8358
  %v9086 = vsub.f32 %v9048, %v8358
  %v9087 = vsub.f32 %v9052, %v8358
  %v9088 = vsub.f32 %v9056, %v8358
  %v9089 = vmul.f32 %v9073, %v9073
  %v9090 = vmul.f32 %v9074, %v9074
  %v9091 = vmul.f32 %v9075, %v9075
  %v9092 = vmul.f32 %v9076, %v9076
  %v9093 = vmul.f32 %v9077, %v9077
  %v9094 = vmul.f32 %v9078, %v9078
  %v9095 = vmul.f32 %v9079, %v9079
  %v9096 = vmul.f32 %v9080, %v9080
  %v9097 = vmul.f32 %v9081, %v9081
  %v9098 = vmul.f32 %v9082, %v9082
  %v9099 = vmul.f32 %v9083, %v9083
  %v9100 = vmul.f32 %v9084, %v9084
  %v9101 = vmul.f32 %v9085, %v9085
  %v9102 = vmul.f32 %v9086, %v9086
  %v9103 = vmul.f32 %v9087, %v9087
  %v9104 = vmul.f32 %v9088, %v9088
  %v9105 = vsel %vm288, %v9089, 0.0
  %9106 = vadd.xlane.f32.xlu0 %v9105
  %v9107 = vpop.xlane.xlu0 %9106
  %v9108 = vsel %vm288, %v9090, 0.0
  %9109 = vadd.xlane.f32.xlu0 %v9108
  %v9110 = vpop.xlane.xlu0 %9109
  %v9111 = vsel %vm288, %v9091, 0.0
  %9112 = vadd.xlane.f32.xlu0 %v9111
  %v9113 = vpop.xlane.xlu0 %9112
  %v9114 = vsel %vm288, %v9092, 0.0
  %9115 = vadd.xlane.f32.xlu0 %v9114
  %v9116 = vpop.xlane.xlu0 %9115
  %v9117 = vsel %vm288, %v9093, 0.0
  %9118 = vadd.xlane.f32.xlu0 %v9117
  %v9119 = vpop.xlane.xlu0 %9118
  %v9120 = vsel %vm288, %v9094, 0.0
  %9121 = vadd.xlane.f32.xlu0 %v9120
  %v9122 = vpop.xlane.xlu0 %9121
  %v9123 = vsel %vm288, %v9095, 0.0
  %9124 = vadd.xlane.f32.xlu0 %v9123
  %v9125 = vpop.xlane.xlu0 %9124
  %v9126 = vsel %vm288, %v9096, 0.0
  %9127 = vadd.xlane.f32.xlu0 %v9126
  %v9128 = vpop.xlane.xlu0 %9127
  %v9129 = vsel %vm288, %v9097, 0.0
  %9130 = vadd.xlane.f32.xlu0 %v9129
  %v9131 = vpop.xlane.xlu0 %9130
  %v9132 = vsel %vm288, %v9098, 0.0
  %9133 = vadd.xlane.f32.xlu0 %v9132
  %v9134 = vpop.xlane.xlu0 %9133
  %v9135 = vsel %vm288, %v9099, 0.0
  %9136 = vadd.xlane.f32.xlu0 %v9135
  %v9137 = vpop.xlane.xlu0 %9136
  %v9138 = vsel %vm288, %v9100, 0.0
  %9139 = vadd.xlane.f32.xlu0 %v9138
  %v9140 = vpop.xlane.xlu0 %9139
  %v9141 = vsel %vm288, %v9101, 0.0
  %9142 = vadd.xlane.f32.xlu0 %v9141
  %v9143 = vpop.xlane.xlu0 %9142
  %v9144 = vsel %vm288, %v9102, 0.0
  %9145 = vadd.xlane.f32.xlu0 %v9144
  %v9146 = vpop.xlane.xlu0 %9145
  %v9147 = vsel %vm288, %v9103, 0.0
  %9148 = vadd.xlane.f32.xlu0 %v9147
  %v9149 = vpop.xlane.xlu0 %9148
  %v9150 = vsel %vm288, %v9104, 0.0
  %9151 = vadd.xlane.f32.xlu0 %v9150
  %v9152 = vpop.xlane.xlu0 %9151
  %v9153 = vpack.c.bf16 %v8892, %v8891
  %s9154 = scalar_lea.vmem %s2, 1280
  %v9155 = vld [vmem:[%s9154] sm:$0xff]
  %v9156 = vld [vmem:[%s9154 + $0x8] sm:$0xff]
  %v9157 = vld [vmem:[%s9154 + $0x10] sm:$0xff]
  %v9158 = vld [vmem:[%s9154 + $0x18] sm:$0xff]
  %v9159 = vld [vmem:[%s9154 + $0x20] sm:$0xff]
  %v9160 = vld [vmem:[%s9154 + $0x28] sm:$0xff]
  %v9161 = vld [vmem:[%s9154 + $0x30] sm:$0xff]
  %v9162 = vld [vmem:[%s9154 + $0x38] sm:$0xff]
  %v9163 = vld [vmem:[%s9154 + $0x40] sm:$0xff]
  %v9164 = vld [vmem:[%s9154 + $0x48] sm:$0xff]
  %v9165 = vld [vmem:[%s9154 + $0x50] sm:$0xff]
  %v9166 = vld [vmem:[%s9154 + $0x58] sm:$0xff]
  %v9167 = vld [vmem:[%s9154 + $0x60] sm:$0xff]
  %v9168 = vld [vmem:[%s9154 + $0x68] sm:$0xff]
  %v9169 = vld [vmem:[%s9154 + $0x70] sm:$0xff]
  %v9170 = vld [vmem:[%s9154 + $0x78] sm:$0xff]
  %v9171 = vld [vmem:[%s9154 + $0x80] sm:$0xff]
  %v9172 = vld [vmem:[%s9154 + $0x88] sm:$0xff]
  %v9173 = vld [vmem:[%s9154 + $0x90] sm:$0xff]
  %v9174 = vld [vmem:[%s9154 + $0x98] sm:$0xff]
  %v9175 = vld [vmem:[%s9154 + $0xa0] sm:$0xff]
  %v9176 = vld [vmem:[%s9154 + $0xa8] sm:$0xff]
  %v9177 = vld [vmem:[%s9154 + $0xb0] sm:$0xff]
  %v9178 = vld [vmem:[%s9154 + $0xb8] sm:$0xff]
  %v9179 = vld [vmem:[%s9154 + $0xc0] sm:$0xff]
  %v9180 = vld [vmem:[%s9154 + $0xc8] sm:$0xff]
  %v9181 = vld [vmem:[%s9154 + $0xd0] sm:$0xff]
  %v9182 = vld [vmem:[%s9154 + $0xd8] sm:$0xff]
  %v9183 = vld [vmem:[%s9154 + $0xe0] sm:$0xff]
  %v9184 = vld [vmem:[%s9154 + $0xe8] sm:$0xff]
  %v9185 = vld [vmem:[%s9154 + $0xf0] sm:$0xff]
  %v9186 = vld [vmem:[%s9154 + $0xf8] sm:$0xff]
  %v9187 = vld [vmem:[%s9154 + $0x100] sm:$0xff]
  %v9188 = vld [vmem:[%s9154 + $0x108] sm:$0xff]
  %v9189 = vld [vmem:[%s9154 + $0x110] sm:$0xff]
  %v9190 = vld [vmem:[%s9154 + $0x118] sm:$0xff]
  %v9191 = vld [vmem:[%s9154 + $0x120] sm:$0xff]
  %v9192 = vld [vmem:[%s9154 + $0x128] sm:$0xff]
  %v9193 = vld [vmem:[%s9154 + $0x130] sm:$0xff]
  %v9194 = vld [vmem:[%s9154 + $0x138] sm:$0xff]
  %v9195 = vld [vmem:[%s9154 + $0x140] sm:$0xff]
  %v9196 = vld [vmem:[%s9154 + $0x148] sm:$0xff]
  %v9197 = vld [vmem:[%s9154 + $0x150] sm:$0xff]
  %v9198 = vld [vmem:[%s9154 + $0x158] sm:$0xff]
  %v9199 = vld [vmem:[%s9154 + $0x160] sm:$0xff]
  %v9200 = vld [vmem:[%s9154 + $0x168] sm:$0xff]
  %v9201 = vld [vmem:[%s9154 + $0x170] sm:$0xff]
  %v9202 = vld [vmem:[%s9154 + $0x178] sm:$0xff]
  %v9203 = vld [vmem:[%s9154 + $0x180] sm:$0xff]
  %v9204 = vld [vmem:[%s9154 + $0x188] sm:$0xff]
  %v9205 = vld [vmem:[%s9154 + $0x190] sm:$0xff]
  %v9206 = vld [vmem:[%s9154 + $0x198] sm:$0xff]
  %v9207 = vld [vmem:[%s9154 + $0x1a0] sm:$0xff]
  %v9208 = vld [vmem:[%s9154 + $0x1a8] sm:$0xff]
  %v9209 = vld [vmem:[%s9154 + $0x1b0] sm:$0xff]
  %v9210 = vld [vmem:[%s9154 + $0x1b8] sm:$0xff]
  %v9211 = vld [vmem:[%s9154 + $0x1c0] sm:$0xff]
  %v9212 = vld [vmem:[%s9154 + $0x1c8] sm:$0xff]
  %v9213 = vld [vmem:[%s9154 + $0x1d0] sm:$0xff]
  %v9214 = vld [vmem:[%s9154 + $0x1d8] sm:$0xff]
  %v9215 = vld [vmem:[%s9154 + $0x1e0] sm:$0xff]
  %v9216 = vld [vmem:[%s9154 + $0x1e8] sm:$0xff]
  %v9217 = vld [vmem:[%s9154 + $0x1f0] sm:$0xff]
  %v9218 = vld [vmem:[%s9154 + $0x1f8] sm:$0xff]
  %v9219 = vld [vmem:[%s9154 + $0x200] sm:$0xff]
  %v9220 = vld [vmem:[%s9154 + $0x208] sm:$0xff]
  %v9221 = vld [vmem:[%s9154 + $0x210] sm:$0xff]
  %v9222 = vld [vmem:[%s9154 + $0x218] sm:$0xff]
  %v9223 = vld [vmem:[%s9154 + $0x220] sm:$0xff]
  %v9224 = vld [vmem:[%s9154 + $0x228] sm:$0xff]
  %v9225 = vld [vmem:[%s9154 + $0x230] sm:$0xff]
  %v9226 = vld [vmem:[%s9154 + $0x238] sm:$0xff]
  %v9227 = vld [vmem:[%s9154 + $0x240] sm:$0xff]
  %v9228 = vld [vmem:[%s9154 + $0x248] sm:$0xff]
  %v9229 = vld [vmem:[%s9154 + $0x250] sm:$0xff]
  %v9230 = vld [vmem:[%s9154 + $0x258] sm:$0xff]
  %v9231 = vld [vmem:[%s9154 + $0x260] sm:$0xff]
  %v9232 = vld [vmem:[%s9154 + $0x268] sm:$0xff]
  %v9233 = vld [vmem:[%s9154 + $0x270] sm:$0xff]
  %v9234 = vld [vmem:[%s9154 + $0x278] sm:$0xff]
  %v9315 = vunpack.c.l.b16 %v9155
  %v9316 = vunpack.c.h.b16 %v9155
  %v9317 = vunpack.c.l.b16 %v9156
  %v9318 = vunpack.c.h.b16 %v9156
  %v9319 = vunpack.c.l.b16 %v9157
  %v9320 = vunpack.c.h.b16 %v9157
  %v9321 = vunpack.c.l.b16 %v9158
  %v9322 = vunpack.c.h.b16 %v9158
  %v9323 = vunpack.c.l.b16 %v9159
  %v9324 = vunpack.c.h.b16 %v9159
  %v9325 = vunpack.c.l.b16 %v9160
  %v9326 = vunpack.c.h.b16 %v9160
  %v9327 = vunpack.c.l.b16 %v9161
  %v9328 = vunpack.c.h.b16 %v9161
  %v9329 = vunpack.c.l.b16 %v9162
  %v9330 = vunpack.c.h.b16 %v9162
  %v9331 = vunpack.c.l.b16 %v9163
  %v9332 = vunpack.c.h.b16 %v9163
  %v9333 = vunpack.c.l.b16 %v9164
  %v9334 = vunpack.c.h.b16 %v9164
  %v9335 = vunpack.c.l.b16 %v9165
  %v9336 = vunpack.c.h.b16 %v9165
  %v9337 = vunpack.c.l.b16 %v9166
  %v9338 = vunpack.c.h.b16 %v9166
  %v9339 = vunpack.c.l.b16 %v9167
  %v9340 = vunpack.c.h.b16 %v9167
  %v9341 = vunpack.c.l.b16 %v9168
  %v9342 = vunpack.c.h.b16 %v9168
  %v9343 = vunpack.c.l.b16 %v9169
  %v9344 = vunpack.c.h.b16 %v9169
  %v9345 = vunpack.c.l.b16 %v9170
  %v9346 = vunpack.c.h.b16 %v9170
  %v9347 = vunpack.c.l.b16 %v9171
  %v9348 = vunpack.c.h.b16 %v9171
  %v9349 = vunpack.c.l.b16 %v9172
  %v9350 = vunpack.c.h.b16 %v9172
  %v9351 = vunpack.c.l.b16 %v9173
  %v9352 = vunpack.c.h.b16 %v9173
  %v9353 = vunpack.c.l.b16 %v9174
  %v9354 = vunpack.c.h.b16 %v9174
  %v9355 = vunpack.c.l.b16 %v9175
  %v9356 = vunpack.c.h.b16 %v9175
  %v9357 = vunpack.c.l.b16 %v9176
  %v9358 = vunpack.c.h.b16 %v9176
  %v9359 = vunpack.c.l.b16 %v9177
  %v9360 = vunpack.c.h.b16 %v9177
  %v9361 = vunpack.c.l.b16 %v9178
  %v9362 = vunpack.c.h.b16 %v9178
  %v9363 = vunpack.c.l.b16 %v9179
  %v9364 = vunpack.c.h.b16 %v9179
  %v9365 = vunpack.c.l.b16 %v9180
  %v9366 = vunpack.c.h.b16 %v9180
  %v9367 = vunpack.c.l.b16 %v9181
  %v9368 = vunpack.c.h.b16 %v9181
  %v9369 = vunpack.c.l.b16 %v9182
  %v9370 = vunpack.c.h.b16 %v9182
  %v9371 = vunpack.c.l.b16 %v9183
  %v9372 = vunpack.c.h.b16 %v9183
  %v9373 = vunpack.c.l.b16 %v9184
  %v9374 = vunpack.c.h.b16 %v9184
  %v9375 = vunpack.c.l.b16 %v9185
  %v9376 = vunpack.c.h.b16 %v9185
  %v9377 = vunpack.c.l.b16 %v9186
  %v9378 = vunpack.c.h.b16 %v9186
  %v9379 = vunpack.c.l.b16 %v9187
  %v9380 = vunpack.c.h.b16 %v9187
  %v9381 = vunpack.c.l.b16 %v9188
  %v9382 = vunpack.c.h.b16 %v9188
  %v9383 = vunpack.c.l.b16 %v9189
  %v9384 = vunpack.c.h.b16 %v9189
  %v9385 = vunpack.c.l.b16 %v9190
  %v9386 = vunpack.c.h.b16 %v9190
  %v9387 = vunpack.c.l.b16 %v9191
  %v9388 = vunpack.c.h.b16 %v9191
  %v9389 = vunpack.c.l.b16 %v9192
  %v9390 = vunpack.c.h.b16 %v9192
  %v9391 = vunpack.c.l.b16 %v9193
  %v9392 = vunpack.c.h.b16 %v9193
  %v9393 = vunpack.c.l.b16 %v9194
  %v9394 = vunpack.c.h.b16 %v9194
  %v9395 = vunpack.c.l.b16 %v9195
  %v9396 = vunpack.c.h.b16 %v9195
  %v9397 = vunpack.c.l.b16 %v9196
  %v9398 = vunpack.c.h.b16 %v9196
  %v9399 = vunpack.c.l.b16 %v9197
  %v9400 = vunpack.c.h.b16 %v9197
  %v9401 = vunpack.c.l.b16 %v9198
  %v9402 = vunpack.c.h.b16 %v9198
  %v9403 = vunpack.c.l.b16 %v9199
  %v9404 = vunpack.c.h.b16 %v9199
  %v9405 = vunpack.c.l.b16 %v9200
  %v9406 = vunpack.c.h.b16 %v9200
  %v9407 = vunpack.c.l.b16 %v9201
  %v9408 = vunpack.c.h.b16 %v9201
  %v9409 = vunpack.c.l.b16 %v9202
  %v9410 = vunpack.c.h.b16 %v9202
  %v9411 = vunpack.c.l.b16 %v9203
  %v9412 = vunpack.c.h.b16 %v9203
  %v9413 = vunpack.c.l.b16 %v9204
  %v9414 = vunpack.c.h.b16 %v9204
  %v9415 = vunpack.c.l.b16 %v9205
  %v9416 = vunpack.c.h.b16 %v9205
  %v9417 = vunpack.c.l.b16 %v9206
  %v9418 = vunpack.c.h.b16 %v9206
  %v9419 = vunpack.c.l.b16 %v9207
  %v9420 = vunpack.c.h.b16 %v9207
  %v9421 = vunpack.c.l.b16 %v9208
  %v9422 = vunpack.c.h.b16 %v9208
  %v9423 = vunpack.c.l.b16 %v9209
  %v9424 = vunpack.c.h.b16 %v9209
  %v9425 = vunpack.c.l.b16 %v9210
  %v9426 = vunpack.c.h.b16 %v9210
  %v9427 = vunpack.c.l.b16 %v9211
  %v9428 = vunpack.c.h.b16 %v9211
  %v9429 = vunpack.c.l.b16 %v9212
  %v9430 = vunpack.c.h.b16 %v9212
  %v9431 = vunpack.c.l.b16 %v9213
  %v9432 = vunpack.c.h.b16 %v9213
  %v9433 = vunpack.c.l.b16 %v9214
  %v9434 = vunpack.c.h.b16 %v9214
  %v9435 = vunpack.c.l.b16 %v9215
  %v9436 = vunpack.c.h.b16 %v9215
  %v9437 = vunpack.c.l.b16 %v9216
  %v9438 = vunpack.c.h.b16 %v9216
  %v9439 = vunpack.c.l.b16 %v9217
  %v9440 = vunpack.c.h.b16 %v9217
  %v9441 = vunpack.c.l.b16 %v9218
  %v9442 = vunpack.c.h.b16 %v9218
  %v9443 = vunpack.c.l.b16 %v9219
  %v9444 = vunpack.c.h.b16 %v9219
  %v9445 = vunpack.c.l.b16 %v9220
  %v9446 = vunpack.c.h.b16 %v9220
  %v9447 = vunpack.c.l.b16 %v9221
  %v9448 = vunpack.c.h.b16 %v9221
  %v9449 = vunpack.c.l.b16 %v9222
  %v9450 = vunpack.c.h.b16 %v9222
  %v9451 = vunpack.c.l.b16 %v9223
  %v9452 = vunpack.c.h.b16 %v9223
  %v9453 = vunpack.c.l.b16 %v9224
  %v9454 = vunpack.c.h.b16 %v9224
  %v9455 = vunpack.c.l.b16 %v9225
  %v9456 = vunpack.c.h.b16 %v9225
  %v9457 = vunpack.c.l.b16 %v9226
  %v9458 = vunpack.c.h.b16 %v9226
  %v9459 = vunpack.c.l.b16 %v9227
  %v9460 = vunpack.c.h.b16 %v9227
  %v9461 = vunpack.c.l.b16 %v9228
  %v9462 = vunpack.c.h.b16 %v9228
  %v9463 = vunpack.c.l.b16 %v9229
  %v9464 = vunpack.c.h.b16 %v9229
  %v9465 = vunpack.c.l.b16 %v9230
  %v9466 = vunpack.c.h.b16 %v9230
  %v9467 = vunpack.c.l.b16 %v9231
  %v9468 = vunpack.c.h.b16 %v9231
  %v9469 = vunpack.c.l.b16 %v9232
  %v9470 = vunpack.c.h.b16 %v9232
  %v9471 = vunpack.c.l.b16 %v9233
  %v9472 = vunpack.c.h.b16 %v9233
  %v9473 = vunpack.c.l.b16 %v9234
  %v9474 = vunpack.c.h.b16 %v9234
  %v9475 = vpack.c.b16 %v9325, %v9315
  %v9476 = vpack.c.b16 %v9326, %v9316
  %v9477 = vpack.c.b16 %v9327, %v9317
  %v9478 = vpack.c.b16 %v9328, %v9318
  %v9479 = vpack.c.b16 %v9329, %v9319
  %v9480 = vpack.c.b16 %v9330, %v9320
  %v9481 = vpack.c.b16 %v9331, %v9321
  %v9482 = vpack.c.b16 %v9332, %v9322
  %v9483 = vpack.c.b16 %v9333, %v9323
  %v9484 = vpack.c.b16 %v9334, %v9324
  %v9485 = vpack.c.b16 %v9345, %v9335
  %v9486 = vpack.c.b16 %v9346, %v9336
  %v9487 = vpack.c.b16 %v9347, %v9337
  %v9488 = vpack.c.b16 %v9348, %v9338
  %v9489 = vpack.c.b16 %v9349, %v9339
  %v9490 = vpack.c.b16 %v9350, %v9340
  %v9491 = vpack.c.b16 %v9351, %v9341
  %v9492 = vpack.c.b16 %v9352, %v9342
  %v9493 = vpack.c.b16 %v9353, %v9343
  %v9494 = vpack.c.b16 %v9354, %v9344
  %v9495 = vpack.c.b16 %v9365, %v9355
  %v9496 = vpack.c.b16 %v9366, %v9356
  %v9497 = vpack.c.b16 %v9367, %v9357
  %v9498 = vpack.c.b16 %v9368, %v9358
  %v9499 = vpack.c.b16 %v9369, %v9359
  %v9500 = vpack.c.b16 %v9370, %v9360
  %v9501 = vpack.c.b16 %v9371, %v9361
  %v9502 = vpack.c.b16 %v9372, %v9362
  %v9503 = vpack.c.b16 %v9373, %v9363
  %v9504 = vpack.c.b16 %v9374, %v9364
  %v9505 = vpack.c.b16 %v9385, %v9375
  %v9506 = vpack.c.b16 %v9386, %v9376
  %v9507 = vpack.c.b16 %v9387, %v9377
  %v9508 = vpack.c.b16 %v9388, %v9378
  %v9509 = vpack.c.b16 %v9389, %v9379
  %v9510 = vpack.c.b16 %v9390, %v9380
  %v9511 = vpack.c.b16 %v9391, %v9381
  %v9512 = vpack.c.b16 %v9392, %v9382
  %v9513 = vpack.c.b16 %v9393, %v9383
  %v9514 = vpack.c.b16 %v9394, %v9384
  %v9515 = vpack.c.b16 %v9405, %v9395
  %v9516 = vpack.c.b16 %v9406, %v9396
  %v9517 = vpack.c.b16 %v9407, %v9397
  %v9518 = vpack.c.b16 %v9408, %v9398
  %v9519 = vpack.c.b16 %v9409, %v9399
  %v9520 = vpack.c.b16 %v9410, %v9400
  %v9521 = vpack.c.b16 %v9411, %v9401
  %v9522 = vpack.c.b16 %v9412, %v9402
  %v9523 = vpack.c.b16 %v9413, %v9403
  %v9524 = vpack.c.b16 %v9414, %v9404
  %v9525 = vpack.c.b16 %v9425, %v9415
  %v9526 = vpack.c.b16 %v9426, %v9416
  %v9527 = vpack.c.b16 %v9427, %v9417
  %v9528 = vpack.c.b16 %v9428, %v9418
  %v9529 = vpack.c.b16 %v9429, %v9419
  %v9530 = vpack.c.b16 %v9430, %v9420
  %v9531 = vpack.c.b16 %v9431, %v9421
  %v9532 = vpack.c.b16 %v9432, %v9422
  %v9533 = vpack.c.b16 %v9433, %v9423
  %v9534 = vpack.c.b16 %v9434, %v9424
  %v9535 = vpack.c.b16 %v9445, %v9435
  %v9536 = vpack.c.b16 %v9446, %v9436
  %v9537 = vpack.c.b16 %v9447, %v9437
  %v9538 = vpack.c.b16 %v9448, %v9438
  %v9539 = vpack.c.b16 %v9449, %v9439
  %v9540 = vpack.c.b16 %v9450, %v9440
  %v9541 = vpack.c.b16 %v9451, %v9441
  %v9542 = vpack.c.b16 %v9452, %v9442
  %v9543 = vpack.c.b16 %v9453, %v9443
  %v9544 = vpack.c.b16 %v9454, %v9444
  %v9545 = vpack.c.b16 %v9465, %v9455
  %v9546 = vpack.c.b16 %v9466, %v9456
  %v9547 = vpack.c.b16 %v9467, %v9457
  %v9548 = vpack.c.b16 %v9468, %v9458
  %v9549 = vpack.c.b16 %v9469, %v9459
  %v9550 = vpack.c.b16 %v9470, %v9460
  %v9551 = vpack.c.b16 %v9471, %v9461
  %v9552 = vpack.c.b16 %v9472, %v9462
  %v9553 = vpack.c.b16 %v9473, %v9463
  %v9554 = vpack.c.b16 %v9474, %v9464
  %9635 = vmatprep.subr.bf16.mxu0 %v9476
  %9636 = vmatpush1.bf16.msra.mxu0 %v9475
  %9637 = vmatprep.subr.bf16.mxu0 %v9486
  %9638 = vmatpush1.bf16.msra.mxu0 %v9485
  %9639 = vmatprep.subr.bf16.mxu0 %v9496
  %9640 = vmatpush1.bf16.msra.mxu0 %v9495
  %9641 = vmatprep.subr.bf16.mxu0 %v9506
  %9642 = vmatpush1.bf16.msra.mxu0 %v9505
  %9643 = vmatprep.subr.bf16.mxu0 %v9516
  %9644 = vmatpush1.bf16.msra.mxu0 %v9515
  %9645 = vmatprep.subr.bf16.mxu0 %v9526
  %9646 = vmatpush1.bf16.msra.mxu0 %v9525
  %9647 = vmatprep.subr.bf16.mxu0 %v9536
  %9648 = vmatpush1.bf16.msra.mxu0 %v9535
  %9649 = vmatprep.subr.bf16.mxu0 %v9546
  %9650 = vmatpush1.bf16.msra.mxu0 %v9545
  %9651 = vmatprep.subr.bf16.mxu0 0
  %9652 = vmatpush1.bf16.msra.mxu0 0
  %9653 = vmatprep.subr.bf16.mxu0 0
  %9654 = vmatpush1.bf16.msra.mxu0 0
  %9655 = vmatprep.subr.bf16.mxu0 0
  %9656 = vmatpush1.bf16.msra.mxu0 0
  %9657 = vmatprep.subr.bf16.mxu0 0
  %9658 = vmatpush1.bf16.msra.mxu0 0
  %9659 = vmatprep.subr.bf16.mxu0 0
  %9660 = vmatpush1.bf16.msra.mxu0 0
  %9661 = vmatprep.subr.bf16.mxu0 0
  %9662 = vmatpush1.bf16.msra.mxu0 0
  %9663 = vmatprep.subr.bf16.mxu0 0
  %9664 = vmatpush1.bf16.msra.mxu0 0
  %9665 = vmatprep.subr.bf16.mxu0 0
  %9666 = vmatpush1.bf16.msra.mxu0 0
  %9667 = vmatprep.mubr.bf16.mxu0 0
  %9668 = vmatmul.mubr.bf16.gmra.mrb[0].mxu0 %v9153
  %v9669 = vpop.f32.mrb[0].mxu0
  %v9670 = vadd.f32 0.0, %v9669
  %v9671 = vpop.f32.mrb[0].mxu0
  %v9672 = vadd.f32 0.0, %v9671
  %v9673 = vpop.f32.mrb[0].mxu0
  %v9674 = vadd.f32 0.0, %v9673
  %v9675 = vpop.f32.mrb[0].mxu0
  %v9676 = vadd.f32 0.0, %v9675
  %9677 = vdwg.mxu0
  %9678 = vmatprep.subr.bf16.mxu0 %v9478
  %9679 = vmatpush1.bf16.msra.mxu0 %v9477
  %9680 = vmatprep.subr.bf16.mxu0 %v9488
  %9681 = vmatpush1.bf16.msra.mxu0 %v9487
  %9682 = vmatprep.subr.bf16.mxu0 %v9498
  %9683 = vmatpush1.bf16.msra.mxu0 %v9497
  %9684 = vmatprep.subr.bf16.mxu0 %v9508
  %9685 = vmatpush1.bf16.msra.mxu0 %v9507
  %9686 = vmatprep.subr.bf16.mxu0 %v9518
  %9687 = vmatpush1.bf16.msra.mxu0 %v9517
  %9688 = vmatprep.subr.bf16.mxu0 %v9528
  %9689 = vmatpush1.bf16.msra.mxu0 %v9527
  %9690 = vmatprep.subr.bf16.mxu0 %v9538
  %9691 = vmatpush1.bf16.msra.mxu0 %v9537
  %9692 = vmatprep.subr.bf16.mxu0 %v9548
  %9693 = vmatpush1.bf16.msra.mxu0 %v9547
  %9694 = vmatprep.subr.bf16.mxu0 0
  %9695 = vmatpush1.bf16.msra.mxu0 0
  %9696 = vmatprep.subr.bf16.mxu0 0
  %9697 = vmatpush1.bf16.msra.mxu0 0
  %9698 = vmatprep.subr.bf16.mxu0 0
  %9699 = vmatpush1.bf16.msra.mxu0 0
  %9700 = vmatprep.subr.bf16.mxu0 0
  %9701 = vmatpush1.bf16.msra.mxu0 0
  %9702 = vmatprep.subr.bf16.mxu0 0
  %9703 = vmatpush1.bf16.msra.mxu0 0
  %9704 = vmatprep.subr.bf16.mxu0 0
  %9705 = vmatpush1.bf16.msra.mxu0 0
  %9706 = vmatprep.subr.bf16.mxu0 0
  %9707 = vmatpush1.bf16.msra.mxu0 0
  %9708 = vmatprep.subr.bf16.mxu0 0
  %9709 = vmatpush1.bf16.msra.mxu0 0
  %9710 = vmatprep.mubr.bf16.mxu0 0
  %9711 = vmatmul.mubr.bf16.gmra.mrb[0].mxu0 %v9153
  %v9712 = vpop.f32.mrb[0].mxu0
  %v9713 = vadd.f32 0.0, %v9712
  %v9714 = vpop.f32.mrb[0].mxu0
  %v9715 = vadd.f32 0.0, %v9714
  %v9716 = vpop.f32.mrb[0].mxu0
  %v9717 = vadd.f32 0.0, %v9716
  %v9718 = vpop.f32.mrb[0].mxu0
  %v9719 = vadd.f32 0.0, %v9718
  %9720 = vdwg.mxu0
  %9721 = vmatprep.subr.bf16.mxu0 %v9480
  %9722 = vmatpush1.bf16.msra.mxu0 %v9479
  %9723 = vmatprep.subr.bf16.mxu0 %v9490
  %9724 = vmatpush1.bf16.msra.mxu0 %v9489
  %9725 = vmatprep.subr.bf16.mxu0 %v9500
  %9726 = vmatpush1.bf16.msra.mxu0 %v9499
  %9727 = vmatprep.subr.bf16.mxu0 %v9510
  %9728 = vmatpush1.bf16.msra.mxu0 %v9509
  %9729 = vmatprep.subr.bf16.mxu0 %v9520
  %9730 = vmatpush1.bf16.msra.mxu0 %v9519
  %9731 = vmatprep.subr.bf16.mxu0 %v9530
  %9732 = vmatpush1.bf16.msra.mxu0 %v9529
  %9733 = vmatprep.subr.bf16.mxu0 %v9540
  %9734 = vmatpush1.bf16.msra.mxu0 %v9539
  %9735 = vmatprep.subr.bf16.mxu0 %v9550
  %9736 = vmatpush1.bf16.msra.mxu0 %v9549
  %9737 = vmatprep.subr.bf16.mxu0 0
  %9738 = vmatpush1.bf16.msra.mxu0 0
  %9739 = vmatprep.subr.bf16.mxu0 0
  %9740 = vmatpush1.bf16.msra.mxu0 0
  %9741 = vmatprep.subr.bf16.mxu0 0
  %9742 = vmatpush1.bf16.msra.mxu0 0
  %9743 = vmatprep.subr.bf16.mxu0 0
  %9744 = vmatpush1.bf16.msra.mxu0 0
  %9745 = vmatprep.subr.bf16.mxu0 0
  %9746 = vmatpush1.bf16.msra.mxu0 0
  %9747 = vmatprep.subr.bf16.mxu0 0
  %9748 = vmatpush1.bf16.msra.mxu0 0
  %9749 = vmatprep.subr.bf16.mxu0 0
  %9750 = vmatpush1.bf16.msra.mxu0 0
  %9751 = vmatprep.subr.bf16.mxu0 0
  %9752 = vmatpush1.bf16.msra.mxu0 0
  %9753 = vmatprep.mubr.bf16.mxu0 0
  %9754 = vmatmul.mubr.bf16.gmra.mrb[0].mxu0 %v9153
  %v9755 = vpop.f32.mrb[0].mxu0
  %v9756 = vadd.f32 0.0, %v9755
  %v9757 = vpop.f32.mrb[0].mxu0
  %v9758 = vadd.f32 0.0, %v9757
  %v9759 = vpop.f32.mrb[0].mxu0
  %v9760 = vadd.f32 0.0, %v9759
  %v9761 = vpop.f32.mrb[0].mxu0
  %v9762 = vadd.f32 0.0, %v9761
  %9763 = vdwg.mxu0
  %9764 = vmatprep.subr.bf16.mxu0 %v9482
  %9765 = vmatpush1.bf16.msra.mxu0 %v9481
  %9766 = vmatprep.subr.bf16.mxu0 %v9492
  %9767 = vmatpush1.bf16.msra.mxu0 %v9491
  %9768 = vmatprep.subr.bf16.mxu0 %v9502
  %9769 = vmatpush1.bf16.msra.mxu0 %v9501
  %9770 = vmatprep.subr.bf16.mxu0 %v9512
  %9771 = vmatpush1.bf16.msra.mxu0 %v9511
  %9772 = vmatprep.subr.bf16.mxu0 %v9522
  %9773 = vmatpush1.bf16.msra.mxu0 %v9521
  %9774 = vmatprep.subr.bf16.mxu0 %v9532
  %9775 = vmatpush1.bf16.msra.mxu0 %v9531
  %9776 = vmatprep.subr.bf16.mxu0 %v9542
  %9777 = vmatpush1.bf16.msra.mxu0 %v9541
  %9778 = vmatprep.subr.bf16.mxu0 %v9552
  %9779 = vmatpush1.bf16.msra.mxu0 %v9551
  %9780 = vmatprep.subr.bf16.mxu0 0
  %9781 = vmatpush1.bf16.msra.mxu0 0
  %9782 = vmatprep.subr.bf16.mxu0 0
  %9783 = vmatpush1.bf16.msra.mxu0 0
  %9784 = vmatprep.subr.bf16.mxu0 0
  %9785 = vmatpush1.bf16.msra.mxu0 0
  %9786 = vmatprep.subr.bf16.mxu0 0
  %9787 = vmatpush1.bf16.msra.mxu0 0
  %9788 = vmatprep.subr.bf16.mxu0 0
  %9789 = vmatpush1.bf16.msra.mxu0 0
  %9790 = vmatprep.subr.bf16.mxu0 0
  %9791 = vmatpush1.bf16.msra.mxu0 0
  %9792 = vmatprep.subr.bf16.mxu0 0
  %9793 = vmatpush1.bf16.msra.mxu0 0
  %9794 = vmatprep.subr.bf16.mxu0 0
  %9795 = vmatpush1.bf16.msra.mxu0 0
  %9796 = vmatprep.mubr.bf16.mxu0 0
  %9797 = vmatmul.mubr.bf16.gmra.mrb[0].mxu0 %v9153
  %v9798 = vpop.f32.mrb[0].mxu0
  %v9799 = vadd.f32 0.0, %v9798
  %v9800 = vpop.f32.mrb[0].mxu0
  %v9801 = vadd.f32 0.0, %v9800
  %v9802 = vpop.f32.mrb[0].mxu0
  %v9803 = vadd.f32 0.0, %v9802
  %v9804 = vpop.f32.mrb[0].mxu0
  %v9805 = vadd.f32 0.0, %v9804
  %9806 = vdwg.mxu0
  %9807 = vmatprep.subr.bf16.mxu0 %v9484
  %9808 = vmatpush1.bf16.msra.mxu0 %v9483
  %9809 = vmatprep.subr.bf16.mxu0 %v9494
  %9810 = vmatpush1.bf16.msra.mxu0 %v9493
  %9811 = vmatprep.subr.bf16.mxu0 %v9504
  %9812 = vmatpush1.bf16.msra.mxu0 %v9503
  %9813 = vmatprep.subr.bf16.mxu0 %v9514
  %9814 = vmatpush1.bf16.msra.mxu0 %v9513
  %9815 = vmatprep.subr.bf16.mxu0 %v9524
  %9816 = vmatpush1.bf16.msra.mxu0 %v9523
  %9817 = vmatprep.subr.bf16.mxu0 %v9534
  %9818 = vmatpush1.bf16.msra.mxu0 %v9533
  %9819 = vmatprep.subr.bf16.mxu0 %v9544
  %9820 = vmatpush1.bf16.msra.mxu0 %v9543
  %9821 = vmatprep.subr.bf16.mxu0 %v9554
  %9822 = vmatpush1.bf16.msra.mxu0 %v9553
  %9823 = vmatprep.subr.bf16.mxu0 0
  %9824 = vmatpush1.bf16.msra.mxu0 0
  %9825 = vmatprep.subr.bf16.mxu0 0
  %9826 = vmatpush1.bf16.msra.mxu0 0
  %9827 = vmatprep.subr.bf16.mxu0 0
  %9828 = vmatpush1.bf16.msra.mxu0 0
  %9829 = vmatprep.subr.bf16.mxu0 0
  %9830 = vmatpush1.bf16.msra.mxu0 0
  %9831 = vmatprep.subr.bf16.mxu0 0
  %9832 = vmatpush1.bf16.msra.mxu0 0
  %9833 = vmatprep.subr.bf16.mxu0 0
  %9834 = vmatpush1.bf16.msra.mxu0 0
  %9835 = vmatprep.subr.bf16.mxu0 0
  %9836 = vmatpush1.bf16.msra.mxu0 0
  %9837 = vmatprep.subr.bf16.mxu0 0
  %9838 = vmatpush1.bf16.msra.mxu0 0
  %9839 = vmatprep.mubr.bf16.mxu0 0
  %9840 = vmatmul.mubr.bf16.gmra.mrb[0].mxu0 %v9153
  %v9841 = vpop.f32.mrb[0].mxu0
  %v9842 = vadd.f32 0.0, %v9841
  %v9843 = vpop.f32.mrb[0].mxu0
  %v9844 = vadd.f32 0.0, %v9843
  %v9845 = vpop.f32.mrb[0].mxu0
  %v9846 = vadd.f32 0.0, %v9845
  %v9847 = vpop.f32.mrb[0].mxu0
  %v9848 = vadd.f32 0.0, %v9847
  %9849 = vdwg.mxu0
  %v9860 = vcombine.low %v9670, %v9672
  %v9861 = vcombine.high %v9670, %v9672
  %v9862 = vcombine.low %v9713, %v9715
  %v9863 = vcombine.high %v9713, %v9715
  %v9864 = vcombine.high %v9756, %v9756
  %v9866 = vunpack.c.l.s4 1966171168
  %v9867 = vunpack.c.0.s8 %v9866
  %v9868 = vlaneseq
  %v9869 = vshrl.u32 %v9868, 7
  %v9870 = vsub.s32 %v9867, %v9869
  %v9871 = vrot.slane %v9860, %v9870
  %v9873 = vunpack.c.l.s4 1966171168
  %v9874 = vunpack.c.0.s8 %v9873
  %v9875 = vlaneseq
  %v9876 = vshrl.u32 %v9875, 7
  %v9877 = vsub.s32 %v9874, %v9876
  %v9878 = vrot.slane %v9861, %v9877
  %v9880 = vunpack.c.l.s4 1966171168
  %v9881 = vunpack.c.0.s8 %v9880
  %v9882 = vlaneseq
  %v9883 = vshrl.u32 %v9882, 7
  %v9884 = vsub.s32 %v9881, %v9883
  %v9885 = vrot.slane %v9862, %v9884
  %v9887 = vunpack.c.l.s4 1966171168
  %v9888 = vunpack.c.0.s8 %v9887
  %v9889 = vlaneseq
  %v9890 = vshrl.u32 %v9889, 7
  %v9891 = vsub.s32 %v9888, %v9890
  %v9892 = vrot.slane %v9863, %v9891
  %v9894 = vunpack.c.l.s4 1966171168
  %v9895 = vunpack.c.0.s8 %v9894
  %v9896 = vlaneseq
  %v9897 = vshrl.u32 %v9896, 7
  %v9898 = vsub.s32 %v9895, %v9897
  %v9899 = vrot.slane %v9756, %v9898
  %v9901 = vunpack.c.l.s4 1966171168
  %v9902 = vunpack.c.0.s8 %v9901
  %v9903 = vlaneseq
  %v9904 = vshrl.u32 %v9903, 7
  %v9905 = vsub.s32 %v9902, %v9904
  %v9906 = vrot.slane %v9864, %v9905
  %v9907 = vcombine.low %v9871, %v9885
  %v9908 = vcombine.high %v9871, %v9885
  %v9909 = vcombine.low %v9878, %v9892
  %v9910 = vcombine.high %v9878, %v9892
  %v9911 = vcombine.high %v9899, %v9899
  %v9912 = vcombine.high %v9906, %v9906
  %v9914 = vunpack.c.l.s4 1966171168
  %v9915 = vunpack.c.0.s8 %v9914
  %v9916 = vlaneseq
  %v9917 = vshrl.u32 %v9916, 7
  %v9918 = vsub.s32 %v9915, %v9917
  %v9919 = vrot.slane %v9907, %v9918
  %v9921 = vunpack.c.l.s4 1966171168
  %v9922 = vunpack.c.0.s8 %v9921
  %v9923 = vlaneseq
  %v9924 = vshrl.u32 %v9923, 7
  %v9925 = vsub.s32 %v9922, %v9924
  %v9926 = vrot.slane %v9909, %v9925
  %v9928 = vunpack.c.l.s4 1966171168
  %v9929 = vunpack.c.0.s8 %v9928
  %v9930 = vlaneseq
  %v9931 = vshrl.u32 %v9930, 7
  %v9932 = vsub.s32 %v9929, %v9931
  %v9933 = vrot.slane %v9908, %v9932
  %v9935 = vunpack.c.l.s4 1966171168
  %v9936 = vunpack.c.0.s8 %v9935
  %v9937 = vlaneseq
  %v9938 = vshrl.u32 %v9937, 7
  %v9939 = vsub.s32 %v9936, %v9938
  %v9940 = vrot.slane %v9910, %v9939
  %v9942 = vunpack.c.l.s4 1966171168
  %v9943 = vunpack.c.0.s8 %v9942
  %v9944 = vlaneseq
  %v9945 = vshrl.u32 %v9944, 7
  %v9946 = vsub.s32 %v9943, %v9945
  %v9947 = vrot.slane %v9899, %v9946
  %v9949 = vunpack.c.l.s4 1966171168
  %v9950 = vunpack.c.0.s8 %v9949
  %v9951 = vlaneseq
  %v9952 = vshrl.u32 %v9951, 7
  %v9953 = vsub.s32 %v9950, %v9952
  %v9954 = vrot.slane %v9906, %v9953
  %v9956 = vunpack.c.l.s4 1966171168
  %v9957 = vunpack.c.0.s8 %v9956
  %v9958 = vlaneseq
  %v9959 = vshrl.u32 %v9958, 7
  %v9960 = vsub.s32 %v9957, %v9959
  %v9961 = vrot.slane %v9911, %v9960
  %v9963 = vunpack.c.l.s4 1966171168
  %v9964 = vunpack.c.0.s8 %v9963
  %v9965 = vlaneseq
  %v9966 = vshrl.u32 %v9965, 7
  %v9967 = vsub.s32 %v9964, %v9966
  %v9968 = vrot.slane %v9912, %v9967
  %v9969 = vcombine.low %v9919, %v9947
  %v9970 = vcombine.high %v9919, %v9947
  %v9971 = vcombine.low %v9926, %v9954
  %v9972 = vcombine.high %v9926, %v9954
  %v9973 = vcombine.low %v9933, %v9961
  %v9974 = vcombine.high %v9933, %v9961
  %v9975 = vcombine.low %v9940, %v9968
  %v9976 = vcombine.high %v9940, %v9968
  %v9977 = vcombine.low %v9674, %v9676
  %v9978 = vcombine.high %v9674, %v9676
  %v9979 = vcombine.low %v9717, %v9719
  %v9980 = vcombine.high %v9717, %v9719
  %v9981 = vcombine.high %v9760, %v9760
  %v9983 = vunpack.c.l.s4 1966171168
  %v9984 = vunpack.c.0.s8 %v9983
  %v9985 = vlaneseq
  %v9986 = vshrl.u32 %v9985, 7
  %v9987 = vsub.s32 %v9984, %v9986
  %v9988 = vrot.slane %v9977, %v9987
  %v9990 = vunpack.c.l.s4 1966171168
  %v9991 = vunpack.c.0.s8 %v9990
  %v9992 = vlaneseq
  %v9993 = vshrl.u32 %v9992, 7
  %v9994 = vsub.s32 %v9991, %v9993
  %v9995 = vrot.slane %v9978, %v9994
  %v9997 = vunpack.c.l.s4 1966171168
  %v9998 = vunpack.c.0.s8 %v9997
  %v9999 = vlaneseq
  %v10000 = vshrl.u32 %v9999, 7
  %v10001 = vsub.s32 %v9998, %v10000
  %v10002 = vrot.slane %v9979, %v10001
  %v10004 = vunpack.c.l.s4 1966171168
  %v10005 = vunpack.c.0.s8 %v10004
  %v10006 = vlaneseq
  %v10007 = vshrl.u32 %v10006, 7
  %v10008 = vsub.s32 %v10005, %v10007
  %v10009 = vrot.slane %v9980, %v10008
  %v10011 = vunpack.c.l.s4 1966171168
  %v10012 = vunpack.c.0.s8 %v10011
  %v10013 = vlaneseq
  %v10014 = vshrl.u32 %v10013, 7
  %v10015 = vsub.s32 %v10012, %v10014
  %v10016 = vrot.slane %v9760, %v10015
  %v10018 = vunpack.c.l.s4 1966171168
  %v10019 = vunpack.c.0.s8 %v10018
  %v10020 = vlaneseq
  %v10021 = vshrl.u32 %v10020, 7
  %v10022 = vsub.s32 %v10019, %v10021
  %v10023 = vrot.slane %v9981, %v10022
  %v10024 = vcombine.low %v9988, %v10002
  %v10025 = vcombine.high %v9988, %v10002
  %v10026 = vcombine.low %v9995, %v10009
  %v10027 = vcombine.high %v9995, %v10009
  %v10028 = vcombine.high %v10016, %v10016
  %v10029 = vcombine.high %v10023, %v10023
  %v10031 = vunpack.c.l.s4 1966171168
  %v10032 = vunpack.c.0.s8 %v10031
  %v10033 = vlaneseq
  %v10034 = vshrl.u32 %v10033, 7
  %v10035 = vsub.s32 %v10032, %v10034
  %v10036 = vrot.slane %v10024, %v10035
  %v10038 = vunpack.c.l.s4 1966171168
  %v10039 = vunpack.c.0.s8 %v10038
  %v10040 = vlaneseq
  %v10041 = vshrl.u32 %v10040, 7
  %v10042 = vsub.s32 %v10039, %v10041
  %v10043 = vrot.slane %v10026, %v10042
  %v10045 = vunpack.c.l.s4 1966171168
  %v10046 = vunpack.c.0.s8 %v10045
  %v10047 = vlaneseq
  %v10048 = vshrl.u32 %v10047, 7
  %v10049 = vsub.s32 %v10046, %v10048
  %v10050 = vrot.slane %v10025, %v10049
  %v10052 = vunpack.c.l.s4 1966171168
  %v10053 = vunpack.c.0.s8 %v10052
  %v10054 = vlaneseq
  %v10055 = vshrl.u32 %v10054, 7
  %v10056 = vsub.s32 %v10053, %v10055
  %v10057 = vrot.slane %v10027, %v10056
  %v10059 = vunpack.c.l.s4 1966171168
  %v10060 = vunpack.c.0.s8 %v10059
  %v10061 = vlaneseq
  %v10062 = vshrl.u32 %v10061, 7
  %v10063 = vsub.s32 %v10060, %v10062
  %v10064 = vrot.slane %v10016, %v10063
  %v10066 = vunpack.c.l.s4 1966171168
  %v10067 = vunpack.c.0.s8 %v10066
  %v10068 = vlaneseq
  %v10069 = vshrl.u32 %v10068, 7
  %v10070 = vsub.s32 %v10067, %v10069
  %v10071 = vrot.slane %v10023, %v10070
  %v10073 = vunpack.c.l.s4 1966171168
  %v10074 = vunpack.c.0.s8 %v10073
  %v10075 = vlaneseq
  %v10076 = vshrl.u32 %v10075, 7
  %v10077 = vsub.s32 %v10074, %v10076
  %v10078 = vrot.slane %v10028, %v10077
  %v10080 = vunpack.c.l.s4 1966171168
  %v10081 = vunpack.c.0.s8 %v10080
  %v10082 = vlaneseq
  %v10083 = vshrl.u32 %v10082, 7
  %v10084 = vsub.s32 %v10081, %v10083
  %v10085 = vrot.slane %v10029, %v10084
  %v10086 = vcombine.low %v10036, %v10064
  %v10087 = vcombine.high %v10036, %v10064
  %v10088 = vcombine.low %v10043, %v10071
  %v10089 = vcombine.high %v10043, %v10071
  %v10090 = vcombine.low %v10050, %v10078
  %v10091 = vcombine.high %v10050, %v10078
  %v10092 = vcombine.low %v10057, %v10085
  %v10093 = vcombine.high %v10057, %v10085
  %v10094 = vlaneseq
  %v10095 = vshrl.u32 %v10094, 7
  %v10096 = vsub.s32 0, %v10095
  %v10097 = vrot.slane %v9969, %v10096
  %v10098 = vlaneseq
  %v10099 = vshrl.u32 %v10098, 7
  %v10100 = vsub.s32 1, %v10099
  %v10101 = vrot.slane %v9969, %v10100
  %v10102 = vlaneseq
  %v10103 = vshrl.u32 %v10102, 7
  %v10104 = vsub.s32 2, %v10103
  %v10105 = vrot.slane %v9969, %v10104
  %v10106 = vlaneseq
  %v10107 = vshrl.u32 %v10106, 7
  %v10108 = vsub.s32 3, %v10107
  %v10109 = vrot.slane %v9969, %v10108
  %v10110 = vlaneseq
  %v10111 = vshrl.u32 %v10110, 7
  %v10112 = vsub.s32 4, %v10111
  %v10113 = vrot.slane %v9969, %v10112
  %v10114 = vlaneseq
  %v10115 = vshrl.u32 %v10114, 7
  %v10116 = vsub.s32 0, %v10115
  %v10117 = vrot.slane %v9973, %v10116
  %v10118 = vlaneseq
  %v10119 = vshrl.u32 %v10118, 7
  %v10120 = vsub.s32 1, %v10119
  %v10121 = vrot.slane %v9973, %v10120
  %v10122 = vlaneseq
  %v10123 = vshrl.u32 %v10122, 7
  %v10124 = vsub.s32 2, %v10123
  %v10125 = vrot.slane %v9973, %v10124
  %v10126 = vlaneseq
  %v10127 = vshrl.u32 %v10126, 7
  %v10128 = vsub.s32 3, %v10127
  %v10129 = vrot.slane %v9973, %v10128
  %v10130 = vlaneseq
  %v10131 = vshrl.u32 %v10130, 7
  %v10132 = vsub.s32 4, %v10131
  %v10133 = vrot.slane %v9973, %v10132
  %v10134 = vlaneseq
  %v10135 = vshrl.u32 %v10134, 7
  %v10136 = vsub.s32 0, %v10135
  %v10137 = vrot.slane %v9970, %v10136
  %v10138 = vlaneseq
  %v10139 = vshrl.u32 %v10138, 7
  %v10140 = vsub.s32 1, %v10139
  %v10141 = vrot.slane %v9970, %v10140
  %v10142 = vlaneseq
  %v10143 = vshrl.u32 %v10142, 7
  %v10144 = vsub.s32 2, %v10143
  %v10145 = vrot.slane %v9970, %v10144
  %v10146 = vlaneseq
  %v10147 = vshrl.u32 %v10146, 7
  %v10148 = vsub.s32 3, %v10147
  %v10149 = vrot.slane %v9970, %v10148
  %v10150 = vlaneseq
  %v10151 = vshrl.u32 %v10150, 7
  %v10152 = vsub.s32 4, %v10151
  %v10153 = vrot.slane %v9970, %v10152
  %v10154 = vlaneseq
  %v10155 = vshrl.u32 %v10154, 7
  %v10156 = vsub.s32 0, %v10155
  %v10157 = vrot.slane %v9974, %v10156
  %v10158 = vlaneseq
  %v10159 = vshrl.u32 %v10158, 7
  %v10160 = vsub.s32 1, %v10159
  %v10161 = vrot.slane %v9974, %v10160
  %v10162 = vlaneseq
  %v10163 = vshrl.u32 %v10162, 7
  %v10164 = vsub.s32 2, %v10163
  %v10165 = vrot.slane %v9974, %v10164
  %v10166 = vlaneseq
  %v10167 = vshrl.u32 %v10166, 7
  %v10168 = vsub.s32 3, %v10167
  %v10169 = vrot.slane %v9974, %v10168
  %v10170 = vlaneseq
  %v10171 = vshrl.u32 %v10170, 7
  %v10172 = vsub.s32 4, %v10171
  %v10173 = vrot.slane %v9974, %v10172
  %v10174 = vlaneseq
  %v10175 = vshrl.u32 %v10174, 7
  %v10176 = vsub.s32 0, %v10175
  %v10177 = vrot.slane %v9971, %v10176
  %v10178 = vlaneseq
  %v10179 = vshrl.u32 %v10178, 7
  %v10180 = vsub.s32 1, %v10179
  %v10181 = vrot.slane %v9971, %v10180
  %v10182 = vlaneseq
  %v10183 = vshrl.u32 %v10182, 7
  %v10184 = vsub.s32 2, %v10183
  %v10185 = vrot.slane %v9971, %v10184
  %v10186 = vlaneseq
  %v10187 = vshrl.u32 %v10186, 7
  %v10188 = vsub.s32 3, %v10187
  %v10189 = vrot.slane %v9971, %v10188
  %v10190 = vlaneseq
  %v10191 = vshrl.u32 %v10190, 7
  %v10192 = vsub.s32 4, %v10191
  %v10193 = vrot.slane %v9971, %v10192
  %v10194 = vlaneseq
  %v10195 = vshrl.u32 %v10194, 7
  %v10196 = vsub.s32 0, %v10195
  %v10197 = vrot.slane %v9975, %v10196
  %v10198 = vlaneseq
  %v10199 = vshrl.u32 %v10198, 7
  %v10200 = vsub.s32 1, %v10199
  %v10201 = vrot.slane %v9975, %v10200
  %v10202 = vlaneseq
  %v10203 = vshrl.u32 %v10202, 7
  %v10204 = vsub.s32 2, %v10203
  %v10205 = vrot.slane %v9975, %v10204
  %v10206 = vlaneseq
  %v10207 = vshrl.u32 %v10206, 7
  %v10208 = vsub.s32 3, %v10207
  %v10209 = vrot.slane %v9975, %v10208
  %v10210 = vlaneseq
  %v10211 = vshrl.u32 %v10210, 7
  %v10212 = vsub.s32 4, %v10211
  %v10213 = vrot.slane %v9975, %v10212
  %v10214 = vlaneseq
  %v10215 = vshrl.u32 %v10214, 7
  %v10216 = vsub.s32 0, %v10215
  %v10217 = vrot.slane %v9972, %v10216
  %v10218 = vlaneseq
  %v10219 = vshrl.u32 %v10218, 7
  %v10220 = vsub.s32 1, %v10219
  %v10221 = vrot.slane %v9972, %v10220
  %v10222 = vlaneseq
  %v10223 = vshrl.u32 %v10222, 7
  %v10224 = vsub.s32 2, %v10223
  %v10225 = vrot.slane %v9972, %v10224
  %v10226 = vlaneseq
  %v10227 = vshrl.u32 %v10226, 7
  %v10228 = vsub.s32 3, %v10227
  %v10229 = vrot.slane %v9972, %v10228
  %v10230 = vlaneseq
  %v10231 = vshrl.u32 %v10230, 7
  %v10232 = vsub.s32 4, %v10231
  %v10233 = vrot.slane %v9972, %v10232
  %v10234 = vlaneseq
  %v10235 = vshrl.u32 %v10234, 7
  %v10236 = vsub.s32 0, %v10235
  %v10237 = vrot.slane %v9976, %v10236
  %v10238 = vlaneseq
  %v10239 = vshrl.u32 %v10238, 7
  %v10240 = vsub.s32 1, %v10239
  %v10241 = vrot.slane %v9976, %v10240
  %v10242 = vlaneseq
  %v10243 = vshrl.u32 %v10242, 7
  %v10244 = vsub.s32 2, %v10243
  %v10245 = vrot.slane %v9976, %v10244
  %v10246 = vlaneseq
  %v10247 = vshrl.u32 %v10246, 7
  %v10248 = vsub.s32 3, %v10247
  %v10249 = vrot.slane %v9976, %v10248
  %v10250 = vlaneseq
  %v10251 = vshrl.u32 %v10250, 7
  %v10252 = vsub.s32 4, %v10251
  %v10253 = vrot.slane %v9976, %v10252
  %v10254 = vlaneseq
  %v10255 = vshrl.u32 %v10254, 7
  %v10256 = vsub.s32 0, %v10255
  %v10257 = vrot.slane %v10086, %v10256
  %v10258 = vlaneseq
  %v10259 = vshrl.u32 %v10258, 7
  %v10260 = vsub.s32 1, %v10259
  %v10261 = vrot.slane %v10086, %v10260
  %v10262 = vlaneseq
  %v10263 = vshrl.u32 %v10262, 7
  %v10264 = vsub.s32 2, %v10263
  %v10265 = vrot.slane %v10086, %v10264
  %v10266 = vlaneseq
  %v10267 = vshrl.u32 %v10266, 7
  %v10268 = vsub.s32 3, %v10267
  %v10269 = vrot.slane %v10086, %v10268
  %v10270 = vlaneseq
  %v10271 = vshrl.u32 %v10270, 7
  %v10272 = vsub.s32 4, %v10271
  %v10273 = vrot.slane %v10086, %v10272
  %v10274 = vlaneseq
  %v10275 = vshrl.u32 %v10274, 7
  %v10276 = vsub.s32 0, %v10275
  %v10277 = vrot.slane %v10090, %v10276
  %v10278 = vlaneseq
  %v10279 = vshrl.u32 %v10278, 7
  %v10280 = vsub.s32 1, %v10279
  %v10281 = vrot.slane %v10090, %v10280
  %v10282 = vlaneseq
  %v10283 = vshrl.u32 %v10282, 7
  %v10284 = vsub.s32 2, %v10283
  %v10285 = vrot.slane %v10090, %v10284
  %v10286 = vlaneseq
  %v10287 = vshrl.u32 %v10286, 7
  %v10288 = vsub.s32 3, %v10287
  %v10289 = vrot.slane %v10090, %v10288
  %v10290 = vlaneseq
  %v10291 = vshrl.u32 %v10290, 7
  %v10292 = vsub.s32 4, %v10291
  %v10293 = vrot.slane %v10090, %v10292
  %v10294 = vlaneseq
  %v10295 = vshrl.u32 %v10294, 7
  %v10296 = vsub.s32 0, %v10295
  %v10297 = vrot.slane %v10087, %v10296
  %v10298 = vlaneseq
  %v10299 = vshrl.u32 %v10298, 7
  %v10300 = vsub.s32 1, %v10299
  %v10301 = vrot.slane %v10087, %v10300
  %v10302 = vlaneseq
  %v10303 = vshrl.u32 %v10302, 7
  %v10304 = vsub.s32 2, %v10303
  %v10305 = vrot.slane %v10087, %v10304
  %v10306 = vlaneseq
  %v10307 = vshrl.u32 %v10306, 7
  %v10308 = vsub.s32 3, %v10307
  %v10309 = vrot.slane %v10087, %v10308
  %v10310 = vlaneseq
  %v10311 = vshrl.u32 %v10310, 7
  %v10312 = vsub.s32 4, %v10311
  %v10313 = vrot.slane %v10087, %v10312
  %v10314 = vlaneseq
  %v10315 = vshrl.u32 %v10314, 7
  %v10316 = vsub.s32 0, %v10315
  %v10317 = vrot.slane %v10091, %v10316
  %v10318 = vlaneseq
  %v10319 = vshrl.u32 %v10318, 7
  %v10320 = vsub.s32 1, %v10319
  %v10321 = vrot.slane %v10091, %v10320
  %v10322 = vlaneseq
  %v10323 = vshrl.u32 %v10322, 7
  %v10324 = vsub.s32 2, %v10323
  %v10325 = vrot.slane %v10091, %v10324
  %v10326 = vlaneseq
  %v10327 = vshrl.u32 %v10326, 7
  %v10328 = vsub.s32 3, %v10327
  %v10329 = vrot.slane %v10091, %v10328
  %v10330 = vlaneseq
  %v10331 = vshrl.u32 %v10330, 7
  %v10332 = vsub.s32 4, %v10331
  %v10333 = vrot.slane %v10091, %v10332
  %v10334 = vlaneseq
  %v10335 = vshrl.u32 %v10334, 7
  %v10336 = vsub.s32 0, %v10335
  %v10337 = vrot.slane %v10088, %v10336
  %v10338 = vlaneseq
  %v10339 = vshrl.u32 %v10338, 7
  %v10340 = vsub.s32 1, %v10339
  %v10341 = vrot.slane %v10088, %v10340
  %v10342 = vlaneseq
  %v10343 = vshrl.u32 %v10342, 7
  %v10344 = vsub.s32 2, %v10343
  %v10345 = vrot.slane %v10088, %v10344
  %v10346 = vlaneseq
  %v10347 = vshrl.u32 %v10346, 7
  %v10348 = vsub.s32 3, %v10347
  %v10349 = vrot.slane %v10088, %v10348
  %v10350 = vlaneseq
  %v10351 = vshrl.u32 %v10350, 7
  %v10352 = vsub.s32 4, %v10351
  %v10353 = vrot.slane %v10088, %v10352
  %v10354 = vlaneseq
  %v10355 = vshrl.u32 %v10354, 7
  %v10356 = vsub.s32 0, %v10355
  %v10357 = vrot.slane %v10092, %v10356
  %v10358 = vlaneseq
  %v10359 = vshrl.u32 %v10358, 7
  %v10360 = vsub.s32 1, %v10359
  %v10361 = vrot.slane %v10092, %v10360
  %v10362 = vlaneseq
  %v10363 = vshrl.u32 %v10362, 7
  %v10364 = vsub.s32 2, %v10363
  %v10365 = vrot.slane %v10092, %v10364
  %v10366 = vlaneseq
  %v10367 = vshrl.u32 %v10366, 7
  %v10368 = vsub.s32 3, %v10367
  %v10369 = vrot.slane %v10092, %v10368
  %v10370 = vlaneseq
  %v10371 = vshrl.u32 %v10370, 7
  %v10372 = vsub.s32 4, %v10371
  %v10373 = vrot.slane %v10092, %v10372
  %v10374 = vlaneseq
  %v10375 = vshrl.u32 %v10374, 7
  %v10376 = vsub.s32 0, %v10375
  %v10377 = vrot.slane %v10089, %v10376
  %v10378 = vlaneseq
  %v10379 = vshrl.u32 %v10378, 7
  %v10380 = vsub.s32 1, %v10379
  %v10381 = vrot.slane %v10089, %v10380
  %v10382 = vlaneseq
  %v10383 = vshrl.u32 %v10382, 7
  %v10384 = vsub.s32 2, %v10383
  %v10385 = vrot.slane %v10089, %v10384
  %v10386 = vlaneseq
  %v10387 = vshrl.u32 %v10386, 7
  %v10388 = vsub.s32 3, %v10387
  %v10389 = vrot.slane %v10089, %v10388
  %v10390 = vlaneseq
  %v10391 = vshrl.u32 %v10390, 7
  %v10392 = vsub.s32 4, %v10391
  %v10393 = vrot.slane %v10089, %v10392
  %v10394 = vlaneseq
  %v10395 = vshrl.u32 %v10394, 7
  %v10396 = vsub.s32 0, %v10395
  %v10397 = vrot.slane %v10093, %v10396
  %v10398 = vlaneseq
  %v10399 = vshrl.u32 %v10398, 7
  %v10400 = vsub.s32 1, %v10399
  %v10401 = vrot.slane %v10093, %v10400
  %v10402 = vlaneseq
  %v10403 = vshrl.u32 %v10402, 7
  %v10404 = vsub.s32 2, %v10403
  %v10405 = vrot.slane %v10093, %v10404
  %v10406 = vlaneseq
  %v10407 = vshrl.u32 %v10406, 7
  %v10408 = vsub.s32 3, %v10407
  %v10409 = vrot.slane %v10093, %v10408
  %v10410 = vlaneseq
  %v10411 = vshrl.u32 %v10410, 7
  %v10412 = vsub.s32 4, %v10411
  %v10413 = vrot.slane %v10093, %v10412
  %v10494 = vadd.f32 %v10097, %v9758
  %v10495 = vadd.f32 %v10101, %v9799
  %v10496 = vadd.f32 %v10105, %v9801
  %v10497 = vadd.f32 %v10109, %v9842
  %v10498 = vadd.f32 %v10113, %v9844
  %v10499 = vadd.f32 %v10117, %v9758
  %v10500 = vadd.f32 %v10121, %v9799
  %v10501 = vadd.f32 %v10125, %v9801
  %v10502 = vadd.f32 %v10129, %v9842
  %v10503 = vadd.f32 %v10133, %v9844
  %v10504 = vadd.f32 %v10137, %v9758
  %v10505 = vadd.f32 %v10141, %v9799
  %v10506 = vadd.f32 %v10145, %v9801
  %v10507 = vadd.f32 %v10149, %v9842
  %v10508 = vadd.f32 %v10153, %v9844
  %v10509 = vadd.f32 %v10157, %v9758
  %v10510 = vadd.f32 %v10161, %v9799
  %v10511 = vadd.f32 %v10165, %v9801
  %v10512 = vadd.f32 %v10169, %v9842
  %v10513 = vadd.f32 %v10173, %v9844
  %v10514 = vadd.f32 %v10177, %v9758
  %v10515 = vadd.f32 %v10181, %v9799
  %v10516 = vadd.f32 %v10185, %v9801
  %v10517 = vadd.f32 %v10189, %v9842
  %v10518 = vadd.f32 %v10193, %v9844
  %v10519 = vadd.f32 %v10197, %v9758
  %v10520 = vadd.f32 %v10201, %v9799
  %v10521 = vadd.f32 %v10205, %v9801
  %v10522 = vadd.f32 %v10209, %v9842
  %v10523 = vadd.f32 %v10213, %v9844
  %v10524 = vadd.f32 %v10217, %v9758
  %v10525 = vadd.f32 %v10221, %v9799
  %v10526 = vadd.f32 %v10225, %v9801
  %v10527 = vadd.f32 %v10229, %v9842
  %v10528 = vadd.f32 %v10233, %v9844
  %v10529 = vadd.f32 %v10237, %v9758
  %v10530 = vadd.f32 %v10241, %v9799
  %v10531 = vadd.f32 %v10245, %v9801
  %v10532 = vadd.f32 %v10249, %v9842
  %v10533 = vadd.f32 %v10253, %v9844
  %v10534 = vadd.f32 %v10257, %v9762
  %v10535 = vadd.f32 %v10261, %v9803
  %v10536 = vadd.f32 %v10265, %v9805
  %v10537 = vadd.f32 %v10269, %v9846
  %v10538 = vadd.f32 %v10273, %v9848
  %v10539 = vadd.f32 %v10277, %v9762
  %v10540 = vadd.f32 %v10281, %v9803
  %v10541 = vadd.f32 %v10285, %v9805
  %v10542 = vadd.f32 %v10289, %v9846
  %v10543 = vadd.f32 %v10293, %v9848
  %v10544 = vadd.f32 %v10297, %v9762
  %v10545 = vadd.f32 %v10301, %v9803
  %v10546 = vadd.f32 %v10305, %v9805
  %v10547 = vadd.f32 %v10309, %v9846
  %v10548 = vadd.f32 %v10313, %v9848
  %v10549 = vadd.f32 %v10317, %v9762
  %v10550 = vadd.f32 %v10321, %v9803
  %v10551 = vadd.f32 %v10325, %v9805
  %v10552 = vadd.f32 %v10329, %v9846
  %v10553 = vadd.f32 %v10333, %v9848
  %v10554 = vadd.f32 %v10337, %v9762
  %v10555 = vadd.f32 %v10341, %v9803
  %v10556 = vadd.f32 %v10345, %v9805
  %v10557 = vadd.f32 %v10349, %v9846
  %v10558 = vadd.f32 %v10353, %v9848
  %v10559 = vadd.f32 %v10357, %v9762
  %v10560 = vadd.f32 %v10361, %v9803
  %v10561 = vadd.f32 %v10365, %v9805
  %v10562 = vadd.f32 %v10369, %v9846
  %v10563 = vadd.f32 %v10373, %v9848
  %v10564 = vadd.f32 %v10377, %v9762
  %v10565 = vadd.f32 %v10381, %v9803
  %v10566 = vadd.f32 %v10385, %v9805
  %v10567 = vadd.f32 %v10389, %v9846
  %v10568 = vadd.f32 %v10393, %v9848
  %v10569 = vadd.f32 %v10397, %v9762
  %v10570 = vadd.f32 %v10401, %v9803
  %v10571 = vadd.f32 %v10405, %v9805
  %v10572 = vadd.f32 %v10409, %v9846
  %v10573 = vadd.f32 %v10413, %v9848
  %s10574 = scalar_lea.vmem %s3, 10
  %v10575 = vld [vmem:[%s10574] sm:$0x1f]
  %v10577 = vlaneseq
  %v10578 = vshrl.u32 %v10577, 7
  %v10579 = vsub.s32 0, %v10578
  %v10580 = vrot.slane %v10575, %v10579
  %v10581 = vlaneseq
  %v10582 = vshrl.u32 %v10581, 7
  %v10583 = vsub.s32 1, %v10582
  %v10584 = vrot.slane %v10575, %v10583
  %v10585 = vlaneseq
  %v10586 = vshrl.u32 %v10585, 7
  %v10587 = vsub.s32 2, %v10586
  %v10588 = vrot.slane %v10575, %v10587
  %v10589 = vlaneseq
  %v10590 = vshrl.u32 %v10589, 7
  %v10591 = vsub.s32 3, %v10590
  %v10592 = vrot.slane %v10575, %v10591
  %v10593 = vlaneseq
  %v10594 = vshrl.u32 %v10593, 7
  %v10595 = vsub.s32 4, %v10594
  %v10596 = vrot.slane %v10575, %v10595
  %v10602 = vmul.f32 %v9107, %v10580
  %v10603 = vmul.f32 %v9107, %v10584
  %v10604 = vmul.f32 %v9107, %v10588
  %v10605 = vmul.f32 %v9107, %v10592
  %v10606 = vmul.f32 %v9107, %v10596
  %v10607 = vmul.f32 %v9110, %v10580
  %v10608 = vmul.f32 %v9110, %v10584
  %v10609 = vmul.f32 %v9110, %v10588
  %v10610 = vmul.f32 %v9110, %v10592
  %v10611 = vmul.f32 %v9110, %v10596
  %v10612 = vmul.f32 %v9113, %v10580
  %v10613 = vmul.f32 %v9113, %v10584
  %v10614 = vmul.f32 %v9113, %v10588
  %v10615 = vmul.f32 %v9113, %v10592
  %v10616 = vmul.f32 %v9113, %v10596
  %v10617 = vmul.f32 %v9116, %v10580
  %v10618 = vmul.f32 %v9116, %v10584
  %v10619 = vmul.f32 %v9116, %v10588
  %v10620 = vmul.f32 %v9116, %v10592
  %v10621 = vmul.f32 %v9116, %v10596
  %v10622 = vmul.f32 %v9119, %v10580
  %v10623 = vmul.f32 %v9119, %v10584
  %v10624 = vmul.f32 %v9119, %v10588
  %v10625 = vmul.f32 %v9119, %v10592
  %v10626 = vmul.f32 %v9119, %v10596
  %v10627 = vmul.f32 %v9122, %v10580
  %v10628 = vmul.f32 %v9122, %v10584
  %v10629 = vmul.f32 %v9122, %v10588
  %v10630 = vmul.f32 %v9122, %v10592
  %v10631 = vmul.f32 %v9122, %v10596
  %v10632 = vmul.f32 %v9125, %v10580
  %v10633 = vmul.f32 %v9125, %v10584
  %v10634 = vmul.f32 %v9125, %v10588
  %v10635 = vmul.f32 %v9125, %v10592
  %v10636 = vmul.f32 %v9125, %v10596
  %v10637 = vmul.f32 %v9128, %v10580
  %v10638 = vmul.f32 %v9128, %v10584
  %v10639 = vmul.f32 %v9128, %v10588
  %v10640 = vmul.f32 %v9128, %v10592
  %v10641 = vmul.f32 %v9128, %v10596
  %v10642 = vmul.f32 %v9131, %v10580
  %v10643 = vmul.f32 %v9131, %v10584
  %v10644 = vmul.f32 %v9131, %v10588
  %v10645 = vmul.f32 %v9131, %v10592
  %v10646 = vmul.f32 %v9131, %v10596
  %v10647 = vmul.f32 %v9134, %v10580
  %v10648 = vmul.f32 %v9134, %v10584
  %v10649 = vmul.f32 %v9134, %v10588
  %v10650 = vmul.f32 %v9134, %v10592
  %v10651 = vmul.f32 %v9134, %v10596
  %v10652 = vmul.f32 %v9137, %v10580
  %v10653 = vmul.f32 %v9137, %v10584
  %v10654 = vmul.f32 %v9137, %v10588
  %v10655 = vmul.f32 %v9137, %v10592
  %v10656 = vmul.f32 %v9137, %v10596
  %v10657 = vmul.f32 %v9140, %v10580
  %v10658 = vmul.f32 %v9140, %v10584
  %v10659 = vmul.f32 %v9140, %v10588
  %v10660 = vmul.f32 %v9140, %v10592
  %v10661 = vmul.f32 %v9140, %v10596
  %v10662 = vmul.f32 %v9143, %v10580
  %v10663 = vmul.f32 %v9143, %v10584
  %v10664 = vmul.f32 %v9143, %v10588
  %v10665 = vmul.f32 %v9143, %v10592
  %v10666 = vmul.f32 %v9143, %v10596
  %v10667 = vmul.f32 %v9146, %v10580
  %v10668 = vmul.f32 %v9146, %v10584
  %v10669 = vmul.f32 %v9146, %v10588
  %v10670 = vmul.f32 %v9146, %v10592
  %v10671 = vmul.f32 %v9146, %v10596
  %v10672 = vmul.f32 %v9149, %v10580
  %v10673 = vmul.f32 %v9149, %v10584
  %v10674 = vmul.f32 %v9149, %v10588
  %v10675 = vmul.f32 %v9149, %v10592
  %v10676 = vmul.f32 %v9149, %v10596
  %v10677 = vmul.f32 %v9152, %v10580
  %v10678 = vmul.f32 %v9152, %v10584
  %v10679 = vmul.f32 %v9152, %v10588
  %v10680 = vmul.f32 %v9152, %v10592
  %v10681 = vmul.f32 %v9152, %v10596
  %v10682 = vadd.f32 %v10494, %v10602
  %v10683 = vadd.f32 %v10495, %v10603
  %v10684 = vadd.f32 %v10496, %v10604
  %v10685 = vadd.f32 %v10497, %v10605
  %v10686 = vadd.f32 %v10498, %v10606
  %v10687 = vadd.f32 %v10499, %v10607
  %v10688 = vadd.f32 %v10500, %v10608
  %v10689 = vadd.f32 %v10501, %v10609
  %v10690 = vadd.f32 %v10502, %v10610
  %v10691 = vadd.f32 %v10503, %v10611
  %v10692 = vadd.f32 %v10504, %v10612
  %v10693 = vadd.f32 %v10505, %v10613
  %v10694 = vadd.f32 %v10506, %v10614
  %v10695 = vadd.f32 %v10507, %v10615
  %v10696 = vadd.f32 %v10508, %v10616
  %v10697 = vadd.f32 %v10509, %v10617
  %v10698 = vadd.f32 %v10510, %v10618
  %v10699 = vadd.f32 %v10511, %v10619
  %v10700 = vadd.f32 %v10512, %v10620
  %v10701 = vadd.f32 %v10513, %v10621
  %v10702 = vadd.f32 %v10514, %v10622
  %v10703 = vadd.f32 %v10515, %v10623
  %v10704 = vadd.f32 %v10516, %v10624
  %v10705 = vadd.f32 %v10517, %v10625
  %v10706 = vadd.f32 %v10518, %v10626
  %v10707 = vadd.f32 %v10519, %v10627
  %v10708 = vadd.f32 %v10520, %v10628
  %v10709 = vadd.f32 %v10521, %v10629
  %v10710 = vadd.f32 %v10522, %v10630
  %v10711 = vadd.f32 %v10523, %v10631
  %v10712 = vadd.f32 %v10524, %v10632
  %v10713 = vadd.f32 %v10525, %v10633
  %v10714 = vadd.f32 %v10526, %v10634
  %v10715 = vadd.f32 %v10527, %v10635
  %v10716 = vadd.f32 %v10528, %v10636
  %v10717 = vadd.f32 %v10529, %v10637
  %v10718 = vadd.f32 %v10530, %v10638
  %v10719 = vadd.f32 %v10531, %v10639
  %v10720 = vadd.f32 %v10532, %v10640
  %v10721 = vadd.f32 %v10533, %v10641
  %v10722 = vadd.f32 %v10534, %v10642
  %v10723 = vadd.f32 %v10535, %v10643
  %v10724 = vadd.f32 %v10536, %v10644
  %v10725 = vadd.f32 %v10537, %v10645
  %v10726 = vadd.f32 %v10538, %v10646
  %v10727 = vadd.f32 %v10539, %v10647
  %v10728 = vadd.f32 %v10540, %v10648
  %v10729 = vadd.f32 %v10541, %v10649
  %v10730 = vadd.f32 %v10542, %v10650
  %v10731 = vadd.f32 %v10543, %v10651
  %v10732 = vadd.f32 %v10544, %v10652
  %v10733 = vadd.f32 %v10545, %v10653
  %v10734 = vadd.f32 %v10546, %v10654
  %v10735 = vadd.f32 %v10547, %v10655
  %v10736 = vadd.f32 %v10548, %v10656
  %v10737 = vadd.f32 %v10549, %v10657
  %v10738 = vadd.f32 %v10550, %v10658
  %v10739 = vadd.f32 %v10551, %v10659
  %v10740 = vadd.f32 %v10552, %v10660
  %v10741 = vadd.f32 %v10553, %v10661
  %v10742 = vadd.f32 %v10554, %v10662
  %v10743 = vadd.f32 %v10555, %v10663
  %v10744 = vadd.f32 %v10556, %v10664
  %v10745 = vadd.f32 %v10557, %v10665
  %v10746 = vadd.f32 %v10558, %v10666
  %v10747 = vadd.f32 %v10559, %v10667
  %v10748 = vadd.f32 %v10560, %v10668
  %v10749 = vadd.f32 %v10561, %v10669
  %v10750 = vadd.f32 %v10562, %v10670
  %v10751 = vadd.f32 %v10563, %v10671
  %v10752 = vadd.f32 %v10564, %v10672
  %v10753 = vadd.f32 %v10565, %v10673
  %v10754 = vadd.f32 %v10566, %v10674
  %v10755 = vadd.f32 %v10567, %v10675
  %v10756 = vadd.f32 %v10568, %v10676
  %v10757 = vadd.f32 %v10569, %v10677
  %v10758 = vadd.f32 %v10570, %v10678
  %v10759 = vadd.f32 %v10571, %v10679
  %v10760 = vadd.f32 %v10572, %v10680
  %v10761 = vadd.f32 %v10573, %v10681
  %s10762 = scalar_lea.vmem %s4, 2
  %v10763 = vld [vmem:[%s10762] ss:$4 sm:$0x1f]
  %v10765 = vlaneseq
  %v10766 = vshrl.u32 %v10765, 7
  %v10767 = vsub.s32 0, %v10766
  %v10768 = vrot.slane %v10763, %v10767
  %v10769 = vlaneseq
  %v10770 = vshrl.u32 %v10769, 7
  %v10771 = vsub.s32 1, %v10770
  %v10772 = vrot.slane %v10763, %v10771
  %v10773 = vlaneseq
  %v10774 = vshrl.u32 %v10773, 7
  %v10775 = vsub.s32 2, %v10774
  %v10776 = vrot.slane %v10763, %v10775
  %v10777 = vlaneseq
  %v10778 = vshrl.u32 %v10777, 7
  %v10779 = vsub.s32 3, %v10778
  %v10780 = vrot.slane %v10763, %v10779
  %v10781 = vlaneseq
  %v10782 = vshrl.u32 %v10781, 7
  %v10783 = vsub.s32 4, %v10782
  %v10784 = vrot.slane %v10763, %v10783
  %v10790 = vadd.f32 %v10682, %v10768
  %v10791 = vadd.f32 %v10683, %v10772
  %v10792 = vadd.f32 %v10684, %v10776
  %v10793 = vadd.f32 %v10685, %v10780
  %v10794 = vadd.f32 %v10686, %v10784
  %v10795 = vadd.f32 %v10687, %v10768
  %v10796 = vadd.f32 %v10688, %v10772
  %v10797 = vadd.f32 %v10689, %v10776
  %v10798 = vadd.f32 %v10690, %v10780
  %v10799 = vadd.f32 %v10691, %v10784
  %v10800 = vadd.f32 %v10692, %v10768
  %v10801 = vadd.f32 %v10693, %v10772
  %v10802 = vadd.f32 %v10694, %v10776
  %v10803 = vadd.f32 %v10695, %v10780
  %v10804 = vadd.f32 %v10696, %v10784
  %v10805 = vadd.f32 %v10697, %v10768
  %v10806 = vadd.f32 %v10698, %v10772
  %v10807 = vadd.f32 %v10699, %v10776
  %v10808 = vadd.f32 %v10700, %v10780
  %v10809 = vadd.f32 %v10701, %v10784
  %v10810 = vadd.f32 %v10702, %v10768
  %v10811 = vadd.f32 %v10703, %v10772
  %v10812 = vadd.f32 %v10704, %v10776
  %v10813 = vadd.f32 %v10705, %v10780
  %v10814 = vadd.f32 %v10706, %v10784
  %v10815 = vadd.f32 %v10707, %v10768
  %v10816 = vadd.f32 %v10708, %v10772
  %v10817 = vadd.f32 %v10709, %v10776
  %v10818 = vadd.f32 %v10710, %v10780
  %v10819 = vadd.f32 %v10711, %v10784
  %v10820 = vadd.f32 %v10712, %v10768
  %v10821 = vadd.f32 %v10713, %v10772
  %v10822 = vadd.f32 %v10714, %v10776
  %v10823 = vadd.f32 %v10715, %v10780
  %v10824 = vadd.f32 %v10716, %v10784
  %v10825 = vadd.f32 %v10717, %v10768
  %v10826 = vadd.f32 %v10718, %v10772
  %v10827 = vadd.f32 %v10719, %v10776
  %v10828 = vadd.f32 %v10720, %v10780
  %v10829 = vadd.f32 %v10721, %v10784
  %v10830 = vadd.f32 %v10722, %v10768
  %v10831 = vadd.f32 %v10723, %v10772
  %v10832 = vadd.f32 %v10724, %v10776
  %v10833 = vadd.f32 %v10725, %v10780
  %v10834 = vadd.f32 %v10726, %v10784
  %v10835 = vadd.f32 %v10727, %v10768
  %v10836 = vadd.f32 %v10728, %v10772
  %v10837 = vadd.f32 %v10729, %v10776
  %v10838 = vadd.f32 %v10730, %v10780
  %v10839 = vadd.f32 %v10731, %v10784
  %v10840 = vadd.f32 %v10732, %v10768
  %v10841 = vadd.f32 %v10733, %v10772
  %v10842 = vadd.f32 %v10734, %v10776
  %v10843 = vadd.f32 %v10735, %v10780
  %v10844 = vadd.f32 %v10736, %v10784
  %v10845 = vadd.f32 %v10737, %v10768
  %v10846 = vadd.f32 %v10738, %v10772
  %v10847 = vadd.f32 %v10739, %v10776
  %v10848 = vadd.f32 %v10740, %v10780
  %v10849 = vadd.f32 %v10741, %v10784
  %v10850 = vadd.f32 %v10742, %v10768
  %v10851 = vadd.f32 %v10743, %v10772
  %v10852 = vadd.f32 %v10744, %v10776
  %v10853 = vadd.f32 %v10745, %v10780
  %v10854 = vadd.f32 %v10746, %v10784
  %v10855 = vadd.f32 %v10747, %v10768
  %v10856 = vadd.f32 %v10748, %v10772
  %v10857 = vadd.f32 %v10749, %v10776
  %v10858 = vadd.f32 %v10750, %v10780
  %v10859 = vadd.f32 %v10751, %v10784
  %v10860 = vadd.f32 %v10752, %v10768
  %v10861 = vadd.f32 %v10753, %v10772
  %v10862 = vadd.f32 %v10754, %v10776
  %v10863 = vadd.f32 %v10755, %v10780
  %v10864 = vadd.f32 %v10756, %v10784
  %v10865 = vadd.f32 %v10757, %v10768
  %v10866 = vadd.f32 %v10758, %v10772
  %v10867 = vadd.f32 %v10759, %v10776
  %v10868 = vadd.f32 %v10760, %v10780
  %v10869 = vadd.f32 %v10761, %v10784
  %v10870 = vsub.f32 0.0, %v10790
  %v10871 = vsub.f32 0.0, %v10791
  %v10872 = vsub.f32 0.0, %v10792
  %v10873 = vsub.f32 0.0, %v10793
  %v10874 = vsub.f32 0.0, %v10794
  %v10875 = vsub.f32 0.0, %v10795
  %v10876 = vsub.f32 0.0, %v10796
  %v10877 = vsub.f32 0.0, %v10797
  %v10878 = vsub.f32 0.0, %v10798
  %v10879 = vsub.f32 0.0, %v10799
  %v10880 = vsub.f32 0.0, %v10800
  %v10881 = vsub.f32 0.0, %v10801
  %v10882 = vsub.f32 0.0, %v10802
  %v10883 = vsub.f32 0.0, %v10803
  %v10884 = vsub.f32 0.0, %v10804
  %v10885 = vsub.f32 0.0, %v10805
  %v10886 = vsub.f32 0.0, %v10806
  %v10887 = vsub.f32 0.0, %v10807
  %v10888 = vsub.f32 0.0, %v10808
  %v10889 = vsub.f32 0.0, %v10809
  %v10890 = vsub.f32 0.0, %v10810
  %v10891 = vsub.f32 0.0, %v10811
  %v10892 = vsub.f32 0.0, %v10812
  %v10893 = vsub.f32 0.0, %v10813
  %v10894 = vsub.f32 0.0, %v10814
  %v10895 = vsub.f32 0.0, %v10815
  %v10896 = vsub.f32 0.0, %v10816
  %v10897 = vsub.f32 0.0, %v10817
  %v10898 = vsub.f32 0.0, %v10818
  %v10899 = vsub.f32 0.0, %v10819
  %v10900 = vsub.f32 0.0, %v10820
  %v10901 = vsub.f32 0.0, %v10821
  %v10902 = vsub.f32 0.0, %v10822
  %v10903 = vsub.f32 0.0, %v10823
  %v10904 = vsub.f32 0.0, %v10824
  %v10905 = vsub.f32 0.0, %v10825
  %v10906 = vsub.f32 0.0, %v10826
  %v10907 = vsub.f32 0.0, %v10827
  %v10908 = vsub.f32 0.0, %v10828
  %v10909 = vsub.f32 0.0, %v10829
  %v10910 = vsub.f32 0.0, %v10830
  %v10911 = vsub.f32 0.0, %v10831
  %v10912 = vsub.f32 0.0, %v10832
  %v10913 = vsub.f32 0.0, %v10833
  %v10914 = vsub.f32 0.0, %v10834
  %v10915 = vsub.f32 0.0, %v10835
  %v10916 = vsub.f32 0.0, %v10836
  %v10917 = vsub.f32 0.0, %v10837
  %v10918 = vsub.f32 0.0, %v10838
  %v10919 = vsub.f32 0.0, %v10839
  %v10920 = vsub.f32 0.0, %v10840
  %v10921 = vsub.f32 0.0, %v10841
  %v10922 = vsub.f32 0.0, %v10842
  %v10923 = vsub.f32 0.0, %v10843
  %v10924 = vsub.f32 0.0, %v10844
  %v10925 = vsub.f32 0.0, %v10845
  %v10926 = vsub.f32 0.0, %v10846
  %v10927 = vsub.f32 0.0, %v10847
  %v10928 = vsub.f32 0.0, %v10848
  %v10929 = vsub.f32 0.0, %v10849
  %v10930 = vsub.f32 0.0, %v10850
  %v10931 = vsub.f32 0.0, %v10851
  %v10932 = vsub.f32 0.0, %v10852
  %v10933 = vsub.f32 0.0, %v10853
  %v10934 = vsub.f32 0.0, %v10854
  %v10935 = vsub.f32 0.0, %v10855
  %v10936 = vsub.f32 0.0, %v10856
  %v10937 = vsub.f32 0.0, %v10857
  %v10938 = vsub.f32 0.0, %v10858
  %v10939 = vsub.f32 0.0, %v10859
  %v10940 = vsub.f32 0.0, %v10860
  %v10941 = vsub.f32 0.0, %v10861
  %v10942 = vsub.f32 0.0, %v10862
  %v10943 = vsub.f32 0.0, %v10863
  %v10944 = vsub.f32 0.0, %v10864
  %v10945 = vsub.f32 0.0, %v10865
  %v10946 = vsub.f32 0.0, %v10866
  %v10947 = vsub.f32 0.0, %v10867
  %v10948 = vsub.f32 0.0, %v10868
  %v10949 = vsub.f32 0.0, %v10869
  %v10950 = vmul.f32 %v10870, 1.442695
  %v10951 = vpow.pop %v10950
  %v10952 = vmul.f32 %v10871, 1.442695
  %v10953 = vpow.pop %v10952
  %v10954 = vmul.f32 %v10872, 1.442695
  %v10955 = vpow.pop %v10954
  %v10956 = vmul.f32 %v10873, 1.442695
  %v10957 = vpow.pop %v10956
  %v10958 = vmul.f32 %v10874, 1.442695
  %v10959 = vpow.pop %v10958
  %v10960 = vmul.f32 %v10875, 1.442695
  %v10961 = vpow.pop %v10960
  %v10962 = vmul.f32 %v10876, 1.442695
  %v10963 = vpow.pop %v10962
  %v10964 = vmul.f32 %v10877, 1.442695
  %v10965 = vpow.pop %v10964
  %v10966 = vmul.f32 %v10878, 1.442695
  %v10967 = vpow.pop %v10966
  %v10968 = vmul.f32 %v10879, 1.442695
  %v10969 = vpow.pop %v10968
  %v10970 = vmul.f32 %v10880, 1.442695
  %v10971 = vpow.pop %v10970
  %v10972 = vmul.f32 %v10881, 1.442695
  %v10973 = vpow.pop %v10972
  %v10974 = vmul.f32 %v10882, 1.442695
  %v10975 = vpow.pop %v10974
  %v10976 = vmul.f32 %v10883, 1.442695
  %v10977 = vpow.pop %v10976
  %v10978 = vmul.f32 %v10884, 1.442695
  %v10979 = vpow.pop %v10978
  %v10980 = vmul.f32 %v10885, 1.442695
  %v10981 = vpow.pop %v10980
  %v10982 = vmul.f32 %v10886, 1.442695
  %v10983 = vpow.pop %v10982
  %v10984 = vmul.f32 %v10887, 1.442695
  %v10985 = vpow.pop %v10984
  %v10986 = vmul.f32 %v10888, 1.442695
  %v10987 = vpow.pop %v10986
  %v10988 = vmul.f32 %v10889, 1.442695
  %v10989 = vpow.pop %v10988
  %v10990 = vmul.f32 %v10890, 1.442695
  %v10991 = vpow.pop %v10990
  %v10992 = vmul.f32 %v10891, 1.442695
  %v10993 = vpow.pop %v10992
  %v10994 = vmul.f32 %v10892, 1.442695
  %v10995 = vpow.pop %v10994
  %v10996 = vmul.f32 %v10893, 1.442695
  %v10997 = vpow.pop %v10996
  %v10998 = vmul.f32 %v10894, 1.442695
  %v10999 = vpow.pop %v10998
  %v11000 = vmul.f32 %v10895, 1.442695
  %v11001 = vpow.pop %v11000
  %v11002 = vmul.f32 %v10896, 1.442695
  %v11003 = vpow.pop %v11002
  %v11004 = vmul.f32 %v10897, 1.442695
  %v11005 = vpow.pop %v11004
  %v11006 = vmul.f32 %v10898, 1.442695
  %v11007 = vpow.pop %v11006
  %v11008 = vmul.f32 %v10899, 1.442695
  %v11009 = vpow.pop %v11008
  %v11010 = vmul.f32 %v10900, 1.442695
  %v11011 = vpow.pop %v11010
  %v11012 = vmul.f32 %v10901, 1.442695
  %v11013 = vpow.pop %v11012
  %v11014 = vmul.f32 %v10902, 1.442695
  %v11015 = vpow.pop %v11014
  %v11016 = vmul.f32 %v10903, 1.442695
  %v11017 = vpow.pop %v11016
  %v11018 = vmul.f32 %v10904, 1.442695
  %v11019 = vpow.pop %v11018
  %v11020 = vmul.f32 %v10905, 1.442695
  %v11021 = vpow.pop %v11020
  %v11022 = vmul.f32 %v10906, 1.442695
  %v11023 = vpow.pop %v11022
  %v11024 = vmul.f32 %v10907, 1.442695
  %v11025 = vpow.pop %v11024
  %v11026 = vmul.f32 %v10908, 1.442695
  %v11027 = vpow.pop %v11026
  %v11028 = vmul.f32 %v10909, 1.442695
  %v11029 = vpow.pop %v11028
  %v11030 = vmul.f32 %v10910, 1.442695
  %v11031 = vpow.pop %v11030
  %v11032 = vmul.f32 %v10911, 1.442695
  %v11033 = vpow.pop %v11032
  %v11034 = vmul.f32 %v10912, 1.442695
  %v11035 = vpow.pop %v11034
  %v11036 = vmul.f32 %v10913, 1.442695
  %v11037 = vpow.pop %v11036
  %v11038 = vmul.f32 %v10914, 1.442695
  %v11039 = vpow.pop %v11038
  %v11040 = vmul.f32 %v10915, 1.442695
  %v11041 = vpow.pop %v11040
  %v11042 = vmul.f32 %v10916, 1.442695
  %v11043 = vpow.pop %v11042
  %v11044 = vmul.f32 %v10917, 1.442695
  %v11045 = vpow.pop %v11044
  %v11046 = vmul.f32 %v10918, 1.442695
  %v11047 = vpow.pop %v11046
  %v11048 = vmul.f32 %v10919, 1.442695
  %v11049 = vpow.pop %v11048
  %v11050 = vmul.f32 %v10920, 1.442695
  %v11051 = vpow.pop %v11050
  %v11052 = vmul.f32 %v10921, 1.442695
  %v11053 = vpow.pop %v11052
  %v11054 = vmul.f32 %v10922, 1.442695
  %v11055 = vpow.pop %v11054
  %v11056 = vmul.f32 %v10923, 1.442695
  %v11057 = vpow.pop %v11056
  %v11058 = vmul.f32 %v10924, 1.442695
  %v11059 = vpow.pop %v11058
  %v11060 = vmul.f32 %v10925, 1.442695
  %v11061 = vpow.pop %v11060
  %v11062 = vmul.f32 %v10926, 1.442695
  %v11063 = vpow.pop %v11062
  %v11064 = vmul.f32 %v10927, 1.442695
  %v11065 = vpow.pop %v11064
  %v11066 = vmul.f32 %v10928, 1.442695
  %v11067 = vpow.pop %v11066
  %v11068 = vmul.f32 %v10929, 1.442695
  %v11069 = vpow.pop %v11068
  %v11070 = vmul.f32 %v10930, 1.442695
  %v11071 = vpow.pop %v11070
  %v11072 = vmul.f32 %v10931, 1.442695
  %v11073 = vpow.pop %v11072
  %v11074 = vmul.f32 %v10932, 1.442695
  %v11075 = vpow.pop %v11074
  %v11076 = vmul.f32 %v10933, 1.442695
  %v11077 = vpow.pop %v11076
  %v11078 = vmul.f32 %v10934, 1.442695
  %v11079 = vpow.pop %v11078
  %v11080 = vmul.f32 %v10935, 1.442695
  %v11081 = vpow.pop %v11080
  %v11082 = vmul.f32 %v10936, 1.442695
  %v11083 = vpow.pop %v11082
  %v11084 = vmul.f32 %v10937, 1.442695
  %v11085 = vpow.pop %v11084
  %v11086 = vmul.f32 %v10938, 1.442695
  %v11087 = vpow.pop %v11086
  %v11088 = vmul.f32 %v10939, 1.442695
  %v11089 = vpow.pop %v11088
  %v11090 = vmul.f32 %v10940, 1.442695
  %v11091 = vpow.pop %v11090
  %v11092 = vmul.f32 %v10941, 1.442695
  %v11093 = vpow.pop %v11092
  %v11094 = vmul.f32 %v10942, 1.442695
  %v11095 = vpow.pop %v11094
  %v11096 = vmul.f32 %v10943, 1.442695
  %v11097 = vpow.pop %v11096
  %v11098 = vmul.f32 %v10944, 1.442695
  %v11099 = vpow.pop %v11098
  %v11100 = vmul.f32 %v10945, 1.442695
  %v11101 = vpow.pop %v11100
  %v11102 = vmul.f32 %v10946, 1.442695
  %v11103 = vpow.pop %v11102
  %v11104 = vmul.f32 %v10947, 1.442695
  %v11105 = vpow.pop %v11104
  %v11106 = vmul.f32 %v10948, 1.442695
  %v11107 = vpow.pop %v11106
  %v11108 = vmul.f32 %v10949, 1.442695
  %v11109 = vpow.pop %v11108
  %v11110 = vadd.f32 %v10951, 1.0
  %v11111 = vadd.f32 %v10953, 1.0
  %v11112 = vadd.f32 %v10955, 1.0
  %v11113 = vadd.f32 %v10957, 1.0
  %v11114 = vadd.f32 %v10959, 1.0
  %v11115 = vadd.f32 %v10961, 1.0
  %v11116 = vadd.f32 %v10963, 1.0
  %v11117 = vadd.f32 %v10965, 1.0
  %v11118 = vadd.f32 %v10967, 1.0
  %v11119 = vadd.f32 %v10969, 1.0
  %v11120 = vadd.f32 %v10971, 1.0
  %v11121 = vadd.f32 %v10973, 1.0
  %v11122 = vadd.f32 %v10975, 1.0
  %v11123 = vadd.f32 %v10977, 1.0
  %v11124 = vadd.f32 %v10979, 1.0
  %v11125 = vadd.f32 %v10981, 1.0
  %v11126 = vadd.f32 %v10983, 1.0
  %v11127 = vadd.f32 %v10985, 1.0
  %v11128 = vadd.f32 %v10987, 1.0
  %v11129 = vadd.f32 %v10989, 1.0
  %v11130 = vadd.f32 %v10991, 1.0
  %v11131 = vadd.f32 %v10993, 1.0
  %v11132 = vadd.f32 %v10995, 1.0
  %v11133 = vadd.f32 %v10997, 1.0
  %v11134 = vadd.f32 %v10999, 1.0
  %v11135 = vadd.f32 %v11001, 1.0
  %v11136 = vadd.f32 %v11003, 1.0
  %v11137 = vadd.f32 %v11005, 1.0
  %v11138 = vadd.f32 %v11007, 1.0
  %v11139 = vadd.f32 %v11009, 1.0
  %v11140 = vadd.f32 %v11011, 1.0
  %v11141 = vadd.f32 %v11013, 1.0
  %v11142 = vadd.f32 %v11015, 1.0
  %v11143 = vadd.f32 %v11017, 1.0
  %v11144 = vadd.f32 %v11019, 1.0
  %v11145 = vadd.f32 %v11021, 1.0
  %v11146 = vadd.f32 %v11023, 1.0
  %v11147 = vadd.f32 %v11025, 1.0
  %v11148 = vadd.f32 %v11027, 1.0
  %v11149 = vadd.f32 %v11029, 1.0
  %v11150 = vadd.f32 %v11031, 1.0
  %v11151 = vadd.f32 %v11033, 1.0
  %v11152 = vadd.f32 %v11035, 1.0
  %v11153 = vadd.f32 %v11037, 1.0
  %v11154 = vadd.f32 %v11039, 1.0
  %v11155 = vadd.f32 %v11041, 1.0
  %v11156 = vadd.f32 %v11043, 1.0
  %v11157 = vadd.f32 %v11045, 1.0
  %v11158 = vadd.f32 %v11047, 1.0
  %v11159 = vadd.f32 %v11049, 1.0
  %v11160 = vadd.f32 %v11051, 1.0
  %v11161 = vadd.f32 %v11053, 1.0
  %v11162 = vadd.f32 %v11055, 1.0
  %v11163 = vadd.f32 %v11057, 1.0
  %v11164 = vadd.f32 %v11059, 1.0
  %v11165 = vadd.f32 %v11061, 1.0
  %v11166 = vadd.f32 %v11063, 1.0
  %v11167 = vadd.f32 %v11065, 1.0
  %v11168 = vadd.f32 %v11067, 1.0
  %v11169 = vadd.f32 %v11069, 1.0
  %v11170 = vadd.f32 %v11071, 1.0
  %v11171 = vadd.f32 %v11073, 1.0
  %v11172 = vadd.f32 %v11075, 1.0
  %v11173 = vadd.f32 %v11077, 1.0
  %v11174 = vadd.f32 %v11079, 1.0
  %v11175 = vadd.f32 %v11081, 1.0
  %v11176 = vadd.f32 %v11083, 1.0
  %v11177 = vadd.f32 %v11085, 1.0
  %v11178 = vadd.f32 %v11087, 1.0
  %v11179 = vadd.f32 %v11089, 1.0
  %v11180 = vadd.f32 %v11091, 1.0
  %v11181 = vadd.f32 %v11093, 1.0
  %v11182 = vadd.f32 %v11095, 1.0
  %v11183 = vadd.f32 %v11097, 1.0
  %v11184 = vadd.f32 %v11099, 1.0
  %v11185 = vadd.f32 %v11101, 1.0
  %v11186 = vadd.f32 %v11103, 1.0
  %v11187 = vadd.f32 %v11105, 1.0
  %v11188 = vadd.f32 %v11107, 1.0
  %v11189 = vadd.f32 %v11109, 1.0
  %v11190 = vrcp.pop %v11110
  %v11191 = vrcp.pop %v11111
  %v11192 = vrcp.pop %v11112
  %v11193 = vrcp.pop %v11113
  %v11194 = vrcp.pop %v11114
  %v11195 = vrcp.pop %v11115
  %v11196 = vrcp.pop %v11116
  %v11197 = vrcp.pop %v11117
  %v11198 = vrcp.pop %v11118
  %v11199 = vrcp.pop %v11119
  %v11200 = vrcp.pop %v11120
  %v11201 = vrcp.pop %v11121
  %v11202 = vrcp.pop %v11122
  %v11203 = vrcp.pop %v11123
  %v11204 = vrcp.pop %v11124
  %v11205 = vrcp.pop %v11125
  %v11206 = vrcp.pop %v11126
  %v11207 = vrcp.pop %v11127
  %v11208 = vrcp.pop %v11128
  %v11209 = vrcp.pop %v11129
  %v11210 = vrcp.pop %v11130
  %v11211 = vrcp.pop %v11131
  %v11212 = vrcp.pop %v11132
  %v11213 = vrcp.pop %v11133
  %v11214 = vrcp.pop %v11134
  %v11215 = vrcp.pop %v11135
  %v11216 = vrcp.pop %v11136
  %v11217 = vrcp.pop %v11137
  %v11218 = vrcp.pop %v11138
  %v11219 = vrcp.pop %v11139
  %v11220 = vrcp.pop %v11140
  %v11221 = vrcp.pop %v11141
  %v11222 = vrcp.pop %v11142
  %v11223 = vrcp.pop %v11143
  %v11224 = vrcp.pop %v11144
  %v11225 = vrcp.pop %v11145
  %v11226 = vrcp.pop %v11146
  %v11227 = vrcp.pop %v11147
  %v11228 = vrcp.pop %v11148
  %v11229 = vrcp.pop %v11149
  %v11230 = vrcp.pop %v11150
  %v11231 = vrcp.pop %v11151
  %v11232 = vrcp.pop %v11152
  %v11233 = vrcp.pop %v11153
  %v11234 = vrcp.pop %v11154
  %v11235 = vrcp.pop %v11155
  %v11236 = vrcp.pop %v11156
  %v11237 = vrcp.pop %v11157
  %v11238 = vrcp.pop %v11158
  %v11239 = vrcp.pop %v11159
  %v11240 = vrcp.pop %v11160
  %v11241 = vrcp.pop %v11161
  %v11242 = vrcp.pop %v11162
  %v11243 = vrcp.pop %v11163
  %v11244 = vrcp.pop %v11164
  %v11245 = vrcp.pop %v11165
  %v11246 = vrcp.pop %v11166
  %v11247 = vrcp.pop %v11167
  %v11248 = vrcp.pop %v11168
  %v11249 = vrcp.pop %v11169
  %v11250 = vrcp.pop %v11170
  %v11251 = vrcp.pop %v11171
  %v11252 = vrcp.pop %v11172
  %v11253 = vrcp.pop %v11173
  %v11254 = vrcp.pop %v11174
  %v11255 = vrcp.pop %v11175
  %v11256 = vrcp.pop %v11176
  %v11257 = vrcp.pop %v11177
  %v11258 = vrcp.pop %v11178
  %v11259 = vrcp.pop %v11179
  %v11260 = vrcp.pop %v11180
  %v11261 = vrcp.pop %v11181
  %v11262 = vrcp.pop %v11182
  %v11263 = vrcp.pop %v11183
  %v11264 = vrcp.pop %v11184
  %v11265 = vrcp.pop %v11185
  %v11266 = vrcp.pop %v11186
  %v11267 = vrcp.pop %v11187
  %v11268 = vrcp.pop %v11188
  %v11269 = vrcp.pop %v11189
  %v11270 = vmul.f32 %v10790, %v11190
  %v11271 = vmul.f32 %v10791, %v11191
  %v11272 = vmul.f32 %v10792, %v11192
  %v11273 = vmul.f32 %v10793, %v11193
  %v11274 = vmul.f32 %v10794, %v11194
  %v11275 = vmul.f32 %v10795, %v11195
  %v11276 = vmul.f32 %v10796, %v11196
  %v11277 = vmul.f32 %v10797, %v11197
  %v11278 = vmul.f32 %v10798, %v11198
  %v11279 = vmul.f32 %v10799, %v11199
  %v11280 = vmul.f32 %v10800, %v11200
  %v11281 = vmul.f32 %v10801, %v11201
  %v11282 = vmul.f32 %v10802, %v11202
  %v11283 = vmul.f32 %v10803, %v11203
  %v11284 = vmul.f32 %v10804, %v11204
  %v11285 = vmul.f32 %v10805, %v11205
  %v11286 = vmul.f32 %v10806, %v11206
  %v11287 = vmul.f32 %v10807, %v11207
  %v11288 = vmul.f32 %v10808, %v11208
  %v11289 = vmul.f32 %v10809, %v11209
  %v11290 = vmul.f32 %v10810, %v11210
  %v11291 = vmul.f32 %v10811, %v11211
  %v11292 = vmul.f32 %v10812, %v11212
  %v11293 = vmul.f32 %v10813, %v11213
  %v11294 = vmul.f32 %v10814, %v11214
  %v11295 = vmul.f32 %v10815, %v11215
  %v11296 = vmul.f32 %v10816, %v11216
  %v11297 = vmul.f32 %v10817, %v11217
  %v11298 = vmul.f32 %v10818, %v11218
  %v11299 = vmul.f32 %v10819, %v11219
  %v11300 = vmul.f32 %v10820, %v11220
  %v11301 = vmul.f32 %v10821, %v11221
  %v11302 = vmul.f32 %v10822, %v11222
  %v11303 = vmul.f32 %v10823, %v11223
  %v11304 = vmul.f32 %v10824, %v11224
  %v11305 = vmul.f32 %v10825, %v11225
  %v11306 = vmul.f32 %v10826, %v11226
  %v11307 = vmul.f32 %v10827, %v11227
  %v11308 = vmul.f32 %v10828, %v11228
  %v11309 = vmul.f32 %v10829, %v11229
  %v11310 = vmul.f32 %v10830, %v11230
  %v11311 = vmul.f32 %v10831, %v11231
  %v11312 = vmul.f32 %v10832, %v11232
  %v11313 = vmul.f32 %v10833, %v11233
  %v11314 = vmul.f32 %v10834, %v11234
  %v11315 = vmul.f32 %v10835, %v11235
  %v11316 = vmul.f32 %v10836, %v11236
  %v11317 = vmul.f32 %v10837, %v11237
  %v11318 = vmul.f32 %v10838, %v11238
  %v11319 = vmul.f32 %v10839, %v11239
  %v11320 = vmul.f32 %v10840, %v11240
  %v11321 = vmul.f32 %v10841, %v11241
  %v11322 = vmul.f32 %v10842, %v11242
  %v11323 = vmul.f32 %v10843, %v11243
  %v11324 = vmul.f32 %v10844, %v11244
  %v11325 = vmul.f32 %v10845, %v11245
  %v11326 = vmul.f32 %v10846, %v11246
  %v11327 = vmul.f32 %v10847, %v11247
  %v11328 = vmul.f32 %v10848, %v11248
  %v11329 = vmul.f32 %v10849, %v11249
  %v11330 = vmul.f32 %v10850, %v11250
  %v11331 = vmul.f32 %v10851, %v11251
  %v11332 = vmul.f32 %v10852, %v11252
  %v11333 = vmul.f32 %v10853, %v11253
  %v11334 = vmul.f32 %v10854, %v11254
  %v11335 = vmul.f32 %v10855, %v11255
  %v11336 = vmul.f32 %v10856, %v11256
  %v11337 = vmul.f32 %v10857, %v11257
  %v11338 = vmul.f32 %v10858, %v11258
  %v11339 = vmul.f32 %v10859, %v11259
  %v11340 = vmul.f32 %v10860, %v11260
  %v11341 = vmul.f32 %v10861, %v11261
  %v11342 = vmul.f32 %v10862, %v11262
  %v11343 = vmul.f32 %v10863, %v11263
  %v11344 = vmul.f32 %v10864, %v11264
  %v11345 = vmul.f32 %v10865, %v11265
  %v11346 = vmul.f32 %v10866, %v11266
  %v11347 = vmul.f32 %v10867, %v11267
  %v11348 = vmul.f32 %v10868, %v11268
  %v11349 = vmul.f32 %v10869, %v11269
  %v11350 = vpack.c.bf16 %v11275, %v11270
  %v11351 = vpack.c.bf16 %v11276, %v11271
  %v11352 = vpack.c.bf16 %v11277, %v11272
  %v11353 = vpack.c.bf16 %v11278, %v11273
  %v11354 = vpack.c.bf16 %v11279, %v11274
  %v11355 = vpack.c.bf16 %v11285, %v11280
  %v11356 = vpack.c.bf16 %v11286, %v11281
  %v11357 = vpack.c.bf16 %v11287, %v11282
  %v11358 = vpack.c.bf16 %v11288, %v11283
  %v11359 = vpack.c.bf16 %v11289, %v11284
  %v11360 = vpack.c.bf16 %v11295, %v11290
  %v11361 = vpack.c.bf16 %v11296, %v11291
  %v11362 = vpack.c.bf16 %v11297, %v11292
  %v11363 = vpack.c.bf16 %v11298, %v11293
  %v11364 = vpack.c.bf16 %v11299, %v11294
  %v11365 = vpack.c.bf16 %v11305, %v11300
  %v11366 = vpack.c.bf16 %v11306, %v11301
  %v11367 = vpack.c.bf16 %v11307, %v11302
  %v11368 = vpack.c.bf16 %v11308, %v11303
  %v11369 = vpack.c.bf16 %v11309, %v11304
  %v11370 = vpack.c.bf16 %v11315, %v11310
  %v11371 = vpack.c.bf16 %v11316, %v11311
  %v11372 = vpack.c.bf16 %v11317, %v11312
  %v11373 = vpack.c.bf16 %v11318, %v11313
  %v11374 = vpack.c.bf16 %v11319, %v11314
  %v11375 = vpack.c.bf16 %v11325, %v11320
  %v11376 = vpack.c.bf16 %v11326, %v11321
  %v11377 = vpack.c.bf16 %v11327, %v11322
  %v11378 = vpack.c.bf16 %v11328, %v11323
  %v11379 = vpack.c.bf16 %v11329, %v11324
  %v11380 = vpack.c.bf16 %v11335, %v11330
  %v11381 = vpack.c.bf16 %v11336, %v11331
  %v11382 = vpack.c.bf16 %v11337, %v11332
  %v11383 = vpack.c.bf16 %v11338, %v11333
  %v11384 = vpack.c.bf16 %v11339, %v11334
  %v11385 = vpack.c.bf16 %v11345, %v11340
  %v11386 = vpack.c.bf16 %v11346, %v11341
  %v11387 = vpack.c.bf16 %v11347, %v11342
  %v11388 = vpack.c.bf16 %v11348, %v11343
  %v11389 = vpack.c.bf16 %v11349, %v11344
  %s11390 = scalar_lea.vmem %s5, 640
  %v11391 = vld [vmem:[%s11390] sm:$0xf]
  %v11392 = vld [vmem:[%s11390 + $0x4] sm:$0xf]
  %v11393 = vld [vmem:[%s11390 + $0x8] sm:$0xf]
  %v11394 = vld [vmem:[%s11390 + $0xc] sm:$0xf]
  %v11395 = vld [vmem:[%s11390 + $0x10] sm:$0xf]
  %v11396 = vld [vmem:[%s11390 + $0x14] sm:$0xf]
  %v11397 = vld [vmem:[%s11390 + $0x18] sm:$0xf]
  %v11398 = vld [vmem:[%s11390 + $0x1c] sm:$0xf]
  %v11399 = vld [vmem:[%s11390 + $0x20] sm:$0xf]
  %v11400 = vld [vmem:[%s11390 + $0x24] sm:$0xf]
  %v11401 = vld [vmem:[%s11390 + $0x28] sm:$0xf]
  %v11402 = vld [vmem:[%s11390 + $0x2c] sm:$0xf]
  %v11403 = vld [vmem:[%s11390 + $0x30] sm:$0xf]
  %v11404 = vld [vmem:[%s11390 + $0x34] sm:$0xf]
  %v11405 = vld [vmem:[%s11390 + $0x38] sm:$0xf]
  %v11406 = vld [vmem:[%s11390 + $0x3c] sm:$0xf]
  %v11407 = vld [vmem:[%s11390 + $0x40] sm:$0xf]
  %v11408 = vld [vmem:[%s11390 + $0x44] sm:$0xf]
  %v11409 = vld [vmem:[%s11390 + $0x48] sm:$0xf]
  %v11410 = vld [vmem:[%s11390 + $0x4c] sm:$0xf]
  %v11411 = vld [vmem:[%s11390 + $0x50] sm:$0xf]
  %v11412 = vld [vmem:[%s11390 + $0x54] sm:$0xf]
  %v11413 = vld [vmem:[%s11390 + $0x58] sm:$0xf]
  %v11414 = vld [vmem:[%s11390 + $0x5c] sm:$0xf]
  %v11415 = vld [vmem:[%s11390 + $0x60] sm:$0xf]
  %v11416 = vld [vmem:[%s11390 + $0x64] sm:$0xf]
  %v11417 = vld [vmem:[%s11390 + $0x68] sm:$0xf]
  %v11418 = vld [vmem:[%s11390 + $0x6c] sm:$0xf]
  %v11419 = vld [vmem:[%s11390 + $0x70] sm:$0xf]
  %v11420 = vld [vmem:[%s11390 + $0x74] sm:$0xf]
  %v11421 = vld [vmem:[%s11390 + $0x78] sm:$0xf]
  %v11422 = vld [vmem:[%s11390 + $0x7c] sm:$0xf]
  %v11423 = vld [vmem:[%s11390 + $0x80] sm:$0xf]
  %v11424 = vld [vmem:[%s11390 + $0x84] sm:$0xf]
  %v11425 = vld [vmem:[%s11390 + $0x88] sm:$0xf]
  %v11426 = vld [vmem:[%s11390 + $0x8c] sm:$0xf]
  %v11427 = vld [vmem:[%s11390 + $0x90] sm:$0xf]
  %v11428 = vld [vmem:[%s11390 + $0x94] sm:$0xf]
  %v11429 = vld [vmem:[%s11390 + $0x98] sm:$0xf]
  %v11430 = vld [vmem:[%s11390 + $0x9c] sm:$0xf]
  %v11431 = vld [vmem:[%s11390 + $0xa0] sm:$0xf]
  %v11432 = vld [vmem:[%s11390 + $0xa4] sm:$0xf]
  %v11433 = vld [vmem:[%s11390 + $0xa8] sm:$0xf]
  %v11434 = vld [vmem:[%s11390 + $0xac] sm:$0xf]
  %v11435 = vld [vmem:[%s11390 + $0xb0] sm:$0xf]
  %v11436 = vld [vmem:[%s11390 + $0xb4] sm:$0xf]
  %v11437 = vld [vmem:[%s11390 + $0xb8] sm:$0xf]
  %v11438 = vld [vmem:[%s11390 + $0xbc] sm:$0xf]
  %v11439 = vld [vmem:[%s11390 + $0xc0] sm:$0xf]
  %v11440 = vld [vmem:[%s11390 + $0xc4] sm:$0xf]
  %v11441 = vld [vmem:[%s11390 + $0xc8] sm:$0xf]
  %v11442 = vld [vmem:[%s11390 + $0xcc] sm:$0xf]
  %v11443 = vld [vmem:[%s11390 + $0xd0] sm:$0xf]
  %v11444 = vld [vmem:[%s11390 + $0xd4] sm:$0xf]
  %v11445 = vld [vmem:[%s11390 + $0xd8] sm:$0xf]
  %v11446 = vld [vmem:[%s11390 + $0xdc] sm:$0xf]
  %v11447 = vld [vmem:[%s11390 + $0xe0] sm:$0xf]
  %v11448 = vld [vmem:[%s11390 + $0xe4] sm:$0xf]
  %v11449 = vld [vmem:[%s11390 + $0xe8] sm:$0xf]
  %v11450 = vld [vmem:[%s11390 + $0xec] sm:$0xf]
  %v11451 = vld [vmem:[%s11390 + $0xf0] sm:$0xf]
  %v11452 = vld [vmem:[%s11390 + $0xf4] sm:$0xf]
  %v11453 = vld [vmem:[%s11390 + $0xf8] sm:$0xf]
  %v11454 = vld [vmem:[%s11390 + $0xfc] sm:$0xf]
  %v11455 = vld [vmem:[%s11390 + $0x100] sm:$0xf]
  %v11456 = vld [vmem:[%s11390 + $0x104] sm:$0xf]
  %v11457 = vld [vmem:[%s11390 + $0x108] sm:$0xf]
  %v11458 = vld [vmem:[%s11390 + $0x10c] sm:$0xf]
  %v11459 = vld [vmem:[%s11390 + $0x110] sm:$0xf]
  %v11460 = vld [vmem:[%s11390 + $0x114] sm:$0xf]
  %v11461 = vld [vmem:[%s11390 + $0x118] sm:$0xf]
  %v11462 = vld [vmem:[%s11390 + $0x11c] sm:$0xf]
  %v11463 = vld [vmem:[%s11390 + $0x120] sm:$0xf]
  %v11464 = vld [vmem:[%s11390 + $0x124] sm:$0xf]
  %v11465 = vld [vmem:[%s11390 + $0x128] sm:$0xf]
  %v11466 = vld [vmem:[%s11390 + $0x12c] sm:$0xf]
  %v11467 = vld [vmem:[%s11390 + $0x130] sm:$0xf]
  %v11468 = vld [vmem:[%s11390 + $0x134] sm:$0xf]
  %v11469 = vld [vmem:[%s11390 + $0x138] sm:$0xf]
  %v11470 = vld [vmem:[%s11390 + $0x13c] sm:$0xf]
  %v11471 = vld [vmem:[%s6 + $0x2] sm:$0x1]
  %v11472 = vlaneseq
  %v11473 = vshrl.u32 %v11472, 7
  %v11474 = vsub.s32 0, %v11473
  %v11475 = vrot.slane %v11471, %v11474
  %v11556 = vunpack.c.l.b16 %v11391
  %v11557 = vunpack.c.l.b16 %v11392
  %v11558 = vunpack.c.l.b16 %v11393
  %v11559 = vunpack.c.l.b16 %v11394
  %v11560 = vunpack.c.l.b16 %v11395
  %v11561 = vunpack.c.l.b16 %v11396
  %v11562 = vunpack.c.l.b16 %v11397
  %v11563 = vunpack.c.l.b16 %v11398
  %v11564 = vunpack.c.l.b16 %v11399
  %v11565 = vunpack.c.l.b16 %v11400
  %v11566 = vunpack.c.l.b16 %v11401
  %v11567 = vunpack.c.l.b16 %v11402
  %v11568 = vunpack.c.l.b16 %v11403
  %v11569 = vunpack.c.l.b16 %v11404
  %v11570 = vunpack.c.l.b16 %v11405
  %v11571 = vunpack.c.l.b16 %v11406
  %v11572 = vunpack.c.l.b16 %v11407
  %v11573 = vunpack.c.l.b16 %v11408
  %v11574 = vunpack.c.l.b16 %v11409
  %v11575 = vunpack.c.l.b16 %v11410
  %v11576 = vunpack.c.l.b16 %v11411
  %v11577 = vunpack.c.l.b16 %v11412
  %v11578 = vunpack.c.l.b16 %v11413
  %v11579 = vunpack.c.l.b16 %v11414
  %v11580 = vunpack.c.l.b16 %v11415
  %v11581 = vunpack.c.l.b16 %v11416
  %v11582 = vunpack.c.l.b16 %v11417
  %v11583 = vunpack.c.l.b16 %v11418
  %v11584 = vunpack.c.l.b16 %v11419
  %v11585 = vunpack.c.l.b16 %v11420
  %v11586 = vunpack.c.l.b16 %v11421
  %v11587 = vunpack.c.l.b16 %v11422
  %v11588 = vunpack.c.l.b16 %v11423
  %v11589 = vunpack.c.l.b16 %v11424
  %v11590 = vunpack.c.l.b16 %v11425
  %v11591 = vunpack.c.l.b16 %v11426
  %v11592 = vunpack.c.l.b16 %v11427
  %v11593 = vunpack.c.l.b16 %v11428
  %v11594 = vunpack.c.l.b16 %v11429
  %v11595 = vunpack.c.l.b16 %v11430
  %v11596 = vunpack.c.l.b16 %v11431
  %v11597 = vunpack.c.l.b16 %v11432
  %v11598 = vunpack.c.l.b16 %v11433
  %v11599 = vunpack.c.l.b16 %v11434
  %v11600 = vunpack.c.l.b16 %v11435
  %v11601 = vunpack.c.l.b16 %v11436
  %v11602 = vunpack.c.l.b16 %v11437
  %v11603 = vunpack.c.l.b16 %v11438
  %v11604 = vunpack.c.l.b16 %v11439
  %v11605 = vunpack.c.l.b16 %v11440
  %v11606 = vunpack.c.l.b16 %v11441
  %v11607 = vunpack.c.l.b16 %v11442
  %v11608 = vunpack.c.l.b16 %v11443
  %v11609 = vunpack.c.l.b16 %v11444
  %v11610 = vunpack.c.l.b16 %v11445
  %v11611 = vunpack.c.l.b16 %v11446
  %v11612 = vunpack.c.l.b16 %v11447
  %v11613 = vunpack.c.l.b16 %v11448
  %v11614 = vunpack.c.l.b16 %v11449
  %v11615 = vunpack.c.l.b16 %v11450
  %v11616 = vunpack.c.l.b16 %v11451
  %v11617 = vunpack.c.l.b16 %v11452
  %v11618 = vunpack.c.l.b16 %v11453
  %v11619 = vunpack.c.l.b16 %v11454
  %v11620 = vunpack.c.l.b16 %v11455
  %v11621 = vunpack.c.l.b16 %v11456
  %v11622 = vunpack.c.l.b16 %v11457
  %v11623 = vunpack.c.l.b16 %v11458
  %v11624 = vunpack.c.l.b16 %v11459
  %v11625 = vunpack.c.l.b16 %v11460
  %v11626 = vunpack.c.l.b16 %v11461
  %v11627 = vunpack.c.l.b16 %v11462
  %v11628 = vunpack.c.l.b16 %v11463
  %v11629 = vunpack.c.l.b16 %v11464
  %v11630 = vunpack.c.l.b16 %v11465
  %v11631 = vunpack.c.l.b16 %v11466
  %v11632 = vunpack.c.l.b16 %v11467
  %v11633 = vunpack.c.l.b16 %v11468
  %v11634 = vunpack.c.l.b16 %v11469
  %v11635 = vunpack.c.l.b16 %v11470
  %v11636 = vpack.c.b16 %v11557, %v11556
  %v11637 = vpack.c.b16 %v11559, %v11558
  %v11638 = vpack.c.b16 %v11561, %v11560
  %v11639 = vpack.c.b16 %v11563, %v11562
  %v11640 = vpack.c.b16 %v11565, %v11564
  %v11641 = vpack.c.b16 %v11567, %v11566
  %v11642 = vpack.c.b16 %v11569, %v11568
  %v11643 = vpack.c.b16 %v11571, %v11570
  %v11644 = vpack.c.b16 %v11573, %v11572
  %v11645 = vpack.c.b16 %v11575, %v11574
  %v11646 = vpack.c.b16 %v11577, %v11576
  %v11647 = vpack.c.b16 %v11579, %v11578
  %v11648 = vpack.c.b16 %v11581, %v11580
  %v11649 = vpack.c.b16 %v11583, %v11582
  %v11650 = vpack.c.b16 %v11585, %v11584
  %v11651 = vpack.c.b16 %v11587, %v11586
  %v11652 = vpack.c.b16 %v11589, %v11588
  %v11653 = vpack.c.b16 %v11591, %v11590
  %v11654 = vpack.c.b16 %v11593, %v11592
  %v11655 = vpack.c.b16 %v11595, %v11594
  %v11656 = vpack.c.b16 %v11597, %v11596
  %v11657 = vpack.c.b16 %v11599, %v11598
  %v11658 = vpack.c.b16 %v11601, %v11600
  %v11659 = vpack.c.b16 %v11603, %v11602
  %v11660 = vpack.c.b16 %v11605, %v11604
  %v11661 = vpack.c.b16 %v11607, %v11606
  %v11662 = vpack.c.b16 %v11609, %v11608
  %v11663 = vpack.c.b16 %v11611, %v11610
  %v11664 = vpack.c.b16 %v11613, %v11612
  %v11665 = vpack.c.b16 %v11615, %v11614
  %v11666 = vpack.c.b16 %v11617, %v11616
  %v11667 = vpack.c.b16 %v11619, %v11618
  %v11668 = vpack.c.b16 %v11621, %v11620
  %v11669 = vpack.c.b16 %v11623, %v11622
  %v11670 = vpack.c.b16 %v11625, %v11624
  %v11671 = vpack.c.b16 %v11627, %v11626
  %v11672 = vpack.c.b16 %v11629, %v11628
  %v11673 = vpack.c.b16 %v11631, %v11630
  %v11674 = vpack.c.b16 %v11633, %v11632
  %v11675 = vpack.c.b16 %v11635, %v11634
  %11716 = vmatprep.subr.bf16.mxu0 0
  %11717 = vmatpush1.bf16.msra.mxu0 %v11636
  %11718 = vmatprep.subr.bf16.mxu0 0
  %11719 = vmatpush1.bf16.msra.mxu0 %v11637
  %11720 = vmatprep.subr.bf16.mxu0 0
  %11721 = vmatpush1.bf16.msra.mxu0 %v11638
  %11722 = vmatprep.subr.bf16.mxu0 0
  %11723 = vmatpush1.bf16.msra.mxu0 %v11639
  %11724 = vmatprep.subr.bf16.mxu0 0
  %11725 = vmatpush1.bf16.msra.mxu0 %v11640
  %11726 = vmatprep.subr.bf16.mxu0 0
  %11727 = vmatpush1.bf16.msra.mxu0 %v11641
  %11728 = vmatprep.subr.bf16.mxu0 0
  %11729 = vmatpush1.bf16.msra.mxu0 %v11642
  %11730 = vmatprep.subr.bf16.mxu0 0
  %11731 = vmatpush1.bf16.msra.mxu0 %v11643
  %11732 = vmatprep.subr.bf16.mxu0 0
  %11733 = vmatpush1.bf16.msra.mxu0 %v11644
  %11734 = vmatprep.subr.bf16.mxu0 0
  %11735 = vmatpush1.bf16.msra.mxu0 %v11645
  %11736 = vmatprep.subr.bf16.mxu0 0
  %11737 = vmatpush1.bf16.msra.mxu0 %v11646
  %11738 = vmatprep.subr.bf16.mxu0 0
  %11739 = vmatpush1.bf16.msra.mxu0 %v11647
  %11740 = vmatprep.subr.bf16.mxu0 0
  %11741 = vmatpush1.bf16.msra.mxu0 %v11648
  %11742 = vmatprep.subr.bf16.mxu0 0
  %11743 = vmatpush1.bf16.msra.mxu0 %v11649
  %11744 = vmatprep.subr.bf16.mxu0 0
  %11745 = vmatpush1.bf16.msra.mxu0 %v11650
  %11746 = vmatprep.subr.bf16.mxu0 0
  %11747 = vmatpush1.bf16.msra.mxu0 %v11651
  %11748 = vmatprep.mubr.bf16.mxu0 %v11351
  %11749 = vmatmul.mubr.bf16.gmra.mrb[0].mxu0 %v11350
  %v11750 = vpop.f32.mrb[0].mxu0
  %v11751 = vadd.f32 %v11475, %v11750
  %v11752 = vpop.f32.mrb[0].mxu0
  %v11753 = vpop.f32.mrb[0].mxu0
  %v11754 = vadd.f32 %v11475, %v11753
  %v11755 = vpop.f32.mrb[0].mxu0
  %11756 = vmatprep.mubr.bf16.mxu0 %v11356
  %11757 = vmatmul.mubr.bf16.gmra.mrb[0].mxu0 %v11355
  %v11758 = vpop.f32.mrb[0].mxu0
  %v11759 = vadd.f32 %v11475, %v11758
  %v11760 = vpop.f32.mrb[0].mxu0
  %v11761 = vpop.f32.mrb[0].mxu0
  %v11762 = vadd.f32 %v11475, %v11761
  %v11763 = vpop.f32.mrb[0].mxu0
  %11764 = vmatprep.mubr.bf16.mxu0 %v11361
  %11765 = vmatmul.mubr.bf16.gmra.mrb[0].mxu0 %v11360
  %v11766 = vpop.f32.mrb[0].mxu0
  %v11767 = vadd.f32 %v11475, %v11766
  %v11768 = vpop.f32.mrb[0].mxu0
  %v11769 = vpop.f32.mrb[0].mxu0
  %v11770 = vadd.f32 %v11475, %v11769
  %v11771 = vpop.f32.mrb[0].mxu0
  %11772 = vmatprep.mubr.bf16.mxu0 %v11366
  %11773 = vmatmul.mubr.bf16.gmra.mrb[0].mxu0 %v11365
  %v11774 = vpop.f32.mrb[0].mxu0
  %v11775 = vadd.f32 %v11475, %v11774
  %v11776 = vpop.f32.mrb[0].mxu0
  %v11777 = vpop.f32.mrb[0].mxu0
  %v11778 = vadd.f32 %v11475, %v11777
  %v11779 = vpop.f32.mrb[0].mxu0
  %11780 = vmatprep.mubr.bf16.mxu0 %v11371
  %11781 = vmatmul.mubr.bf16.gmra.mrb[0].mxu0 %v11370
  %v11782 = vpop.f32.mrb[0].mxu0
  %v11783 = vadd.f32 %v11475, %v11782
  %v11784 = vpop.f32.mrb[0].mxu0
  %v11785 = vpop.f32.mrb[0].mxu0
  %v11786 = vadd.f32 %v11475, %v11785
  %v11787 = vpop.f32.mrb[0].mxu0
  %11788 = vmatprep.mubr.bf16.mxu0 %v11376
  %11789 = vmatmul.mubr.bf16.gmra.mrb[0].mxu0 %v11375
  %v11790 = vpop.f32.mrb[0].mxu0
  %v11791 = vadd.f32 %v11475, %v11790
  %v11792 = vpop.f32.mrb[0].mxu0
  %v11793 = vpop.f32.mrb[0].mxu0
  %v11794 = vadd.f32 %v11475, %v11793
  %v11795 = vpop.f32.mrb[0].mxu0
  %11796 = vmatprep.mubr.bf16.mxu0 %v11381
  %11797 = vmatmul.mubr.bf16.gmra.mrb[0].mxu0 %v11380
  %v11798 = vpop.f32.mrb[0].mxu0
  %v11799 = vadd.f32 %v11475, %v11798
  %v11800 = vpop.f32.mrb[0].mxu0
  %v11801 = vpop.f32.mrb[0].mxu0
  %v11802 = vadd.f32 %v11475, %v11801
  %v11803 = vpop.f32.mrb[0].mxu0
  %11804 = vmatprep.mubr.bf16.mxu0 %v11386
  %11805 = vmatmul.mubr.bf16.gmra.mrb[0].mxu0 %v11385
  %v11806 = vpop.f32.mrb[0].mxu0
  %v11807 = vadd.f32 %v11475, %v11806
  %v11808 = vpop.f32.mrb[0].mxu0
  %v11809 = vpop.f32.mrb[0].mxu0
  %v11810 = vadd.f32 %v11475, %v11809
  %v11811 = vpop.f32.mrb[0].mxu0
  %11812 = vdwg.mxu0
  %11813 = vmatprep.subr.bf16.mxu0 0
  %11814 = vmatpush1.bf16.msra.mxu0 %v11652
  %11815 = vmatprep.subr.bf16.mxu0 0
  %11816 = vmatpush1.bf16.msra.mxu0 %v11653
  %11817 = vmatprep.subr.bf16.mxu0 0
  %11818 = vmatpush1.bf16.msra.mxu0 %v11654
  %11819 = vmatprep.subr.bf16.mxu0 0
  %11820 = vmatpush1.bf16.msra.mxu0 %v11655
  %11821 = vmatprep.subr.bf16.mxu0 0
  %11822 = vmatpush1.bf16.msra.mxu0 %v11656
  %11823 = vmatprep.subr.bf16.mxu0 0
  %11824 = vmatpush1.bf16.msra.mxu0 %v11657
  %11825 = vmatprep.subr.bf16.mxu0 0
  %11826 = vmatpush1.bf16.msra.mxu0 %v11658
  %11827 = vmatprep.subr.bf16.mxu0 0
  %11828 = vmatpush1.bf16.msra.mxu0 %v11659
  %11829 = vmatprep.subr.bf16.mxu0 0
  %11830 = vmatpush1.bf16.msra.mxu0 %v11660
  %11831 = vmatprep.subr.bf16.mxu0 0
  %11832 = vmatpush1.bf16.msra.mxu0 %v11661
  %11833 = vmatprep.subr.bf16.mxu0 0
  %11834 = vmatpush1.bf16.msra.mxu0 %v11662
  %11835 = vmatprep.subr.bf16.mxu0 0
  %11836 = vmatpush1.bf16.msra.mxu0 %v11663
  %11837 = vmatprep.subr.bf16.mxu0 0
  %11838 = vmatpush1.bf16.msra.mxu0 %v11664
  %11839 = vmatprep.subr.bf16.mxu0 0
  %11840 = vmatpush1.bf16.msra.mxu0 %v11665
  %11841 = vmatprep.subr.bf16.mxu0 0
  %11842 = vmatpush1.bf16.msra.mxu0 %v11666
  %11843 = vmatprep.subr.bf16.mxu0 0
  %11844 = vmatpush1.bf16.msra.mxu0 %v11667
  %11845 = vmatprep.mubr.bf16.mxu0 %v11353
  %11846 = vmatmul.mubr.bf16.gmra.mrb[0].mxu0 %v11352
  %v11847 = vpop.f32.mrb[0].mxu0
  %v11848 = vadd.f32 %v11751, %v11847
  %v11849 = vpop.f32.mrb[0].mxu0
  %v11850 = vpop.f32.mrb[0].mxu0
  %v11851 = vadd.f32 %v11754, %v11850
  %v11852 = vpop.f32.mrb[0].mxu0
  %11853 = vmatprep.mubr.bf16.mxu0 %v11358
  %11854 = vmatmul.mubr.bf16.gmra.mrb[0].mxu0 %v11357
  %v11855 = vpop.f32.mrb[0].mxu0
  %v11856 = vadd.f32 %v11759, %v11855
  %v11857 = vpop.f32.mrb[0].mxu0
  %v11858 = vpop.f32.mrb[0].mxu0
  %v11859 = vadd.f32 %v11762, %v11858
  %v11860 = vpop.f32.mrb[0].mxu0
  %11861 = vmatprep.mubr.bf16.mxu0 %v11363
  %11862 = vmatmul.mubr.bf16.gmra.mrb[0].mxu0 %v11362
  %v11863 = vpop.f32.mrb[0].mxu0
  %v11864 = vadd.f32 %v11767, %v11863
  %v11865 = vpop.f32.mrb[0].mxu0
  %v11866 = vpop.f32.mrb[0].mxu0
  %v11867 = vadd.f32 %v11770, %v11866
  %v11868 = vpop.f32.mrb[0].mxu0
  %11869 = vmatprep.mubr.bf16.mxu0 %v11368
  %11870 = vmatmul.mubr.bf16.gmra.mrb[0].mxu0 %v11367
  %v11871 = vpop.f32.mrb[0].mxu0
  %v11872 = vadd.f32 %v11775, %v11871
  %v11873 = vpop.f32.mrb[0].mxu0
  %v11874 = vpop.f32.mrb[0].mxu0
  %v11875 = vadd.f32 %v11778, %v11874
  %v11876 = vpop.f32.mrb[0].mxu0
  %11877 = vmatprep.mubr.bf16.mxu0 %v11373
  %11878 = vmatmul.mubr.bf16.gmra.mrb[0].mxu0 %v11372
  %v11879 = vpop.f32.mrb[0].mxu0
  %v11880 = vadd.f32 %v11783, %v11879
  %v11881 = vpop.f32.mrb[0].mxu0
  %v11882 = vpop.f32.mrb[0].mxu0
  %v11883 = vadd.f32 %v11786, %v11882
  %v11884 = vpop.f32.mrb[0].mxu0
  %11885 = vmatprep.mubr.bf16.mxu0 %v11378
  %11886 = vmatmul.mubr.bf16.gmra.mrb[0].mxu0 %v11377
  %v11887 = vpop.f32.mrb[0].mxu0
  %v11888 = vadd.f32 %v11791, %v11887
  %v11889 = vpop.f32.mrb[0].mxu0
  %v11890 = vpop.f32.mrb[0].mxu0
  %v11891 = vadd.f32 %v11794, %v11890
  %v11892 = vpop.f32.mrb[0].mxu0
  %11893 = vmatprep.mubr.bf16.mxu0 %v11383
  %11894 = vmatmul.mubr.bf16.gmra.mrb[0].mxu0 %v11382
  %v11895 = vpop.f32.mrb[0].mxu0
  %v11896 = vadd.f32 %v11799, %v11895
  %v11897 = vpop.f32.mrb[0].mxu0
  %v11898 = vpop.f32.mrb[0].mxu0
  %v11899 = vadd.f32 %v11802, %v11898
  %v11900 = vpop.f32.mrb[0].mxu0
  %11901 = vmatprep.mubr.bf16.mxu0 %v11388
  %11902 = vmatmul.mubr.bf16.gmra.mrb[0].mxu0 %v11387
  %v11903 = vpop.f32.mrb[0].mxu0
  %v11904 = vadd.f32 %v11807, %v11903
  %v11905 = vpop.f32.mrb[0].mxu0
  %v11906 = vpop.f32.mrb[0].mxu0
  %v11907 = vadd.f32 %v11810, %v11906
  %v11908 = vpop.f32.mrb[0].mxu0
  %11909 = vdwg.mxu0
  %11910 = vmatprep.subr.bf16.mxu0 0
  %11911 = vmatpush1.bf16.msra.mxu0 %v11668
  %11912 = vmatprep.subr.bf16.mxu0 0
  %11913 = vmatpush1.bf16.msra.mxu0 %v11669
  %11914 = vmatprep.subr.bf16.mxu0 0
  %11915 = vmatpush1.bf16.msra.mxu0 %v11670
  %11916 = vmatprep.subr.bf16.mxu0 0
  %11917 = vmatpush1.bf16.msra.mxu0 %v11671
  %11918 = vmatprep.subr.bf16.mxu0 0
  %11919 = vmatpush1.bf16.msra.mxu0 %v11672
  %11920 = vmatprep.subr.bf16.mxu0 0
  %11921 = vmatpush1.bf16.msra.mxu0 %v11673
  %11922 = vmatprep.subr.bf16.mxu0 0
  %11923 = vmatpush1.bf16.msra.mxu0 %v11674
  %11924 = vmatprep.subr.bf16.mxu0 0
  %11925 = vmatpush1.bf16.msra.mxu0 %v11675
  %11926 = vmatprep.subr.bf16.mxu0 0
  %11927 = vmatpush1.bf16.msra.mxu0 0
  %11928 = vmatprep.subr.bf16.mxu0 0
  %11929 = vmatpush1.bf16.msra.mxu0 0
  %11930 = vmatprep.subr.bf16.mxu0 0
  %11931 = vmatpush1.bf16.msra.mxu0 0
  %11932 = vmatprep.subr.bf16.mxu0 0
  %11933 = vmatpush1.bf16.msra.mxu0 0
  %11934 = vmatprep.subr.bf16.mxu0 0
  %11935 = vmatpush1.bf16.msra.mxu0 0
  %11936 = vmatprep.subr.bf16.mxu0 0
  %11937 = vmatpush1.bf16.msra.mxu0 0
  %11938 = vmatprep.subr.bf16.mxu0 0
  %11939 = vmatpush1.bf16.msra.mxu0 0
  %11940 = vmatprep.subr.bf16.mxu0 0
  %11941 = vmatpush1.bf16.msra.mxu0 0
  %11942 = vmatprep.mubr.bf16.mxu0 0
  %11943 = vmatmul.mubr.bf16.gmra.mrb[0].mxu0 %v11354
  %v11944 = vpop.f32.mrb[0].mxu0
  %v11945 = vadd.f32 %v11848, %v11944
  %v11946 = vpop.f32.mrb[0].mxu0
  %v11947 = vpop.f32.mrb[0].mxu0
  %v11948 = vadd.f32 %v11851, %v11947
  %v11949 = vpop.f32.mrb[0].mxu0
  %11950 = vmatprep.mubr.bf16.mxu0 0
  %11951 = vmatmul.mubr.bf16.gmra.mrb[0].mxu0 %v11359
  %v11952 = vpop.f32.mrb[0].mxu0
  %v11953 = vadd.f32 %v11856, %v11952
  %v11954 = vpop.f32.mrb[0].mxu0
  %v11955 = vpop.f32.mrb[0].mxu0
  %v11956 = vadd.f32 %v11859, %v11955
  %v11957 = vpop.f32.mrb[0].mxu0
  %11958 = vmatprep.mubr.bf16.mxu0 0
  %11959 = vmatmul.mubr.bf16.gmra.mrb[0].mxu0 %v11364
  %v11960 = vpop.f32.mrb[0].mxu0
  %v11961 = vadd.f32 %v11864, %v11960
  %v11962 = vpop.f32.mrb[0].mxu0
  %v11963 = vpop.f32.mrb[0].mxu0
  %v11964 = vadd.f32 %v11867, %v11963
  %v11965 = vpop.f32.mrb[0].mxu0
  %11966 = vmatprep.mubr.bf16.mxu0 0
  %11967 = vmatmul.mubr.bf16.gmra.mrb[0].mxu0 %v11369
  %v11968 = vpop.f32.mrb[0].mxu0
  %v11969 = vadd.f32 %v11872, %v11968
  %v11970 = vpop.f32.mrb[0].mxu0
  %v11971 = vpop.f32.mrb[0].mxu0
  %v11972 = vadd.f32 %v11875, %v11971
  %v11973 = vpop.f32.mrb[0].mxu0
  %11974 = vmatprep.mubr.bf16.mxu0 0
  %11975 = vmatmul.mubr.bf16.gmra.mrb[0].mxu0 %v11374
  %v11976 = vpop.f32.mrb[0].mxu0
  %v11977 = vadd.f32 %v11880, %v11976
  %v11978 = vpop.f32.mrb[0].mxu0
  %v11979 = vpop.f32.mrb[0].mxu0
  %v11980 = vadd.f32 %v11883, %v11979
  %v11981 = vpop.f32.mrb[0].mxu0
  %11982 = vmatprep.mubr.bf16.mxu0 0
  %11983 = vmatmul.mubr.bf16.gmra.mrb[0].mxu0 %v11379
  %v11984 = vpop.f32.mrb[0].mxu0
  %v11985 = vadd.f32 %v11888, %v11984
  %v11986 = vpop.f32.mrb[0].mxu0
  %v11987 = vpop.f32.mrb[0].mxu0
  %v11988 = vadd.f32 %v11891, %v11987
  %v11989 = vpop.f32.mrb[0].mxu0
  %11990 = vmatprep.mubr.bf16.mxu0 0
  %11991 = vmatmul.mubr.bf16.gmra.mrb[0].mxu0 %v11384
  %v11992 = vpop.f32.mrb[0].mxu0
  %v11993 = vadd.f32 %v11896, %v11992
  %v11994 = vpop.f32.mrb[0].mxu0
  %v11995 = vpop.f32.mrb[0].mxu0
  %v11996 = vadd.f32 %v11899, %v11995
  %v11997 = vpop.f32.mrb[0].mxu0
  %11998 = vmatprep.mubr.bf16.mxu0 0
  %11999 = vmatmul.mubr.bf16.gmra.mrb[0].mxu0 %v11389
  %v12000 = vpop.f32.mrb[0].mxu0
  %v12001 = vadd.f32 %v11904, %v12000
  %v12002 = vpop.f32.mrb[0].mxu0
  %v12003 = vpop.f32.mrb[0].mxu0
  %v12004 = vadd.f32 %v11907, %v12003
  %v12005 = vpop.f32.mrb[0].mxu0
  %12006 = vdwg.mxu0
  %v12007 = vxor.u32 %v11945, 2147483648
  %v12008 = vxor.u32 %v11948, 2147483648
  %v12009 = vxor.u32 %v11953, 2147483648
  %v12010 = vxor.u32 %v11956, 2147483648
  %v12011 = vxor.u32 %v11961, 2147483648
  %v12012 = vxor.u32 %v11964, 2147483648
  %v12013 = vxor.u32 %v11969, 2147483648
  %v12014 = vxor.u32 %v11972, 2147483648
  %v12015 = vxor.u32 %v11977, 2147483648
  %v12016 = vxor.u32 %v11980, 2147483648
  %v12017 = vxor.u32 %v11985, 2147483648
  %v12018 = vxor.u32 %v11988, 2147483648
  %v12019 = vxor.u32 %v11993, 2147483648
  %v12020 = vxor.u32 %v11996, 2147483648
  %v12021 = vxor.u32 %v12001, 2147483648
  %v12022 = vxor.u32 %v12004, 2147483648
  %v12023 = vmul.f32 %v12007, 1.442695
  %v12024 = vpow.pop %v12023
  %v12025 = vmul.f32 %v12008, 1.442695
  %v12026 = vpow.pop %v12025
  %v12027 = vmul.f32 %v12009, 1.442695
  %v12028 = vpow.pop %v12027
  %v12029 = vmul.f32 %v12010, 1.442695
  %v12030 = vpow.pop %v12029
  %v12031 = vmul.f32 %v12011, 1.442695
  %v12032 = vpow.pop %v12031
  %v12033 = vmul.f32 %v12012, 1.442695
  %v12034 = vpow.pop %v12033
  %v12035 = vmul.f32 %v12013, 1.442695
  %v12036 = vpow.pop %v12035
  %v12037 = vmul.f32 %v12014, 1.442695
  %v12038 = vpow.pop %v12037
  %v12039 = vmul.f32 %v12015, 1.442695
  %v12040 = vpow.pop %v12039
  %v12041 = vmul.f32 %v12016, 1.442695
  %v12042 = vpow.pop %v12041
  %v12043 = vmul.f32 %v12017, 1.442695
  %v12044 = vpow.pop %v12043
  %v12045 = vmul.f32 %v12018, 1.442695
  %v12046 = vpow.pop %v12045
  %v12047 = vmul.f32 %v12019, 1.442695
  %v12048 = vpow.pop %v12047
  %v12049 = vmul.f32 %v12020, 1.442695
  %v12050 = vpow.pop %v12049
  %v12051 = vmul.f32 %v12021, 1.442695
  %v12052 = vpow.pop %v12051
  %v12053 = vmul.f32 %v12022, 1.442695
  %v12054 = vpow.pop %v12053
  %v12055 = vadd.f32 %v12024, 1.0
  %v12056 = vadd.f32 %v12026, 1.0
  %v12057 = vadd.f32 %v12028, 1.0
  %v12058 = vadd.f32 %v12030, 1.0
  %v12059 = vadd.f32 %v12032, 1.0
  %v12060 = vadd.f32 %v12034, 1.0
  %v12061 = vadd.f32 %v12036, 1.0
  %v12062 = vadd.f32 %v12038, 1.0
  %v12063 = vadd.f32 %v12040, 1.0
  %v12064 = vadd.f32 %v12042, 1.0
  %v12065 = vadd.f32 %v12044, 1.0
  %v12066 = vadd.f32 %v12046, 1.0
  %v12067 = vadd.f32 %v12048, 1.0
  %v12068 = vadd.f32 %v12050, 1.0
  %v12069 = vadd.f32 %v12052, 1.0
  %v12070 = vadd.f32 %v12054, 1.0
  %v12071 = vrcp.pop %v12055
  %v12072 = vmul.f32 1.0, %v12071
  %v12073 = vrcp.pop %v12056
  %v12074 = vmul.f32 1.0, %v12073
  %v12075 = vrcp.pop %v12057
  %v12076 = vmul.f32 1.0, %v12075
  %v12077 = vrcp.pop %v12058
  %v12078 = vmul.f32 1.0, %v12077
  %v12079 = vrcp.pop %v12059
  %v12080 = vmul.f32 1.0, %v12079
  %v12081 = vrcp.pop %v12060
  %v12082 = vmul.f32 1.0, %v12081
  %v12083 = vrcp.pop %v12061
  %v12084 = vmul.f32 1.0, %v12083
  %v12085 = vrcp.pop %v12062
  %v12086 = vmul.f32 1.0, %v12085
  %v12087 = vrcp.pop %v12063
  %v12088 = vmul.f32 1.0, %v12087
  %v12089 = vrcp.pop %v12064
  %v12090 = vmul.f32 1.0, %v12089
  %v12091 = vrcp.pop %v12065
  %v12092 = vmul.f32 1.0, %v12091
  %v12093 = vrcp.pop %v12066
  %v12094 = vmul.f32 1.0, %v12093
  %v12095 = vrcp.pop %v12067
  %v12096 = vmul.f32 1.0, %v12095
  %v12097 = vrcp.pop %v12068
  %v12098 = vmul.f32 1.0, %v12097
  %v12099 = vrcp.pop %v12069
  %v12100 = vmul.f32 1.0, %v12099
  %v12101 = vrcp.pop %v12070
  %v12102 = vmul.f32 1.0, %v12101
  %v12103 = vmul.f32 %v11945, %v12072
  %v12104 = vmul.f32 %v11948, %v12074
  %v12105 = vmul.f32 %v11953, %v12076
  %v12106 = vmul.f32 %v11956, %v12078
  %v12107 = vmul.f32 %v11961, %v12080
  %v12108 = vmul.f32 %v11964, %v12082
  %v12109 = vmul.f32 %v11969, %v12084
  %v12110 = vmul.f32 %v11972, %v12086
  %v12111 = vmul.f32 %v11977, %v12088
  %v12112 = vmul.f32 %v11980, %v12090
  %v12113 = vmul.f32 %v11985, %v12092
  %v12114 = vmul.f32 %v11988, %v12094
  %v12115 = vmul.f32 %v11993, %v12096
  %v12116 = vmul.f32 %v11996, %v12098
  %v12117 = vmul.f32 %v12001, %v12100
  %v12118 = vmul.f32 %v12004, %v12102
  %v12119 = vsel %vm3306, %v12103, 0.0
  %v12120 = vrot.slane %v12119, 4
  %v12121 = vadd.f32 %v12119, %v12120
  %v12122 = vrot.slane %v12121, 2
  %v12123 = vadd.f32 %v12121, %v12122
  %v12124 = vrot.slane %v12123, 1
  %v12125 = vadd.f32 %v12123, %v12124
  %v12126 = vsel %vm3306, %v12104, 0.0
  %v12127 = vrot.slane %v12126, 4
  %v12128 = vadd.f32 %v12126, %v12127
  %v12129 = vrot.slane %v12128, 2
  %v12130 = vadd.f32 %v12128, %v12129
  %v12131 = vrot.slane %v12130, 1
  %v12132 = vadd.f32 %v12130, %v12131
  %v12133 = vsel %vm3306, %v12105, 0.0
  %v12134 = vrot.slane %v12133, 4
  %v12135 = vadd.f32 %v12133, %v12134
  %v12136 = vrot.slane %v12135, 2
  %v12137 = vadd.f32 %v12135, %v12136
  %v12138 = vrot.slane %v12137, 1
  %v12139 = vadd.f32 %v12137, %v12138
  %v12140 = vsel %vm3306, %v12106, 0.0
  %v12141 = vrot.slane %v12140, 4
  %v12142 = vadd.f32 %v12140, %v12141
  %v12143 = vrot.slane %v12142, 2
  %v12144 = vadd.f32 %v12142, %v12143
  %v12145 = vrot.slane %v12144, 1
  %v12146 = vadd.f32 %v12144, %v12145
  %v12147 = vsel %vm3306, %v12107, 0.0
  %v12148 = vrot.slane %v12147, 4
  %v12149 = vadd.f32 %v12147, %v12148
  %v12150 = vrot.slane %v12149, 2
  %v12151 = vadd.f32 %v12149, %v12150
  %v12152 = vrot.slane %v12151, 1
  %v12153 = vadd.f32 %v12151, %v12152
  %v12154 = vsel %vm3306, %v12108, 0.0
  %v12155 = vrot.slane %v12154, 4
  %v12156 = vadd.f32 %v12154, %v12155
  %v12157 = vrot.slane %v12156, 2
  %v12158 = vadd.f32 %v12156, %v12157
  %v12159 = vrot.slane %v12158, 1
  %v12160 = vadd.f32 %v12158, %v12159
  %v12161 = vsel %vm3306, %v12109, 0.0
  %v12162 = vrot.slane %v12161, 4
  %v12163 = vadd.f32 %v12161, %v12162
  %v12164 = vrot.slane %v12163, 2
  %v12165 = vadd.f32 %v12163, %v12164
  %v12166 = vrot.slane %v12165, 1
  %v12167 = vadd.f32 %v12165, %v12166
  %v12168 = vsel %vm3306, %v12110, 0.0
  %v12169 = vrot.slane %v12168, 4
  %v12170 = vadd.f32 %v12168, %v12169
  %v12171 = vrot.slane %v12170, 2
  %v12172 = vadd.f32 %v12170, %v12171
  %v12173 = vrot.slane %v12172, 1
  %v12174 = vadd.f32 %v12172, %v12173
  %v12175 = vsel %vm3306, %v12111, 0.0
  %v12176 = vrot.slane %v12175, 4
  %v12177 = vadd.f32 %v12175, %v12176
  %v12178 = vrot.slane %v12177, 2
  %v12179 = vadd.f32 %v12177, %v12178
  %v12180 = vrot.slane %v12179, 1
  %v12181 = vadd.f32 %v12179, %v12180
  %v12182 = vsel %vm3306, %v12112, 0.0
  %v12183 = vrot.slane %v12182, 4
  %v12184 = vadd.f32 %v12182, %v12183
  %v12185 = vrot.slane %v12184, 2
  %v12186 = vadd.f32 %v12184, %v12185
  %v12187 = vrot.slane %v12186, 1
  %v12188 = vadd.f32 %v12186, %v12187
  %v12189 = vsel %vm3306, %v12113, 0.0
  %v12190 = vrot.slane %v12189, 4
  %v12191 = vadd.f32 %v12189, %v12190
  %v12192 = vrot.slane %v12191, 2
  %v12193 = vadd.f32 %v12191, %v12192
  %v12194 = vrot.slane %v12193, 1
  %v12195 = vadd.f32 %v12193, %v12194
  %v12196 = vsel %vm3306, %v12114, 0.0
  %v12197 = vrot.slane %v12196, 4
  %v12198 = vadd.f32 %v12196, %v12197
  %v12199 = vrot.slane %v12198, 2
  %v12200 = vadd.f32 %v12198, %v12199
  %v12201 = vrot.slane %v12200, 1
  %v12202 = vadd.f32 %v12200, %v12201
  %v12203 = vsel %vm3306, %v12115, 0.0
  %v12204 = vrot.slane %v12203, 4
  %v12205 = vadd.f32 %v12203, %v12204
  %v12206 = vrot.slane %v12205, 2
  %v12207 = vadd.f32 %v12205, %v12206
  %v12208 = vrot.slane %v12207, 1
  %v12209 = vadd.f32 %v12207, %v12208
  %v12210 = vsel %vm3306, %v12116, 0.0
  %v12211 = vrot.slane %v12210, 4
  %v12212 = vadd.f32 %v12210, %v12211
  %v12213 = vrot.slane %v12212, 2
  %v12214 = vadd.f32 %v12212, %v12213
  %v12215 = vrot.slane %v12214, 1
  %v12216 = vadd.f32 %v12214, %v12215
  %v12217 = vsel %vm3306, %v12117, 0.0
  %v12218 = vrot.slane %v12217, 4
  %v12219 = vadd.f32 %v12217, %v12218
  %v12220 = vrot.slane %v12219, 2
  %v12221 = vadd.f32 %v12219, %v12220
  %v12222 = vrot.slane %v12221, 1
  %v12223 = vadd.f32 %v12221, %v12222
  %v12224 = vsel %vm3306, %v12118, 0.0
  %v12225 = vrot.slane %v12224, 4
  %v12226 = vadd.f32 %v12224, %v12225
  %v12227 = vrot.slane %v12226, 2
  %v12228 = vadd.f32 %v12226, %v12227
  %v12229 = vrot.slane %v12228, 1
  %v12230 = vadd.f32 %v12228, %v12229
  %12231 = vadd.xlane.f32.xlu0 %v8891
  %v12232 = vpop.xlane.xlu0 %12231
  %12233 = vadd.xlane.f32.xlu0 %v8892
  %v12234 = vpop.xlane.xlu0 %12233
  %v12235 = vmul.f32 %v12232, %v4070
  %v12236 = vmul.f32 %v12234, %v4070
  %v12237 = vsub.f32 %v8891, %v12235
  %v12238 = vsub.f32 %v8892, %v12236
  %v12239 = vmul.f32 %v12237, %v12237
  %v12240 = vmul.f32 %v12238, %v12238
  %12241 = vadd.xlane.f32.xlu0 %v12239
  %v12242 = vpop.xlane.xlu0 %12241
  %12243 = vadd.xlane.f32.xlu0 %v12240
  %v12244 = vpop.xlane.xlu0 %12243
  %v12245 = vmul.f32 %v12242, %v4070
  %v12246 = vmul.f32 %v12244, %v4070
  %v12247 = vadd.f32 %v12245, 1e-05
  %v12248 = vadd.f32 %v12246, 1e-05
  %v12249 = vrsqrt.pop %v12247
  %v12250 = vrsqrt.pop %v12248
  %v12251 = vmul.f32 %v12237, %v12249
  %v12252 = vmul.f32 %v12238, %v12250
  %v12253 = vld [vmem:[%s7 + $0x2] sm:$0x1]
  %v12254 = vlaneseq
  %v12255 = vshrl.u32 %v12254, 7
  %v12256 = vsub.s32 0, %v12255
  %v12257 = vrot.slane %v12253, %v12256
  %v12258 = vmul.f32 %v12251, %v12257
  %v12259 = vmul.f32 %v12252, %v12257
  %v12260 = vld [vmem:[%s8 + $0x2] sm:$0x1]
  %v12261 = vlaneseq
  %v12262 = vshrl.u32 %v12261, 7
  %v12263 = vsub.s32 0, %v12262
  %v12264 = vrot.slane %v12260, %v12263
  %v12265 = vadd.f32 %v12258, %v12264
  %v12266 = vadd.f32 %v12259, %v12264
  %s12267 = scalar_lea.vmem %s13, 512
  %v12268 = vld [vmem:[%s12267] sm:$0xff]
  %v12269 = vld [vmem:[%s12267 + $0x8] sm:$0xff]
  %v12270 = vld [vmem:[%s12267 + $0x10] sm:$0xff]
  %v12271 = vld [vmem:[%s12267 + $0x18] sm:$0xff]
  %v12272 = vld [vmem:[%s12267 + $0x20] sm:$0xff]
  %v12273 = vld [vmem:[%s12267 + $0x28] sm:$0xff]
  %v12274 = vld [vmem:[%s12267 + $0x30] sm:$0xff]
  %v12275 = vld [vmem:[%s12267 + $0x38] sm:$0xff]
  %v12276 = vld [vmem:[%s12267 + $0x40] sm:$0xff]
  %v12277 = vld [vmem:[%s12267 + $0x48] sm:$0xff]
  %v12278 = vld [vmem:[%s12267 + $0x50] sm:$0xff]
  %v12279 = vld [vmem:[%s12267 + $0x58] sm:$0xff]
  %v12280 = vld [vmem:[%s12267 + $0x60] sm:$0xff]
  %v12281 = vld [vmem:[%s12267 + $0x68] sm:$0xff]
  %v12282 = vld [vmem:[%s12267 + $0x70] sm:$0xff]
  %v12283 = vld [vmem:[%s12267 + $0x78] sm:$0xff]
  %v12284 = vld [vmem:[%s12267 + $0x80] sm:$0xff]
  %v12285 = vld [vmem:[%s12267 + $0x88] sm:$0xff]
  %v12286 = vld [vmem:[%s12267 + $0x90] sm:$0xff]
  %v12287 = vld [vmem:[%s12267 + $0x98] sm:$0xff]
  %v12288 = vld [vmem:[%s12267 + $0xa0] sm:$0xff]
  %v12289 = vld [vmem:[%s12267 + $0xa8] sm:$0xff]
  %v12290 = vld [vmem:[%s12267 + $0xb0] sm:$0xff]
  %v12291 = vld [vmem:[%s12267 + $0xb8] sm:$0xff]
  %v12292 = vld [vmem:[%s12267 + $0xc0] sm:$0xff]
  %v12293 = vld [vmem:[%s12267 + $0xc8] sm:$0xff]
  %v12294 = vld [vmem:[%s12267 + $0xd0] sm:$0xff]
  %v12295 = vld [vmem:[%s12267 + $0xd8] sm:$0xff]
  %v12296 = vld [vmem:[%s12267 + $0xe0] sm:$0xff]
  %v12297 = vld [vmem:[%s12267 + $0xe8] sm:$0xff]
  %v12298 = vld [vmem:[%s12267 + $0xf0] sm:$0xff]
  %v12299 = vld [vmem:[%s12267 + $0xf8] sm:$0xff]
  %s12300 = scalar_lea.vmem %s14, 64
  %v12301 = vld [vmem:[%s12300] sm:$0xff]
  %v12302 = vld [vmem:[%s12300 + $0x8] sm:$0xff]
  %v12303 = vld [vmem:[%s12300 + $0x10] sm:$0xff]
  %v12304 = vld [vmem:[%s12300 + $0x18] sm:$0xff]
  %v12321 = vsel %vm3929, %v12132, %v12125
  %v12322 = vsel %vm3931, %v12139, %v12321
  %v12323 = vsel %vm3933, %v12146, %v12322
  %v12324 = vsel %vm3935, %v12153, %v12323
  %v12325 = vsel %vm3937, %v12160, %v12324
  %v12326 = vsel %vm3939, %v12167, %v12325
  %v12327 = vsel %vm3941, %v12174, %v12326
  %v12328 = vsel %vm3929, %v12188, %v12181
  %v12329 = vsel %vm3931, %v12195, %v12328
  %v12330 = vsel %vm3933, %v12202, %v12329
  %v12331 = vsel %vm3935, %v12209, %v12330
  %v12332 = vsel %vm3937, %v12216, %v12331
  %v12333 = vsel %vm3939, %v12223, %v12332
  %v12334 = vsel %vm3941, %v12230, %v12333
  %v12335 = vsel %vm3306, %v12327, 0
  %v12337 = vsel %vm3306, %v12334, 0
  %12339 = vmatprep.subr.mxu0 %v12302
  %12340 = vmatpush1.msra.mxu0 %v12301
  %12341 = vmatprep.subr.mxu0 %v12304
  %12342 = vmatpush1.msra.mxu0 %v12303
  %12343 = vmatprep.subr.mxu0 0.0
  %12344 = vmatpush1.msra.mxu0 0.0
  %12345 = vmatprep.subr.mxu0 0.0
  %12346 = vmatpush1.msra.mxu0 0.0
  %12347 = vmatprep.subr.mxu0 0.0
  %12348 = vmatpush1.msra.mxu0 0.0
  %12349 = vmatprep.subr.mxu0 0.0
  %12350 = vmatpush1.msra.mxu0 0.0
  %12351 = vmatprep.subr.mxu0 0.0
  %12352 = vmatpush1.msra.mxu0 0.0
  %12353 = vmatprep.subr.mxu0 0.0
  %12354 = vmatpush1.msra.mxu0 0.0
  %12355 = vmatprep.subr.mxu0 0.0
  %12356 = vmatpush1.msra.mxu0 0.0
  %12357 = vmatprep.subr.mxu0 0.0
  %12358 = vmatpush1.msra.mxu0 0.0
  %12359 = vmatprep.subr.mxu0 0.0
  %12360 = vmatpush1.msra.mxu0 0.0
  %12361 = vmatprep.subr.mxu0 0.0
  %12362 = vmatpush1.msra.mxu0 0.0
  %12363 = vmatprep.subr.mxu0 0.0
  %12364 = vmatpush1.msra.mxu0 0.0
  %12365 = vmatprep.subr.mxu0 0.0
  %12366 = vmatpush1.msra.mxu0 0.0
  %12367 = vmatprep.subr.mxu0 0.0
  %12368 = vmatpush1.msra.mxu0 0.0
  %12369 = vmatprep.subr.mxu0 0.0
  %12370 = vmatpush1.msra.mxu0 0.0
  %12371 = vmatprep.subr.mxu0 0.0
  %12372 = vmatpush1.msra.mxu0 0.0
  %12373 = vmatprep.subr.mxu0 0.0
  %12374 = vmatpush1.msra.mxu0 0.0
  %12375 = vmatprep.subr.mxu0 0.0
  %12376 = vmatpush1.msra.mxu0 0.0
  %12377 = vmatprep.subr.mxu0 0.0
  %12378 = vmatpush1.msra.mxu0 0.0
  %12379 = vmatprep.subr.mxu0 0.0
  %12380 = vmatpush1.msra.mxu0 0.0
  %12381 = vmatprep.subr.mxu0 0.0
  %12382 = vmatpush1.msra.mxu0 0.0
  %12383 = vmatprep.subr.mxu0 0.0
  %12384 = vmatpush1.msra.mxu0 0.0
  %12385 = vmatprep.subr.mxu0 0.0
  %12386 = vmatpush1.msra.mxu0 0.0
  %12387 = vmatprep.subr.mxu0 0.0
  %12388 = vmatpush1.msra.mxu0 0.0
  %12389 = vmatprep.subr.mxu0 0.0
  %12390 = vmatpush1.msra.mxu0 0.0
  %12391 = vmatprep.subr.mxu0 0.0
  %12392 = vmatpush1.msra.mxu0 0.0
  %12393 = vmatprep.subr.mxu0 0.0
  %12394 = vmatpush1.msra.mxu0 0.0
  %12395 = vmatprep.subr.mxu0 0.0
  %12396 = vmatpush1.msra.mxu0 0.0
  %12397 = vmatprep.subr.mxu0 0.0
  %12398 = vmatpush1.msra.mxu0 0.0
  %12399 = vmatprep.subr.mxu0 0.0
  %12400 = vmatpush1.msra.mxu0 0.0
  %12401 = vmatprep.subr.mxu0 0.0
  %12402 = vmatpush1.msra.mxu0 0.0
  %12403 = vmatprep.mubr.f32.mxu0 0.0
  %12404 = vmatmul.mubr.f32.gmra.mrb[0].mxu0 %v12335
  %v12405 = vpop.f32.mrb[0].mxu0
  %v12406 = vadd.f32 0.0, %v12405
  %v12407 = vpop.f32.mrb[0].mxu0
  %v12408 = vadd.f32 0.0, %v12407
  %12409 = vmatprep.mubr.f32.mxu0 0.0
  %12410 = vmatmul.mubr.f32.gmra.mrb[0].mxu0 %v12337
  %v12411 = vpop.f32.mrb[0].mxu0
  %v12412 = vadd.f32 0.0, %v12411
  %v12413 = vpop.f32.mrb[0].mxu0
  %v12414 = vadd.f32 0.0, %v12413
  %12415 = vdwg.mxu0
  %12416 = vmatprep.subr.mxu0 %v12269
  %12417 = vmatpush1.msra.mxu0 %v12268
  %12418 = vmatprep.subr.mxu0 %v12271
  %12419 = vmatpush1.msra.mxu0 %v12270
  %12420 = vmatprep.subr.mxu0 %v12273
  %12421 = vmatpush1.msra.mxu0 %v12272
  %12422 = vmatprep.subr.mxu0 %v12275
  %12423 = vmatpush1.msra.mxu0 %v12274
  %12424 = vmatprep.subr.mxu0 %v12277
  %12425 = vmatpush1.msra.mxu0 %v12276
  %12426 = vmatprep.subr.mxu0 %v12279
  %12427 = vmatpush1.msra.mxu0 %v12278
  %12428 = vmatprep.subr.mxu0 %v12281
  %12429 = vmatpush1.msra.mxu0 %v12280
  %12430 = vmatprep.subr.mxu0 %v12283
  %12431 = vmatpush1.msra.mxu0 %v12282
  %12432 = vmatprep.subr.mxu0 %v12285
  %12433 = vmatpush1.msra.mxu0 %v12284
  %12434 = vmatprep.subr.mxu0 %v12287
  %12435 = vmatpush1.msra.mxu0 %v12286
  %12436 = vmatprep.subr.mxu0 %v12289
  %12437 = vmatpush1.msra.mxu0 %v12288
  %12438 = vmatprep.subr.mxu0 %v12291
  %12439 = vmatpush1.msra.mxu0 %v12290
  %12440 = vmatprep.subr.mxu0 %v12293
  %12441 = vmatpush1.msra.mxu0 %v12292
  %12442 = vmatprep.subr.mxu0 %v12295
  %12443 = vmatpush1.msra.mxu0 %v12294
  %12444 = vmatprep.subr.mxu0 %v12297
  %12445 = vmatpush1.msra.mxu0 %v12296
  %12446 = vmatprep.subr.mxu0 %v12299
  %12447 = vmatpush1.msra.mxu0 %v12298
  %12448 = vmatprep.subr.mxu0 0.0
  %12449 = vmatpush1.msra.mxu0 0.0
  %12450 = vmatprep.subr.mxu0 0.0
  %12451 = vmatpush1.msra.mxu0 0.0
  %12452 = vmatprep.subr.mxu0 0.0
  %12453 = vmatpush1.msra.mxu0 0.0
  %12454 = vmatprep.subr.mxu0 0.0
  %12455 = vmatpush1.msra.mxu0 0.0
  %12456 = vmatprep.subr.mxu0 0.0
  %12457 = vmatpush1.msra.mxu0 0.0
  %12458 = vmatprep.subr.mxu0 0.0
  %12459 = vmatpush1.msra.mxu0 0.0
  %12460 = vmatprep.subr.mxu0 0.0
  %12461 = vmatpush1.msra.mxu0 0.0
  %12462 = vmatprep.subr.mxu0 0.0
  %12463 = vmatpush1.msra.mxu0 0.0
  %12464 = vmatprep.subr.mxu0 0.0
  %12465 = vmatpush1.msra.mxu0 0.0
  %12466 = vmatprep.subr.mxu0 0.0
  %12467 = vmatpush1.msra.mxu0 0.0
  %12468 = vmatprep.subr.mxu0 0.0
  %12469 = vmatpush1.msra.mxu0 0.0
  %12470 = vmatprep.subr.mxu0 0.0
  %12471 = vmatpush1.msra.mxu0 0.0
  %12472 = vmatprep.subr.mxu0 0.0
  %12473 = vmatpush1.msra.mxu0 0.0
  %12474 = vmatprep.subr.mxu0 0.0
  %12475 = vmatpush1.msra.mxu0 0.0
  %12476 = vmatprep.subr.mxu0 0.0
  %12477 = vmatpush1.msra.mxu0 0.0
  %12478 = vmatprep.subr.mxu0 0.0
  %12479 = vmatpush1.msra.mxu0 0.0
  %12480 = vmatprep.mubr.f32.mxu0 0.0
  %12481 = vmatmul.mubr.f32.gmra.mrb[0].mxu0 %v12265
  %v12482 = vpop.f32.mrb[0].mxu0
  %v12483 = vadd.f32 %v12406, %v12482
  %v12484 = vpop.f32.mrb[0].mxu0
  %v12485 = vadd.f32 %v12408, %v12484
  %12486 = vmatprep.mubr.f32.mxu0 0.0
  %12487 = vmatmul.mubr.f32.gmra.mrb[0].mxu0 %v12266
  %v12488 = vpop.f32.mrb[0].mxu0
  %v12489 = vadd.f32 %v12412, %v12488
  %v12490 = vpop.f32.mrb[0].mxu0
  %v12491 = vadd.f32 %v12414, %v12490
  %12492 = vdwg.mxu0
  %s12493 = scalar_lea.vmem %s15, 2
  %v12494 = vld [vmem:[%s12493] ss:$4 sm:$0x3]
  %v12496 = vlaneseq
  %v12497 = vshrl.u32 %v12496, 7
  %v12498 = vsub.s32 0, %v12497
  %v12499 = vrot.slane %v12494, %v12498
  %v12500 = vlaneseq
  %v12501 = vshrl.u32 %v12500, 7
  %v12502 = vsub.s32 1, %v12501
  %v12503 = vrot.slane %v12494, %v12502
  %v12506 = vadd.f32 %v12483, %v12499
  %v12507 = vadd.f32 %v12485, %v12503
  %v12508 = vadd.f32 %v12489, %v12499
  %v12509 = vadd.f32 %v12491, %v12503
  %v12510 = vxor.u32 %v12506, 2147483648
  %v12511 = vxor.u32 %v12507, 2147483648
  %v12512 = vxor.u32 %v12508, 2147483648
  %v12513 = vxor.u32 %v12509, 2147483648
  %v12514 = vmul.f32 %v12510, 1.442695
  %v12515 = vpow.pop %v12514
  %v12516 = vmul.f32 %v12511, 1.442695
  %v12517 = vpow.pop %v12516
  %v12518 = vmul.f32 %v12512, 1.442695
  %v12519 = vpow.pop %v12518
  %v12520 = vmul.f32 %v12513, 1.442695
  %v12521 = vpow.pop %v12520
  %v12522 = vadd.f32 %v12515, 1.0
  %v12523 = vadd.f32 %v12517, 1.0
  %v12524 = vadd.f32 %v12519, 1.0
  %v12525 = vadd.f32 %v12521, 1.0
  %v12526 = vrcp.pop %v12522
  %v12527 = vmul.f32 1.0, %v12526
  %v12528 = vrcp.pop %v12523
  %v12529 = vmul.f32 1.0, %v12528
  %v12530 = vrcp.pop %v12524
  %v12531 = vmul.f32 1.0, %v12530
  %v12532 = vrcp.pop %v12525
  %v12533 = vmul.f32 1.0, %v12532
  %v12534 = vmul.f32 %v12506, %v12527
  %v12535 = vmul.f32 %v12507, %v12529
  %v12536 = vmul.f32 %v12508, %v12531
  %v12537 = vmul.f32 %v12509, %v12533
  %s12538 = scalar_lea.vmem %s16, 512
  %v12539 = vld [vmem:[%s12538] sm:$0xff]
  %v12540 = vld [vmem:[%s12538 + $0x8] sm:$0xff]
  %v12541 = vld [vmem:[%s12538 + $0x10] sm:$0xff]
  %v12542 = vld [vmem:[%s12538 + $0x18] sm:$0xff]
  %v12543 = vld [vmem:[%s12538 + $0x20] sm:$0xff]
  %v12544 = vld [vmem:[%s12538 + $0x28] sm:$0xff]
  %v12545 = vld [vmem:[%s12538 + $0x30] sm:$0xff]
  %v12546 = vld [vmem:[%s12538 + $0x38] sm:$0xff]
  %v12547 = vld [vmem:[%s12538 + $0x40] sm:$0xff]
  %v12548 = vld [vmem:[%s12538 + $0x48] sm:$0xff]
  %v12549 = vld [vmem:[%s12538 + $0x50] sm:$0xff]
  %v12550 = vld [vmem:[%s12538 + $0x58] sm:$0xff]
  %v12551 = vld [vmem:[%s12538 + $0x60] sm:$0xff]
  %v12552 = vld [vmem:[%s12538 + $0x68] sm:$0xff]
  %v12553 = vld [vmem:[%s12538 + $0x70] sm:$0xff]
  %v12554 = vld [vmem:[%s12538 + $0x78] sm:$0xff]
  %v12555 = vld [vmem:[%s12538 + $0x80] sm:$0xff]
  %v12556 = vld [vmem:[%s12538 + $0x88] sm:$0xff]
  %v12557 = vld [vmem:[%s12538 + $0x90] sm:$0xff]
  %v12558 = vld [vmem:[%s12538 + $0x98] sm:$0xff]
  %v12559 = vld [vmem:[%s12538 + $0xa0] sm:$0xff]
  %v12560 = vld [vmem:[%s12538 + $0xa8] sm:$0xff]
  %v12561 = vld [vmem:[%s12538 + $0xb0] sm:$0xff]
  %v12562 = vld [vmem:[%s12538 + $0xb8] sm:$0xff]
  %v12563 = vld [vmem:[%s12538 + $0xc0] sm:$0xff]
  %v12564 = vld [vmem:[%s12538 + $0xc8] sm:$0xff]
  %v12565 = vld [vmem:[%s12538 + $0xd0] sm:$0xff]
  %v12566 = vld [vmem:[%s12538 + $0xd8] sm:$0xff]
  %v12567 = vld [vmem:[%s12538 + $0xe0] sm:$0xff]
  %v12568 = vld [vmem:[%s12538 + $0xe8] sm:$0xff]
  %v12569 = vld [vmem:[%s12538 + $0xf0] sm:$0xff]
  %v12570 = vld [vmem:[%s12538 + $0xf8] sm:$0xff]
  %v12571 = vld [vmem:[%s17 + $0x2] sm:$0x1]
  %v12572 = vlaneseq
  %v12573 = vshrl.u32 %v12572, 7
  %v12574 = vsub.s32 0, %v12573
  %v12575 = vrot.slane %v12571, %v12574
  %12576 = vmatprep.subr.mxu0 0.0
  %12577 = vmatpush1.msra.mxu0 %v12539
  %12578 = vmatprep.subr.mxu0 0.0
  %12579 = vmatpush1.msra.mxu0 %v12540
  %12580 = vmatprep.subr.mxu0 0.0
  %12581 = vmatpush1.msra.mxu0 %v12541
  %12582 = vmatprep.subr.mxu0 0.0
  %12583 = vmatpush1.msra.mxu0 %v12542
  %12584 = vmatprep.subr.mxu0 0.0
  %12585 = vmatpush1.msra.mxu0 %v12543
  %12586 = vmatprep.subr.mxu0 0.0
  %12587 = vmatpush1.msra.mxu0 %v12544
  %12588 = vmatprep.subr.mxu0 0.0
  %12589 = vmatpush1.msra.mxu0 %v12545
  %12590 = vmatprep.subr.mxu0 0.0
  %12591 = vmatpush1.msra.mxu0 %v12546
  %12592 = vmatprep.subr.mxu0 0.0
  %12593 = vmatpush1.msra.mxu0 %v12547
  %12594 = vmatprep.subr.mxu0 0.0
  %12595 = vmatpush1.msra.mxu0 %v12548
  %12596 = vmatprep.subr.mxu0 0.0
  %12597 = vmatpush1.msra.mxu0 %v12549
  %12598 = vmatprep.subr.mxu0 0.0
  %12599 = vmatpush1.msra.mxu0 %v12550
  %12600 = vmatprep.subr.mxu0 0.0
  %12601 = vmatpush1.msra.mxu0 %v12551
  %12602 = vmatprep.subr.mxu0 0.0
  %12603 = vmatpush1.msra.mxu0 %v12552
  %12604 = vmatprep.subr.mxu0 0.0
  %12605 = vmatpush1.msra.mxu0 %v12553
  %12606 = vmatprep.subr.mxu0 0.0
  %12607 = vmatpush1.msra.mxu0 %v12554
  %12608 = vmatprep.subr.mxu0 0.0
  %12609 = vmatpush1.msra.mxu0 %v12555
  %12610 = vmatprep.subr.mxu0 0.0
  %12611 = vmatpush1.msra.mxu0 %v12556
  %12612 = vmatprep.subr.mxu0 0.0
  %12613 = vmatpush1.msra.mxu0 %v12557
  %12614 = vmatprep.subr.mxu0 0.0
  %12615 = vmatpush1.msra.mxu0 %v12558
  %12616 = vmatprep.subr.mxu0 0.0
  %12617 = vmatpush1.msra.mxu0 %v12559
  %12618 = vmatprep.subr.mxu0 0.0
  %12619 = vmatpush1.msra.mxu0 %v12560
  %12620 = vmatprep.subr.mxu0 0.0
  %12621 = vmatpush1.msra.mxu0 %v12561
  %12622 = vmatprep.subr.mxu0 0.0
  %12623 = vmatpush1.msra.mxu0 %v12562
  %12624 = vmatprep.subr.mxu0 0.0
  %12625 = vmatpush1.msra.mxu0 %v12563
  %12626 = vmatprep.subr.mxu0 0.0
  %12627 = vmatpush1.msra.mxu0 %v12564
  %12628 = vmatprep.subr.mxu0 0.0
  %12629 = vmatpush1.msra.mxu0 %v12565
  %12630 = vmatprep.subr.mxu0 0.0
  %12631 = vmatpush1.msra.mxu0 %v12566
  %12632 = vmatprep.subr.mxu0 0.0
  %12633 = vmatpush1.msra.mxu0 %v12567
  %12634 = vmatprep.subr.mxu0 0.0
  %12635 = vmatpush1.msra.mxu0 %v12568
  %12636 = vmatprep.subr.mxu0 0.0
  %12637 = vmatpush1.msra.mxu0 %v12569
  %12638 = vmatprep.subr.mxu0 0.0
  %12639 = vmatpush1.msra.mxu0 %v12570
  %12640 = vmatprep.mubr.f32.mxu0 %v12535
  %12641 = vmatmul.mubr.f32.gmra.mrb[0].mxu0 %v12534
  %v12642 = vpop.f32.mrb[0].mxu0
  %v12643 = vadd.f32 %v12575, %v12642
  %v12644 = vpop.f32.mrb[0].mxu0
  %12645 = vmatprep.mubr.f32.mxu0 %v12537
  %12646 = vmatmul.mubr.f32.gmra.mrb[0].mxu0 %v12536
  %v12647 = vpop.f32.mrb[0].mxu0
  %v12648 = vadd.f32 %v12575, %v12647
  %v12649 = vpop.f32.mrb[0].mxu0
  %12650 = vdwg.mxu0
  %v12651 = vadd.f32 %v12643, %v8891
  %v12652 = vadd.f32 %v12648, %v8892
  %v12653 = vrot.slane %v12651, 4
  %v12654 = vadd.f32 %v12651, %v12653
  %v12655 = vrot.slane %v12654, 2
  %v12656 = vadd.f32 %v12654, %v12655
  %v12657 = vrot.slane %v12656, 1
  %v12658 = vadd.f32 %v12656, %v12657
  %v12659 = vrot.slane %v12652, 4
  %v12660 = vadd.f32 %v12652, %v12659
  %v12661 = vrot.slane %v12660, 2
  %v12662 = vadd.f32 %v12660, %v12661
  %v12663 = vrot.slane %v12662, 1
  %v12664 = vadd.f32 %v12662, %v12663
  %v12665 = vrcp.pop 8.0
  %v12666 = vmul.f32 %v12658, %v12665
  %v12667 = vmul.f32 %v12664, %v12665
  %v12668 = vld [vmem:[%s18] sm:$0xff]
  %v12669 = vld [vmem:[%s18 + $0x8] sm:$0xff]
  %v12670 = vld [vmem:[%s18 + $0x10] sm:$0xff]
  %v12671 = vld [vmem:[%s18 + $0x18] sm:$0xff]
  %v12672 = vld [vmem:[%s18 + $0x20] sm:$0xff]
  %v12673 = vld [vmem:[%s18 + $0x28] sm:$0xff]
  %v12674 = vld [vmem:[%s18 + $0x30] sm:$0xff]
  %v12675 = vld [vmem:[%s18 + $0x38] sm:$0xff]
  %v12676 = vld [vmem:[%s18 + $0x40] sm:$0xff]
  %v12677 = vld [vmem:[%s18 + $0x48] sm:$0xff]
  %v12678 = vld [vmem:[%s18 + $0x50] sm:$0xff]
  %v12679 = vld [vmem:[%s18 + $0x58] sm:$0xff]
  %v12680 = vld [vmem:[%s18 + $0x60] sm:$0xff]
  %v12681 = vld [vmem:[%s18 + $0x68] sm:$0xff]
  %v12682 = vld [vmem:[%s18 + $0x70] sm:$0xff]
  %v12683 = vld [vmem:[%s18 + $0x78] sm:$0xff]
  %v12684 = vld [vmem:[%s19] sm:$0x1]
  %v12686 = vlaneseq
  %v12687 = vshrl.u32 %v12686, 7
  %v12688 = vsub.s32 0, %v12687
  %v12689 = vrot.slane %v12684, %v12688
  %v12693 = vsel %vm3929, %v12667, %v12666
  %12695 = vmatprep.subr.mxu0 0.0
  %12696 = vmatpush1.msra.mxu0 %v12668
  %12697 = vmatprep.subr.mxu0 0.0
  %12698 = vmatpush1.msra.mxu0 %v12669
  %12699 = vmatprep.subr.mxu0 0.0
  %12700 = vmatpush1.msra.mxu0 %v12670
  %12701 = vmatprep.subr.mxu0 0.0
  %12702 = vmatpush1.msra.mxu0 %v12671
  %12703 = vmatprep.subr.mxu0 0.0
  %12704 = vmatpush1.msra.mxu0 %v12672
  %12705 = vmatprep.subr.mxu0 0.0
  %12706 = vmatpush1.msra.mxu0 %v12673
  %12707 = vmatprep.subr.mxu0 0.0
  %12708 = vmatpush1.msra.mxu0 %v12674
  %12709 = vmatprep.subr.mxu0 0.0
  %12710 = vmatpush1.msra.mxu0 %v12675
  %12711 = vmatprep.subr.mxu0 0.0
  %12712 = vmatpush1.msra.mxu0 %v12676
  %12713 = vmatprep.subr.mxu0 0.0
  %12714 = vmatpush1.msra.mxu0 %v12677
  %12715 = vmatprep.subr.mxu0 0.0
  %12716 = vmatpush1.msra.mxu0 %v12678
  %12717 = vmatprep.subr.mxu0 0.0
  %12718 = vmatpush1.msra.mxu0 %v12679
  %12719 = vmatprep.subr.mxu0 0.0
  %12720 = vmatpush1.msra.mxu0 %v12680
  %12721 = vmatprep.subr.mxu0 0.0
  %12722 = vmatpush1.msra.mxu0 %v12681
  %12723 = vmatprep.subr.mxu0 0.0
  %12724 = vmatpush1.msra.mxu0 %v12682
  %12725 = vmatprep.subr.mxu0 0.0
  %12726 = vmatpush1.msra.mxu0 %v12683
  %12727 = vmatprep.subr.mxu0 0.0
  %12728 = vmatpush1.msra.mxu0 0.0
  %12729 = vmatprep.subr.mxu0 0.0
  %12730 = vmatpush1.msra.mxu0 0.0
  %12731 = vmatprep.subr.mxu0 0.0
  %12732 = vmatpush1.msra.mxu0 0.0
  %12733 = vmatprep.subr.mxu0 0.0
  %12734 = vmatpush1.msra.mxu0 0.0
  %12735 = vmatprep.subr.mxu0 0.0
  %12736 = vmatpush1.msra.mxu0 0.0
  %12737 = vmatprep.subr.mxu0 0.0
  %12738 = vmatpush1.msra.mxu0 0.0
  %12739 = vmatprep.subr.mxu0 0.0
  %12740 = vmatpush1.msra.mxu0 0.0
  %12741 = vmatprep.subr.mxu0 0.0
  %12742 = vmatpush1.msra.mxu0 0.0
  %12743 = vmatprep.subr.mxu0 0.0
  %12744 = vmatpush1.msra.mxu0 0.0
  %12745 = vmatprep.subr.mxu0 0.0
  %12746 = vmatpush1.msra.mxu0 0.0
  %12747 = vmatprep.subr.mxu0 0.0
  %12748 = vmatpush1.msra.mxu0 0.0
  %12749 = vmatprep.subr.mxu0 0.0
  %12750 = vmatpush1.msra.mxu0 0.0
  %12751 = vmatprep.subr.mxu0 0.0
  %12752 = vmatpush1.msra.mxu0 0.0
  %12753 = vmatprep.subr.mxu0 0.0
  %12754 = vmatpush1.msra.mxu0 0.0
  %12755 = vmatprep.subr.mxu0 0.0
  %12756 = vmatpush1.msra.mxu0 0.0
  %12757 = vmatprep.subr.mxu0 0.0
  %12758 = vmatpush1.msra.mxu0 0.0
  %12759 = vmatprep.mubr.f32.mxu0 0.0
  %12760 = vmatmul.mubr.f32.gmra.mrb[0].mxu0 %v12693
  %v12761 = vpop.f32.mrb[0].mxu0
  %v12762 = vadd.f32 %v12689, %v12761
  %v12763 = vpop.f32.mrb[0].mxu0
  %12764 = vdwg.mxu0
  %v12765 = vxor.u32 %v12762, 2147483648
  %v12766 = vmul.f32 %v12765, 1.442695
  %v12767 = vpow.pop %v12766
  %v12768 = vadd.f32 %v12767, 1.0
  %v12769 = vrcp.pop %v12768
  %v12770 = vmul.f32 1.0, %v12769
  %v12771 = vmul.f32 %v12762, %v12770
  %v12772 = vld [vmem:[%s20] sm:$0xff]
  %v12773 = vld [vmem:[%s20 + $0x8] sm:$0xff]
  %v12774 = vld [vmem:[%s20 + $0x10] sm:$0xff]
  %v12775 = vld [vmem:[%s20 + $0x18] sm:$0xff]
  %v12776 = vld [vmem:[%s20 + $0x20] sm:$0xff]
  %v12777 = vld [vmem:[%s20 + $0x28] sm:$0xff]
  %v12778 = vld [vmem:[%s20 + $0x30] sm:$0xff]
  %v12779 = vld [vmem:[%s20 + $0x38] sm:$0xff]
  %v12780 = vld [vmem:[%s20 + $0x40] sm:$0xff]
  %v12781 = vld [vmem:[%s20 + $0x48] sm:$0xff]
  %v12782 = vld [vmem:[%s20 + $0x50] sm:$0xff]
  %v12783 = vld [vmem:[%s20 + $0x58] sm:$0xff]
  %v12784 = vld [vmem:[%s20 + $0x60] sm:$0xff]
  %v12785 = vld [vmem:[%s20 + $0x68] sm:$0xff]
  %v12786 = vld [vmem:[%s20 + $0x70] sm:$0xff]
  %v12787 = vld [vmem:[%s20 + $0x78] sm:$0xff]
  %v12788 = vld [vmem:[%s21] sm:$0x1]
  %v12790 = vlaneseq
  %v12791 = vshrl.u32 %v12790, 7
  %v12792 = vsub.s32 0, %v12791
  %v12793 = vrot.slane %v12788, %v12792
  %12795 = vmatprep.subr.mxu0 0.0
  %12796 = vmatpush1.msra.mxu0 %v12772
  %12797 = vmatprep.subr.mxu0 0.0
  %12798 = vmatpush1.msra.mxu0 %v12773
  %12799 = vmatprep.subr.mxu0 0.0
  %12800 = vmatpush1.msra.mxu0 %v12774
  %12801 = vmatprep.subr.mxu0 0.0
  %12802 = vmatpush1.msra.mxu0 %v12775
  %12803 = vmatprep.subr.mxu0 0.0
  %12804 = vmatpush1.msra.mxu0 %v12776
  %12805 = vmatprep.subr.mxu0 0.0
  %12806 = vmatpush1.msra.mxu0 %v12777
  %12807 = vmatprep.subr.mxu0 0.0
  %12808 = vmatpush1.msra.mxu0 %v12778
  %12809 = vmatprep.subr.mxu0 0.0
  %12810 = vmatpush1.msra.mxu0 %v12779
  %12811 = vmatprep.subr.mxu0 0.0
  %12812 = vmatpush1.msra.mxu0 %v12780
  %12813 = vmatprep.subr.mxu0 0.0
  %12814 = vmatpush1.msra.mxu0 %v12781
  %12815 = vmatprep.subr.mxu0 0.0
  %12816 = vmatpush1.msra.mxu0 %v12782
  %12817 = vmatprep.subr.mxu0 0.0
  %12818 = vmatpush1.msra.mxu0 %v12783
  %12819 = vmatprep.subr.mxu0 0.0
  %12820 = vmatpush1.msra.mxu0 %v12784
  %12821 = vmatprep.subr.mxu0 0.0
  %12822 = vmatpush1.msra.mxu0 %v12785
  %12823 = vmatprep.subr.mxu0 0.0
  %12824 = vmatpush1.msra.mxu0 %v12786
  %12825 = vmatprep.subr.mxu0 0.0
  %12826 = vmatpush1.msra.mxu0 %v12787
  %12827 = vmatprep.subr.mxu0 0.0
  %12828 = vmatpush1.msra.mxu0 0.0
  %12829 = vmatprep.subr.mxu0 0.0
  %12830 = vmatpush1.msra.mxu0 0.0
  %12831 = vmatprep.subr.mxu0 0.0
  %12832 = vmatpush1.msra.mxu0 0.0
  %12833 = vmatprep.subr.mxu0 0.0
  %12834 = vmatpush1.msra.mxu0 0.0
  %12835 = vmatprep.subr.mxu0 0.0
  %12836 = vmatpush1.msra.mxu0 0.0
  %12837 = vmatprep.subr.mxu0 0.0
  %12838 = vmatpush1.msra.mxu0 0.0
  %12839 = vmatprep.subr.mxu0 0.0
  %12840 = vmatpush1.msra.mxu0 0.0
  %12841 = vmatprep.subr.mxu0 0.0
  %12842 = vmatpush1.msra.mxu0 0.0
  %12843 = vmatprep.subr.mxu0 0.0
  %12844 = vmatpush1.msra.mxu0 0.0
  %12845 = vmatprep.subr.mxu0 0.0
  %12846 = vmatpush1.msra.mxu0 0.0
  %12847 = vmatprep.subr.mxu0 0.0
  %12848 = vmatpush1.msra.mxu0 0.0
  %12849 = vmatprep.subr.mxu0 0.0
  %12850 = vmatpush1.msra.mxu0 0.0
  %12851 = vmatprep.subr.mxu0 0.0
  %12852 = vmatpush1.msra.mxu0 0.0
  %12853 = vmatprep.subr.mxu0 0.0
  %12854 = vmatpush1.msra.mxu0 0.0
  %12855 = vmatprep.subr.mxu0 0.0
  %12856 = vmatpush1.msra.mxu0 0.0
  %12857 = vmatprep.subr.mxu0 0.0
  %12858 = vmatpush1.msra.mxu0 0.0
  %12859 = vmatprep.mubr.f32.mxu0 0.0
  %12860 = vmatmul.mubr.f32.gmra.mrb[0].mxu0 %v12771
  %v12861 = vpop.f32.mrb[0].mxu0
  %v12862 = vadd.f32 %v12793, %v12861
  %v12863 = vpop.f32.mrb[0].mxu0
  %12864 = vdwg.mxu0
  %v12867 = vunpack.c.l.s4 1966171168
  %v12868 = vunpack.c.0.s8 %v12867
  %v12869 = vlaneseq
  %v12870 = vshrl.u32 %v12869, 7
  %v12871 = vsub.s32 %v12868, %v12870
  %v12872 = vrot.slane %v12862, %v12871
  %v12873 = vcombine.high %v12872, %v12872
  %v12875 = vunpack.c.l.s4 1966171168
  %v12876 = vunpack.c.0.s8 %v12875
  %v12877 = vlaneseq
  %v12878 = vshrl.u32 %v12877, 7
  %v12879 = vsub.s32 %v12876, %v12878
  %v12880 = vrot.slane %v12872, %v12879
  %v12882 = vunpack.c.l.s4 1966171168
  %v12883 = vunpack.c.0.s8 %v12882
  %v12884 = vlaneseq
  %v12885 = vshrl.u32 %v12884, 7
  %v12886 = vsub.s32 %v12883, %v12885
  %v12887 = vrot.slane %v12873, %v12886
  %12890 = vst [vmem:[%s22] sm:$0x1] %v12880
  %12891 = vst [vmem:[%s22 + $0x1] sm:$0x1] %v12887
  // Predicated region
  $region90: #{quadrupole_predictor_egnn.1} parent=0 // pred_check
    _
  $region91: #{quadrupole_predictor_egnn.1} parent=0 // pred_check_branch
    %12893 = sbr.rel (0) target = $region93
  $region92: #{quadrupole_predictor_egnn.1} parent=0 // pred_region
    _
  $region93: #{quadrupole_predictor_egnn.1} parent=0 // pred_fallthru
    _
  // Predicated region
  $region94: #{quadrupole_predictor_egnn.1} parent=0 // pred_check
    _
  $region95: #{quadrupole_predictor_egnn.1} parent=0 // pred_check_branch
    %12895 = sbr.rel (0) target = $region97
  $region96: #{quadrupole_predictor_egnn.1} parent=0 // pred_region
    _
  $region97: #{quadrupole_predictor_egnn.1} parent=0 // pred_fallthru
    _

</llo_original>
